<compile_context>
chip_gen: v7x
topology: tpu7x:2x2x1
jax: 0.10.0
libtpu: 0.0.40
codegen_flags: <defaults>
</compile_context>

<pallas_src>
import functools

import jax
import jax.numpy as jnp
from jax.experimental import pallas as pl
from jax.experimental.pallas import tpu as pltpu

BN_EPS = 1e-5
_VMEM_LIMIT_CACHE = []


def _vmem_limit_bytes():
    """~3/4 of physical VMEM: ≈96 MiB on v5e/v6e (128 MiB), ≈48 MiB on v7x."""
    if not _VMEM_LIMIT_CACHE:
        try:
            cap = int(pltpu.get_tpu_info().vmem_capacity_bytes)
        except Exception:  # unknown backend / interpret mode
            cap = 64 * 1024 * 1024
        _VMEM_LIMIT_CACHE.append(min(cap * 3 // 4, 100 * 1024 * 1024))
    return _VMEM_LIMIT_CACHE[0]


def _pick_tile(dim, preferred, min_blocks=1):
    for t in preferred:
        if t <= dim and dim % t == 0 and dim // t >= min_blocks:
            return t
    return dim  # fall back to the full (untiled) extent


def _fold_bn(bias, gamma, beta, mean, var):
    """Return (scale, fused_bias) so that BN(x + bias) == x * scale + fused_bias."""
    scale = gamma * jax.lax.rsqrt(var + BN_EPS)
    return scale, (bias - mean) * scale + beta


# ---------------------------------------------------------------------------
# Kernel 1: 3x3 conv (stride 1, pad 1) + folded BN + ReLU.
# Grid: (B, Co_tiles, Cin_tiles); Cin is the innermost reduction axis.
# ---------------------------------------------------------------------------
def _conv3x3_bn_act_kernel(x_ref, w_ref, b_ref, o_ref, *scratch,
                           width, n, nk, relu, stack):
    tk = x_ref.shape[-1]
    tn = o_ref.shape[-1]

    # Boundary masks for the dx=0 / dx=2 tap groups (kill the horizontal wrap
    # of the flat shift).  Applied to the per-group matmul OUTPUT: row scaling
    # commutes with the matmul, so the cost is two (n, tn) f32 multiplies per
    # grid step and no lane-width-1 input streams.
    col = jax.lax.broadcasted_iota(jnp.int32, (n, 1), 0) % width
    mask_l = (col >= 1).astype(jnp.float32)
    mask_r = (col <= width - 2).astype(jnp.float32)

    def dx_group(dx):
        if stack:
            # K-stack the 3 dy taps: one MXU call with K = 3*tk.
            xs = jnp.concatenate(
                [x_ref[0, pl.ds(dy * width + dx, n), :] for dy in range(3)],
                axis=-1)                                         # (n, 3*tk) bf16
            return jnp.dot(xs, w_ref[0, dx],                     # (3*tk, tn)
                           preferred_element_type=jnp.float32)
        # Fallback (channels not lane-aligned): 3 separate dots, summed locally.
        wd = w_ref[dx]                                           # (3, tk, tn)
        out = jnp.dot(x_ref[0, pl.ds(dx, n), :], wd[0],
                      preferred_element_type=jnp.float32)
        for dy in (1, 2):
            out = out + jnp.dot(x_ref[0, pl.ds(dy * width + dx, n), :], wd[dy],
                                preferred_element_type=jnp.float32)
        return out

    local = mask_l * dx_group(0) + dx_group(1) + mask_r * dx_group(2)

    def _finish(acc):
        y = acc + b_ref[...]
        if relu:
            y = jnp.maximum(y, 0.0)
        o_ref[0] = y.astype(o_ref.dtype)

    if nk == 1:
        _finish(local)                     # no accumulator round-trip needed
    else:
        acc_ref = scratch[0]
        k = pl.program_id(2)

        @pl.when(k == 0)
        def _():
            acc_ref[...] = local

        @pl.when(k > 0)
        def _():
            acc_ref[...] = acc_ref[...] + local

        @pl.when(k == nk - 1)
        def _():
            _finish(acc_ref[...])


def conv3x3_bn_relu(x_flat, w_hwio, bias, gamma, beta, mean, var, *,
                    height, width, out_dtype=jnp.bfloat16, relu=True):
    """Conv2d(k=3, pad=1) + inference BN + ReLU over (B, H*W, Cin) -> (B, H*W, Co)."""
    B, N, Cin = x_flat.shape
    Co = w_hwio.shape[-1]
    assert N == height * width

    # Fold BN into the conv weight / bias; reorder to (dx, dy, Cin, Co).
    scale, fbias = _fold_bn(bias, gamma, beta, mean, var)
    w_dxdy = jnp.transpose(w_hwio * scale, (1, 0, 2, 3)).astype(jnp.bfloat16)
    fbias = fbias.reshape(1, Co).astype(jnp.float32)

    # bf16 end-to-end; zero-pad the flat spatial axis so every tap is in bounds.
    pad = width + 1
    xpad = jnp.pad(x_flat.astype(jnp.bfloat16), ((0, 0), (pad, pad), (0, 0)))
    npad = N + 2 * pad

    tk = _pick_tile(Cin, (256, 128))     # lane-aligned K tiles (or full Cin)
    tn = Co                              # full Co: x is streamed only once
    nk = Cin // tk
    stack = (tk % 128 == 0)              # K-stack dy taps when lane-aligned

    if stack:
        # (dx, dy, Cin, Co) -> (nk, dx, 3*tk, Co): the kernel reads the whole
        # stacked-K weight slab for a dx group without any in-kernel reshape.
        w_k = (w_dxdy.reshape(3, 3, nk, tk, Co)
               .transpose(2, 0, 1, 3, 4)
               .reshape(nk, 3, 3 * tk, Co))
        w_spec = pl.BlockSpec((1, 3, 3 * tk, tn), lambda b, j, k: (k, 0, 0, j))
    else:
        w_k = w_dxdy                     # (3, 3, Cin, Co)
        w_spec = pl.BlockSpec((3, 3, tk, tn), lambda b, j, k: (0, 0, k, j))

    kernel = functools.partial(_conv3x3_bn_act_kernel, width=width, n=N,
                               nk=nk, relu=relu, stack=stack)
    scratch = [pltpu.VMEM((N, tn), jnp.float32)] if nk > 1 else []
    flops = 2 * B * N * 9 * Cin * Co
    bytes_accessed = B * npad * Cin * 2 + 9 * Cin * Co * 2 + B * N * Co * 2
    return pl.pallas_call(
        kernel,
        out_shape=jax.ShapeDtypeStruct((B, N, Co), out_dtype),
        grid=(B, Co // tn, nk),
        in_specs=[
            pl.BlockSpec((1, npad, tk), lambda b, j, k: (b, 0, k)),
            w_spec,
            pl.BlockSpec((1, tn), lambda b, j, k: (0, j)),
        ],
        out_specs=pl.BlockSpec((1, N, tn), lambda b, j, k: (b, 0, j)),
        scratch_shapes=scratch,
        compiler_params=pltpu.CompilerParams(
            dimension_semantics=("parallel", "parallel", "arbitrary"),
            vmem_limit_bytes=_vmem_limit_bytes()),
        cost_estimate=pl.CostEstimate(flops=int(flops), transcendentals=0,
                                      bytes_accessed=int(bytes_accessed)),
    )(xpad, w_k, fbias)


# ---------------------------------------------------------------------------
# Kernel 2: tiled matmul + bias (+ ReLU on the first `relu_cols` out columns).
# ---------------------------------------------------------------------------
def _matmul_bias_act_kernel(x_ref, w_ref, b_ref, o_ref, *scratch,
                            nk, n_cols, relu_cols):
    part = jnp.dot(x_ref[...], w_ref[...], preferred_element_type=jnp.float32)
    tn = o_ref.shape[-1]

    def _finish(acc):
        y = acc + b_ref[...]
        if relu_cols >= n_cols:                 # ReLU on every output column
            y = jnp.maximum(y, 0.0)
        elif relu_cols > 0:                     # ReLU on leading columns only
            col = (pl.program_id(1) * tn
                   + jax.lax.broadcasted_iota(jnp.int32, (1, tn), 1))
            y = jnp.where(col < relu_cols, jnp.maximum(y, 0.0), y)
        o_ref[...] = y.astype(o_ref.dtype)

    if nk == 1:
        _finish(part)                           # skip the f32 accumulator
    else:
        acc_ref = scratch[0]
        k = pl.program_id(2)

        @pl.when(k == 0)
        def _():
            acc_ref[...] = part

        @pl.when(k > 0)
        def _():
            acc_ref[...] = acc_ref[...] + part

        @pl.when(k == nk - 1)
        def _():
            _finish(acc_ref[...])


def matmul_bias_act(x, w, bias, *, relu_cols=0, out_dtype=jnp.bfloat16):
    M, K = x.shape
    K2, N = w.shape
    assert K == K2
    # Keep >=2 M-blocks so v7x megacore has something to shard.
    tm = _pick_tile(M, (1024, 512, 256, 128), min_blocks=2)
    tn = _pick_tile(N, (512, 256, 128))
    tk = _pick_tile(K, (512, 256, 128))
    nk = K // tk

    kernel = functools.partial(_matmul_bias_act_kernel, nk=nk, n_cols=N,
                               relu_cols=relu_cols)
    scratch = [pltpu.VMEM((tm, tn), jnp.float32)] if nk > 1 else []
    return pl.pallas_call(
        kernel,
        out_shape=jax.ShapeDtypeStruct((M, N), out_dtype),
        grid=(M // tm, N // tn, nk),
        in_specs=[
            pl.BlockSpec((tm, tk), lambda i, j, k: (i, k)),
            pl.BlockSpec((tk, tn), lambda i, j, k: (k, j)),
            pl.BlockSpec((1, tn), lambda i, j, k: (0, j)),
        ],
        out_specs=pl.BlockSpec((tm, tn), lambda i, j, k: (i, j)),
        scratch_shapes=scratch,
        compiler_params=pltpu.CompilerParams(
            dimension_semantics=("parallel", "parallel", "arbitrary"),
            vmem_limit_bytes=_vmem_limit_bytes()),
        cost_estimate=pl.CostEstimate(
            flops=int(2 * M * N * K), transcendentals=0,
            bytes_accessed=int((M * K + K * N + M * N) * 2)),
    )(x.astype(jnp.bfloat16), w.astype(jnp.bfloat16),
      bias.reshape(1, N).astype(jnp.float32))


# ---------------------------------------------------------------------------
# Kernel 3: self-attention (query == key), flash-style online softmax,
# reading q/k/v directly from the fused (B, N, Ck+Cv) kq|v slab.
# ---------------------------------------------------------------------------
def _flash_attn_kernel(q_ref, k_ref, v_ref, o_ref, m_ref, l_ref, acc_ref):
    ki = pl.program_id(2)

    @pl.when(ki == 0)
    def _init():
        m_ref[...] = jnp.full(m_ref.shape, -jnp.inf, jnp.float32)
        l_ref[...] = jnp.zeros(l_ref.shape, jnp.float32)
        acc_ref[...] = jnp.zeros(acc_ref.shape, jnp.float32)

    q = q_ref[0]                                   # (tq, Ck) bf16 (pre-scaled)
    k = k_ref[0]                                   # (tkv, Ck) bf16
    # NT matmul: contract the feature dim of both operands (no explicit .T).
    s = jax.lax.dot_general(q, k, (((1,), (1,)), ((), ())),
                            preferred_element_type=jnp.float32)   # (tq, tkv)

    m_prev = m_ref[...]
    m_new = jnp.maximum(m_prev, jnp.max(s, axis=-1, keepdims=True))
    alpha = jnp.exp(m_prev - m_new)
    p = jnp.exp(s - m_new)
    l_ref[...] = alpha * l_ref[...] + jnp.sum(p, axis=-1, keepdims=True)
    acc_ref[...] = alpha * acc_ref[...] + jnp.dot(
        p.astype(v_ref.dtype), v_ref[0], preferred_element_type=jnp.float32)
    m_ref[...] = m_new

    @pl.when(ki == pl.num_programs(2) - 1)
    def _finalize():
        inv_l = pl.reciprocal(l_ref[...], approx=True)
        o_ref[0] = (acc_ref[...] * inv_l).astype(o_ref.dtype)


def flash_self_attention(kqv, *, key_channels, value_channels,
                         tq=256, tkv=256, out_dtype=jnp.bfloat16):
    """softmax(kq @ kq^T) @ v with online softmax; kq / v are column slices of
    the fused projection output.  The key_channels**-0.5 softmax scale was
    folded into kq by the caller (as key_channels**-0.25)."""
    B, N, C = kqv.shape
    Ck, Cv = key_channels, value_channels
    assert C == Ck + Cv and Ck == Cv and Ck % 128 == 0, (
        "fused kq|v layout needs Ck == Cv and lane-aligned channels")
    # tkv=256 fills the 256-deep MXU on v6e/v7x (harmless split on v5e).
    tq = _pick_tile(N, (tq, 128, 64, 8))
    tkv = _pick_tile(N, (tkv, 128, 64, 8))
    return pl.pallas_call(
        _flash_attn_kernel,
        out_shape=jax.ShapeDtypeStruct((B, N, Cv), out_dtype),
        grid=(B, N // tq, N // tkv),
        in_specs=[
            pl.BlockSpec((1, tq, Ck), lambda b, qi, ki: (b, qi, 0)),   # query
            pl.BlockSpec((1, tkv, Ck), lambda b, qi, ki: (b, ki, 0)),  # key
            pl.BlockSpec((1, tkv, Cv), lambda b, qi, ki: (b, ki, 1)),  # value
        ],
        out_specs=pl.BlockSpec((1, tq, Cv), lambda b, qi, ki: (b, qi, 0)),
        scratch_shapes=[pltpu.VMEM((tq, 1), jnp.float32),
                        pltpu.VMEM((tq, 1), jnp.float32),
                        pltpu.VMEM((tq, Cv), jnp.float32)],
        compiler_params=pltpu.CompilerParams(
            dimension_semantics=("parallel", "parallel", "arbitrary"),
            vmem_limit_bytes=_vmem_limit_bytes()),
        cost_estimate=pl.CostEstimate(
            flops=int(2 * B * N * N * (Ck + Cv)),
            transcendentals=int(B * N * N),
            bytes_accessed=int(3 * B * N * C * 2)),
    )(kqv, kqv, kqv)


# ---------------------------------------------------------------------------
# Forward pass glue (only transposes / reshapes / weight folds live outside
# Pallas).
# ---------------------------------------------------------------------------
def base_oc_forward(x_nchw, p):
    B, Cin, H, W = x_nchw.shape
    N = H * W
    Co = p["w3"].shape[-1]
    Ck = p["wk"].shape[-1]
    Cv = p["wv"].shape[-1]

    # NCHW -> channels-last, spatially flattened (B, H*W, Cin).
    x = jnp.transpose(x_nchw, (0, 2, 3, 1)).reshape(B, N, Cin)

    # 1) Conv2d(Cin, Co, k=3, pad=1) + ActivatedBatchNorm
    y = conv3x3_bn_relu(x, p["w3"], p["b3"], p["g1"], p["be1"], p["mu1"],
                        p["var1"], height=H, width=W)            # (B, N, Co) bf16
    y2 = y.reshape(B * N, Co)

    # 2) BaseOC_Context single stage: SelfAttentionBlock2D (scale=1).
    #    f_key == f_query (Conv1x1 + ABN) and f_value (Conv1x1) fused into one
    #    matmul; ReLU only on the first Ck columns.  The Ck**-0.5 softmax scale
    #    is folded as Ck**-0.25 into the kq columns (valid through the ReLU
    #    because the scale is positive).
    qscale = float(Ck) ** -0.25
    sk, bk = _fold_bn(p["bk"], p["gk"], p["bek"], p["muk"], p["vark"])
    w_kqv = jnp.concatenate([p["wk"] * (sk * qscale), p["wv"]], axis=1)
    b_kqv = jnp.concatenate([bk * qscale, p["bv"]], axis=0)
    kqv = matmul_bias_act(y2, w_kqv, b_kqv, relu_cols=Ck,
                          out_dtype=jnp.bfloat16)                # (B*N, Ck+Cv)

    ctx = flash_self_attention(kqv.reshape(B, N, Ck + Cv),
                               key_channels=Ck, value_channels=Cv)  # (B, N, Cv)

    # 3) W (Conv1x1, Cv->Co) and conv_bn_dropout (Conv1x1 + ABN + Dropout2d
    #    [eval = identity]) have NO nonlinearity between them, so fold them
    #    algebraically into a single matmul:
    #      relu(((ctx@ww + bw) @ wf)*s2 + b2)
    #        == relu(ctx @ (ww @ (wf*s2)) + bw @ (wf*s2) + b2)
    s2, b2 = _fold_bn(p["bf"], p["g2"], p["be2"], p["mu2"], p["var2"])
    wf_s = p["wf"] * s2
    w_out = p["ww"] @ wf_s                                        # (Cv, Co)
    b_out = p["bw"] @ wf_s + b2                                   # (Co,)
    out = matmul_bias_act(ctx.reshape(B * N, Cv), w_out, b_out,
                          relu_cols=Co, out_dtype=jnp.float32)    # (B*N, Co)

    out = out.reshape(B, H, W, Co)
    return jnp.transpose(out, (0, 3, 1, 2))                       # back to NCHW


# ---------------------------------------------------------------------------
# Plain-JAX (f32) reference of the same forward pass, for validation.
# ---------------------------------------------------------------------------
def _bn_relu_ref(x, gamma, beta, mean, var):
    return jnp.maximum((x - mean) * (gamma * jax.lax.rsqrt(var + BN_EPS)) + beta,
                       0.0)


def reference_forward(x_nchw, p):
    x = jnp.transpose(x_nchw, (0, 2, 3, 1)).astype(jnp.float32)
    B, H, W, Cin = x.shape
    Co = p["w3"].shape[-1]
    Ck = p["wk"].shape[-1]
    xp = jnp.pad(x, ((0, 0), (1, 1), (1, 1), (0, 0)))
    y = jnp.zeros((B, H, W, Co), jnp.float32) + p["b3"]
    for dy in range(3):
        for dx in range(3):
            y = y + jnp.einsum("bhwc,co->bhwo",
                               xp[:, dy:dy + H, dx:dx + W, :], p["w3"][dy, dx])
    y = _bn_relu_ref(y, p["g1"], p["be1"], p["mu1"], p["var1"]).reshape(B, H * W, Co)
    kq = _bn_relu_ref(y @ p["wk"] + p["bk"], p["gk"], p["bek"], p["muk"], p["vark"])
    v = y @ p["wv"] + p["bv"]
    sim = jax.nn.softmax(jnp.einsum("bqc,bkc->bqk", kq, kq) * Ck ** -0.5, axis=-1)
    ctx = jnp.einsum("bqk,bkc->bqc", sim, v)
    attn = ctx @ p["ww"] + p["bw"]
    out = _bn_relu_ref(attn @ p["wf"] + p["bf"],
                       p["g2"], p["be2"], p["mu2"], p["var2"])
    return jnp.transpose(out.reshape(B, H, W, Co), (0, 3, 1, 2))


# ---------------------------------------------------------------------------
# Deterministic parameter init (shapes follow the module's __init__).
# ---------------------------------------------------------------------------
def init_params(key, cin, co):
    ck = co // 2
    cv = co // 2
    ks = jax.random.split(key, 24)
    nrm = lambda k, shape, s=0.05: s * jax.random.normal(k, shape, jnp.float32)
    pos = lambda k, shape: 0.5 + jax.random.uniform(k, shape, jnp.float32)
    return {
        # Conv2d(cin, co, 3, pad=1) stored HWIO (3,3,cin,co) + ABN(co)
        "w3": nrm(ks[0], (3, 3, cin, co)), "b3": nrm(ks[1], (co,), 0.1),
        "g1": pos(ks[2], (co,)), "be1": nrm(ks[3], (co,), 0.1),
        "mu1": nrm(ks[4], (co,), 0.1), "var1": pos(ks[5], (co,)),
        # f_key / f_query (shared): Conv1x1(co, ck) + ABN(ck)
        "wk": nrm(ks[6], (co, ck)), "bk": nrm(ks[7], (ck,), 0.1),
        "gk": pos(ks[8], (ck,)), "bek": nrm(ks[9], (ck,), 0.1),
        "muk": nrm(ks[10], (ck,), 0.1), "vark": pos(ks[11], (ck,)),
        # f_value: Conv1x1(co, cv)
        "wv": nrm(ks[12], (co, cv)), "bv": nrm(ks[13], (cv,), 0.1),
        # W: Conv1x1(cv, co).  PyTorch zero-inits this; a small nonzero init is
        # used here so the attention path contributes (documented deviation).
        "ww": nrm(ks[14], (cv, co)), "bw": nrm(ks[15], (co,), 0.05),
        # conv_bn_dropout: Conv1x1(co, co) + ABN(co)
        "wf": nrm(ks[16], (co, co)), "bf": nrm(ks[17], (co,), 0.1),
        "g2": pos(ks[18], (co,)), "be2": nrm(ks[19], (co,), 0.1),
        "mu2": nrm(ks[20], (co,), 0.1), "var2": pos(ks[21], (co,)),
    }


if __name__ == "__main__":
    key = jax.random.PRNGKey(0)
    k_x, k_p = jax.random.split(key)
    # Small, lane-aligned stand-ins for (N, 2048, H, W) -> out_channels=256.
    # Cin=128 exercises the K-stacked conv path (tk % 128 == 0).
    B, Cin, Co, H, W = 2, 128, 256, 16, 16

    x = jax.random.normal(k_x, (B, Cin, H, W), jnp.float32)   # NCHW, like PyTorch
    params = init_params(k_p, Cin, Co)

    fwd = jax.jit(lambda xx: base_oc_forward(xx, params))
    out = jax.block_until_ready(fwd(x))
    assert out.shape == (B, Co, H, W), out.shape
    assert bool(jnp.all(jnp.isfinite(out)))

    # Validate against a plain-JAX f32 reference (bf16 MXU operands => loose tol).
    ref = jax.jit(lambda xx: reference_forward(xx, params))(x)
    err = float(jnp.linalg.norm(out - ref) / (jnp.linalg.norm(ref) + 1e-12))
    assert err < 5e-2, f"relative L2 error too large: {err}"
    print("KERNEL_OK")
</pallas_src>

<mosaic_0001>
module attributes {stable_mosaic.version = 11 : i64} {
  func.func @_conv3x3_bn_act_kernel(%arg0: i32, %arg1: i32, %arg2: i32, %arg3: memref<1x290x128xbf16, #tpu.memory_space<vmem>>, %arg4: memref<1x3x384x256xbf16, #tpu.memory_space<vmem>>, %arg5: memref<1x256xf32, #tpu.memory_space<vmem>>, %arg6: memref<1x256x256xbf16, #tpu.memory_space<vmem>>) attributes {dimension_semantics = [#tpu.dimension_semantics<parallel>, #tpu.dimension_semantics<parallel>, #tpu.dimension_semantics<arbitrary>], iteration_bounds = array<i64: 2, 1, 1>, scalar_prefetch = 0 : i64, scratch_operands = 0 : i64, tpu.core_type = #tpu.core_type<tc>, window_params = [{transform_indices = @transform_0, window_bounds = array<i64: 1, 290, 128>}, {transform_indices = @transform_1, window_bounds = array<i64: 1, 3, 384, 256>}, {transform_indices = @transform_2, window_bounds = array<i64: 1, 256>}, {transform_indices = @transform_3, window_bounds = array<i64: 1, 256, 256>}]} {
    %0 = tpu.iota {dimensions = array<i32: 0>} : vector<256x1xi32>
    %c16_i32 = arith.constant 16 : i32
    %c0_i32 = arith.constant 0 : i32
    %1 = arith.cmpi eq, %c16_i32, %c0_i32 : i32
    %c1_i32 = arith.constant 1 : i32
    %2 = arith.select %1, %c1_i32, %c16_i32 : i32
    %3 = vector.broadcast %2 : i32 to vector<256x1xi32>
    %4 = arith.remsi %0, %3 : vector<256x1xi32>
    %c0_i32_0 = arith.constant 0 : i32
    %5 = vector.broadcast %c0_i32_0 : i32 to vector<256x1xi32>
    %6 = arith.cmpi ne, %4, %5 : vector<256x1xi32>
    %c0_i32_1 = arith.constant 0 : i32
    %7 = vector.broadcast %c0_i32_1 : i32 to vector<256x1xi32>
    %8 = arith.cmpi slt, %4, %7 : vector<256x1xi32>
    %c0_i32_2 = arith.constant 0 : i32
    %9 = arith.cmpi slt, %2, %c0_i32_2 : i32
    %10 = vector.broadcast %9 : i1 to vector<256x1xi1>
    %11 = vector.broadcast %10 : vector<256x1xi1> to vector<256x1xi1>
    %12 = arith.xori %8, %11 : vector<256x1xi1>
    %13 = arith.andi %12, %6 : vector<256x1xi1>
    %14 = vector.broadcast %2 : i32 to vector<256x1xi32>
    %15 = arith.addi %4, %14 : vector<256x1xi32>
    %16 = arith.select %13, %15, %4 : vector<256x1xi1>, vector<256x1xi32>
    %c1_i32_3 = arith.constant 1 : i32
    %17 = vector.broadcast %c1_i32_3 : i32 to vector<256x1xi32>
    %18 = arith.cmpi sge, %16, %17 : vector<256x1xi32>
    %19 = arith.extui %18 : vector<256x1xi1> to vector<256x1xi32>
    %20 = arith.sitofp %19 : vector<256x1xi32> to vector<256x1xf32>
    %c14_i32 = arith.constant 14 : i32
    %21 = vector.broadcast %c14_i32 : i32 to vector<256x1xi32>
    %22 = arith.cmpi sle, %16, %21 : vector<256x1xi32>
    %23 = arith.extui %22 : vector<256x1xi1> to vector<256x1xi32>
    %24 = arith.sitofp %23 : vector<256x1xi32> to vector<256x1xf32>
    %c0 = arith.constant 0 : index
    %c0_4 = arith.constant 0 : index
    %c0_5 = arith.constant 0 : index
    %25 = vector.load %arg3[%c0, %c0_4, %c0_5] : memref<1x290x128xbf16, #tpu.memory_space<vmem>>, vector<1x256x128xbf16>
    %26 = vector.shape_cast %25 : vector<1x256x128xbf16> to vector<256x128xbf16>
    %c0_6 = arith.constant 0 : index
    %c16 = arith.constant 16 : index
    %c0_7 = arith.constant 0 : index
    %27 = vector.load %arg3[%c0_6, %c16, %c0_7] : memref<1x290x128xbf16, #tpu.memory_space<vmem>>, vector<1x256x128xbf16>
    %28 = vector.shape_cast %27 : vector<1x256x128xbf16> to vector<256x128xbf16>
    %c0_8 = arith.constant 0 : index
    %c32 = arith.constant 32 : index
    %c0_9 = arith.constant 0 : index
    %29 = vector.load %arg3[%c0_8, %c32, %c0_9] : memref<1x290x128xbf16, #tpu.memory_space<vmem>>, vector<1x256x128xbf16>
    %30 = vector.shape_cast %29 : vector<1x256x128xbf16> to vector<256x128xbf16>
    %31 = tpu.concatenate %26, %28, %30 in 1 : vector<256x128xbf16>, vector<256x128xbf16>, vector<256x128xbf16> -> vector<256x384xbf16>
    %c0_10 = arith.constant 0 : index
    %c0_11 = arith.constant 0 : index
    %c0_12 = arith.constant 0 : index
    %c0_13 = arith.constant 0 : index
    %32 = vector.load %arg4[%c0_10, %c0_11, %c0_12, %c0_13] : memref<1x3x384x256xbf16, #tpu.memory_space<vmem>>, vector<1x1x384x256xbf16>
    %33 = vector.shape_cast %32 : vector<1x1x384x256xbf16> to vector<384x256xbf16>
    %cst = arith.constant dense<0.000000e+00> : vector<256x256xf32>
    %34 = tpu.matmul %31, %33, %cst {dimension_numbers = #tpu.dot_dimension_numbers<[1], [0], [0], [1], [0, 0, 1, 1], [], []>} : vector<256x384xbf16>, vector<384x256xbf16>, vector<256x256xf32> -> vector<256x256xf32>
    %35 = vector.broadcast %20 : vector<256x1xf32> to vector<256x256xf32>
    %36 = arith.mulf %35, %34 : vector<256x256xf32>
    %c0_14 = arith.constant 0 : index
    %c1 = arith.constant 1 : index
    %c0_15 = arith.constant 0 : index
    %37 = vector.load %arg3[%c0_14, %c1, %c0_15] : memref<1x290x128xbf16, #tpu.memory_space<vmem>>, vector<1x256x128xbf16>
    %38 = vector.shape_cast %37 : vector<1x256x128xbf16> to vector<256x128xbf16>
    %c0_16 = arith.constant 0 : index
    %c17 = arith.constant 17 : index
    %c0_17 = arith.constant 0 : index
    %39 = vector.load %arg3[%c0_16, %c17, %c0_17] : memref<1x290x128xbf16, #tpu.memory_space<vmem>>, vector<1x256x128xbf16>
    %40 = vector.shape_cast %39 : vector<1x256x128xbf16> to vector<256x128xbf16>
    %c0_18 = arith.constant 0 : index
    %c33 = arith.constant 33 : index
    %c0_19 = arith.constant 0 : index
    %41 = vector.load %arg3[%c0_18, %c33, %c0_19] : memref<1x290x128xbf16, #tpu.memory_space<vmem>>, vector<1x256x128xbf16>
    %42 = vector.shape_cast %41 : vector<1x256x128xbf16> to vector<256x128xbf16>
    %43 = tpu.concatenate %38, %40, %42 in 1 : vector<256x128xbf16>, vector<256x128xbf16>, vector<256x128xbf16> -> vector<256x384xbf16>
    %c0_20 = arith.constant 0 : index
    %c1_21 = arith.constant 1 : index
    %c0_22 = arith.constant 0 : index
    %c0_23 = arith.constant 0 : index
    %44 = vector.load %arg4[%c0_20, %c1_21, %c0_22, %c0_23] : memref<1x3x384x256xbf16, #tpu.memory_space<vmem>>, vector<1x1x384x256xbf16>
    %45 = vector.shape_cast %44 : vector<1x1x384x256xbf16> to vector<384x256xbf16>
    %cst_24 = arith.constant dense<0.000000e+00> : vector<256x256xf32>
    %46 = tpu.matmul %43, %45, %cst_24 {dimension_numbers = #tpu.dot_dimension_numbers<[1], [0], [0], [1], [0, 0, 1, 1], [], []>} : vector<256x384xbf16>, vector<384x256xbf16>, vector<256x256xf32> -> vector<256x256xf32>
    %47 = arith.addf %36, %46 : vector<256x256xf32>
    %c0_25 = arith.constant 0 : index
    %c2 = arith.constant 2 : index
    %c0_26 = arith.constant 0 : index
    %48 = vector.load %arg3[%c0_25, %c2, %c0_26] : memref<1x290x128xbf16, #tpu.memory_space<vmem>>, vector<1x256x128xbf16>
    %49 = vector.shape_cast %48 : vector<1x256x128xbf16> to vector<256x128xbf16>
    %c0_27 = arith.constant 0 : index
    %c18 = arith.constant 18 : index
    %c0_28 = arith.constant 0 : index
    %50 = vector.load %arg3[%c0_27, %c18, %c0_28] : memref<1x290x128xbf16, #tpu.memory_space<vmem>>, vector<1x256x128xbf16>
    %51 = vector.shape_cast %50 : vector<1x256x128xbf16> to vector<256x128xbf16>
    %c0_29 = arith.constant 0 : index
    %c34 = arith.constant 34 : index
    %c0_30 = arith.constant 0 : index
    %52 = vector.load %arg3[%c0_29, %c34, %c0_30] : memref<1x290x128xbf16, #tpu.memory_space<vmem>>, vector<1x256x128xbf16>
    %53 = vector.shape_cast %52 : vector<1x256x128xbf16> to vector<256x128xbf16>
    %54 = tpu.concatenate %49, %51, %53 in 1 : vector<256x128xbf16>, vector<256x128xbf16>, vector<256x128xbf16> -> vector<256x384xbf16>
    %c0_31 = arith.constant 0 : index
    %c2_32 = arith.constant 2 : index
    %c0_33 = arith.constant 0 : index
    %c0_34 = arith.constant 0 : index
    %55 = vector.load %arg4[%c0_31, %c2_32, %c0_33, %c0_34] : memref<1x3x384x256xbf16, #tpu.memory_space<vmem>>, vector<1x1x384x256xbf16>
    %56 = vector.shape_cast %55 : vector<1x1x384x256xbf16> to vector<384x256xbf16>
    %cst_35 = arith.constant dense<0.000000e+00> : vector<256x256xf32>
    %57 = tpu.matmul %54, %56, %cst_35 {dimension_numbers = #tpu.dot_dimension_numbers<[1], [0], [0], [1], [0, 0, 1, 1], [], []>} : vector<256x384xbf16>, vector<384x256xbf16>, vector<256x256xf32> -> vector<256x256xf32>
    %58 = vector.broadcast %24 : vector<256x1xf32> to vector<256x256xf32>
    %59 = arith.mulf %58, %57 : vector<256x256xf32>
    %60 = arith.addf %47, %59 : vector<256x256xf32>
    %c0_36 = arith.constant 0 : index
    %c0_37 = arith.constant 0 : index
    %61 = vector.load %arg5[%c0_36, %c0_37] : memref<1x256xf32, #tpu.memory_space<vmem>>, vector<1x256xf32>
    %62 = vector.broadcast %61 : vector<1x256xf32> to vector<256x256xf32>
    %63 = arith.addf %60, %62 : vector<256x256xf32>
    %cst_38 = arith.constant 0.000000e+00 : f32
    %64 = vector.broadcast %cst_38 : f32 to vector<256x256xf32>
    %65 = arith.maximumf %63, %64 : vector<256x256xf32>
    %66 = arith.truncf %65 : vector<256x256xf32> to vector<256x256xbf16>
    %c0_39 = arith.constant 0 : index
    %c0_40 = arith.constant 0 : index
    %c0_41 = arith.constant 0 : index
    %67 = vector.load %arg6[%c0_39, %c0_40, %c0_41] : memref<1x256x256xbf16, #tpu.memory_space<vmem>>, vector<1x256x256xbf16>
    %68 = vector.shape_cast %67 : vector<1x256x256xbf16> to vector<256x256xbf16>
    %69 = vector.shape_cast %66 : vector<256x256xbf16> to vector<1x256x256xbf16>
    tpu.vector_store %arg6[%c0_39, %c0_40, %c0_41], %69 {strides = array<i32>} : memref<1x256x256xbf16, #tpu.memory_space<vmem>>, vector<1x256x256xbf16>,
    return
  }
  func.func @transform_0(%arg0: i32, %arg1: i32, %arg2: i32) -> (i32, i32, i32) {
    %c0_i32 = arith.constant 0 : i32
    %c0_i32_0 = arith.constant 0 : i32
    return %arg0, %c0_i32, %arg2 : i32, i32, i32
  }
  func.func @transform_1(%arg0: i32, %arg1: i32, %arg2: i32) -> (i32, i32, i32, i32) {
    %c0_i32 = arith.constant 0 : i32
    %c0_i32_0 = arith.constant 0 : i32
    %c0_i32_1 = arith.constant 0 : i32
    return %arg2, %c0_i32, %c0_i32_0, %arg1 : i32, i32, i32, i32
  }
  func.func @transform_2(%arg0: i32, %arg1: i32, %arg2: i32) -> (i32, i32) {
    %c0_i32 = arith.constant 0 : i32
    %c0_i32_0 = arith.constant 0 : i32
    return %c0_i32, %arg1 : i32, i32
  }
  func.func @transform_3(%arg0: i32, %arg1: i32, %arg2: i32) -> (i32, i32, i32) {
    %c0_i32 = arith.constant 0 : i32
    %c0_i32_0 = arith.constant 0 : i32
    return %arg0, %c0_i32, %arg1 : i32, i32, i32
  }
}

module attributes {stable_mosaic.version = 11 : i64} {
  func.func @_matmul_bias_act_kernel(%arg0: i32, %arg1: i32, %arg2: i32, %arg3: memref<256x256xbf16, #tpu.memory_space<vmem>>, %arg4: memref<256x256xbf16, #tpu.memory_space<vmem>>, %arg5: memref<1x256xf32, #tpu.memory_space<vmem>>, %arg6: memref<256x256xbf16, #tpu.memory_space<vmem>>) attributes {dimension_semantics = [#tpu.dimension_semantics<parallel>, #tpu.dimension_semantics<parallel>, #tpu.dimension_semantics<arbitrary>], iteration_bounds = array<i64: 2, 1, 1>, scalar_prefetch = 0 : i64, scratch_operands = 0 : i64, tpu.core_type = #tpu.core_type<tc>, window_params = [{transform_indices = @transform_0, window_bounds = array<i64: 256, 256>}, {transform_indices = @transform_1, window_bounds = array<i64: 256, 256>}, {transform_indices = @transform_2, window_bounds = array<i64: 1, 256>}, {transform_indices = @transform_3, window_bounds = array<i64: 256, 256>}]} {
    %c0 = arith.constant 0 : index
    %c0_0 = arith.constant 0 : index
    %0 = vector.load %arg3[%c0, %c0_0] : memref<256x256xbf16, #tpu.memory_space<vmem>>, vector<256x256xbf16>
    %c0_1 = arith.constant 0 : index
    %c0_2 = arith.constant 0 : index
    %1 = vector.load %arg4[%c0_1, %c0_2] : memref<256x256xbf16, #tpu.memory_space<vmem>>, vector<256x256xbf16>
    %cst = arith.constant dense<0.000000e+00> : vector<256x256xf32>
    %2 = tpu.matmul %0, %1, %cst {dimension_numbers = #tpu.dot_dimension_numbers<[1], [0], [0], [1], [0, 0, 1, 1], [], []>} : vector<256x256xbf16>, vector<256x256xbf16>, vector<256x256xf32> -> vector<256x256xf32>
    %c0_3 = arith.constant 0 : index
    %c0_4 = arith.constant 0 : index
    %3 = vector.load %arg5[%c0_3, %c0_4] : memref<1x256xf32, #tpu.memory_space<vmem>>, vector<1x256xf32>
    %4 = vector.broadcast %3 : vector<1x256xf32> to vector<256x256xf32>
    %5 = arith.addf %2, %4 : vector<256x256xf32>
    %c256_i32 = arith.constant 256 : i32
    %6 = arith.muli %arg1, %c256_i32 : i32
    %7 = tpu.iota {dimensions = array<i32: 1>} : vector<1x256xi32>
    %8 = vector.broadcast %6 : i32 to vector<1x256xi32>
    %9 = arith.addi %8, %7 : vector<1x256xi32>
    %c128_i32 = arith.constant 128 : i32
    %10 = vector.broadcast %c128_i32 : i32 to vector<1x256xi32>
    %11 = arith.cmpi slt, %9, %10 : vector<1x256xi32>
    %cst_5 = arith.constant 0.000000e+00 : f32
    %12 = vector.broadcast %cst_5 : f32 to vector<256x256xf32>
    %13 = arith.maximumf %5, %12 : vector<256x256xf32>
    %14 = vector.shape_cast %11 : vector<1x256xi1> to vector<1x256xi1>
    %15 = vector.broadcast %14 : vector<1x256xi1> to vector<256x256xi1>
    %16 = arith.select %15, %13, %5 : vector<256x256xi1>, vector<256x256xf32>
    %17 = arith.truncf %16 : vector<256x256xf32> to vector<256x256xbf16>
    %c0_6 = arith.constant 0 : index
    %c0_7 = arith.constant 0 : index
    %18 = vector.load %arg6[%c0_6, %c0_7] : memref<256x256xbf16, #tpu.memory_space<vmem>>, vector<256x256xbf16>
    tpu.vector_store %arg6[%c0_6, %c0_7], %17 {strides = array<i32>} : memref<256x256xbf16, #tpu.memory_space<vmem>>, vector<256x256xbf16>,
    return
  }
  func.func @transform_0(%arg0: i32, %arg1: i32, %arg2: i32) -> (i32, i32) {
    %c0_i32 = arith.constant 0 : i32
    return %arg0, %arg2 : i32, i32
  }
  func.func @transform_1(%arg0: i32, %arg1: i32, %arg2: i32) -> (i32, i32) {
    %c0_i32 = arith.constant 0 : i32
    return %arg2, %arg1 : i32, i32
  }
  func.func @transform_2(%arg0: i32, %arg1: i32, %arg2: i32) -> (i32, i32) {
    %c0_i32 = arith.constant 0 : i32
    %c0_i32_0 = arith.constant 0 : i32
    return %c0_i32, %arg1 : i32, i32
  }
  func.func @transform_3(%arg0: i32, %arg1: i32, %arg2: i32) -> (i32, i32) {
    %c0_i32 = arith.constant 0 : i32
    return %arg0, %arg1 : i32, i32
  }
}

module attributes {stable_mosaic.version = 11 : i64} {
  func.func @_flash_attn_kernel(%arg0: i32, %arg1: i32, %arg2: i32, %arg3: memref<1x256x128xbf16, #tpu.memory_space<vmem>>, %arg4: memref<1x256x128xbf16, #tpu.memory_space<vmem>>, %arg5: memref<1x256x128xbf16, #tpu.memory_space<vmem>>, %arg6: memref<1x256x128xbf16, #tpu.memory_space<vmem>>, %arg7: memref<256x1xf32, #tpu.memory_space<vmem>>, %arg8: memref<256x1xf32, #tpu.memory_space<vmem>>, %arg9: memref<256x128xf32, #tpu.memory_space<vmem>>) attributes {dimension_semantics = [#tpu.dimension_semantics<parallel>, #tpu.dimension_semantics<parallel>, #tpu.dimension_semantics<arbitrary>], iteration_bounds = array<i64: 2, 1, 1>, scalar_prefetch = 0 : i64, scratch_operands = 3 : i64, tpu.core_type = #tpu.core_type<tc>, window_params = [{transform_indices = @transform_0, window_bounds = array<i64: 1, 256, 128>}, {transform_indices = @transform_1, window_bounds = array<i64: 1, 256, 128>}, {transform_indices = @transform_2, window_bounds = array<i64: 1, 256, 128>}, {transform_indices = @transform_3, window_bounds = array<i64: 1, 256, 128>}]} {
    %c0_i32 = arith.constant 0 : i32
    %0 = arith.cmpi eq, %arg2, %c0_i32 : i32
    %1 = arith.extui %0 : i1 to i32
    %c0_i32_0 = arith.constant 0 : i32
    %2 = arith.cmpi ne, %1, %c0_i32_0 : i32
    scf.if %2 {
      %cst_26 = arith.constant 0xFF800000 : f32
      %36 = vector.broadcast %cst_26 : f32 to vector<256x1xf32>
      %c0_27 = arith.constant 0 : index
      %c0_28 = arith.constant 0 : index
      %37 = vector.load %arg7[%c0_27, %c0_28] : memref<256x1xf32, #tpu.memory_space<vmem>>, vector<256x1xf32>
      tpu.vector_store %arg7[%c0_27, %c0_28], %36 {strides = array<i32>} : memref<256x1xf32, #tpu.memory_space<vmem>>, vector<256x1xf32>,
      %cst_29 = arith.constant 0.000000e+00 : f32
      %38 = vector.broadcast %cst_29 : f32 to vector<256x1xf32>
      %c0_30 = arith.constant 0 : index
      %c0_31 = arith.constant 0 : index
      %39 = vector.load %arg8[%c0_30, %c0_31] : memref<256x1xf32, #tpu.memory_space<vmem>>, vector<256x1xf32>
      tpu.vector_store %arg8[%c0_30, %c0_31], %38 {strides = array<i32>} : memref<256x1xf32, #tpu.memory_space<vmem>>, vector<256x1xf32>,
      %cst_32 = arith.constant 0.000000e+00 : f32
      %40 = vector.broadcast %cst_32 : f32 to vector<256x128xf32>
      %c0_33 = arith.constant 0 : index
      %c0_34 = arith.constant 0 : index
      %41 = vector.load %arg9[%c0_33, %c0_34] : memref<256x128xf32, #tpu.memory_space<vmem>>, vector<256x128xf32>
      tpu.vector_store %arg9[%c0_33, %c0_34], %40 {strides = array<i32>} : memref<256x128xf32, #tpu.memory_space<vmem>>, vector<256x128xf32>,
    } else {
    }
    %c0 = arith.constant 0 : index
    %c0_1 = arith.constant 0 : index
    %c0_2 = arith.constant 0 : index
    %3 = vector.load %arg3[%c0, %c0_1, %c0_2] : memref<1x256x128xbf16, #tpu.memory_space<vmem>>, vector<1x256x128xbf16>
    %4 = vector.shape_cast %3 : vector<1x256x128xbf16> to vector<256x128xbf16>
    %c0_3 = arith.constant 0 : index
    %c0_4 = arith.constant 0 : index
    %c0_5 = arith.constant 0 : index
    %5 = vector.load %arg4[%c0_3, %c0_4, %c0_5] : memref<1x256x128xbf16, #tpu.memory_space<vmem>>, vector<1x256x128xbf16>
    %6 = vector.shape_cast %5 : vector<1x256x128xbf16> to vector<256x128xbf16>
    %cst = arith.constant dense<0.000000e+00> : vector<256x256xf32>
    %7 = tpu.matmul %4, %6, %cst {dimension_numbers = #tpu.dot_dimension_numbers<[1], [1], [0], [0], [0, 0, 1, 0], [], []>} : vector<256x128xbf16>, vector<256x128xbf16>, vector<256x256xf32> -> vector<256x256xf32>
    %c0_6 = arith.constant 0 : index
    %c0_7 = arith.constant 0 : index
    %8 = vector.load %arg7[%c0_6, %c0_7] : memref<256x1xf32, #tpu.memory_space<vmem>>, vector<256x1xf32>
    %cst_8 = arith.constant dense<0xFF800000> : vector<256xf32>
    %9 = vector.multi_reduction <maximumf>, %7, %cst_8 [1] : vector<256x256xf32> to vector<256xf32>
    %10 = vector.shape_cast %9 : vector<256xf32> to vector<256x1xf32>
    %11 = arith.maximumf %8, %10 : vector<256x1xf32>
    %12 = arith.subf %8, %11 : vector<256x1xf32>
    %13 = math.exp %12 : vector<256x1xf32>
    %14 = vector.broadcast %11 : vector<256x1xf32> to vector<256x256xf32>
    %15 = arith.subf %7, %14 : vector<256x256xf32>
    %16 = math.exp %15 : vector<256x256xf32>
    %c0_9 = arith.constant 0 : index
    %c0_10 = arith.constant 0 : index
    %17 = vector.load %arg8[%c0_9, %c0_10] : memref<256x1xf32, #tpu.memory_space<vmem>>, vector<256x1xf32>
    %18 = arith.mulf %13, %17 : vector<256x1xf32>
    %cst_11 = arith.constant dense<0.000000e+00> : vector<256xf32>
    %19 = vector.multi_reduction <add>, %16, %cst_11 [1] : vector<256x256xf32> to vector<256xf32>
    %20 = vector.shape_cast %19 : vector<256xf32> to vector<256x1xf32>
    %21 = arith.addf %18, %20 : vector<256x1xf32>
    %c0_12 = arith.constant 0 : index
    %c0_13 = arith.constant 0 : index
    %22 = vector.load %arg8[%c0_12, %c0_13] : memref<256x1xf32, #tpu.memory_space<vmem>>, vector<256x1xf32>
    tpu.vector_store %arg8[%c0_12, %c0_13], %21 {strides = array<i32>} : memref<256x1xf32, #tpu.memory_space<vmem>>, vector<256x1xf32>,
    %c0_14 = arith.constant 0 : index
    %c0_15 = arith.constant 0 : index
    %23 = vector.load %arg9[%c0_14, %c0_15] : memref<256x128xf32, #tpu.memory_space<vmem>>, vector<256x128xf32>
    %24 = vector.broadcast %13 : vector<256x1xf32> to vector<256x128xf32>
    %25 = arith.mulf %24, %23 : vector<256x128xf32>
    %26 = arith.truncf %16 : vector<256x256xf32> to vector<256x256xbf16>
    %c0_16 = arith.constant 0 : index
    %c0_17 = arith.constant 0 : index
    %c0_18 = arith.constant 0 : index
    %27 = vector.load %arg5[%c0_16, %c0_17, %c0_18] : memref<1x256x128xbf16, #tpu.memory_space<vmem>>, vector<1x256x128xbf16>
    %28 = vector.shape_cast %27 : vector<1x256x128xbf16> to vector<256x128xbf16>
    %cst_19 = arith.constant dense<0.000000e+00> : vector<256x128xf32>
    %29 = tpu.matmul %26, %28, %cst_19 {dimension_numbers = #tpu.dot_dimension_numbers<[1], [0], [0], [1], [0, 0, 1, 1], [], []>} : vector<256x256xbf16>, vector<256x128xbf16>, vector<256x128xf32> -> vector<256x128xf32>
    %30 = arith.addf %25, %29 : vector<256x128xf32>
    %c0_20 = arith.constant 0 : index
    %c0_21 = arith.constant 0 : index
    %31 = vector.load %arg9[%c0_20, %c0_21] : memref<256x128xf32, #tpu.memory_space<vmem>>, vector<256x128xf32>
    tpu.vector_store %arg9[%c0_20, %c0_21], %30 {strides = array<i32>} : memref<256x128xf32, #tpu.memory_space<vmem>>, vector<256x128xf32>,
    %c0_22 = arith.constant 0 : index
    %c0_23 = arith.constant 0 : index
    %32 = vector.load %arg7[%c0_22, %c0_23] : memref<256x1xf32, #tpu.memory_space<vmem>>, vector<256x1xf32>
    tpu.vector_store %arg7[%c0_22, %c0_23], %11 {strides = array<i32>} : memref<256x1xf32, #tpu.memory_space<vmem>>, vector<256x1xf32>,
    %c0_i32_24 = arith.constant 0 : i32
    %33 = arith.cmpi eq, %arg2, %c0_i32_24 : i32
    %34 = arith.extui %33 : i1 to i32
    %c0_i32_25 = arith.constant 0 : i32
    %35 = arith.cmpi ne, %34, %c0_i32_25 : i32
    scf.if %35 {
      %c0_26 = arith.constant 0 : index
      %c0_27 = arith.constant 0 : index
      %36 = vector.load %arg8[%c0_26, %c0_27] : memref<256x1xf32, #tpu.memory_space<vmem>>, vector<256x1xf32>
      %37 = tpu.reciprocal %36 {approx = true} : vector<256x1xf32> -> vector<256x1xf32>
      %c0_28 = arith.constant 0 : index
      %c0_29 = arith.constant 0 : index
      %38 = vector.load %arg9[%c0_28, %c0_29] : memref<256x128xf32, #tpu.memory_space<vmem>>, vector<256x128xf32>
      %39 = vector.broadcast %37 : vector<256x1xf32> to vector<256x128xf32>
      %40 = arith.mulf %38, %39 : vector<256x128xf32>
      %41 = arith.truncf %40 : vector<256x128xf32> to vector<256x128xbf16>
      %c0_30 = arith.constant 0 : index
      %c0_31 = arith.constant 0 : index
      %c0_32 = arith.constant 0 : index
      %42 = vector.load %arg6[%c0_30, %c0_31, %c0_32] : memref<1x256x128xbf16, #tpu.memory_space<vmem>>, vector<1x256x128xbf16>
      %43 = vector.shape_cast %42 : vector<1x256x128xbf16> to vector<256x128xbf16>
      %44 = vector.shape_cast %41 : vector<256x128xbf16> to vector<1x256x128xbf16>
      tpu.vector_store %arg6[%c0_30, %c0_31, %c0_32], %44 {strides = array<i32>} : memref<1x256x128xbf16, #tpu.memory_space<vmem>>, vector<1x256x128xbf16>,
    } else {
    }
    return
  }
  func.func @transform_0(%arg0: i32, %arg1: i32, %arg2: i32) -> (i32, i32, i32) {
    %c0_i32 = arith.constant 0 : i32
    %c0_i32_0 = arith.constant 0 : i32
    return %arg0, %arg1, %c0_i32 : i32, i32, i32
  }
  func.func @transform_1(%arg0: i32, %arg1: i32, %arg2: i32) -> (i32, i32, i32) {
    %c0_i32 = arith.constant 0 : i32
    %c0_i32_0 = arith.constant 0 : i32
    return %arg0, %arg2, %c0_i32 : i32, i32, i32
  }
  func.func @transform_2(%arg0: i32, %arg1: i32, %arg2: i32) -> (i32, i32, i32) {
    %c1_i32 = arith.constant 1 : i32
    %c0_i32 = arith.constant 0 : i32
    return %arg0, %arg2, %c1_i32 : i32, i32, i32
  }
  func.func @transform_3(%arg0: i32, %arg1: i32, %arg2: i32) -> (i32, i32, i32) {
    %c0_i32 = arith.constant 0 : i32
    %c0_i32_0 = arith.constant 0 : i32
    return %arg0, %arg1, %c0_i32 : i32, i32, i32
  }
}

module attributes {stable_mosaic.version = 11 : i64} {
  func.func @_matmul_bias_act_kernel(%arg0: i32, %arg1: i32, %arg2: i32, %arg3: memref<256x128xbf16, #tpu.memory_space<vmem>>, %arg4: memref<128x256xbf16, #tpu.memory_space<vmem>>, %arg5: memref<1x256xf32, #tpu.memory_space<vmem>>, %arg6: memref<256x256xf32, #tpu.memory_space<vmem>>) attributes {dimension_semantics = [#tpu.dimension_semantics<parallel>, #tpu.dimension_semantics<parallel>, #tpu.dimension_semantics<arbitrary>], iteration_bounds = array<i64: 2, 1, 1>, scalar_prefetch = 0 : i64, scratch_operands = 0 : i64, tpu.core_type = #tpu.core_type<tc>, window_params = [{transform_indices = @transform_0, window_bounds = array<i64: 256, 128>}, {transform_indices = @transform_1, window_bounds = array<i64: 128, 256>}, {transform_indices = @transform_2, window_bounds = array<i64: 1, 256>}, {transform_indices = @transform_3, window_bounds = array<i64: 256, 256>}]} {
    %c0 = arith.constant 0 : index
    %c0_0 = arith.constant 0 : index
    %0 = vector.load %arg3[%c0, %c0_0] : memref<256x128xbf16, #tpu.memory_space<vmem>>, vector<256x128xbf16>
    %c0_1 = arith.constant 0 : index
    %c0_2 = arith.constant 0 : index
    %1 = vector.load %arg4[%c0_1, %c0_2] : memref<128x256xbf16, #tpu.memory_space<vmem>>, vector<128x256xbf16>
    %cst = arith.constant dense<0.000000e+00> : vector<256x256xf32>
    %2 = tpu.matmul %0, %1, %cst {dimension_numbers = #tpu.dot_dimension_numbers<[1], [0], [0], [1], [0, 0, 1, 1], [], []>} : vector<256x128xbf16>, vector<128x256xbf16>, vector<256x256xf32> -> vector<256x256xf32>
    %c0_3 = arith.constant 0 : index
    %c0_4 = arith.constant 0 : index
    %3 = vector.load %arg5[%c0_3, %c0_4] : memref<1x256xf32, #tpu.memory_space<vmem>>, vector<1x256xf32>
    %4 = vector.broadcast %3 : vector<1x256xf32> to vector<256x256xf32>
    %5 = arith.addf %2, %4 : vector<256x256xf32>
    %cst_5 = arith.constant 0.000000e+00 : f32
    %6 = vector.broadcast %cst_5 : f32 to vector<256x256xf32>
    %7 = arith.maximumf %5, %6 : vector<256x256xf32>
    %c0_6 = arith.constant 0 : index
    %c0_7 = arith.constant 0 : index
    %8 = vector.load %arg6[%c0_6, %c0_7] : memref<256x256xf32, #tpu.memory_space<vmem>>, vector<256x256xf32>
    tpu.vector_store %arg6[%c0_6, %c0_7], %7 {strides = array<i32>} : memref<256x256xf32, #tpu.memory_space<vmem>>, vector<256x256xf32>,
    return
  }
  func.func @transform_0(%arg0: i32, %arg1: i32, %arg2: i32) -> (i32, i32) {
    %c0_i32 = arith.constant 0 : i32
    return %arg0, %arg2 : i32, i32
  }
  func.func @transform_1(%arg0: i32, %arg1: i32, %arg2: i32) -> (i32, i32) {
    %c0_i32 = arith.constant 0 : i32
    return %arg2, %arg1 : i32, i32
  }
  func.func @transform_2(%arg0: i32, %arg1: i32, %arg2: i32) -> (i32, i32) {
    %c0_i32 = arith.constant 0 : i32
    %c0_i32_0 = arith.constant 0 : i32
    return %c0_i32, %arg1 : i32, i32
  }
  func.func @transform_3(%arg0: i32, %arg1: i32, %arg2: i32) -> (i32, i32) {
    %c0_i32 = arith.constant 0 : i32
    return %arg0, %arg1 : i32, i32
  }
}

</mosaic_0001>

<llo_original>
// kernel: _lambda_.7
$region0: #{_lambda_.7}
  #allocation0 [shape = 'u32[]', space=smem, size = 0x4, offset = 0x4, fixed_abs, tag = 'smem constant byte address 0x4 - core index']
  #allocation1 [shape = 'u32[144,128]{1,0:T(1,128)}', space=vmem, size = 0x12000, scoped, tag = 'internal scratch']
  %s0 = inlined_call_operand.vmem [shape: bf16[512,128], index: 0, kind: input, shape index: {}]
  %s1 = inlined_call_operand.vmem [shape: bf16[128,256], index: 1, kind: input, shape index: {}]
  %s2 = inlined_call_operand.vmem [shape: f32[1,256], index: 2, kind: input, shape index: {}]
  %s3 = inlined_call_operand.hbm [shape: f32[512,256], index: 3, kind: output, shape index: {}]
  %s4 = sld [smem:[#allocation0]]
  $region45: #{_lambda_.7} parent=0
    _
  %s6 = ssub.s32 1, %s4
  %s7 = scalar_select 0, %s6, %s4
  $region1: #{_lambda_.7} parent=0
    #allocation2 [shape = 'u8[524288]{0}', space=vmem, size = 0x80000, scoped, tag = 'output window, operand 0']
    #allocation3 [shape = 's32[2]{0}', space=sflag, size = 0x8, scoped, tag = 'scoped memory for _lambda_.7']
    %8 = vsyncpa [#allocation3], 0
    %s9 = scalar_lea.sflag [#allocation3], 1
    %10 = vsyncpa %s9, 0
    loop: start=0, step=1, limit=4
    $region2: #{_lambda_.7} parent=1 // loop_pre_header
      _
    $region3: #{_lambda_.7} parent=1 // loop_header
      %s12 = sphi 0, %s16
      %p13 = scmp.ge.s32.totalorder %s12, 4
      %s19 = sphi 0, %s38
      %s20 = sphi 0, %s34
      %s21 = sphi 0, %s30
      %s22 = sphi 0, %s19
      %s23 = sphi 0, %s20
      %s24 = sphi 0, %s21
      %s25 = sphi 0, %s22
      %s26 = sphi 0, %s23
      %s27 = sphi 0, %s24
      %s43 = sphi 0, %s45
      %s46 = sphi 0, %s43
      %s47 = sphi 0, %s46
      %s63 = sphi 0, %s47
      %s71 = sphi 0, %s73
      %s74 = sphi 0, %s71
      %s75 = sphi 0, %s74
      %s91 = sphi 0, %s75
      %s97 = sphi 0, %s99
      %s100 = sphi 0, %s97
      %s101 = sphi 0, %s100
      %s117 = sphi 0, %s101
      %s125 = sphi 0, %s127
      %s128 = sphi 0, %s125
      %s129 = sphi 0, %s128
      %s145 = sphi 0, %s129
    $region4: #{_lambda_.7} parent=1 // loop_header_branch
      %15 = sbr.rel (%p13) target = $region8
    $region5: #{_lambda_.7} parent=1 // loop_body
      %s17 = ssub.s32 %s12, 1
      %s18 = ssub.s32 %s12, 2
      %s28 = sadd.s32 1, %s21
      %p29 = scmp.ge.s32.totalorder %s28, 1
      %s30 = scalar_select %p29, 0, %s28
      %s31 = sadd.s32 1, %s20
      %s32 = scalar_select %p29, %s31, %s20
      %p33 = scmp.ge.s32.totalorder %s32, 1
      %s34 = scalar_select %p33, 0, %s32
      %s35 = sadd.s32 1, %s19
      %s36 = scalar_select %p33, %s35, %s19
      %p37 = scmp.ge.s32.totalorder %s36, 2
      %s38 = scalar_select %p37, 0, %s36
      %s39 = ssub.s32 %s19, %s38
      %s40 = ssub.s32 %s21, %s30
      %s41 = sor.u32 %s39, %s40
      %p42 = scmp.eq.s32.totalorder %s41, 0
      %s44 = sadd.s32 %s43, 1
      %s45 = scalar_select %p42, %s43, %s44
      %p48 = pneg %p42
      %p49 = scmp.eq.s32.totalorder %s12, 1
      %p50 = por %p48, %p49
      %p51 = scmp.ne.s32.totalorder %s43, %s46
      %p52 = scmp.eq.s32.totalorder %s12, 0
      %p53 = por %p51, %p52
      %p54 = scmp.ne.s32.totalorder %s43, %s46
      %p55 = scmp.eq.s32.totalorder %s17, 1
      %p56 = por %p54, %p55
      %p57 = scmp.ne.s32.totalorder %s46, %s47
      %p58 = scmp.eq.s32.totalorder %s17, 0
      %p59 = por %p57, %p58
      %p60 = scmp.ne.s32.totalorder %s46, %s47
      %p61 = scmp.eq.s32.totalorder %s18, 1
      %p62 = por %p60, %p61
      %p64 = scmp.ne.s32.totalorder %s47, %s63
      %p65 = scmp.eq.s32.totalorder %s18, 0
      %p66 = por %p64, %p65
      %s67 = ssub.s32 %s21, %s30
      %s68 = ssub.s32 %s20, %s34
      %s69 = sor.u32 %s67, %s68
      %p70 = scmp.eq.s32.totalorder %s69, 0
      %s72 = sadd.s32 %s71, 1
      %s73 = scalar_select %p70, %s71, %s72
      %p76 = pneg %p70
      %p77 = scmp.eq.s32.totalorder %s12, 1
      %p78 = por %p76, %p77
      %p79 = scmp.ne.s32.totalorder %s71, %s74
      %p80 = scmp.eq.s32.totalorder %s12, 0
      %p81 = por %p79, %p80
      %p82 = scmp.ne.s32.totalorder %s71, %s74
      %p83 = scmp.eq.s32.totalorder %s17, 1
      %p84 = por %p82, %p83
      %p85 = scmp.ne.s32.totalorder %s74, %s75
      %p86 = scmp.eq.s32.totalorder %s17, 0
      %p87 = por %p85, %p86
      %p88 = scmp.ne.s32.totalorder %s74, %s75
      %p89 = scmp.eq.s32.totalorder %s18, 1
      %p90 = por %p88, %p89
      %p92 = scmp.ne.s32.totalorder %s75, %s91
      %p93 = scmp.eq.s32.totalorder %s18, 0
      %p94 = por %p92, %p93
      %s95 = ssub.s32 %s20, %s34
      %p96 = scmp.eq.s32.totalorder %s95, 0
      %s98 = sadd.s32 %s97, 1
      %s99 = scalar_select %p96, %s97, %s98
      %p102 = pneg %p96
      %p103 = scmp.eq.s32.totalorder %s12, 1
      %p104 = por %p102, %p103
      %p105 = scmp.ne.s32.totalorder %s97, %s100
      %p106 = scmp.eq.s32.totalorder %s12, 0
      %p107 = por %p105, %p106
      %p108 = scmp.ne.s32.totalorder %s97, %s100
      %p109 = scmp.eq.s32.totalorder %s17, 1
      %p110 = por %p108, %p109
      %p111 = scmp.ne.s32.totalorder %s100, %s101
      %p112 = scmp.eq.s32.totalorder %s17, 0
      %p113 = por %p111, %p112
      %p114 = scmp.ne.s32.totalorder %s100, %s101
      %p115 = scmp.eq.s32.totalorder %s18, 1
      %p116 = por %p114, %p115
      %p118 = scmp.ne.s32.totalorder %s101, %s117
      %p119 = scmp.eq.s32.totalorder %s18, 0
      %p120 = por %p118, %p119
      %s121 = ssub.s32 %s19, %s38
      %s122 = ssub.s32 %s20, %s34
      %s123 = sor.u32 %s121, %s122
      %p124 = scmp.eq.s32.totalorder %s123, 0
      %s126 = sadd.s32 %s125, 1
      %s127 = scalar_select %p124, %s125, %s126
      %p130 = pneg %p124
      %p131 = scmp.eq.s32.totalorder %s12, 1
      %p132 = por %p130, %p131
      %p133 = scmp.ne.s32.totalorder %s125, %s128
      %p134 = scmp.eq.s32.totalorder %s12, 0
      %p135 = por %p133, %p134
      %p136 = scmp.ne.s32.totalorder %s125, %s128
      %p137 = scmp.eq.s32.totalorder %s17, 1
      %p138 = por %p136, %p137
      %p139 = scmp.ne.s32.totalorder %s128, %s129
      %p140 = scmp.eq.s32.totalorder %s17, 0
      %p141 = por %p139, %p140
      %p142 = scmp.ne.s32.totalorder %s128, %s129
      %p143 = scmp.eq.s32.totalorder %s18, 1
      %p144 = por %p142, %p143
      %p146 = scmp.ne.s32.totalorder %s129, %s145
      %p147 = scmp.eq.s32.totalorder %s18, 0
      %p148 = por %p146, %p147
      %p149 = scmp.le.s32.totalorder 1, %s12
      %p150 = scmp.lt.s32.totalorder %s12, 3
      %p151 = pnand %p149, %p150
      %p152 = pneg %p151
      // Predicated region
      $region9: #{_lambda_.7} parent=5 // pred_check
        _
      $region10: #{_lambda_.7} parent=5 // pred_check_branch
        %154 = sbr.rel (%p151) target = $region12
      $region11: #{_lambda_.7} parent=5 // pred_region
        %s155 = ssub.s32 %s12, 1
        // Predicated region
        $region13: #{_lambda_.7} parent=11 // pred_check
          %p156 = pneg %p87
        $region14: #{_lambda_.7} parent=11 // pred_check_branch
          %158 = sbr.rel (%p156) target = $region16
        $region15: #{_lambda_.7} parent=11 // pred_region
          %s159 = smul.u32 16, %s24
          %s160 = smul.u32 2, %s23
          %p161 = scmp.lt.s32.totalorder %s159, 15
          %s162 = scalar_select %p161, %s159, 15
          %p163 = scmp.lt.s32.totalorder %s160, 1
          %s164 = scalar_select %p163, %s160, 1
          %s165 = smul.addr %s162, 2
          %s166 = sadd.s32 %s164, %s165
          %s167 = smul.addr %s166, 4
          %s168 = scalar_lea.vmem %s1, %s167
          %s169 = smul.u32 16, %s24
          %s170 = smul.u32 2, %s23
        $region16: #{_lambda_.7} parent=11 // pred_fallthru
          _
        // Predicated region
        $region17: #{_lambda_.7} parent=11 // pred_check
          %p171 = pneg %p113
        $region18: #{_lambda_.7} parent=11 // pred_check_branch
          %173 = sbr.rel (%p171) target = $region20
        $region19: #{_lambda_.7} parent=11 // pred_region
          %s174 = smul.u32 2, %s23
          %p175 = scmp.lt.s32.totalorder %s174, 1
          %s176 = scalar_select %p175, %s174, 1
          %s177 = scalar_lea.vmem %s2, %s176
          %s178 = smul.u32 2, %s23
        $region20: #{_lambda_.7} parent=11 // pred_fallthru
          _
      $region12: #{_lambda_.7} parent=5 // pred_fallthru
        _
      %p179 = scmp.lt.s32.totalorder %s12, 2
      // Predicated region
      $region21: #{_lambda_.7} parent=5 // pred_check
        %p180 = pneg %p179
      $region22: #{_lambda_.7} parent=5 // pred_check_branch
        %182 = sbr.rel (%p180) target = $region24
      $region23: #{_lambda_.7} parent=5 // pred_region
        // Predicated region
        $region25: #{_lambda_.7} parent=23 // pred_check
          %p183 = pneg %p53
        $region26: #{_lambda_.7} parent=23 // pred_check_branch
          %185 = sbr.rel (%p183) target = $region28
        $region27: #{_lambda_.7} parent=23 // pred_region
          %s186 = smul.u32 32, %s19
          %p187 = scmp.lt.s32.totalorder %s186, 63
          %s188 = scalar_select %p187, %s186, 63
          %p189 = scmp.lt.s32.totalorder %s21, 0
          %s190 = scalar_select %p189, %s21, 0
          %s191 = sadd.s32 %s190, %s188
          %s192 = smul.addr %s191, 4
          %s193 = scalar_lea.vmem %s0, %s192
          %s194 = smul.u32 32, %s19
        $region28: #{_lambda_.7} parent=23 // pred_fallthru
          _
      $region24: #{_lambda_.7} parent=5 // pred_fallthru
        _
      %p195 = scmp.le.s32.totalorder 1, %s12
      %p196 = scmp.lt.s32.totalorder %s12, 3
      %p197 = pnand %p195, %p196
      %p198 = pneg %p197
      // Predicated region
      $region29: #{_lambda_.7} parent=5 // pred_check
        _
      $region30: #{_lambda_.7} parent=5 // pred_check_branch
        %200 = sbr.rel (%p197) target = $region32
      $region31: #{_lambda_.7} parent=5 // pred_region
        %s201 = ssub.s32 %s12, 1
        %s202 = smul.u32 32, %s22
        %p203 = scmp.lt.s32.totalorder %s202, 63
        %s204 = scalar_select %p203, %s202, 63
        %p205 = scmp.lt.s32.totalorder %s24, 0
        %s206 = scalar_select %p205, %s24, 0
        %s207 = sadd.s32 %s206, %s204
        %s208 = smul.addr %s207, 4
        %s209 = scalar_lea.vmem %s0, %s208
        %p210 = pneg %p59
        %p211 = pneg %p56
        %s212 = smul.u32 16, %s24
        %s213 = smul.u32 2, %s23
        %p214 = scmp.lt.s32.totalorder %s212, 15
        %s215 = scalar_select %p214, %s212, 15
        %p216 = scmp.lt.s32.totalorder %s213, 1
        %s217 = scalar_select %p216, %s213, 1
        %s218 = smul.addr %s215, 2
        %s219 = sadd.s32 %s217, %s218
        %s220 = smul.addr %s219, 4
        %s221 = scalar_lea.vmem %s1, %s220
        %p222 = pneg %p87
        %p223 = pneg %p84
        %s224 = smul.u32 2, %s23
        %p225 = scmp.lt.s32.totalorder %s224, 1
        %s226 = scalar_select %p225, %s224, 1
        %s227 = scalar_lea.vmem %s2, %s226
        %p228 = pneg %p113
        %p229 = pneg %p110
        %p230 = pneg %p141
        %p231 = pneg %p138
        %s232 = sand.u32 %s128, 1
        %s233 = scalar_lea.sflag [#allocation3], %s232
        %s234 = sand.u32 %s128, 1
        %s235 = smul.addr %s234, 512
        %s236 = scalar_lea.vmem [#allocation2], %s235
        %s237 = smul.u32 32, %s22
        %p238 = scmp.lt.s32.totalorder %s237, 63
        %s239 = scalar_select %p238, %s237, 63
        %p240 = scmp.lt.s32.totalorder %s24, 0
        %s241 = scalar_select %p240, %s24, 0
        %s242 = sadd.s32 %s241, %s239
        %s243 = smul.addr %s242, 4
        %s244 = scalar_lea.vmem %s0, %s243
        %s245 = smul.u32 32, %s22
        %s246 = smul.u32 16, %s24
        %s247 = smul.u32 2, %s23
        %p248 = scmp.lt.s32.totalorder %s246, 15
        %s249 = scalar_select %p248, %s246, 15
        %p250 = scmp.lt.s32.totalorder %s247, 1
        %s251 = scalar_select %p250, %s247, 1
        %s252 = smul.addr %s249, 2
        %s253 = sadd.s32 %s251, %s252
        %s254 = smul.addr %s253, 4
        %s255 = scalar_lea.vmem %s1, %s254
        %s256 = smul.u32 16, %s24
        %s257 = smul.u32 2, %s23
        %s258 = smul.u32 2, %s23
        %p259 = scmp.lt.s32.totalorder %s258, 1
        %s260 = scalar_select %p259, %s258, 1
        %s261 = scalar_lea.vmem %s2, %s260
        %s262 = smul.u32 2, %s23
        %s263 = smul.u32 32, %s22
        %s264 = smul.u32 2, %s23
        %v266 = vld [vmem:[%s244] sm:$0xf]
        %v267 = vld [vmem:[%s244 + $0x4] sm:$0xf]
        %v268 = vld [vmem:[%s244 + $0x8] sm:$0xf]
        %v269 = vld [vmem:[%s244 + $0xc] sm:$0xf]
        %v270 = vld [vmem:[%s244 + $0x10] sm:$0xf]
        %v271 = vld [vmem:[%s244 + $0x14] sm:$0xf]
        %v272 = vld [vmem:[%s244 + $0x18] sm:$0xf]
        %v273 = vld [vmem:[%s244 + $0x1c] sm:$0xf]
        %v274 = vld [vmem:[%s244 + $0x20] sm:$0xf]
        %v275 = vld [vmem:[%s244 + $0x24] sm:$0xf]
        %v276 = vld [vmem:[%s244 + $0x28] sm:$0xf]
        %v277 = vld [vmem:[%s244 + $0x2c] sm:$0xf]
        %v278 = vld [vmem:[%s244 + $0x30] sm:$0xf]
        %v279 = vld [vmem:[%s244 + $0x34] sm:$0xf]
        %v280 = vld [vmem:[%s244 + $0x38] sm:$0xf]
        %v281 = vld [vmem:[%s244 + $0x3c] sm:$0xf]
        %v282 = vld [vmem:[%s244 + $0x40] sm:$0xf]
        %v283 = vld [vmem:[%s244 + $0x44] sm:$0xf]
        %v284 = vld [vmem:[%s244 + $0x48] sm:$0xf]
        %v285 = vld [vmem:[%s244 + $0x4c] sm:$0xf]
        %v286 = vld [vmem:[%s244 + $0x50] sm:$0xf]
        %v287 = vld [vmem:[%s244 + $0x54] sm:$0xf]
        %v288 = vld [vmem:[%s244 + $0x58] sm:$0xf]
        %v289 = vld [vmem:[%s244 + $0x5c] sm:$0xf]
        %v290 = vld [vmem:[%s244 + $0x60] sm:$0xf]
        %v291 = vld [vmem:[%s244 + $0x64] sm:$0xf]
        %v292 = vld [vmem:[%s244 + $0x68] sm:$0xf]
        %v293 = vld [vmem:[%s244 + $0x6c] sm:$0xf]
        %v294 = vld [vmem:[%s244 + $0x70] sm:$0xf]
        %v295 = vld [vmem:[%s244 + $0x74] sm:$0xf]
        %v296 = vld [vmem:[%s244 + $0x78] sm:$0xf]
        %v297 = vld [vmem:[%s244 + $0x7c] sm:$0xf]
        %v298 = vld [vmem:[%s255] sm:$0xff]
        %v299 = vld [vmem:[%s255 + $0x8] sm:$0xff]
        %v300 = vld [vmem:[%s255 + $0x10] sm:$0xff]
        %v301 = vld [vmem:[%s255 + $0x18] sm:$0xff]
        %v302 = vld [vmem:[%s255 + $0x20] sm:$0xff]
        %v303 = vld [vmem:[%s255 + $0x28] sm:$0xff]
        %v304 = vld [vmem:[%s255 + $0x30] sm:$0xff]
        %v305 = vld [vmem:[%s255 + $0x38] sm:$0xff]
        %v306 = vld [vmem:[%s255 + $0x40] sm:$0xff]
        %v307 = vld [vmem:[%s255 + $0x48] sm:$0xff]
        %v308 = vld [vmem:[%s255 + $0x50] sm:$0xff]
        %v309 = vld [vmem:[%s255 + $0x58] sm:$0xff]
        %v310 = vld [vmem:[%s255 + $0x60] sm:$0xff]
        %v311 = vld [vmem:[%s255 + $0x68] sm:$0xff]
        %v312 = vld [vmem:[%s255 + $0x70] sm:$0xff]
        %v313 = vld [vmem:[%s255 + $0x78] sm:$0xff]
        %v314 = vld [vmem:[%s261] sm:$0x3]
        %v316 = vlaneseq
        %v317 = vshrl.u32 %v316, 7
        %v318 = vsub.s32 0, %v317
        %v319 = vrot.slane %v314, %v318
        %v320 = vlaneseq
        %v321 = vshrl.u32 %v320, 7
        %v322 = vsub.s32 1, %v321
        %v323 = vrot.slane %v314, %v322
        %v358 = vunpack.c.l.b16 %v266
        %v359 = vunpack.c.l.b16 %v267
        %v360 = vunpack.c.l.b16 %v268
        %v361 = vunpack.c.l.b16 %v269
        %v362 = vunpack.c.l.b16 %v270
        %v363 = vunpack.c.l.b16 %v271
        %v364 = vunpack.c.l.b16 %v272
        %v365 = vunpack.c.l.b16 %v273
        %v366 = vunpack.c.l.b16 %v274
        %v367 = vunpack.c.l.b16 %v275
        %v368 = vunpack.c.l.b16 %v276
        %v369 = vunpack.c.l.b16 %v277
        %v370 = vunpack.c.l.b16 %v278
        %v371 = vunpack.c.l.b16 %v279
        %v372 = vunpack.c.l.b16 %v280
        %v373 = vunpack.c.l.b16 %v281
        %v374 = vunpack.c.l.b16 %v282
        %v375 = vunpack.c.l.b16 %v283
        %v376 = vunpack.c.l.b16 %v284
        %v377 = vunpack.c.l.b16 %v285
        %v378 = vunpack.c.l.b16 %v286
        %v379 = vunpack.c.l.b16 %v287
        %v380 = vunpack.c.l.b16 %v288
        %v381 = vunpack.c.l.b16 %v289
        %v382 = vunpack.c.l.b16 %v290
        %v383 = vunpack.c.l.b16 %v291
        %v384 = vunpack.c.l.b16 %v292
        %v385 = vunpack.c.l.b16 %v293
        %v386 = vunpack.c.l.b16 %v294
        %v387 = vunpack.c.l.b16 %v295
        %v388 = vunpack.c.l.b16 %v296
        %v389 = vunpack.c.l.b16 %v297
        %v390 = vpack.c.b16 %v359, %v358
        %v391 = vpack.c.b16 %v361, %v360
        %v392 = vpack.c.b16 %v363, %v362
        %v393 = vpack.c.b16 %v365, %v364
        %v394 = vpack.c.b16 %v367, %v366
        %v395 = vpack.c.b16 %v369, %v368
        %v396 = vpack.c.b16 %v371, %v370
        %v397 = vpack.c.b16 %v373, %v372
        %v398 = vpack.c.b16 %v375, %v374
        %v399 = vpack.c.b16 %v377, %v376
        %v400 = vpack.c.b16 %v379, %v378
        %v401 = vpack.c.b16 %v381, %v380
        %v402 = vpack.c.b16 %v383, %v382
        %v403 = vpack.c.b16 %v385, %v384
        %v404 = vpack.c.b16 %v387, %v386
        %v405 = vpack.c.b16 %v389, %v388
        %v438 = vunpack.c.l.b16 %v298
        %v439 = vunpack.c.h.b16 %v298
        %v440 = vunpack.c.l.b16 %v299
        %v441 = vunpack.c.h.b16 %v299
        %v442 = vunpack.c.l.b16 %v300
        %v443 = vunpack.c.h.b16 %v300
        %v444 = vunpack.c.l.b16 %v301
        %v445 = vunpack.c.h.b16 %v301
        %v446 = vunpack.c.l.b16 %v302
        %v447 = vunpack.c.h.b16 %v302
        %v448 = vunpack.c.l.b16 %v303
        %v449 = vunpack.c.h.b16 %v303
        %v450 = vunpack.c.l.b16 %v304
        %v451 = vunpack.c.h.b16 %v304
        %v452 = vunpack.c.l.b16 %v305
        %v453 = vunpack.c.h.b16 %v305
        %v454 = vunpack.c.l.b16 %v306
        %v455 = vunpack.c.h.b16 %v306
        %v456 = vunpack.c.l.b16 %v307
        %v457 = vunpack.c.h.b16 %v307
        %v458 = vunpack.c.l.b16 %v308
        %v459 = vunpack.c.h.b16 %v308
        %v460 = vunpack.c.l.b16 %v309
        %v461 = vunpack.c.h.b16 %v309
        %v462 = vunpack.c.l.b16 %v310
        %v463 = vunpack.c.h.b16 %v310
        %v464 = vunpack.c.l.b16 %v311
        %v465 = vunpack.c.h.b16 %v311
        %v466 = vunpack.c.l.b16 %v312
        %v467 = vunpack.c.h.b16 %v312
        %v468 = vunpack.c.l.b16 %v313
        %v469 = vunpack.c.h.b16 %v313
        %v470 = vpack.c.b16 %v440, %v438
        %v471 = vpack.c.b16 %v441, %v439
        %v472 = vpack.c.b16 %v444, %v442
        %v473 = vpack.c.b16 %v445, %v443
        %v474 = vpack.c.b16 %v448, %v446
        %v475 = vpack.c.b16 %v449, %v447
        %v476 = vpack.c.b16 %v452, %v450
        %v477 = vpack.c.b16 %v453, %v451
        %v478 = vpack.c.b16 %v456, %v454
        %v479 = vpack.c.b16 %v457, %v455
        %v480 = vpack.c.b16 %v460, %v458
        %v481 = vpack.c.b16 %v461, %v459
        %v482 = vpack.c.b16 %v464, %v462
        %v483 = vpack.c.b16 %v465, %v463
        %v484 = vpack.c.b16 %v468, %v466
        %v485 = vpack.c.b16 %v469, %v467
        %502 = vmatprep.subr.bf16.mxu0 %v471
        %503 = vmatpush1.bf16.msra.mxu0 %v470
        %504 = vmatprep.subr.bf16.mxu0 %v473
        %505 = vmatpush1.bf16.msra.mxu0 %v472
        %506 = vmatprep.subr.bf16.mxu0 %v475
        %507 = vmatpush1.bf16.msra.mxu0 %v474
        %508 = vmatprep.subr.bf16.mxu0 %v477
        %509 = vmatpush1.bf16.msra.mxu0 %v476
        %510 = vmatprep.subr.bf16.mxu0 %v479
        %511 = vmatpush1.bf16.msra.mxu0 %v478
        %512 = vmatprep.subr.bf16.mxu0 %v481
        %513 = vmatpush1.bf16.msra.mxu0 %v480
        %514 = vmatprep.subr.bf16.mxu0 %v483
        %515 = vmatpush1.bf16.msra.mxu0 %v482
        %516 = vmatprep.subr.bf16.mxu0 %v485
        %517 = vmatpush1.bf16.msra.mxu0 %v484
        %518 = vmatprep.subr.bf16.mxu0 0
        %519 = vmatpush1.bf16.msra.mxu0 0
        %520 = vmatprep.subr.bf16.mxu0 0
        %521 = vmatpush1.bf16.msra.mxu0 0
        %522 = vmatprep.subr.bf16.mxu0 0
        %523 = vmatpush1.bf16.msra.mxu0 0
        %524 = vmatprep.subr.bf16.mxu0 0
        %525 = vmatpush1.bf16.msra.mxu0 0
        %526 = vmatprep.subr.bf16.mxu0 0
        %527 = vmatpush1.bf16.msra.mxu0 0
        %528 = vmatprep.subr.bf16.mxu0 0
        %529 = vmatpush1.bf16.msra.mxu0 0
        %530 = vmatprep.subr.bf16.mxu0 0
        %531 = vmatpush1.bf16.msra.mxu0 0
        %532 = vmatprep.subr.bf16.mxu0 0
        %533 = vmatpush1.bf16.msra.mxu0 0
        %534 = vmatprep.mubr.bf16.mxu0 0
        %535 = vmatmul.mubr.bf16.gmra.mrb[0].mxu0 %v390
        %v536 = vpop.f32.mrb[0].mxu0
        %v537 = vadd.f32 %v319, %v536
        %v538 = vpop.f32.mrb[0].mxu0
        %v539 = vadd.f32 %v323, %v538
        %v540 = vpop.f32.mrb[0].mxu0
        %v541 = vadd.f32 %v319, %v540
        %v542 = vpop.f32.mrb[0].mxu0
        %v543 = vadd.f32 %v323, %v542
        %544 = vmatprep.mubr.bf16.mxu0 0
        %545 = vmatmul.mubr.bf16.gmra.mrb[0].mxu0 %v391
        %v546 = vpop.f32.mrb[0].mxu0
        %v547 = vadd.f32 %v319, %v546
        %v548 = vpop.f32.mrb[0].mxu0
        %v549 = vadd.f32 %v323, %v548
        %v550 = vpop.f32.mrb[0].mxu0
        %v551 = vadd.f32 %v319, %v550
        %v552 = vpop.f32.mrb[0].mxu0
        %v553 = vadd.f32 %v323, %v552
        %554 = vmatprep.mubr.bf16.mxu0 0
        %555 = vmatmul.mubr.bf16.gmra.mrb[0].mxu0 %v392
        %v556 = vpop.f32.mrb[0].mxu0
        %v557 = vadd.f32 %v319, %v556
        %v558 = vpop.f32.mrb[0].mxu0
        %v559 = vadd.f32 %v323, %v558
        %v560 = vpop.f32.mrb[0].mxu0
        %v561 = vadd.f32 %v319, %v560
        %v562 = vpop.f32.mrb[0].mxu0
        %v563 = vadd.f32 %v323, %v562
        %564 = vmatprep.mubr.bf16.mxu0 0
        %565 = vmatmul.mubr.bf16.gmra.mrb[0].mxu0 %v393
        %v566 = vpop.f32.mrb[0].mxu0
        %v567 = vadd.f32 %v319, %v566
        %v568 = vpop.f32.mrb[0].mxu0
        %v569 = vadd.f32 %v323, %v568
        %v570 = vpop.f32.mrb[0].mxu0
        %v571 = vadd.f32 %v319, %v570
        %v572 = vpop.f32.mrb[0].mxu0
        %v573 = vadd.f32 %v323, %v572
        %574 = vmatprep.mubr.bf16.mxu0 0
        %575 = vmatmul.mubr.bf16.gmra.mrb[0].mxu0 %v394
        %v576 = vpop.f32.mrb[0].mxu0
        %v577 = vadd.f32 %v319, %v576
        %v578 = vpop.f32.mrb[0].mxu0
        %v579 = vadd.f32 %v323, %v578
        %v580 = vpop.f32.mrb[0].mxu0
        %v581 = vadd.f32 %v319, %v580
        %v582 = vpop.f32.mrb[0].mxu0
        %v583 = vadd.f32 %v323, %v582
        %584 = vmatprep.mubr.bf16.mxu0 0
        %585 = vmatmul.mubr.bf16.gmra.mrb[0].mxu0 %v395
        %v586 = vpop.f32.mrb[0].mxu0
        %v587 = vadd.f32 %v319, %v586
        %v588 = vpop.f32.mrb[0].mxu0
        %v589 = vadd.f32 %v323, %v588
        %v590 = vpop.f32.mrb[0].mxu0
        %v591 = vadd.f32 %v319, %v590
        %v592 = vpop.f32.mrb[0].mxu0
        %v593 = vadd.f32 %v323, %v592
        %594 = vmatprep.mubr.bf16.mxu0 0
        %595 = vmatmul.mubr.bf16.gmra.mrb[0].mxu0 %v396
        %v596 = vpop.f32.mrb[0].mxu0
        %v597 = vadd.f32 %v319, %v596
        %v598 = vpop.f32.mrb[0].mxu0
        %v599 = vadd.f32 %v323, %v598
        %v600 = vpop.f32.mrb[0].mxu0
        %v601 = vadd.f32 %v319, %v600
        %v602 = vpop.f32.mrb[0].mxu0
        %v603 = vadd.f32 %v323, %v602
        %604 = vmatprep.mubr.bf16.mxu0 0
        %605 = vmatmul.mubr.bf16.gmra.mrb[0].mxu0 %v397
        %v606 = vpop.f32.mrb[0].mxu0
        %v607 = vadd.f32 %v319, %v606
        %v608 = vpop.f32.mrb[0].mxu0
        %v609 = vadd.f32 %v323, %v608
        %v610 = vpop.f32.mrb[0].mxu0
        %v611 = vadd.f32 %v319, %v610
        %v612 = vpop.f32.mrb[0].mxu0
        %v613 = vadd.f32 %v323, %v612
        %614 = vmatprep.mubr.bf16.mxu0 0
        %615 = vmatmul.mubr.bf16.gmra.mrb[0].mxu0 %v398
        %v616 = vpop.f32.mrb[0].mxu0
        %v617 = vadd.f32 %v319, %v616
        %v618 = vpop.f32.mrb[0].mxu0
        %v619 = vadd.f32 %v323, %v618
        %v620 = vpop.f32.mrb[0].mxu0
        %v621 = vadd.f32 %v319, %v620
        %v622 = vpop.f32.mrb[0].mxu0
        %v623 = vadd.f32 %v323, %v622
        %624 = vmatprep.mubr.bf16.mxu0 0
        %625 = vmatmul.mubr.bf16.gmra.mrb[0].mxu0 %v399
        %v626 = vpop.f32.mrb[0].mxu0
        %v627 = vadd.f32 %v319, %v626
        %v628 = vpop.f32.mrb[0].mxu0
        %v629 = vadd.f32 %v323, %v628
        %v630 = vpop.f32.mrb[0].mxu0
        %v631 = vadd.f32 %v319, %v630
        %v632 = vpop.f32.mrb[0].mxu0
        %v633 = vadd.f32 %v323, %v632
        %634 = vmatprep.mubr.bf16.mxu0 0
        %635 = vmatmul.mubr.bf16.gmra.mrb[0].mxu0 %v400
        %v636 = vpop.f32.mrb[0].mxu0
        %v637 = vadd.f32 %v319, %v636
        %v638 = vpop.f32.mrb[0].mxu0
        %v639 = vadd.f32 %v323, %v638
        %v640 = vpop.f32.mrb[0].mxu0
        %v641 = vadd.f32 %v319, %v640
        %v642 = vpop.f32.mrb[0].mxu0
        %v643 = vadd.f32 %v323, %v642
        %644 = vmatprep.mubr.bf16.mxu0 0
        %645 = vmatmul.mubr.bf16.gmra.mrb[0].mxu0 %v401
        %v646 = vpop.f32.mrb[0].mxu0
        %v647 = vadd.f32 %v319, %v646
        %v648 = vpop.f32.mrb[0].mxu0
        %v649 = vadd.f32 %v323, %v648
        %v650 = vpop.f32.mrb[0].mxu0
        %v651 = vadd.f32 %v319, %v650
        %v652 = vpop.f32.mrb[0].mxu0
        %v653 = vadd.f32 %v323, %v652
        %654 = vmatprep.mubr.bf16.mxu0 0
        %655 = vmatmul.mubr.bf16.gmra.mrb[0].mxu0 %v402
        %v656 = vpop.f32.mrb[0].mxu0
        %v657 = vadd.f32 %v319, %v656
        %v658 = vpop.f32.mrb[0].mxu0
        %v659 = vadd.f32 %v323, %v658
        %v660 = vpop.f32.mrb[0].mxu0
        %v661 = vadd.f32 %v319, %v660
        %v662 = vpop.f32.mrb[0].mxu0
        %v663 = vadd.f32 %v323, %v662
        %664 = vmatprep.mubr.bf16.mxu0 0
        %665 = vmatmul.mubr.bf16.gmra.mrb[0].mxu0 %v403
        %v666 = vpop.f32.mrb[0].mxu0
        %v667 = vadd.f32 %v319, %v666
        %v668 = vpop.f32.mrb[0].mxu0
        %v669 = vadd.f32 %v323, %v668
        %v670 = vpop.f32.mrb[0].mxu0
        %v671 = vadd.f32 %v319, %v670
        %v672 = vpop.f32.mrb[0].mxu0
        %v673 = vadd.f32 %v323, %v672
        %674 = vmatprep.mubr.bf16.mxu0 0
        %675 = vmatmul.mubr.bf16.gmra.mrb[0].mxu0 %v404
        %v676 = vpop.f32.mrb[0].mxu0
        %v677 = vadd.f32 %v319, %v676
        %v678 = vpop.f32.mrb[0].mxu0
        %v679 = vadd.f32 %v323, %v678
        %v680 = vpop.f32.mrb[0].mxu0
        %v681 = vadd.f32 %v319, %v680
        %v682 = vpop.f32.mrb[0].mxu0
        %v683 = vadd.f32 %v323, %v682
        %684 = vmatprep.mubr.bf16.mxu0 0
        %685 = vmatmul.mubr.bf16.gmra.mrb[0].mxu0 %v405
        %v686 = vpop.f32.mrb[0].mxu0
        %v687 = vadd.f32 %v319, %v686
        %v688 = vpop.f32.mrb[0].mxu0
        %v689 = vadd.f32 %v323, %v688
        %v690 = vpop.f32.mrb[0].mxu0
        %v691 = vadd.f32 %v319, %v690
        %v692 = vpop.f32.mrb[0].mxu0
        %v693 = vadd.f32 %v323, %v692
        %694 = vdwg.mxu0
        %v695 = vmax.f32 %v537, 0.0
        %v696 = vmax.f32 %v539, 0.0
        %v697 = vmax.f32 %v541, 0.0
        %v698 = vmax.f32 %v543, 0.0
        %v699 = vmax.f32 %v547, 0.0
        %v700 = vmax.f32 %v549, 0.0
        %v701 = vmax.f32 %v551, 0.0
        %v702 = vmax.f32 %v553, 0.0
        %v703 = vmax.f32 %v557, 0.0
        %v704 = vmax.f32 %v559, 0.0
        %v705 = vmax.f32 %v561, 0.0
        %v706 = vmax.f32 %v563, 0.0
        %v707 = vmax.f32 %v567, 0.0
        %v708 = vmax.f32 %v569, 0.0
        %v709 = vmax.f32 %v571, 0.0
        %v710 = vmax.f32 %v573, 0.0
        %v711 = vmax.f32 %v577, 0.0
        %v712 = vmax.f32 %v579, 0.0
        %v713 = vmax.f32 %v581, 0.0
        %v714 = vmax.f32 %v583, 0.0
        %v715 = vmax.f32 %v587, 0.0
        %v716 = vmax.f32 %v589, 0.0
        %v717 = vmax.f32 %v591, 0.0
        %v718 = vmax.f32 %v593, 0.0
        %v719 = vmax.f32 %v597, 0.0
        %v720 = vmax.f32 %v599, 0.0
        %v721 = vmax.f32 %v601, 0.0
        %v722 = vmax.f32 %v603, 0.0
        %v723 = vmax.f32 %v607, 0.0
        %v724 = vmax.f32 %v609, 0.0
        %v725 = vmax.f32 %v611, 0.0
        %v726 = vmax.f32 %v613, 0.0
        %v727 = vmax.f32 %v617, 0.0
        %v728 = vmax.f32 %v619, 0.0
        %v729 = vmax.f32 %v621, 0.0
        %v730 = vmax.f32 %v623, 0.0
        %v731 = vmax.f32 %v627, 0.0
        %v732 = vmax.f32 %v629, 0.0
        %v733 = vmax.f32 %v631, 0.0
        %v734 = vmax.f32 %v633, 0.0
        %v735 = vmax.f32 %v637, 0.0
        %v736 = vmax.f32 %v639, 0.0
        %v737 = vmax.f32 %v641, 0.0
        %v738 = vmax.f32 %v643, 0.0
        %v739 = vmax.f32 %v647, 0.0
        %v740 = vmax.f32 %v649, 0.0
        %v741 = vmax.f32 %v651, 0.0
        %v742 = vmax.f32 %v653, 0.0
        %v743 = vmax.f32 %v657, 0.0
        %v744 = vmax.f32 %v659, 0.0
        %v745 = vmax.f32 %v661, 0.0
        %v746 = vmax.f32 %v663, 0.0
        %v747 = vmax.f32 %v667, 0.0
        %v748 = vmax.f32 %v669, 0.0
        %v749 = vmax.f32 %v671, 0.0
        %v750 = vmax.f32 %v673, 0.0
        %v751 = vmax.f32 %v677, 0.0
        %v752 = vmax.f32 %v679, 0.0
        %v753 = vmax.f32 %v681, 0.0
        %v754 = vmax.f32 %v683, 0.0
        %v755 = vmax.f32 %v687, 0.0
        %v756 = vmax.f32 %v689, 0.0
        %v757 = vmax.f32 %v691, 0.0
        %v758 = vmax.f32 %v693, 0.0
        %759 = vst [vmem:[%s236] sm:$0xff] %v695
        %760 = vst [vmem:[%s236 + $0x8] sm:$0xff] %v696
        %761 = vst [vmem:[%s236 + $0x10] sm:$0xff] %v697
        %762 = vst [vmem:[%s236 + $0x18] sm:$0xff] %v698
        %763 = vst [vmem:[%s236 + $0x20] sm:$0xff] %v699
        %764 = vst [vmem:[%s236 + $0x28] sm:$0xff] %v700
        %765 = vst [vmem:[%s236 + $0x30] sm:$0xff] %v701
        %766 = vst [vmem:[%s236 + $0x38] sm:$0xff] %v702
        %767 = vst [vmem:[%s236 + $0x40] sm:$0xff] %v703
        %768 = vst [vmem:[%s236 + $0x48] sm:$0xff] %v704
        %769 = vst [vmem:[%s236 + $0x50] sm:$0xff] %v705
        %770 = vst [vmem:[%s236 + $0x58] sm:$0xff] %v706
        %771 = vst [vmem:[%s236 + $0x60] sm:$0xff] %v707
        %772 = vst [vmem:[%s236 + $0x68] sm:$0xff] %v708
        %773 = vst [vmem:[%s236 + $0x70] sm:$0xff] %v709
        %774 = vst [vmem:[%s236 + $0x78] sm:$0xff] %v710
        %775 = vst [vmem:[%s236 + $0x80] sm:$0xff] %v711
        %776 = vst [vmem:[%s236 + $0x88] sm:$0xff] %v712
        %777 = vst [vmem:[%s236 + $0x90] sm:$0xff] %v713
        %778 = vst [vmem:[%s236 + $0x98] sm:$0xff] %v714
        %779 = vst [vmem:[%s236 + $0xa0] sm:$0xff] %v715
        %780 = vst [vmem:[%s236 + $0xa8] sm:$0xff] %v716
        %781 = vst [vmem:[%s236 + $0xb0] sm:$0xff] %v717
        %782 = vst [vmem:[%s236 + $0xb8] sm:$0xff] %v718
        %783 = vst [vmem:[%s236 + $0xc0] sm:$0xff] %v719
        %784 = vst [vmem:[%s236 + $0xc8] sm:$0xff] %v720
        %785 = vst [vmem:[%s236 + $0xd0] sm:$0xff] %v721
        %786 = vst [vmem:[%s236 + $0xd8] sm:$0xff] %v722
        %787 = vst [vmem:[%s236 + $0xe0] sm:$0xff] %v723
        %788 = vst [vmem:[%s236 + $0xe8] sm:$0xff] %v724
        %789 = vst [vmem:[%s236 + $0xf0] sm:$0xff] %v725
        %790 = vst [vmem:[%s236 + $0xf8] sm:$0xff] %v726
        %791 = vst [vmem:[%s236 + $0x100] sm:$0xff] %v727
        %792 = vst [vmem:[%s236 + $0x108] sm:$0xff] %v728
        %793 = vst [vmem:[%s236 + $0x110] sm:$0xff] %v729
        %794 = vst [vmem:[%s236 + $0x118] sm:$0xff] %v730
        %795 = vst [vmem:[%s236 + $0x120] sm:$0xff] %v731
        %796 = vst [vmem:[%s236 + $0x128] sm:$0xff] %v732
        %797 = vst [vmem:[%s236 + $0x130] sm:$0xff] %v733
        %798 = vst [vmem:[%s236 + $0x138] sm:$0xff] %v734
        %799 = vst [vmem:[%s236 + $0x140] sm:$0xff] %v735
        %800 = vst [vmem:[%s236 + $0x148] sm:$0xff] %v736
        %801 = vst [vmem:[%s236 + $0x150] sm:$0xff] %v737
        %802 = vst [vmem:[%s236 + $0x158] sm:$0xff] %v738
        %803 = vst [vmem:[%s236 + $0x160] sm:$0xff] %v739
        %804 = vst [vmem:[%s236 + $0x168] sm:$0xff] %v740
        %805 = vst [vmem:[%s236 + $0x170] sm:$0xff] %v741
        %806 = vst [vmem:[%s236 + $0x178] sm:$0xff] %v742
        %807 = vst [vmem:[%s236 + $0x180] sm:$0xff] %v743
        %808 = vst [vmem:[%s236 + $0x188] sm:$0xff] %v744
        %809 = vst [vmem:[%s236 + $0x190] sm:$0xff] %v745
        %810 = vst [vmem:[%s236 + $0x198] sm:$0xff] %v746
        %811 = vst [vmem:[%s236 + $0x1a0] sm:$0xff] %v747
        %812 = vst [vmem:[%s236 + $0x1a8] sm:$0xff] %v748
        %813 = vst [vmem:[%s236 + $0x1b0] sm:$0xff] %v749
        %814 = vst [vmem:[%s236 + $0x1b8] sm:$0xff] %v750
        %815 = vst [vmem:[%s236 + $0x1c0] sm:$0xff] %v751
        %816 = vst [vmem:[%s236 + $0x1c8] sm:$0xff] %v752
        %817 = vst [vmem:[%s236 + $0x1d0] sm:$0xff] %v753
        %818 = vst [vmem:[%s236 + $0x1d8] sm:$0xff] %v754
        %819 = vst [vmem:[%s236 + $0x1e0] sm:$0xff] %v755
        %820 = vst [vmem:[%s236 + $0x1e8] sm:$0xff] %v756
        %821 = vst [vmem:[%s236 + $0x1f0] sm:$0xff] %v757
        %822 = vst [vmem:[%s236 + $0x1f8] sm:$0xff] %v758
        %s823 = sand.u32 %s128, 1
        %s824 = scalar_lea.sflag [#allocation3], %s823
        %s825 = sand.u32 %s128, 1
        %s826 = smul.addr %s825, 512
        %s827 = scalar_lea.vmem [#allocation2], %s826
        // Predicated region
        $region33: #{_lambda_.7} parent=31 // pred_check
          %p828 = pneg %p138
        $region34: #{_lambda_.7} parent=31 // pred_check_branch
          %830 = sbr.rel (%p828) target = $region36
        $region35: #{_lambda_.7} parent=31 // pred_region
          %s831 = smul.u32 32, %s22
          %s832 = smul.u32 2, %s23
          %s834 = ssub.s32 8192, 8192
          %835 = vsyncadd %s824, %s834
          %s836 = smul.addr %s831, 2
          %s837 = sadd.s32 %s832, %s836
          %s838 = smul.addr %s837, 128
          %s839 = scalar_lea.hbm %s3, %s838
          %s840 = sshll.u32 %s827, 4
          %s841 = int_to_ptr.vmem [resolvable:$true] %s840
          %846 = dma.vmem_to_hbm [thread:$0]  %s841, 8192, %s839, %s824, 256, 256, 16
        $region36: #{_lambda_.7} parent=31 // pred_fallthru
          _
      $region32: #{_lambda_.7} parent=5 // pred_fallthru
        _
      %p847 = scmp.le.s32.totalorder 2, %s12
      // Predicated region
      $region37: #{_lambda_.7} parent=5 // pred_check
        %p848 = pneg %p847
      $region38: #{_lambda_.7} parent=5 // pred_check_branch
        %850 = sbr.rel (%p848) target = $region40
      $region39: #{_lambda_.7} parent=5 // pred_region
        %s851 = ssub.s32 %s12, 2
        // Predicated region
        $region41: #{_lambda_.7} parent=39 // pred_check
          %p852 = pneg %p144
        $region42: #{_lambda_.7} parent=39 // pred_check_branch
          %854 = sbr.rel (%p852) target = $region44
        $region43: #{_lambda_.7} parent=39 // pred_region
          %s855 = sand.u32 %s129, 1
          %s856 = scalar_lea.sflag [#allocation3], %s855
          %s857 = sand.u32 %s129, 1
          %s858 = smul.addr %s857, 512
          %s859 = scalar_lea.vmem [#allocation2], %s858
          %860 = dma.done %s856, 8192
        $region44: #{_lambda_.7} parent=39 // pred_fallthru
          _
      $region40: #{_lambda_.7} parent=5 // pred_fallthru
        _
    $region6: #{_lambda_.7} parent=1 // loop_footer
      %s16 = sadd.s32 1, %s12
    $region7: #{_lambda_.7} parent=1 // loop_footer_branch
      %11 = sbr.rel target = $region3
    $region8: #{_lambda_.7} parent=1 // loop_exit
      _
    %861 = vsyncpa [#allocation3], 1
    %s862 = scalar_lea.sflag [#allocation3], 1
    %863 = vsyncpa %s862, 1

// kernel: _lambda_.5
$region0: #{_lambda_.5}
  #allocation0 [shape = 'u32[]', space=smem, size = 0x4, offset = 0x4, fixed_abs, tag = 'smem constant byte address 0x4 - core index']
  #allocation1 [shape = 'u32[144,128]{1,0:T(1,128)}', space=vmem, size = 0x12000, scoped, tag = 'internal scratch']
  %s0 = inlined_call_operand.vmem [shape: bf16[512,256], index: 0, kind: input, shape index: {}]
  %s1 = inlined_call_operand.vmem [shape: bf16[256,256], index: 1, kind: input, shape index: {}]
  %s2 = inlined_call_operand.vmem [shape: f32[1,256], index: 2, kind: input, shape index: {}]
  %s3 = inlined_call_operand.vmem [shape: bf16[512,256], index: 3, kind: output, shape index: {}]
  %s4 = sld [smem:[#allocation0]]
  $region45: #{_lambda_.5} parent=0
    _
  %s6 = ssub.s32 1, %s4
  %s7 = scalar_select 0, %s6, %s4
  loop: start=0, step=1, limit=4
  $region2: #{_lambda_.5} parent=0 // loop_pre_header
    _
  $region3: #{_lambda_.5} parent=0 // loop_header
    %s9 = sphi 0, %s13
    %p10 = scmp.ge.s32.totalorder %s9, 4
    %s16 = sphi 0, %s35
    %s17 = sphi 0, %s31
    %s18 = sphi 0, %s27
    %s19 = sphi 0, %s16
    %s20 = sphi 0, %s17
    %s21 = sphi 0, %s18
    %s22 = sphi 0, %s19
    %s23 = sphi 0, %s20
    %s24 = sphi 0, %s21
    %s40 = sphi 0, %s42
    %s43 = sphi 0, %s40
    %s44 = sphi 0, %s43
    %s60 = sphi 0, %s44
    %s68 = sphi 0, %s70
    %s71 = sphi 0, %s68
    %s72 = sphi 0, %s71
    %s88 = sphi 0, %s72
    %s94 = sphi 0, %s96
    %s97 = sphi 0, %s94
    %s98 = sphi 0, %s97
    %s114 = sphi 0, %s98
    %s122 = sphi 0, %s124
    %s125 = sphi 0, %s122
    %s126 = sphi 0, %s125
    %s142 = sphi 0, %s126
  $region4: #{_lambda_.5} parent=0 // loop_header_branch
    %12 = sbr.rel (%p10) target = $region8
  $region5: #{_lambda_.5} parent=0 // loop_body
    %s14 = ssub.s32 %s9, 1
    %s15 = ssub.s32 %s9, 2
    %s25 = sadd.s32 1, %s18
    %p26 = scmp.ge.s32.totalorder %s25, 1
    %s27 = scalar_select %p26, 0, %s25
    %s28 = sadd.s32 1, %s17
    %s29 = scalar_select %p26, %s28, %s17
    %p30 = scmp.ge.s32.totalorder %s29, 1
    %s31 = scalar_select %p30, 0, %s29
    %s32 = sadd.s32 1, %s16
    %s33 = scalar_select %p30, %s32, %s16
    %p34 = scmp.ge.s32.totalorder %s33, 2
    %s35 = scalar_select %p34, 0, %s33
    %s36 = ssub.s32 %s16, %s35
    %s37 = ssub.s32 %s18, %s27
    %s38 = sor.u32 %s36, %s37
    %p39 = scmp.eq.s32.totalorder %s38, 0
    %s41 = sadd.s32 %s40, 1
    %s42 = scalar_select %p39, %s40, %s41
    %p45 = pneg %p39
    %p46 = scmp.eq.s32.totalorder %s9, 1
    %p47 = por %p45, %p46
    %p48 = scmp.ne.s32.totalorder %s40, %s43
    %p49 = scmp.eq.s32.totalorder %s9, 0
    %p50 = por %p48, %p49
    %p51 = scmp.ne.s32.totalorder %s40, %s43
    %p52 = scmp.eq.s32.totalorder %s14, 1
    %p53 = por %p51, %p52
    %p54 = scmp.ne.s32.totalorder %s43, %s44
    %p55 = scmp.eq.s32.totalorder %s14, 0
    %p56 = por %p54, %p55
    %p57 = scmp.ne.s32.totalorder %s43, %s44
    %p58 = scmp.eq.s32.totalorder %s15, 1
    %p59 = por %p57, %p58
    %p61 = scmp.ne.s32.totalorder %s44, %s60
    %p62 = scmp.eq.s32.totalorder %s15, 0
    %p63 = por %p61, %p62
    %s64 = ssub.s32 %s18, %s27
    %s65 = ssub.s32 %s17, %s31
    %s66 = sor.u32 %s64, %s65
    %p67 = scmp.eq.s32.totalorder %s66, 0
    %s69 = sadd.s32 %s68, 1
    %s70 = scalar_select %p67, %s68, %s69
    %p73 = pneg %p67
    %p74 = scmp.eq.s32.totalorder %s9, 1
    %p75 = por %p73, %p74
    %p76 = scmp.ne.s32.totalorder %s68, %s71
    %p77 = scmp.eq.s32.totalorder %s9, 0
    %p78 = por %p76, %p77
    %p79 = scmp.ne.s32.totalorder %s68, %s71
    %p80 = scmp.eq.s32.totalorder %s14, 1
    %p81 = por %p79, %p80
    %p82 = scmp.ne.s32.totalorder %s71, %s72
    %p83 = scmp.eq.s32.totalorder %s14, 0
    %p84 = por %p82, %p83
    %p85 = scmp.ne.s32.totalorder %s71, %s72
    %p86 = scmp.eq.s32.totalorder %s15, 1
    %p87 = por %p85, %p86
    %p89 = scmp.ne.s32.totalorder %s72, %s88
    %p90 = scmp.eq.s32.totalorder %s15, 0
    %p91 = por %p89, %p90
    %s92 = ssub.s32 %s17, %s31
    %p93 = scmp.eq.s32.totalorder %s92, 0
    %s95 = sadd.s32 %s94, 1
    %s96 = scalar_select %p93, %s94, %s95
    %p99 = pneg %p93
    %p100 = scmp.eq.s32.totalorder %s9, 1
    %p101 = por %p99, %p100
    %p102 = scmp.ne.s32.totalorder %s94, %s97
    %p103 = scmp.eq.s32.totalorder %s9, 0
    %p104 = por %p102, %p103
    %p105 = scmp.ne.s32.totalorder %s94, %s97
    %p106 = scmp.eq.s32.totalorder %s14, 1
    %p107 = por %p105, %p106
    %p108 = scmp.ne.s32.totalorder %s97, %s98
    %p109 = scmp.eq.s32.totalorder %s14, 0
    %p110 = por %p108, %p109
    %p111 = scmp.ne.s32.totalorder %s97, %s98
    %p112 = scmp.eq.s32.totalorder %s15, 1
    %p113 = por %p111, %p112
    %p115 = scmp.ne.s32.totalorder %s98, %s114
    %p116 = scmp.eq.s32.totalorder %s15, 0
    %p117 = por %p115, %p116
    %s118 = ssub.s32 %s16, %s35
    %s119 = ssub.s32 %s17, %s31
    %s120 = sor.u32 %s118, %s119
    %p121 = scmp.eq.s32.totalorder %s120, 0
    %s123 = sadd.s32 %s122, 1
    %s124 = scalar_select %p121, %s122, %s123
    %p127 = pneg %p121
    %p128 = scmp.eq.s32.totalorder %s9, 1
    %p129 = por %p127, %p128
    %p130 = scmp.ne.s32.totalorder %s122, %s125
    %p131 = scmp.eq.s32.totalorder %s9, 0
    %p132 = por %p130, %p131
    %p133 = scmp.ne.s32.totalorder %s122, %s125
    %p134 = scmp.eq.s32.totalorder %s14, 1
    %p135 = por %p133, %p134
    %p136 = scmp.ne.s32.totalorder %s125, %s126
    %p137 = scmp.eq.s32.totalorder %s14, 0
    %p138 = por %p136, %p137
    %p139 = scmp.ne.s32.totalorder %s125, %s126
    %p140 = scmp.eq.s32.totalorder %s15, 1
    %p141 = por %p139, %p140
    %p143 = scmp.ne.s32.totalorder %s126, %s142
    %p144 = scmp.eq.s32.totalorder %s15, 0
    %p145 = por %p143, %p144
    %p146 = scmp.le.s32.totalorder 1, %s9
    %p147 = scmp.lt.s32.totalorder %s9, 3
    %p148 = pnand %p146, %p147
    %p149 = pneg %p148
    // Predicated region
    $region9: #{_lambda_.5} parent=5 // pred_check
      _
    $region10: #{_lambda_.5} parent=5 // pred_check_branch
      %151 = sbr.rel (%p148) target = $region12
    $region11: #{_lambda_.5} parent=5 // pred_region
      %s152 = ssub.s32 %s9, 1
      // Predicated region
      $region13: #{_lambda_.5} parent=11 // pred_check
        %p153 = pneg %p84
      $region14: #{_lambda_.5} parent=11 // pred_check_branch
        %155 = sbr.rel (%p153) target = $region16
      $region15: #{_lambda_.5} parent=11 // pred_region
        %s156 = smul.u32 32, %s21
        %s157 = smul.u32 2, %s20
        %p158 = scmp.lt.s32.totalorder %s156, 31
        %s159 = scalar_select %p158, %s156, 31
        %p160 = scmp.lt.s32.totalorder %s157, 1
        %s161 = scalar_select %p160, %s157, 1
        %s162 = smul.addr %s159, 2
        %s163 = sadd.s32 %s161, %s162
        %s164 = smul.addr %s163, 4
        %s165 = scalar_lea.vmem %s1, %s164
        %s166 = smul.u32 32, %s21
        %s167 = smul.u32 2, %s20
      $region16: #{_lambda_.5} parent=11 // pred_fallthru
        _
      // Predicated region
      $region17: #{_lambda_.5} parent=11 // pred_check
        %p168 = pneg %p110
      $region18: #{_lambda_.5} parent=11 // pred_check_branch
        %170 = sbr.rel (%p168) target = $region20
      $region19: #{_lambda_.5} parent=11 // pred_region
        %s171 = smul.u32 2, %s20
        %p172 = scmp.lt.s32.totalorder %s171, 1
        %s173 = scalar_select %p172, %s171, 1
        %s174 = scalar_lea.vmem %s2, %s173
        %s175 = smul.u32 2, %s20
      $region20: #{_lambda_.5} parent=11 // pred_fallthru
        _
    $region12: #{_lambda_.5} parent=5 // pred_fallthru
      _
    %p176 = scmp.lt.s32.totalorder %s9, 2
    // Predicated region
    $region21: #{_lambda_.5} parent=5 // pred_check
      %p177 = pneg %p176
    $region22: #{_lambda_.5} parent=5 // pred_check_branch
      %179 = sbr.rel (%p177) target = $region24
    $region23: #{_lambda_.5} parent=5 // pred_region
      // Predicated region
      $region25: #{_lambda_.5} parent=23 // pred_check
        %p180 = pneg %p50
      $region26: #{_lambda_.5} parent=23 // pred_check_branch
        %182 = sbr.rel (%p180) target = $region28
      $region27: #{_lambda_.5} parent=23 // pred_region
        %s183 = smul.u32 32, %s16
        %s184 = smul.u32 2, %s18
        %p185 = scmp.lt.s32.totalorder %s183, 63
        %s186 = scalar_select %p185, %s183, 63
        %p187 = scmp.lt.s32.totalorder %s184, 1
        %s188 = scalar_select %p187, %s184, 1
        %s189 = smul.addr %s186, 2
        %s190 = sadd.s32 %s188, %s189
        %s191 = smul.addr %s190, 4
        %s192 = scalar_lea.vmem %s0, %s191
        %s193 = smul.u32 32, %s16
        %s194 = smul.u32 2, %s18
      $region28: #{_lambda_.5} parent=23 // pred_fallthru
        _
    $region24: #{_lambda_.5} parent=5 // pred_fallthru
      _
    %p195 = scmp.le.s32.totalorder 1, %s9
    %p196 = scmp.lt.s32.totalorder %s9, 3
    %p197 = pnand %p195, %p196
    %p198 = pneg %p197
    // Predicated region
    $region29: #{_lambda_.5} parent=5 // pred_check
      _
    $region30: #{_lambda_.5} parent=5 // pred_check_branch
      %200 = sbr.rel (%p197) target = $region32
    $region31: #{_lambda_.5} parent=5 // pred_region
      %s201 = ssub.s32 %s9, 1
      %s202 = smul.u32 32, %s19
      %s203 = smul.u32 2, %s21
      %p204 = scmp.lt.s32.totalorder %s202, 63
      %s205 = scalar_select %p204, %s202, 63
      %p206 = scmp.lt.s32.totalorder %s203, 1
      %s207 = scalar_select %p206, %s203, 1
      %s208 = smul.addr %s205, 2
      %s209 = sadd.s32 %s207, %s208
      %s210 = smul.addr %s209, 4
      %s211 = scalar_lea.vmem %s0, %s210
      %p212 = pneg %p56
      %p213 = pneg %p53
      %s214 = smul.u32 32, %s21
      %s215 = smul.u32 2, %s20
      %p216 = scmp.lt.s32.totalorder %s214, 31
      %s217 = scalar_select %p216, %s214, 31
      %p218 = scmp.lt.s32.totalorder %s215, 1
      %s219 = scalar_select %p218, %s215, 1
      %s220 = smul.addr %s217, 2
      %s221 = sadd.s32 %s219, %s220
      %s222 = smul.addr %s221, 4
      %s223 = scalar_lea.vmem %s1, %s222
      %p224 = pneg %p84
      %p225 = pneg %p81
      %s226 = smul.u32 2, %s20
      %p227 = scmp.lt.s32.totalorder %s226, 1
      %s228 = scalar_select %p227, %s226, 1
      %s229 = scalar_lea.vmem %s2, %s228
      %p230 = pneg %p110
      %p231 = pneg %p107
      %p232 = pneg %p138
      %p233 = pneg %p135
      %s234 = smul.u32 32, %s19
      %s235 = smul.u32 2, %s20
      %p236 = scmp.lt.s32.totalorder %s234, 63
      %s237 = scalar_select %p236, %s234, 63
      %p238 = scmp.lt.s32.totalorder %s235, 1
      %s239 = scalar_select %p238, %s235, 1
      %s240 = smul.addr %s237, 2
      %s241 = sadd.s32 %s239, %s240
      %s242 = smul.addr %s241, 4
      %s243 = scalar_lea.vmem %s3, %s242
      %s244 = smul.u32 32, %s19
      %s245 = smul.u32 2, %s21
      %p246 = scmp.lt.s32.totalorder %s244, 63
      %s247 = scalar_select %p246, %s244, 63
      %p248 = scmp.lt.s32.totalorder %s245, 1
      %s249 = scalar_select %p248, %s245, 1
      %s250 = smul.addr %s247, 2
      %s251 = sadd.s32 %s249, %s250
      %s252 = smul.addr %s251, 4
      %s253 = scalar_lea.vmem %s0, %s252
      %s254 = smul.u32 32, %s19
      %s255 = smul.u32 2, %s21
      %s256 = smul.u32 32, %s21
      %s257 = smul.u32 2, %s20
      %p258 = scmp.lt.s32.totalorder %s256, 31
      %s259 = scalar_select %p258, %s256, 31
      %p260 = scmp.lt.s32.totalorder %s257, 1
      %s261 = scalar_select %p260, %s257, 1
      %s262 = smul.addr %s259, 2
      %s263 = sadd.s32 %s261, %s262
      %s264 = smul.addr %s263, 4
      %s265 = scalar_lea.vmem %s1, %s264
      %s266 = smul.u32 32, %s21
      %s267 = smul.u32 2, %s20
      %s268 = smul.u32 2, %s20
      %p269 = scmp.lt.s32.totalorder %s268, 1
      %s270 = scalar_select %p269, %s268, 1
      %s271 = scalar_lea.vmem %s2, %s270
      %s272 = smul.u32 2, %s20
      %s273 = smul.u32 32, %s19
      %s274 = smul.u32 2, %s20
      %p275 = scmp.lt.s32.totalorder %s273, 63
      %s276 = scalar_select %p275, %s273, 63
      %p277 = scmp.lt.s32.totalorder %s274, 1
      %s278 = scalar_select %p277, %s274, 1
      %s279 = smul.addr %s276, 2
      %s280 = sadd.s32 %s278, %s279
      %s281 = smul.addr %s280, 4
      %s282 = scalar_lea.vmem %s3, %s281
      %s283 = smul.u32 32, %s19
      %s284 = smul.u32 2, %s20
      %v285 = vld [vmem:[%s253] sm:$0xff]
      %v286 = vld [vmem:[%s253 + $0x8] sm:$0xff]
      %v287 = vld [vmem:[%s253 + $0x10] sm:$0xff]
      %v288 = vld [vmem:[%s253 + $0x18] sm:$0xff]
      %v289 = vld [vmem:[%s253 + $0x20] sm:$0xff]
      %v290 = vld [vmem:[%s253 + $0x28] sm:$0xff]
      %v291 = vld [vmem:[%s253 + $0x30] sm:$0xff]
      %v292 = vld [vmem:[%s253 + $0x38] sm:$0xff]
      %v293 = vld [vmem:[%s253 + $0x40] sm:$0xff]
      %v294 = vld [vmem:[%s253 + $0x48] sm:$0xff]
      %v295 = vld [vmem:[%s253 + $0x50] sm:$0xff]
      %v296 = vld [vmem:[%s253 + $0x58] sm:$0xff]
      %v297 = vld [vmem:[%s253 + $0x60] sm:$0xff]
      %v298 = vld [vmem:[%s253 + $0x68] sm:$0xff]
      %v299 = vld [vmem:[%s253 + $0x70] sm:$0xff]
      %v300 = vld [vmem:[%s253 + $0x78] sm:$0xff]
      %v301 = vld [vmem:[%s253 + $0x80] sm:$0xff]
      %v302 = vld [vmem:[%s253 + $0x88] sm:$0xff]
      %v303 = vld [vmem:[%s253 + $0x90] sm:$0xff]
      %v304 = vld [vmem:[%s253 + $0x98] sm:$0xff]
      %v305 = vld [vmem:[%s253 + $0xa0] sm:$0xff]
      %v306 = vld [vmem:[%s253 + $0xa8] sm:$0xff]
      %v307 = vld [vmem:[%s253 + $0xb0] sm:$0xff]
      %v308 = vld [vmem:[%s253 + $0xb8] sm:$0xff]
      %v309 = vld [vmem:[%s253 + $0xc0] sm:$0xff]
      %v310 = vld [vmem:[%s253 + $0xc8] sm:$0xff]
      %v311 = vld [vmem:[%s253 + $0xd0] sm:$0xff]
      %v312 = vld [vmem:[%s253 + $0xd8] sm:$0xff]
      %v313 = vld [vmem:[%s253 + $0xe0] sm:$0xff]
      %v314 = vld [vmem:[%s253 + $0xe8] sm:$0xff]
      %v315 = vld [vmem:[%s253 + $0xf0] sm:$0xff]
      %v316 = vld [vmem:[%s253 + $0xf8] sm:$0xff]
      %v317 = vld [vmem:[%s265] sm:$0xff]
      %v318 = vld [vmem:[%s265 + $0x8] sm:$0xff]
      %v319 = vld [vmem:[%s265 + $0x10] sm:$0xff]
      %v320 = vld [vmem:[%s265 + $0x18] sm:$0xff]
      %v321 = vld [vmem:[%s265 + $0x20] sm:$0xff]
      %v322 = vld [vmem:[%s265 + $0x28] sm:$0xff]
      %v323 = vld [vmem:[%s265 + $0x30] sm:$0xff]
      %v324 = vld [vmem:[%s265 + $0x38] sm:$0xff]
      %v325 = vld [vmem:[%s265 + $0x40] sm:$0xff]
      %v326 = vld [vmem:[%s265 + $0x48] sm:$0xff]
      %v327 = vld [vmem:[%s265 + $0x50] sm:$0xff]
      %v328 = vld [vmem:[%s265 + $0x58] sm:$0xff]
      %v329 = vld [vmem:[%s265 + $0x60] sm:$0xff]
      %v330 = vld [vmem:[%s265 + $0x68] sm:$0xff]
      %v331 = vld [vmem:[%s265 + $0x70] sm:$0xff]
      %v332 = vld [vmem:[%s265 + $0x78] sm:$0xff]
      %v333 = vld [vmem:[%s265 + $0x80] sm:$0xff]
      %v334 = vld [vmem:[%s265 + $0x88] sm:$0xff]
      %v335 = vld [vmem:[%s265 + $0x90] sm:$0xff]
      %v336 = vld [vmem:[%s265 + $0x98] sm:$0xff]
      %v337 = vld [vmem:[%s265 + $0xa0] sm:$0xff]
      %v338 = vld [vmem:[%s265 + $0xa8] sm:$0xff]
      %v339 = vld [vmem:[%s265 + $0xb0] sm:$0xff]
      %v340 = vld [vmem:[%s265 + $0xb8] sm:$0xff]
      %v341 = vld [vmem:[%s265 + $0xc0] sm:$0xff]
      %v342 = vld [vmem:[%s265 + $0xc8] sm:$0xff]
      %v343 = vld [vmem:[%s265 + $0xd0] sm:$0xff]
      %v344 = vld [vmem:[%s265 + $0xd8] sm:$0xff]
      %v345 = vld [vmem:[%s265 + $0xe0] sm:$0xff]
      %v346 = vld [vmem:[%s265 + $0xe8] sm:$0xff]
      %v347 = vld [vmem:[%s265 + $0xf0] sm:$0xff]
      %v348 = vld [vmem:[%s265 + $0xf8] sm:$0xff]
      %v349 = vld [vmem:[%s271] sm:$0x3]
      %v351 = vlaneseq
      %v352 = vshrl.u32 %v351, 7
      %v353 = vsub.s32 0, %v352
      %v354 = vrot.slane %v349, %v353
      %v355 = vlaneseq
      %v356 = vshrl.u32 %v355, 7
      %v357 = vsub.s32 1, %v356
      %v358 = vrot.slane %v349, %v357
      %v393 = vunpack.c.l.b16 %v285
      %v394 = vunpack.c.h.b16 %v285
      %v395 = vunpack.c.l.b16 %v286
      %v396 = vunpack.c.h.b16 %v286
      %v397 = vunpack.c.l.b16 %v287
      %v398 = vunpack.c.h.b16 %v287
      %v399 = vunpack.c.l.b16 %v288
      %v400 = vunpack.c.h.b16 %v288
      %v401 = vunpack.c.l.b16 %v289
      %v402 = vunpack.c.h.b16 %v289
      %v403 = vunpack.c.l.b16 %v290
      %v404 = vunpack.c.h.b16 %v290
      %v405 = vunpack.c.l.b16 %v291
      %v406 = vunpack.c.h.b16 %v291
      %v407 = vunpack.c.l.b16 %v292
      %v408 = vunpack.c.h.b16 %v292
      %v409 = vunpack.c.l.b16 %v293
      %v410 = vunpack.c.h.b16 %v293
      %v411 = vunpack.c.l.b16 %v294
      %v412 = vunpack.c.h.b16 %v294
      %v413 = vunpack.c.l.b16 %v295
      %v414 = vunpack.c.h.b16 %v295
      %v415 = vunpack.c.l.b16 %v296
      %v416 = vunpack.c.h.b16 %v296
      %v417 = vunpack.c.l.b16 %v297
      %v418 = vunpack.c.h.b16 %v297
      %v419 = vunpack.c.l.b16 %v298
      %v420 = vunpack.c.h.b16 %v298
      %v421 = vunpack.c.l.b16 %v299
      %v422 = vunpack.c.h.b16 %v299
      %v423 = vunpack.c.l.b16 %v300
      %v424 = vunpack.c.h.b16 %v300
      %v425 = vunpack.c.l.b16 %v301
      %v426 = vunpack.c.h.b16 %v301
      %v427 = vunpack.c.l.b16 %v302
      %v428 = vunpack.c.h.b16 %v302
      %v429 = vunpack.c.l.b16 %v303
      %v430 = vunpack.c.h.b16 %v303
      %v431 = vunpack.c.l.b16 %v304
      %v432 = vunpack.c.h.b16 %v304
      %v433 = vunpack.c.l.b16 %v305
      %v434 = vunpack.c.h.b16 %v305
      %v435 = vunpack.c.l.b16 %v306
      %v436 = vunpack.c.h.b16 %v306
      %v437 = vunpack.c.l.b16 %v307
      %v438 = vunpack.c.h.b16 %v307
      %v439 = vunpack.c.l.b16 %v308
      %v440 = vunpack.c.h.b16 %v308
      %v441 = vunpack.c.l.b16 %v309
      %v442 = vunpack.c.h.b16 %v309
      %v443 = vunpack.c.l.b16 %v310
      %v444 = vunpack.c.h.b16 %v310
      %v445 = vunpack.c.l.b16 %v311
      %v446 = vunpack.c.h.b16 %v311
      %v447 = vunpack.c.l.b16 %v312
      %v448 = vunpack.c.h.b16 %v312
      %v449 = vunpack.c.l.b16 %v313
      %v450 = vunpack.c.h.b16 %v313
      %v451 = vunpack.c.l.b16 %v314
      %v452 = vunpack.c.h.b16 %v314
      %v453 = vunpack.c.l.b16 %v315
      %v454 = vunpack.c.h.b16 %v315
      %v455 = vunpack.c.l.b16 %v316
      %v456 = vunpack.c.h.b16 %v316
      %v457 = vpack.c.b16 %v395, %v393
      %v458 = vpack.c.b16 %v396, %v394
      %v459 = vpack.c.b16 %v399, %v397
      %v460 = vpack.c.b16 %v400, %v398
      %v461 = vpack.c.b16 %v403, %v401
      %v462 = vpack.c.b16 %v404, %v402
      %v463 = vpack.c.b16 %v407, %v405
      %v464 = vpack.c.b16 %v408, %v406
      %v465 = vpack.c.b16 %v411, %v409
      %v466 = vpack.c.b16 %v412, %v410
      %v467 = vpack.c.b16 %v415, %v413
      %v468 = vpack.c.b16 %v416, %v414
      %v469 = vpack.c.b16 %v419, %v417
      %v470 = vpack.c.b16 %v420, %v418
      %v471 = vpack.c.b16 %v423, %v421
      %v472 = vpack.c.b16 %v424, %v422
      %v473 = vpack.c.b16 %v427, %v425
      %v474 = vpack.c.b16 %v428, %v426
      %v475 = vpack.c.b16 %v431, %v429
      %v476 = vpack.c.b16 %v432, %v430
      %v477 = vpack.c.b16 %v435, %v433
      %v478 = vpack.c.b16 %v436, %v434
      %v479 = vpack.c.b16 %v439, %v437
      %v480 = vpack.c.b16 %v440, %v438
      %v481 = vpack.c.b16 %v443, %v441
      %v482 = vpack.c.b16 %v444, %v442
      %v483 = vpack.c.b16 %v447, %v445
      %v484 = vpack.c.b16 %v448, %v446
      %v485 = vpack.c.b16 %v451, %v449
      %v486 = vpack.c.b16 %v452, %v450
      %v487 = vpack.c.b16 %v455, %v453
      %v488 = vpack.c.b16 %v456, %v454
      %v553 = vunpack.c.l.b16 %v317
      %v554 = vunpack.c.h.b16 %v317
      %v555 = vunpack.c.l.b16 %v318
      %v556 = vunpack.c.h.b16 %v318
      %v557 = vunpack.c.l.b16 %v319
      %v558 = vunpack.c.h.b16 %v319
      %v559 = vunpack.c.l.b16 %v320
      %v560 = vunpack.c.h.b16 %v320
      %v561 = vunpack.c.l.b16 %v321
      %v562 = vunpack.c.h.b16 %v321
      %v563 = vunpack.c.l.b16 %v322
      %v564 = vunpack.c.h.b16 %v322
      %v565 = vunpack.c.l.b16 %v323
      %v566 = vunpack.c.h.b16 %v323
      %v567 = vunpack.c.l.b16 %v324
      %v568 = vunpack.c.h.b16 %v324
      %v569 = vunpack.c.l.b16 %v325
      %v570 = vunpack.c.h.b16 %v325
      %v571 = vunpack.c.l.b16 %v326
      %v572 = vunpack.c.h.b16 %v326
      %v573 = vunpack.c.l.b16 %v327
      %v574 = vunpack.c.h.b16 %v327
      %v575 = vunpack.c.l.b16 %v328
      %v576 = vunpack.c.h.b16 %v328
      %v577 = vunpack.c.l.b16 %v329
      %v578 = vunpack.c.h.b16 %v329
      %v579 = vunpack.c.l.b16 %v330
      %v580 = vunpack.c.h.b16 %v330
      %v581 = vunpack.c.l.b16 %v331
      %v582 = vunpack.c.h.b16 %v331
      %v583 = vunpack.c.l.b16 %v332
      %v584 = vunpack.c.h.b16 %v332
      %v585 = vunpack.c.l.b16 %v333
      %v586 = vunpack.c.h.b16 %v333
      %v587 = vunpack.c.l.b16 %v334
      %v588 = vunpack.c.h.b16 %v334
      %v589 = vunpack.c.l.b16 %v335
      %v590 = vunpack.c.h.b16 %v335
      %v591 = vunpack.c.l.b16 %v336
      %v592 = vunpack.c.h.b16 %v336
      %v593 = vunpack.c.l.b16 %v337
      %v594 = vunpack.c.h.b16 %v337
      %v595 = vunpack.c.l.b16 %v338
      %v596 = vunpack.c.h.b16 %v338
      %v597 = vunpack.c.l.b16 %v339
      %v598 = vunpack.c.h.b16 %v339
      %v599 = vunpack.c.l.b16 %v340
      %v600 = vunpack.c.h.b16 %v340
      %v601 = vunpack.c.l.b16 %v341
      %v602 = vunpack.c.h.b16 %v341
      %v603 = vunpack.c.l.b16 %v342
      %v604 = vunpack.c.h.b16 %v342
      %v605 = vunpack.c.l.b16 %v343
      %v606 = vunpack.c.h.b16 %v343
      %v607 = vunpack.c.l.b16 %v344
      %v608 = vunpack.c.h.b16 %v344
      %v609 = vunpack.c.l.b16 %v345
      %v610 = vunpack.c.h.b16 %v345
      %v611 = vunpack.c.l.b16 %v346
      %v612 = vunpack.c.h.b16 %v346
      %v613 = vunpack.c.l.b16 %v347
      %v614 = vunpack.c.h.b16 %v347
      %v615 = vunpack.c.l.b16 %v348
      %v616 = vunpack.c.h.b16 %v348
      %v617 = vpack.c.b16 %v555, %v553
      %v618 = vpack.c.b16 %v556, %v554
      %v619 = vpack.c.b16 %v559, %v557
      %v620 = vpack.c.b16 %v560, %v558
      %v621 = vpack.c.b16 %v563, %v561
      %v622 = vpack.c.b16 %v564, %v562
      %v623 = vpack.c.b16 %v567, %v565
      %v624 = vpack.c.b16 %v568, %v566
      %v625 = vpack.c.b16 %v571, %v569
      %v626 = vpack.c.b16 %v572, %v570
      %v627 = vpack.c.b16 %v575, %v573
      %v628 = vpack.c.b16 %v576, %v574
      %v629 = vpack.c.b16 %v579, %v577
      %v630 = vpack.c.b16 %v580, %v578
      %v631 = vpack.c.b16 %v583, %v581
      %v632 = vpack.c.b16 %v584, %v582
      %v633 = vpack.c.b16 %v587, %v585
      %v634 = vpack.c.b16 %v588, %v586
      %v635 = vpack.c.b16 %v591, %v589
      %v636 = vpack.c.b16 %v592, %v590
      %v637 = vpack.c.b16 %v595, %v593
      %v638 = vpack.c.b16 %v596, %v594
      %v639 = vpack.c.b16 %v599, %v597
      %v640 = vpack.c.b16 %v600, %v598
      %v641 = vpack.c.b16 %v603, %v601
      %v642 = vpack.c.b16 %v604, %v602
      %v643 = vpack.c.b16 %v607, %v605
      %v644 = vpack.c.b16 %v608, %v606
      %v645 = vpack.c.b16 %v611, %v609
      %v646 = vpack.c.b16 %v612, %v610
      %v647 = vpack.c.b16 %v615, %v613
      %v648 = vpack.c.b16 %v616, %v614
      %681 = vmatprep.subr.bf16.mxu0 %v618
      %682 = vmatpush1.bf16.msra.mxu0 %v617
      %683 = vmatprep.subr.bf16.mxu0 %v620
      %684 = vmatpush1.bf16.msra.mxu0 %v619
      %685 = vmatprep.subr.bf16.mxu0 %v622
      %686 = vmatpush1.bf16.msra.mxu0 %v621
      %687 = vmatprep.subr.bf16.mxu0 %v624
      %688 = vmatpush1.bf16.msra.mxu0 %v623
      %689 = vmatprep.subr.bf16.mxu0 %v626
      %690 = vmatpush1.bf16.msra.mxu0 %v625
      %691 = vmatprep.subr.bf16.mxu0 %v628
      %692 = vmatpush1.bf16.msra.mxu0 %v627
      %693 = vmatprep.subr.bf16.mxu0 %v630
      %694 = vmatpush1.bf16.msra.mxu0 %v629
      %695 = vmatprep.subr.bf16.mxu0 %v632
      %696 = vmatpush1.bf16.msra.mxu0 %v631
      %697 = vmatprep.subr.bf16.mxu0 %v634
      %698 = vmatpush1.bf16.msra.mxu0 %v633
      %699 = vmatprep.subr.bf16.mxu0 %v636
      %700 = vmatpush1.bf16.msra.mxu0 %v635
      %701 = vmatprep.subr.bf16.mxu0 %v638
      %702 = vmatpush1.bf16.msra.mxu0 %v637
      %703 = vmatprep.subr.bf16.mxu0 %v640
      %704 = vmatpush1.bf16.msra.mxu0 %v639
      %705 = vmatprep.subr.bf16.mxu0 %v642
      %706 = vmatpush1.bf16.msra.mxu0 %v641
      %707 = vmatprep.subr.bf16.mxu0 %v644
      %708 = vmatpush1.bf16.msra.mxu0 %v643
      %709 = vmatprep.subr.bf16.mxu0 %v646
      %710 = vmatpush1.bf16.msra.mxu0 %v645
      %711 = vmatprep.subr.bf16.mxu0 %v648
      %712 = vmatpush1.bf16.msra.mxu0 %v647
      %713 = vmatprep.mubr.bf16.mxu0 %v458
      %714 = vmatmul.mubr.bf16.gmra.mrb[0].mxu0 %v457
      %v715 = vpop.f32.mrb[0].mxu0
      %v716 = vadd.f32 %v354, %v715
      %v717 = vpop.f32.mrb[0].mxu0
      %v718 = vadd.f32 %v358, %v717
      %v719 = vpop.f32.mrb[0].mxu0
      %v720 = vadd.f32 %v354, %v719
      %v721 = vpop.f32.mrb[0].mxu0
      %v722 = vadd.f32 %v358, %v721
      %723 = vmatprep.mubr.bf16.mxu0 %v460
      %724 = vmatmul.mubr.bf16.gmra.mrb[0].mxu0 %v459
      %v725 = vpop.f32.mrb[0].mxu0
      %v726 = vadd.f32 %v354, %v725
      %v727 = vpop.f32.mrb[0].mxu0
      %v728 = vadd.f32 %v358, %v727
      %v729 = vpop.f32.mrb[0].mxu0
      %v730 = vadd.f32 %v354, %v729
      %v731 = vpop.f32.mrb[0].mxu0
      %v732 = vadd.f32 %v358, %v731
      %733 = vmatprep.mubr.bf16.mxu0 %v462
      %734 = vmatmul.mubr.bf16.gmra.mrb[0].mxu0 %v461
      %v735 = vpop.f32.mrb[0].mxu0
      %v736 = vadd.f32 %v354, %v735
      %v737 = vpop.f32.mrb[0].mxu0
      %v738 = vadd.f32 %v358, %v737
      %v739 = vpop.f32.mrb[0].mxu0
      %v740 = vadd.f32 %v354, %v739
      %v741 = vpop.f32.mrb[0].mxu0
      %v742 = vadd.f32 %v358, %v741
      %743 = vmatprep.mubr.bf16.mxu0 %v464
      %744 = vmatmul.mubr.bf16.gmra.mrb[0].mxu0 %v463
      %v745 = vpop.f32.mrb[0].mxu0
      %v746 = vadd.f32 %v354, %v745
      %v747 = vpop.f32.mrb[0].mxu0
      %v748 = vadd.f32 %v358, %v747
      %v749 = vpop.f32.mrb[0].mxu0
      %v750 = vadd.f32 %v354, %v749
      %v751 = vpop.f32.mrb[0].mxu0
      %v752 = vadd.f32 %v358, %v751
      %753 = vmatprep.mubr.bf16.mxu0 %v466
      %754 = vmatmul.mubr.bf16.gmra.mrb[0].mxu0 %v465
      %v755 = vpop.f32.mrb[0].mxu0
      %v756 = vadd.f32 %v354, %v755
      %v757 = vpop.f32.mrb[0].mxu0
      %v758 = vadd.f32 %v358, %v757
      %v759 = vpop.f32.mrb[0].mxu0
      %v760 = vadd.f32 %v354, %v759
      %v761 = vpop.f32.mrb[0].mxu0
      %v762 = vadd.f32 %v358, %v761
      %763 = vmatprep.mubr.bf16.mxu0 %v468
      %764 = vmatmul.mubr.bf16.gmra.mrb[0].mxu0 %v467
      %v765 = vpop.f32.mrb[0].mxu0
      %v766 = vadd.f32 %v354, %v765
      %v767 = vpop.f32.mrb[0].mxu0
      %v768 = vadd.f32 %v358, %v767
      %v769 = vpop.f32.mrb[0].mxu0
      %v770 = vadd.f32 %v354, %v769
      %v771 = vpop.f32.mrb[0].mxu0
      %v772 = vadd.f32 %v358, %v771
      %773 = vmatprep.mubr.bf16.mxu0 %v470
      %774 = vmatmul.mubr.bf16.gmra.mrb[0].mxu0 %v469
      %v775 = vpop.f32.mrb[0].mxu0
      %v776 = vadd.f32 %v354, %v775
      %v777 = vpop.f32.mrb[0].mxu0
      %v778 = vadd.f32 %v358, %v777
      %v779 = vpop.f32.mrb[0].mxu0
      %v780 = vadd.f32 %v354, %v779
      %v781 = vpop.f32.mrb[0].mxu0
      %v782 = vadd.f32 %v358, %v781
      %783 = vmatprep.mubr.bf16.mxu0 %v472
      %784 = vmatmul.mubr.bf16.gmra.mrb[0].mxu0 %v471
      %v785 = vpop.f32.mrb[0].mxu0
      %v786 = vadd.f32 %v354, %v785
      %v787 = vpop.f32.mrb[0].mxu0
      %v788 = vadd.f32 %v358, %v787
      %v789 = vpop.f32.mrb[0].mxu0
      %v790 = vadd.f32 %v354, %v789
      %v791 = vpop.f32.mrb[0].mxu0
      %v792 = vadd.f32 %v358, %v791
      %793 = vmatprep.mubr.bf16.mxu0 %v474
      %794 = vmatmul.mubr.bf16.gmra.mrb[0].mxu0 %v473
      %v795 = vpop.f32.mrb[0].mxu0
      %v796 = vadd.f32 %v354, %v795
      %v797 = vpop.f32.mrb[0].mxu0
      %v798 = vadd.f32 %v358, %v797
      %v799 = vpop.f32.mrb[0].mxu0
      %v800 = vadd.f32 %v354, %v799
      %v801 = vpop.f32.mrb[0].mxu0
      %v802 = vadd.f32 %v358, %v801
      %803 = vmatprep.mubr.bf16.mxu0 %v476
      %804 = vmatmul.mubr.bf16.gmra.mrb[0].mxu0 %v475
      %v805 = vpop.f32.mrb[0].mxu0
      %v806 = vadd.f32 %v354, %v805
      %v807 = vpop.f32.mrb[0].mxu0
      %v808 = vadd.f32 %v358, %v807
      %v809 = vpop.f32.mrb[0].mxu0
      %v810 = vadd.f32 %v354, %v809
      %v811 = vpop.f32.mrb[0].mxu0
      %v812 = vadd.f32 %v358, %v811
      %813 = vmatprep.mubr.bf16.mxu0 %v478
      %814 = vmatmul.mubr.bf16.gmra.mrb[0].mxu0 %v477
      %v815 = vpop.f32.mrb[0].mxu0
      %v816 = vadd.f32 %v354, %v815
      %v817 = vpop.f32.mrb[0].mxu0
      %v818 = vadd.f32 %v358, %v817
      %v819 = vpop.f32.mrb[0].mxu0
      %v820 = vadd.f32 %v354, %v819
      %v821 = vpop.f32.mrb[0].mxu0
      %v822 = vadd.f32 %v358, %v821
      %823 = vmatprep.mubr.bf16.mxu0 %v480
      %824 = vmatmul.mubr.bf16.gmra.mrb[0].mxu0 %v479
      %v825 = vpop.f32.mrb[0].mxu0
      %v826 = vadd.f32 %v354, %v825
      %v827 = vpop.f32.mrb[0].mxu0
      %v828 = vadd.f32 %v358, %v827
      %v829 = vpop.f32.mrb[0].mxu0
      %v830 = vadd.f32 %v354, %v829
      %v831 = vpop.f32.mrb[0].mxu0
      %v832 = vadd.f32 %v358, %v831
      %833 = vmatprep.mubr.bf16.mxu0 %v482
      %834 = vmatmul.mubr.bf16.gmra.mrb[0].mxu0 %v481
      %v835 = vpop.f32.mrb[0].mxu0
      %v836 = vadd.f32 %v354, %v835
      %v837 = vpop.f32.mrb[0].mxu0
      %v838 = vadd.f32 %v358, %v837
      %v839 = vpop.f32.mrb[0].mxu0
      %v840 = vadd.f32 %v354, %v839
      %v841 = vpop.f32.mrb[0].mxu0
      %v842 = vadd.f32 %v358, %v841
      %843 = vmatprep.mubr.bf16.mxu0 %v484
      %844 = vmatmul.mubr.bf16.gmra.mrb[0].mxu0 %v483
      %v845 = vpop.f32.mrb[0].mxu0
      %v846 = vadd.f32 %v354, %v845
      %v847 = vpop.f32.mrb[0].mxu0
      %v848 = vadd.f32 %v358, %v847
      %v849 = vpop.f32.mrb[0].mxu0
      %v850 = vadd.f32 %v354, %v849
      %v851 = vpop.f32.mrb[0].mxu0
      %v852 = vadd.f32 %v358, %v851
      %853 = vmatprep.mubr.bf16.mxu0 %v486
      %854 = vmatmul.mubr.bf16.gmra.mrb[0].mxu0 %v485
      %v855 = vpop.f32.mrb[0].mxu0
      %v856 = vadd.f32 %v354, %v855
      %v857 = vpop.f32.mrb[0].mxu0
      %v858 = vadd.f32 %v358, %v857
      %v859 = vpop.f32.mrb[0].mxu0
      %v860 = vadd.f32 %v354, %v859
      %v861 = vpop.f32.mrb[0].mxu0
      %v862 = vadd.f32 %v358, %v861
      %863 = vmatprep.mubr.bf16.mxu0 %v488
      %864 = vmatmul.mubr.bf16.gmra.mrb[0].mxu0 %v487
      %v865 = vpop.f32.mrb[0].mxu0
      %v866 = vadd.f32 %v354, %v865
      %v867 = vpop.f32.mrb[0].mxu0
      %v868 = vadd.f32 %v358, %v867
      %v869 = vpop.f32.mrb[0].mxu0
      %v870 = vadd.f32 %v354, %v869
      %v871 = vpop.f32.mrb[0].mxu0
      %v872 = vadd.f32 %v358, %v871
      %873 = vdwg.mxu0
      %s874 = smul.u32 %s20, 256
      %v875 = vlaneseq
      %v876 = vand.u32 %v875, 127
      %v877 = vadd.s32 %v876, 128
      %v878 = vstv %s874
      %v879 = vadd.s32 %v878, %v876
      %v880 = vadd.s32 %v878, %v877
      %vm881 = vcmp.lt.s32.totalorder %v879, 128
      %vm882 = vcmp.lt.s32.totalorder %v880, 128
      %v883 = vmax.f32 %v716, 0.0
      %v884 = vmax.f32 %v718, 0.0
      %v885 = vmax.f32 %v720, 0.0
      %v886 = vmax.f32 %v722, 0.0
      %v887 = vmax.f32 %v726, 0.0
      %v888 = vmax.f32 %v728, 0.0
      %v889 = vmax.f32 %v730, 0.0
      %v890 = vmax.f32 %v732, 0.0
      %v891 = vmax.f32 %v736, 0.0
      %v892 = vmax.f32 %v738, 0.0
      %v893 = vmax.f32 %v740, 0.0
      %v894 = vmax.f32 %v742, 0.0
      %v895 = vmax.f32 %v746, 0.0
      %v896 = vmax.f32 %v748, 0.0
      %v897 = vmax.f32 %v750, 0.0
      %v898 = vmax.f32 %v752, 0.0
      %v899 = vmax.f32 %v756, 0.0
      %v900 = vmax.f32 %v758, 0.0
      %v901 = vmax.f32 %v760, 0.0
      %v902 = vmax.f32 %v762, 0.0
      %v903 = vmax.f32 %v766, 0.0
      %v904 = vmax.f32 %v768, 0.0
      %v905 = vmax.f32 %v770, 0.0
      %v906 = vmax.f32 %v772, 0.0
      %v907 = vmax.f32 %v776, 0.0
      %v908 = vmax.f32 %v778, 0.0
      %v909 = vmax.f32 %v780, 0.0
      %v910 = vmax.f32 %v782, 0.0
      %v911 = vmax.f32 %v786, 0.0
      %v912 = vmax.f32 %v788, 0.0
      %v913 = vmax.f32 %v790, 0.0
      %v914 = vmax.f32 %v792, 0.0
      %v915 = vmax.f32 %v796, 0.0
      %v916 = vmax.f32 %v798, 0.0
      %v917 = vmax.f32 %v800, 0.0
      %v918 = vmax.f32 %v802, 0.0
      %v919 = vmax.f32 %v806, 0.0
      %v920 = vmax.f32 %v808, 0.0
      %v921 = vmax.f32 %v810, 0.0
      %v922 = vmax.f32 %v812, 0.0
      %v923 = vmax.f32 %v816, 0.0
      %v924 = vmax.f32 %v818, 0.0
      %v925 = vmax.f32 %v820, 0.0
      %v926 = vmax.f32 %v822, 0.0
      %v927 = vmax.f32 %v826, 0.0
      %v928 = vmax.f32 %v828, 0.0
      %v929 = vmax.f32 %v830, 0.0
      %v930 = vmax.f32 %v832, 0.0
      %v931 = vmax.f32 %v836, 0.0
      %v932 = vmax.f32 %v838, 0.0
      %v933 = vmax.f32 %v840, 0.0
      %v934 = vmax.f32 %v842, 0.0
      %v935 = vmax.f32 %v846, 0.0
      %v936 = vmax.f32 %v848, 0.0
      %v937 = vmax.f32 %v850, 0.0
      %v938 = vmax.f32 %v852, 0.0
      %v939 = vmax.f32 %v856, 0.0
      %v940 = vmax.f32 %v858, 0.0
      %v941 = vmax.f32 %v860, 0.0
      %v942 = vmax.f32 %v862, 0.0
      %v943 = vmax.f32 %v866, 0.0
      %v944 = vmax.f32 %v868, 0.0
      %v945 = vmax.f32 %v870, 0.0
      %v946 = vmax.f32 %v872, 0.0
      %v947 = vsel %vm881, 1, 0
      %v948 = vsel %vm882, 1, 0
      %vm949 = vcmp.eq.s32.totalorder %v947, 1
      %vm950 = vcmp.eq.s32.totalorder %v948, 1
      %v951 = vsel %vm949, %v883, %v716
      %v952 = vsel %vm950, %v884, %v718
      %v953 = vsel %vm949, %v885, %v720
      %v954 = vsel %vm950, %v886, %v722
      %v955 = vsel %vm949, %v887, %v726
      %v956 = vsel %vm950, %v888, %v728
      %v957 = vsel %vm949, %v889, %v730
      %v958 = vsel %vm950, %v890, %v732
      %v959 = vsel %vm949, %v891, %v736
      %v960 = vsel %vm950, %v892, %v738
      %v961 = vsel %vm949, %v893, %v740
      %v962 = vsel %vm950, %v894, %v742
      %v963 = vsel %vm949, %v895, %v746
      %v964 = vsel %vm950, %v896, %v748
      %v965 = vsel %vm949, %v897, %v750
      %v966 = vsel %vm950, %v898, %v752
      %v967 = vsel %vm949, %v899, %v756
      %v968 = vsel %vm950, %v900, %v758
      %v969 = vsel %vm949, %v901, %v760
      %v970 = vsel %vm950, %v902, %v762
      %v971 = vsel %vm949, %v903, %v766
      %v972 = vsel %vm950, %v904, %v768
      %v973 = vsel %vm949, %v905, %v770
      %v974 = vsel %vm950, %v906, %v772
      %v975 = vsel %vm949, %v907, %v776
      %v976 = vsel %vm950, %v908, %v778
      %v977 = vsel %vm949, %v909, %v780
      %v978 = vsel %vm950, %v910, %v782
      %v979 = vsel %vm949, %v911, %v786
      %v980 = vsel %vm950, %v912, %v788
      %v981 = vsel %vm949, %v913, %v790
      %v982 = vsel %vm950, %v914, %v792
      %v983 = vsel %vm949, %v915, %v796
      %v984 = vsel %vm950, %v916, %v798
      %v985 = vsel %vm949, %v917, %v800
      %v986 = vsel %vm950, %v918, %v802
      %v987 = vsel %vm949, %v919, %v806
      %v988 = vsel %vm950, %v920, %v808
      %v989 = vsel %vm949, %v921, %v810
      %v990 = vsel %vm950, %v922, %v812
      %v991 = vsel %vm949, %v923, %v816
      %v992 = vsel %vm950, %v924, %v818
      %v993 = vsel %vm949, %v925, %v820
      %v994 = vsel %vm950, %v926, %v822
      %v995 = vsel %vm949, %v927, %v826
      %v996 = vsel %vm950, %v928, %v828
      %v997 = vsel %vm949, %v929, %v830
      %v998 = vsel %vm950, %v930, %v832
      %v999 = vsel %vm949, %v931, %v836
      %v1000 = vsel %vm950, %v932, %v838
      %v1001 = vsel %vm949, %v933, %v840
      %v1002 = vsel %vm950, %v934, %v842
      %v1003 = vsel %vm949, %v935, %v846
      %v1004 = vsel %vm950, %v936, %v848
      %v1005 = vsel %vm949, %v937, %v850
      %v1006 = vsel %vm950, %v938, %v852
      %v1007 = vsel %vm949, %v939, %v856
      %v1008 = vsel %vm950, %v940, %v858
      %v1009 = vsel %vm949, %v941, %v860
      %v1010 = vsel %vm950, %v942, %v862
      %v1011 = vsel %vm949, %v943, %v866
      %v1012 = vsel %vm950, %v944, %v868
      %v1013 = vsel %vm949, %v945, %v870
      %v1014 = vsel %vm950, %v946, %v872
      %v1015 = vpack.c.bf16 %v953, %v951
      %v1016 = vpack.c.bf16 %v954, %v952
      %v1017 = vpack.c.bf16 %v957, %v955
      %v1018 = vpack.c.bf16 %v958, %v956
      %v1019 = vpack.c.bf16 %v961, %v959
      %v1020 = vpack.c.bf16 %v962, %v960
      %v1021 = vpack.c.bf16 %v965, %v963
      %v1022 = vpack.c.bf16 %v966, %v964
      %v1023 = vpack.c.bf16 %v969, %v967
      %v1024 = vpack.c.bf16 %v970, %v968
      %v1025 = vpack.c.bf16 %v973, %v971
      %v1026 = vpack.c.bf16 %v974, %v972
      %v1027 = vpack.c.bf16 %v977, %v975
      %v1028 = vpack.c.bf16 %v978, %v976
      %v1029 = vpack.c.bf16 %v981, %v979
      %v1030 = vpack.c.bf16 %v982, %v980
      %v1031 = vpack.c.bf16 %v985, %v983
      %v1032 = vpack.c.bf16 %v986, %v984
      %v1033 = vpack.c.bf16 %v989, %v987
      %v1034 = vpack.c.bf16 %v990, %v988
      %v1035 = vpack.c.bf16 %v993, %v991
      %v1036 = vpack.c.bf16 %v994, %v992
      %v1037 = vpack.c.bf16 %v997, %v995
      %v1038 = vpack.c.bf16 %v998, %v996
      %v1039 = vpack.c.bf16 %v1001, %v999
      %v1040 = vpack.c.bf16 %v1002, %v1000
      %v1041 = vpack.c.bf16 %v1005, %v1003
      %v1042 = vpack.c.bf16 %v1006, %v1004
      %v1043 = vpack.c.bf16 %v1009, %v1007
      %v1044 = vpack.c.bf16 %v1010, %v1008
      %v1045 = vpack.c.bf16 %v1013, %v1011
      %v1046 = vpack.c.bf16 %v1014, %v1012
      %v1079 = vunpack.c.l.b16 %v1015
      %v1080 = vunpack.c.l.b16 %v1016
      %v1081 = vunpack.c.h.b16 %v1015
      %v1082 = vunpack.c.h.b16 %v1016
      %v1083 = vunpack.c.l.b16 %v1017
      %v1084 = vunpack.c.l.b16 %v1018
      %v1085 = vunpack.c.h.b16 %v1017
      %v1086 = vunpack.c.h.b16 %v1018
      %v1087 = vunpack.c.l.b16 %v1019
      %v1088 = vunpack.c.l.b16 %v1020
      %v1089 = vunpack.c.h.b16 %v1019
      %v1090 = vunpack.c.h.b16 %v1020
      %v1091 = vunpack.c.l.b16 %v1021
      %v1092 = vunpack.c.l.b16 %v1022
      %v1093 = vunpack.c.h.b16 %v1021
      %v1094 = vunpack.c.h.b16 %v1022
      %v1095 = vunpack.c.l.b16 %v1023
      %v1096 = vunpack.c.l.b16 %v1024
      %v1097 = vunpack.c.h.b16 %v1023
      %v1098 = vunpack.c.h.b16 %v1024
      %v1099 = vunpack.c.l.b16 %v1025
      %v1100 = vunpack.c.l.b16 %v1026
      %v1101 = vunpack.c.h.b16 %v1025
      %v1102 = vunpack.c.h.b16 %v1026
      %v1103 = vunpack.c.l.b16 %v1027
      %v1104 = vunpack.c.l.b16 %v1028
      %v1105 = vunpack.c.h.b16 %v1027
      %v1106 = vunpack.c.h.b16 %v1028
      %v1107 = vunpack.c.l.b16 %v1029
      %v1108 = vunpack.c.l.b16 %v1030
      %v1109 = vunpack.c.h.b16 %v1029
      %v1110 = vunpack.c.h.b16 %v1030
      %v1111 = vunpack.c.l.b16 %v1031
      %v1112 = vunpack.c.l.b16 %v1032
      %v1113 = vunpack.c.h.b16 %v1031
      %v1114 = vunpack.c.h.b16 %v1032
      %v1115 = vunpack.c.l.b16 %v1033
      %v1116 = vunpack.c.l.b16 %v1034
      %v1117 = vunpack.c.h.b16 %v1033
      %v1118 = vunpack.c.h.b16 %v1034
      %v1119 = vunpack.c.l.b16 %v1035
      %v1120 = vunpack.c.l.b16 %v1036
      %v1121 = vunpack.c.h.b16 %v1035
      %v1122 = vunpack.c.h.b16 %v1036
      %v1123 = vunpack.c.l.b16 %v1037
      %v1124 = vunpack.c.l.b16 %v1038
      %v1125 = vunpack.c.h.b16 %v1037
      %v1126 = vunpack.c.h.b16 %v1038
      %v1127 = vunpack.c.l.b16 %v1039
      %v1128 = vunpack.c.l.b16 %v1040
      %v1129 = vunpack.c.h.b16 %v1039
      %v1130 = vunpack.c.h.b16 %v1040
      %v1131 = vunpack.c.l.b16 %v1041
      %v1132 = vunpack.c.l.b16 %v1042
      %v1133 = vunpack.c.h.b16 %v1041
      %v1134 = vunpack.c.h.b16 %v1042
      %v1135 = vunpack.c.l.b16 %v1043
      %v1136 = vunpack.c.l.b16 %v1044
      %v1137 = vunpack.c.h.b16 %v1043
      %v1138 = vunpack.c.h.b16 %v1044
      %v1139 = vunpack.c.l.b16 %v1045
      %v1140 = vunpack.c.l.b16 %v1046
      %v1141 = vunpack.c.h.b16 %v1045
      %v1142 = vunpack.c.h.b16 %v1046
      %v1143 = vpack.c.b16 %v1080, %v1079
      %v1144 = vpack.c.b16 %v1082, %v1081
      %v1145 = vpack.c.b16 %v1084, %v1083
      %v1146 = vpack.c.b16 %v1086, %v1085
      %v1147 = vpack.c.b16 %v1088, %v1087
      %v1148 = vpack.c.b16 %v1090, %v1089
      %v1149 = vpack.c.b16 %v1092, %v1091
      %v1150 = vpack.c.b16 %v1094, %v1093
      %v1151 = vpack.c.b16 %v1096, %v1095
      %v1152 = vpack.c.b16 %v1098, %v1097
      %v1153 = vpack.c.b16 %v1100, %v1099
      %v1154 = vpack.c.b16 %v1102, %v1101
      %v1155 = vpack.c.b16 %v1104, %v1103
      %v1156 = vpack.c.b16 %v1106, %v1105
      %v1157 = vpack.c.b16 %v1108, %v1107
      %v1158 = vpack.c.b16 %v1110, %v1109
      %v1159 = vpack.c.b16 %v1112, %v1111
      %v1160 = vpack.c.b16 %v1114, %v1113
      %v1161 = vpack.c.b16 %v1116, %v1115
      %v1162 = vpack.c.b16 %v1118, %v1117
      %v1163 = vpack.c.b16 %v1120, %v1119
      %v1164 = vpack.c.b16 %v1122, %v1121
      %v1165 = vpack.c.b16 %v1124, %v1123
      %v1166 = vpack.c.b16 %v1126, %v1125
      %v1167 = vpack.c.b16 %v1128, %v1127
      %v1168 = vpack.c.b16 %v1130, %v1129
      %v1169 = vpack.c.b16 %v1132, %v1131
      %v1170 = vpack.c.b16 %v1134, %v1133
      %v1171 = vpack.c.b16 %v1136, %v1135
      %v1172 = vpack.c.b16 %v1138, %v1137
      %v1173 = vpack.c.b16 %v1140, %v1139
      %v1174 = vpack.c.b16 %v1142, %v1141
      %1207 = vst [vmem:[%s282] sm:$0xff] %v1143
      %1208 = vst [vmem:[%s282 + $0x8] sm:$0xff] %v1144
      %1209 = vst [vmem:[%s282 + $0x10] sm:$0xff] %v1145
      %1210 = vst [vmem:[%s282 + $0x18] sm:$0xff] %v1146
      %1211 = vst [vmem:[%s282 + $0x20] sm:$0xff] %v1147
      %1212 = vst [vmem:[%s282 + $0x28] sm:$0xff] %v1148
      %1213 = vst [vmem:[%s282 + $0x30] sm:$0xff] %v1149
      %1214 = vst [vmem:[%s282 + $0x38] sm:$0xff] %v1150
      %1215 = vst [vmem:[%s282 + $0x40] sm:$0xff] %v1151
      %1216 = vst [vmem:[%s282 + $0x48] sm:$0xff] %v1152
      %1217 = vst [vmem:[%s282 + $0x50] sm:$0xff] %v1153
      %1218 = vst [vmem:[%s282 + $0x58] sm:$0xff] %v1154
      %1219 = vst [vmem:[%s282 + $0x60] sm:$0xff] %v1155
      %1220 = vst [vmem:[%s282 + $0x68] sm:$0xff] %v1156
      %1221 = vst [vmem:[%s282 + $0x70] sm:$0xff] %v1157
      %1222 = vst [vmem:[%s282 + $0x78] sm:$0xff] %v1158
      %1223 = vst [vmem:[%s282 + $0x80] sm:$0xff] %v1159
      %1224 = vst [vmem:[%s282 + $0x88] sm:$0xff] %v1160
      %1225 = vst [vmem:[%s282 + $0x90] sm:$0xff] %v1161
      %1226 = vst [vmem:[%s282 + $0x98] sm:$0xff] %v1162
      %1227 = vst [vmem:[%s282 + $0xa0] sm:$0xff] %v1163
      %1228 = vst [vmem:[%s282 + $0xa8] sm:$0xff] %v1164
      %1229 = vst [vmem:[%s282 + $0xb0] sm:$0xff] %v1165
      %1230 = vst [vmem:[%s282 + $0xb8] sm:$0xff] %v1166
      %1231 = vst [vmem:[%s282 + $0xc0] sm:$0xff] %v1167
      %1232 = vst [vmem:[%s282 + $0xc8] sm:$0xff] %v1168
      %1233 = vst [vmem:[%s282 + $0xd0] sm:$0xff] %v1169
      %1234 = vst [vmem:[%s282 + $0xd8] sm:$0xff] %v1170
      %1235 = vst [vmem:[%s282 + $0xe0] sm:$0xff] %v1171
      %1236 = vst [vmem:[%s282 + $0xe8] sm:$0xff] %v1172
      %1237 = vst [vmem:[%s282 + $0xf0] sm:$0xff] %v1173
      %1238 = vst [vmem:[%s282 + $0xf8] sm:$0xff] %v1174
      %s1239 = smul.u32 32, %s19
      %s1240 = smul.u32 2, %s20
      %p1241 = scmp.lt.s32.totalorder %s1239, 63
      %s1242 = scalar_select %p1241, %s1239, 63
      %p1243 = scmp.lt.s32.totalorder %s1240, 1
      %s1244 = scalar_select %p1243, %s1240, 1
      %s1245 = smul.addr %s1242, 2
      %s1246 = sadd.s32 %s1244, %s1245
      %s1247 = smul.addr %s1246, 4
      %s1248 = scalar_lea.vmem %s3, %s1247
      // Predicated region
      $region33: #{_lambda_.5} parent=31 // pred_check
        %p1249 = pneg %p135
      $region34: #{_lambda_.5} parent=31 // pred_check_branch
        %1251 = sbr.rel (%p1249) target = $region36
      $region35: #{_lambda_.5} parent=31 // pred_region
        %s1252 = smul.u32 32, %s19
        %s1253 = smul.u32 2, %s20
      $region36: #{_lambda_.5} parent=31 // pred_fallthru
        _
    $region32: #{_lambda_.5} parent=5 // pred_fallthru
      _
    %p1254 = scmp.le.s32.totalorder 2, %s9
    // Predicated region
    $region37: #{_lambda_.5} parent=5 // pred_check
      %p1255 = pneg %p1254
    $region38: #{_lambda_.5} parent=5 // pred_check_branch
      %1257 = sbr.rel (%p1255) target = $region40
    $region39: #{_lambda_.5} parent=5 // pred_region
      %s1258 = ssub.s32 %s9, 2
      // Predicated region
      $region41: #{_lambda_.5} parent=39 // pred_check
        %p1259 = pneg %p141
      $region42: #{_lambda_.5} parent=39 // pred_check_branch
        %1261 = sbr.rel (%p1259) target = $region44
      $region43: #{_lambda_.5} parent=39 // pred_region
        %s1262 = smul.u32 32, %s22
        %s1263 = smul.u32 2, %s23
        %p1264 = scmp.lt.s32.totalorder %s1262, 63
        %s1265 = scalar_select %p1264, %s1262, 63
        %p1266 = scmp.lt.s32.totalorder %s1263, 1
        %s1267 = scalar_select %p1266, %s1263, 1
        %s1268 = smul.addr %s1265, 2
        %s1269 = sadd.s32 %s1267, %s1268
        %s1270 = smul.addr %s1269, 4
        %s1271 = scalar_lea.vmem %s3, %s1270
      $region44: #{_lambda_.5} parent=39 // pred_fallthru
        _
    $region40: #{_lambda_.5} parent=5 // pred_fallthru
      _
  $region6: #{_lambda_.5} parent=0 // loop_footer
    %s13 = sadd.s32 1, %s9
  $region7: #{_lambda_.5} parent=0 // loop_footer_branch
    %8 = sbr.rel target = $region3
  $region8: #{_lambda_.5} parent=0 // loop_exit
    _

// kernel: _lambda_.6
$region0: #{_lambda_.6}
  #allocation0 [shape = 'u32[]', space=smem, size = 0x4, offset = 0x4, fixed_abs, tag = 'smem constant byte address 0x4 - core index']
  #allocation1 [shape = 'u32[144,128]{1,0:T(1,128)}', space=vmem, size = 0x12000, scoped, tag = 'internal scratch']
  #allocation2 [shape = 'f32[256,1]{1,0:T(8,128)}', space=vmem, size = 0x20000, scoped, tag = 'scratch operand']
  #allocation3 [shape = 'f32[256,1]{1,0:T(8,128)}', space=vmem, size = 0x20000, scoped, tag = 'scratch operand']
  #allocation4 [shape = 'f32[256,128]{1,0:T(8,128)}', space=vmem, size = 0x20000, scoped, tag = 'scratch operand']
  %s0 = inlined_call_operand.vmem [shape: bf16[2,256,256], index: 0, kind: input, shape index: {}, may-alias: {0,1,2}]
  %s1 = inlined_call_operand.vmem [shape: bf16[2,256,256], index: 1, kind: input, shape index: {}, may-alias: {0,1,2}]
  %s2 = inlined_call_operand.vmem [shape: bf16[2,256,256], index: 2, kind: input, shape index: {}, may-alias: {0,1,2}]
  %s3 = inlined_call_operand.vmem [shape: bf16[2,256,128], index: 3, kind: output, shape index: {}]
  %s4 = sld [smem:[#allocation0]]
  $region176: #{_lambda_.6} parent=0
    _
  %s6 = ssub.s32 1, %s4
  %s7 = scalar_select 0, %s6, %s4
  $region1: #{_lambda_.6} parent=0
    #allocation5 [shape = 'u8[131072]{0}', space=vmem, size = 0x20000, scoped, tag = 'input window, operand 0']
    #allocation6 [shape = 'u8[131072]{0}', space=vmem, size = 0x20000, scoped, tag = 'input window, operand 1']
    #allocation7 [shape = 'u8[131072]{0}', space=vmem, size = 0x20000, scoped, tag = 'input window, operand 2']
    loop: start=0, step=1, limit=4
    $region2: #{_lambda_.6} parent=1 // loop_pre_header
      _
    $region3: #{_lambda_.6} parent=1 // loop_header
      %s9 = sphi 0, %s13
      %p10 = scmp.ge.s32.totalorder %s9, 4
      %s16 = sphi 0, %s35
      %s17 = sphi 0, %s31
      %s18 = sphi 0, %s27
      %s19 = sphi 0, %s16
      %s20 = sphi 0, %s17
      %s21 = sphi 0, %s18
      %s22 = sphi 0, %s19
      %s23 = sphi 0, %s20
      %s24 = sphi 0, %s21
      %s40 = sphi 0, %s42
      %s43 = sphi 0, %s40
      %s44 = sphi 0, %s43
      %s60 = sphi 0, %s44
      %s68 = sphi 0, %s70
      %s71 = sphi 0, %s68
      %s72 = sphi 0, %s71
      %s88 = sphi 0, %s72
      %s96 = sphi 0, %s98
      %s99 = sphi 0, %s96
      %s100 = sphi 0, %s99
      %s116 = sphi 0, %s100
      %s124 = sphi 0, %s126
      %s127 = sphi 0, %s124
      %s128 = sphi 0, %s127
      %s144 = sphi 0, %s128
    $region4: #{_lambda_.6} parent=1 // loop_header_branch
      %12 = sbr.rel (%p10) target = $region8
    $region5: #{_lambda_.6} parent=1 // loop_body
      %s14 = ssub.s32 %s9, 1
      %s15 = ssub.s32 %s9, 2
      %s25 = sadd.s32 1, %s18
      %p26 = scmp.ge.s32.totalorder %s25, 1
      %s27 = scalar_select %p26, 0, %s25
      %s28 = sadd.s32 1, %s17
      %s29 = scalar_select %p26, %s28, %s17
      %p30 = scmp.ge.s32.totalorder %s29, 1
      %s31 = scalar_select %p30, 0, %s29
      %s32 = sadd.s32 1, %s16
      %s33 = scalar_select %p30, %s32, %s16
      %p34 = scmp.ge.s32.totalorder %s33, 2
      %s35 = scalar_select %p34, 0, %s33
      %s36 = ssub.s32 %s16, %s35
      %s37 = ssub.s32 %s17, %s31
      %s38 = sor.u32 %s36, %s37
      %p39 = scmp.eq.s32.totalorder %s38, 0
      %s41 = sadd.s32 %s40, 1
      %s42 = scalar_select %p39, %s40, %s41
      %p45 = pneg %p39
      %p46 = scmp.eq.s32.totalorder %s9, 1
      %p47 = por %p45, %p46
      %p48 = scmp.ne.s32.totalorder %s40, %s43
      %p49 = scmp.eq.s32.totalorder %s9, 0
      %p50 = por %p48, %p49
      %p51 = scmp.ne.s32.totalorder %s40, %s43
      %p52 = scmp.eq.s32.totalorder %s14, 1
      %p53 = por %p51, %p52
      %p54 = scmp.ne.s32.totalorder %s43, %s44
      %p55 = scmp.eq.s32.totalorder %s14, 0
      %p56 = por %p54, %p55
      %p57 = scmp.ne.s32.totalorder %s43, %s44
      %p58 = scmp.eq.s32.totalorder %s15, 1
      %p59 = por %p57, %p58
      %p61 = scmp.ne.s32.totalorder %s44, %s60
      %p62 = scmp.eq.s32.totalorder %s15, 0
      %p63 = por %p61, %p62
      %s64 = ssub.s32 %s16, %s35
      %s65 = ssub.s32 %s18, %s27
      %s66 = sor.u32 %s64, %s65
      %p67 = scmp.eq.s32.totalorder %s66, 0
      %s69 = sadd.s32 %s68, 1
      %s70 = scalar_select %p67, %s68, %s69
      %p73 = pneg %p67
      %p74 = scmp.eq.s32.totalorder %s9, 1
      %p75 = por %p73, %p74
      %p76 = scmp.ne.s32.totalorder %s68, %s71
      %p77 = scmp.eq.s32.totalorder %s9, 0
      %p78 = por %p76, %p77
      %p79 = scmp.ne.s32.totalorder %s68, %s71
      %p80 = scmp.eq.s32.totalorder %s14, 1
      %p81 = por %p79, %p80
      %p82 = scmp.ne.s32.totalorder %s71, %s72
      %p83 = scmp.eq.s32.totalorder %s14, 0
      %p84 = por %p82, %p83
      %p85 = scmp.ne.s32.totalorder %s71, %s72
      %p86 = scmp.eq.s32.totalorder %s15, 1
      %p87 = por %p85, %p86
      %p89 = scmp.ne.s32.totalorder %s72, %s88
      %p90 = scmp.eq.s32.totalorder %s15, 0
      %p91 = por %p89, %p90
      %s92 = ssub.s32 %s16, %s35
      %s93 = ssub.s32 %s18, %s27
      %s94 = sor.u32 %s92, %s93
      %p95 = scmp.eq.s32.totalorder %s94, 0
      %s97 = sadd.s32 %s96, 1
      %s98 = scalar_select %p95, %s96, %s97
      %p101 = pneg %p95
      %p102 = scmp.eq.s32.totalorder %s9, 1
      %p103 = por %p101, %p102
      %p104 = scmp.ne.s32.totalorder %s96, %s99
      %p105 = scmp.eq.s32.totalorder %s9, 0
      %p106 = por %p104, %p105
      %p107 = scmp.ne.s32.totalorder %s96, %s99
      %p108 = scmp.eq.s32.totalorder %s14, 1
      %p109 = por %p107, %p108
      %p110 = scmp.ne.s32.totalorder %s99, %s100
      %p111 = scmp.eq.s32.totalorder %s14, 0
      %p112 = por %p110, %p111
      %p113 = scmp.ne.s32.totalorder %s99, %s100
      %p114 = scmp.eq.s32.totalorder %s15, 1
      %p115 = por %p113, %p114
      %p117 = scmp.ne.s32.totalorder %s100, %s116
      %p118 = scmp.eq.s32.totalorder %s15, 0
      %p119 = por %p117, %p118
      %s120 = ssub.s32 %s16, %s35
      %s121 = ssub.s32 %s17, %s31
      %s122 = sor.u32 %s120, %s121
      %p123 = scmp.eq.s32.totalorder %s122, 0
      %s125 = sadd.s32 %s124, 1
      %s126 = scalar_select %p123, %s124, %s125
      %p129 = pneg %p123
      %p130 = scmp.eq.s32.totalorder %s9, 1
      %p131 = por %p129, %p130
      %p132 = scmp.ne.s32.totalorder %s124, %s127
      %p133 = scmp.eq.s32.totalorder %s9, 0
      %p134 = por %p132, %p133
      %p135 = scmp.ne.s32.totalorder %s124, %s127
      %p136 = scmp.eq.s32.totalorder %s14, 1
      %p137 = por %p135, %p136
      %p138 = scmp.ne.s32.totalorder %s127, %s128
      %p139 = scmp.eq.s32.totalorder %s14, 0
      %p140 = por %p138, %p139
      %p141 = scmp.ne.s32.totalorder %s127, %s128
      %p142 = scmp.eq.s32.totalorder %s15, 1
      %p143 = por %p141, %p142
      %p145 = scmp.ne.s32.totalorder %s128, %s144
      %p146 = scmp.eq.s32.totalorder %s15, 0
      %p147 = por %p145, %p146
      %p148 = scmp.le.s32.totalorder 1, %s9
      %p149 = scmp.lt.s32.totalorder %s9, 3
      %p150 = pnand %p148, %p149
      %p151 = pneg %p150
      // Predicated region
      $region9: #{_lambda_.6} parent=5 // pred_check
        _
      $region10: #{_lambda_.6} parent=5 // pred_check_branch
        %153 = sbr.rel (%p150) target = $region12
      $region11: #{_lambda_.6} parent=5 // pred_region
        %s154 = ssub.s32 %s9, 1
      $region12: #{_lambda_.6} parent=5 // pred_fallthru
        _
      %p155 = scmp.lt.s32.totalorder %s9, 2
      // Predicated region
      $region13: #{_lambda_.6} parent=5 // pred_check
        %p156 = pneg %p155
      $region14: #{_lambda_.6} parent=5 // pred_check_branch
        %158 = sbr.rel (%p156) target = $region16
      $region15: #{_lambda_.6} parent=5 // pred_region
        // Predicated region
        $region17: #{_lambda_.6} parent=15 // pred_check
          %p159 = pneg %p50
        $region18: #{_lambda_.6} parent=15 // pred_check_branch
          %161 = sbr.rel (%p159) target = $region20
        $region19: #{_lambda_.6} parent=15 // pred_region
          %s162 = sand.u32 %s40, 1
          %s163 = sand.u32 %s40, 1
          %s164 = smul.addr %s163, 128
          %s165 = scalar_lea.vmem [#allocation5], %s164
          %s166 = smul.u32 32, %s17
          %s167 = smul.addr %s166, 2
          %s168 = smul.addr %s16, 64
          %s169 = sadd.s32 %s167, %s168
          %s170 = smul.addr %s169, 4
          %s171 = scalar_lea.vmem %s0, %s170
          // Predicated region
          $region21: #{_lambda_.6} parent=19 // pred_check
            _
          $region22: #{_lambda_.6} parent=19 // pred_check_branch
            %173 = sbr.rel (0) target = $region24
          $region23: #{_lambda_.6} parent=19 // pred_region
            // Predicated region
            $region25: #{_lambda_.6} parent=23 // pred_check
              _
            $region26: #{_lambda_.6} parent=23 // pred_check_branch
              %175 = sbr.rel target = $region28
            $region27: #{_lambda_.6} parent=23 // pred_region
              // Predicated region
              $region40: #{_lambda_.6} parent=27 // pred_check
                _
              $region41: #{_lambda_.6} parent=27 // pred_check_branch
                %252 = sbr.rel (0) target = $region43
              $region42: #{_lambda_.6} parent=27 // pred_region
                loop: start=0, step=1, limit=1
                $region44: #{_lambda_.6} parent=42 // loop_pre_header
                  _
                $region45: #{_lambda_.6} parent=42 // loop_header
                  %s254 = sphi 0, %s258
                  %p255 = scmp.ge.s32.totalorder %s254, 1
                  %s259 = sphi %s171, %s171
                  %s260 = sphi %s165, %s165
                $region46: #{_lambda_.6} parent=42 // loop_header_branch
                  %257 = sbr.rel (%p255) target = $region50
                $region47: #{_lambda_.6} parent=42 // loop_body
                  _
                $region48: #{_lambda_.6} parent=42 // loop_footer
                  %s258 = sadd.s32 1, %s254
                $region49: #{_lambda_.6} parent=42 // loop_footer_branch
                  %253 = sbr.rel target = $region45
                $region50: #{_lambda_.6} parent=42 // loop_exit
                  _
                loop: start=0, step=1, limit=1
                $region51: #{_lambda_.6} parent=42 // loop_pre_header
                  _
                $region52: #{_lambda_.6} parent=42 // loop_header
                  %s263 = sphi 0, %s267
                  %p264 = scmp.ge.s32.totalorder %s263, 1
                  %s268 = sphi %s171, %s171
                  %s269 = sphi %s165, %s165
                $region53: #{_lambda_.6} parent=42 // loop_header_branch
                  %266 = sbr.rel (%p264) target = $region57
                $region54: #{_lambda_.6} parent=42 // loop_body
                  %v270 = vld [vmem:[%s268] sm:$0xf]
                  %271 = vst [vmem:[%s269] sm:$0xf] %v270
                  %v272 = vld [vmem:[%s268 + $0x8] sm:$0xf]
                  %273 = vst [vmem:[%s269 + $0x4] sm:$0xf] %v272
                  %v274 = vld [vmem:[%s268 + $0x10] sm:$0xf]
                  %275 = vst [vmem:[%s269 + $0x8] sm:$0xf] %v274
                  %v276 = vld [vmem:[%s268 + $0x18] sm:$0xf]
                  %277 = vst [vmem:[%s269 + $0xc] sm:$0xf] %v276
                  %v278 = vld [vmem:[%s268 + $0x20] sm:$0xf]
                  %279 = vst [vmem:[%s269 + $0x10] sm:$0xf] %v278
                  %v280 = vld [vmem:[%s268 + $0x28] sm:$0xf]
                  %281 = vst [vmem:[%s269 + $0x14] sm:$0xf] %v280
                  %v282 = vld [vmem:[%s268 + $0x30] sm:$0xf]
                  %283 = vst [vmem:[%s269 + $0x18] sm:$0xf] %v282
                  %v284 = vld [vmem:[%s268 + $0x38] sm:$0xf]
                  %285 = vst [vmem:[%s269 + $0x1c] sm:$0xf] %v284
                  %v286 = vld [vmem:[%s268 + $0x40] sm:$0xf]
                  %287 = vst [vmem:[%s269 + $0x20] sm:$0xf] %v286
                  %v288 = vld [vmem:[%s268 + $0x48] sm:$0xf]
                  %289 = vst [vmem:[%s269 + $0x24] sm:$0xf] %v288
                  %v290 = vld [vmem:[%s268 + $0x50] sm:$0xf]
                  %291 = vst [vmem:[%s269 + $0x28] sm:$0xf] %v290
                  %v292 = vld [vmem:[%s268 + $0x58] sm:$0xf]
                  %293 = vst [vmem:[%s269 + $0x2c] sm:$0xf] %v292
                  %v294 = vld [vmem:[%s268 + $0x60] sm:$0xf]
                  %295 = vst [vmem:[%s269 + $0x30] sm:$0xf] %v294
                  %v296 = vld [vmem:[%s268 + $0x68] sm:$0xf]
                  %297 = vst [vmem:[%s269 + $0x34] sm:$0xf] %v296
                  %v298 = vld [vmem:[%s268 + $0x70] sm:$0xf]
                  %299 = vst [vmem:[%s269 + $0x38] sm:$0xf] %v298
                  %v300 = vld [vmem:[%s268 + $0x78] sm:$0xf]
                  %301 = vst [vmem:[%s269 + $0x3c] sm:$0xf] %v300
                  %v302 = vld [vmem:[%s268 + $0x80] sm:$0xf]
                  %303 = vst [vmem:[%s269 + $0x40] sm:$0xf] %v302
                  %v304 = vld [vmem:[%s268 + $0x88] sm:$0xf]
                  %305 = vst [vmem:[%s269 + $0x44] sm:$0xf] %v304
                  %v306 = vld [vmem:[%s268 + $0x90] sm:$0xf]
                  %307 = vst [vmem:[%s269 + $0x48] sm:$0xf] %v306
                  %v308 = vld [vmem:[%s268 + $0x98] sm:$0xf]
                  %309 = vst [vmem:[%s269 + $0x4c] sm:$0xf] %v308
                  %v310 = vld [vmem:[%s268 + $0xa0] sm:$0xf]
                  %311 = vst [vmem:[%s269 + $0x50] sm:$0xf] %v310
                  %v312 = vld [vmem:[%s268 + $0xa8] sm:$0xf]
                  %313 = vst [vmem:[%s269 + $0x54] sm:$0xf] %v312
                  %v314 = vld [vmem:[%s268 + $0xb0] sm:$0xf]
                  %315 = vst [vmem:[%s269 + $0x58] sm:$0xf] %v314
                  %v316 = vld [vmem:[%s268 + $0xb8] sm:$0xf]
                  %317 = vst [vmem:[%s269 + $0x5c] sm:$0xf] %v316
                  %v318 = vld [vmem:[%s268 + $0xc0] sm:$0xf]
                  %319 = vst [vmem:[%s269 + $0x60] sm:$0xf] %v318
                  %v320 = vld [vmem:[%s268 + $0xc8] sm:$0xf]
                  %321 = vst [vmem:[%s269 + $0x64] sm:$0xf] %v320
                  %v322 = vld [vmem:[%s268 + $0xd0] sm:$0xf]
                  %323 = vst [vmem:[%s269 + $0x68] sm:$0xf] %v322
                  %v324 = vld [vmem:[%s268 + $0xd8] sm:$0xf]
                  %325 = vst [vmem:[%s269 + $0x6c] sm:$0xf] %v324
                  %v326 = vld [vmem:[%s268 + $0xe0] sm:$0xf]
                  %327 = vst [vmem:[%s269 + $0x70] sm:$0xf] %v326
                  %v328 = vld [vmem:[%s268 + $0xe8] sm:$0xf]
                  %329 = vst [vmem:[%s269 + $0x74] sm:$0xf] %v328
                  %v330 = vld [vmem:[%s268 + $0xf0] sm:$0xf]
                  %331 = vst [vmem:[%s269 + $0x78] sm:$0xf] %v330
                  %v332 = vld [vmem:[%s268 + $0xf8] sm:$0xf]
                  %333 = vst [vmem:[%s269 + $0x7c] sm:$0xf] %v332
                $region55: #{_lambda_.6} parent=42 // loop_footer
                  %s267 = sadd.s32 1, %s263
                $region56: #{_lambda_.6} parent=42 // loop_footer_branch
                  %262 = sbr.rel target = $region52
                $region57: #{_lambda_.6} parent=42 // loop_exit
                  _
              $region43: #{_lambda_.6} parent=27 // pred_fallthru
                _
            $region28: #{_lambda_.6} parent=23 // pred_fallthru
              _
            // Predicated region
            $region29: #{_lambda_.6} parent=23 // pred_check
              _
            $region30: #{_lambda_.6} parent=23 // pred_check_branch
              %177 = sbr.rel (0) target = $region32
            $region31: #{_lambda_.6} parent=23 // pred_region
              loop: start=0, step=1, limit=1
              $region33: #{_lambda_.6} parent=31 // loop_pre_header
                _
              $region34: #{_lambda_.6} parent=31 // loop_header
                %s180 = sphi 0, %s184
                %p181 = scmp.ge.s32.totalorder %s180, 1
                %s185 = sphi %s171, %s171
                %s186 = sphi %s165, %s165
              $region35: #{_lambda_.6} parent=31 // loop_header_branch
                %183 = sbr.rel (%p181) target = $region39
              $region36: #{_lambda_.6} parent=31 // loop_body
                %v187 = vld [vmem:[%s185] sm:$0xf]
                %188 = vst [vmem:[%s186] sm:$0xf] %v187
                %v189 = vld [vmem:[%s185 + $0x8] sm:$0xf]
                %190 = vst [vmem:[%s186 + $0x4] sm:$0xf] %v189
                %v191 = vld [vmem:[%s185 + $0x10] sm:$0xf]
                %192 = vst [vmem:[%s186 + $0x8] sm:$0xf] %v191
                %v193 = vld [vmem:[%s185 + $0x18] sm:$0xf]
                %194 = vst [vmem:[%s186 + $0xc] sm:$0xf] %v193
                %v195 = vld [vmem:[%s185 + $0x20] sm:$0xf]
                %196 = vst [vmem:[%s186 + $0x10] sm:$0xf] %v195
                %v197 = vld [vmem:[%s185 + $0x28] sm:$0xf]
                %198 = vst [vmem:[%s186 + $0x14] sm:$0xf] %v197
                %v199 = vld [vmem:[%s185 + $0x30] sm:$0xf]
                %200 = vst [vmem:[%s186 + $0x18] sm:$0xf] %v199
                %v201 = vld [vmem:[%s185 + $0x38] sm:$0xf]
                %202 = vst [vmem:[%s186 + $0x1c] sm:$0xf] %v201
                %v203 = vld [vmem:[%s185 + $0x40] sm:$0xf]
                %204 = vst [vmem:[%s186 + $0x20] sm:$0xf] %v203
                %v205 = vld [vmem:[%s185 + $0x48] sm:$0xf]
                %206 = vst [vmem:[%s186 + $0x24] sm:$0xf] %v205
                %v207 = vld [vmem:[%s185 + $0x50] sm:$0xf]
                %208 = vst [vmem:[%s186 + $0x28] sm:$0xf] %v207
                %v209 = vld [vmem:[%s185 + $0x58] sm:$0xf]
                %210 = vst [vmem:[%s186 + $0x2c] sm:$0xf] %v209
                %v211 = vld [vmem:[%s185 + $0x60] sm:$0xf]
                %212 = vst [vmem:[%s186 + $0x30] sm:$0xf] %v211
                %v213 = vld [vmem:[%s185 + $0x68] sm:$0xf]
                %214 = vst [vmem:[%s186 + $0x34] sm:$0xf] %v213
                %v215 = vld [vmem:[%s185 + $0x70] sm:$0xf]
                %216 = vst [vmem:[%s186 + $0x38] sm:$0xf] %v215
                %v217 = vld [vmem:[%s185 + $0x78] sm:$0xf]
                %218 = vst [vmem:[%s186 + $0x3c] sm:$0xf] %v217
                %v219 = vld [vmem:[%s185 + $0x80] sm:$0xf]
                %220 = vst [vmem:[%s186 + $0x40] sm:$0xf] %v219
                %v221 = vld [vmem:[%s185 + $0x88] sm:$0xf]
                %222 = vst [vmem:[%s186 + $0x44] sm:$0xf] %v221
                %v223 = vld [vmem:[%s185 + $0x90] sm:$0xf]
                %224 = vst [vmem:[%s186 + $0x48] sm:$0xf] %v223
                %v225 = vld [vmem:[%s185 + $0x98] sm:$0xf]
                %226 = vst [vmem:[%s186 + $0x4c] sm:$0xf] %v225
                %v227 = vld [vmem:[%s185 + $0xa0] sm:$0xf]
                %228 = vst [vmem:[%s186 + $0x50] sm:$0xf] %v227
                %v229 = vld [vmem:[%s185 + $0xa8] sm:$0xf]
                %230 = vst [vmem:[%s186 + $0x54] sm:$0xf] %v229
                %v231 = vld [vmem:[%s185 + $0xb0] sm:$0xf]
                %232 = vst [vmem:[%s186 + $0x58] sm:$0xf] %v231
                %v233 = vld [vmem:[%s185 + $0xb8] sm:$0xf]
                %234 = vst [vmem:[%s186 + $0x5c] sm:$0xf] %v233
                %v235 = vld [vmem:[%s185 + $0xc0] sm:$0xf]
                %236 = vst [vmem:[%s186 + $0x60] sm:$0xf] %v235
                %v237 = vld [vmem:[%s185 + $0xc8] sm:$0xf]
                %238 = vst [vmem:[%s186 + $0x64] sm:$0xf] %v237
                %v239 = vld [vmem:[%s185 + $0xd0] sm:$0xf]
                %240 = vst [vmem:[%s186 + $0x68] sm:$0xf] %v239
                %v241 = vld [vmem:[%s185 + $0xd8] sm:$0xf]
                %242 = vst [vmem:[%s186 + $0x6c] sm:$0xf] %v241
                %v243 = vld [vmem:[%s185 + $0xe0] sm:$0xf]
                %244 = vst [vmem:[%s186 + $0x70] sm:$0xf] %v243
                %v245 = vld [vmem:[%s185 + $0xe8] sm:$0xf]
                %246 = vst [vmem:[%s186 + $0x74] sm:$0xf] %v245
                %v247 = vld [vmem:[%s185 + $0xf0] sm:$0xf]
                %248 = vst [vmem:[%s186 + $0x78] sm:$0xf] %v247
                %v249 = vld [vmem:[%s185 + $0xf8] sm:$0xf]
                %250 = vst [vmem:[%s186 + $0x7c] sm:$0xf] %v249
              $region37: #{_lambda_.6} parent=31 // loop_footer
                %s184 = sadd.s32 1, %s180
              $region38: #{_lambda_.6} parent=31 // loop_footer_branch
                %179 = sbr.rel target = $region34
              $region39: #{_lambda_.6} parent=31 // loop_exit
                _
            $region32: #{_lambda_.6} parent=23 // pred_fallthru
              _
          $region24: #{_lambda_.6} parent=19 // pred_fallthru
            _
          %334 = vnop
        $region20: #{_lambda_.6} parent=15 // pred_fallthru
          _
        // Predicated region
        $region58: #{_lambda_.6} parent=15 // pred_check
          %p335 = pneg %p78
        $region59: #{_lambda_.6} parent=15 // pred_check_branch
          %337 = sbr.rel (%p335) target = $region61
        $region60: #{_lambda_.6} parent=15 // pred_region
          %s338 = sand.u32 %s68, 1
          %s339 = sand.u32 %s68, 1
          %s340 = smul.addr %s339, 128
          %s341 = scalar_lea.vmem [#allocation6], %s340
          %s342 = smul.u32 32, %s18
          %s343 = smul.addr %s342, 2
          %s344 = smul.addr %s16, 64
          %s345 = sadd.s32 %s343, %s344
          %s346 = smul.addr %s345, 4
          %s347 = scalar_lea.vmem %s1, %s346
          // Predicated region
          $region62: #{_lambda_.6} parent=60 // pred_check
            _
          $region63: #{_lambda_.6} parent=60 // pred_check_branch
            %349 = sbr.rel (0) target = $region65
          $region64: #{_lambda_.6} parent=60 // pred_region
            // Predicated region
            $region66: #{_lambda_.6} parent=64 // pred_check
              _
            $region67: #{_lambda_.6} parent=64 // pred_check_branch
              %351 = sbr.rel target = $region69
            $region68: #{_lambda_.6} parent=64 // pred_region
              // Predicated region
              $region81: #{_lambda_.6} parent=68 // pred_check
                _
              $region82: #{_lambda_.6} parent=68 // pred_check_branch
                %428 = sbr.rel (0) target = $region84
              $region83: #{_lambda_.6} parent=68 // pred_region
                loop: start=0, step=1, limit=1
                $region85: #{_lambda_.6} parent=83 // loop_pre_header
                  _
                $region86: #{_lambda_.6} parent=83 // loop_header
                  %s430 = sphi 0, %s434
                  %p431 = scmp.ge.s32.totalorder %s430, 1
                  %s435 = sphi %s347, %s347
                  %s436 = sphi %s341, %s341
                $region87: #{_lambda_.6} parent=83 // loop_header_branch
                  %433 = sbr.rel (%p431) target = $region91
                $region88: #{_lambda_.6} parent=83 // loop_body
                  _
                $region89: #{_lambda_.6} parent=83 // loop_footer
                  %s434 = sadd.s32 1, %s430
                $region90: #{_lambda_.6} parent=83 // loop_footer_branch
                  %429 = sbr.rel target = $region86
                $region91: #{_lambda_.6} parent=83 // loop_exit
                  _
                loop: start=0, step=1, limit=1
                $region92: #{_lambda_.6} parent=83 // loop_pre_header
                  _
                $region93: #{_lambda_.6} parent=83 // loop_header
                  %s439 = sphi 0, %s443
                  %p440 = scmp.ge.s32.totalorder %s439, 1
                  %s444 = sphi %s347, %s347
                  %s445 = sphi %s341, %s341
                $region94: #{_lambda_.6} parent=83 // loop_header_branch
                  %442 = sbr.rel (%p440) target = $region98
                $region95: #{_lambda_.6} parent=83 // loop_body
                  %v446 = vld [vmem:[%s444] sm:$0xf]
                  %447 = vst [vmem:[%s445] sm:$0xf] %v446
                  %v448 = vld [vmem:[%s444 + $0x8] sm:$0xf]
                  %449 = vst [vmem:[%s445 + $0x4] sm:$0xf] %v448
                  %v450 = vld [vmem:[%s444 + $0x10] sm:$0xf]
                  %451 = vst [vmem:[%s445 + $0x8] sm:$0xf] %v450
                  %v452 = vld [vmem:[%s444 + $0x18] sm:$0xf]
                  %453 = vst [vmem:[%s445 + $0xc] sm:$0xf] %v452
                  %v454 = vld [vmem:[%s444 + $0x20] sm:$0xf]
                  %455 = vst [vmem:[%s445 + $0x10] sm:$0xf] %v454
                  %v456 = vld [vmem:[%s444 + $0x28] sm:$0xf]
                  %457 = vst [vmem:[%s445 + $0x14] sm:$0xf] %v456
                  %v458 = vld [vmem:[%s444 + $0x30] sm:$0xf]
                  %459 = vst [vmem:[%s445 + $0x18] sm:$0xf] %v458
                  %v460 = vld [vmem:[%s444 + $0x38] sm:$0xf]
                  %461 = vst [vmem:[%s445 + $0x1c] sm:$0xf] %v460
                  %v462 = vld [vmem:[%s444 + $0x40] sm:$0xf]
                  %463 = vst [vmem:[%s445 + $0x20] sm:$0xf] %v462
                  %v464 = vld [vmem:[%s444 + $0x48] sm:$0xf]
                  %465 = vst [vmem:[%s445 + $0x24] sm:$0xf] %v464
                  %v466 = vld [vmem:[%s444 + $0x50] sm:$0xf]
                  %467 = vst [vmem:[%s445 + $0x28] sm:$0xf] %v466
                  %v468 = vld [vmem:[%s444 + $0x58] sm:$0xf]
                  %469 = vst [vmem:[%s445 + $0x2c] sm:$0xf] %v468
                  %v470 = vld [vmem:[%s444 + $0x60] sm:$0xf]
                  %471 = vst [vmem:[%s445 + $0x30] sm:$0xf] %v470
                  %v472 = vld [vmem:[%s444 + $0x68] sm:$0xf]
                  %473 = vst [vmem:[%s445 + $0x34] sm:$0xf] %v472
                  %v474 = vld [vmem:[%s444 + $0x70] sm:$0xf]
                  %475 = vst [vmem:[%s445 + $0x38] sm:$0xf] %v474
                  %v476 = vld [vmem:[%s444 + $0x78] sm:$0xf]
                  %477 = vst [vmem:[%s445 + $0x3c] sm:$0xf] %v476
                  %v478 = vld [vmem:[%s444 + $0x80] sm:$0xf]
                  %479 = vst [vmem:[%s445 + $0x40] sm:$0xf] %v478
                  %v480 = vld [vmem:[%s444 + $0x88] sm:$0xf]
                  %481 = vst [vmem:[%s445 + $0x44] sm:$0xf] %v480
                  %v482 = vld [vmem:[%s444 + $0x90] sm:$0xf]
                  %483 = vst [vmem:[%s445 + $0x48] sm:$0xf] %v482
                  %v484 = vld [vmem:[%s444 + $0x98] sm:$0xf]
                  %485 = vst [vmem:[%s445 + $0x4c] sm:$0xf] %v484
                  %v486 = vld [vmem:[%s444 + $0xa0] sm:$0xf]
                  %487 = vst [vmem:[%s445 + $0x50] sm:$0xf] %v486
                  %v488 = vld [vmem:[%s444 + $0xa8] sm:$0xf]
                  %489 = vst [vmem:[%s445 + $0x54] sm:$0xf] %v488
                  %v490 = vld [vmem:[%s444 + $0xb0] sm:$0xf]
                  %491 = vst [vmem:[%s445 + $0x58] sm:$0xf] %v490
                  %v492 = vld [vmem:[%s444 + $0xb8] sm:$0xf]
                  %493 = vst [vmem:[%s445 + $0x5c] sm:$0xf] %v492
                  %v494 = vld [vmem:[%s444 + $0xc0] sm:$0xf]
                  %495 = vst [vmem:[%s445 + $0x60] sm:$0xf] %v494
                  %v496 = vld [vmem:[%s444 + $0xc8] sm:$0xf]
                  %497 = vst [vmem:[%s445 + $0x64] sm:$0xf] %v496
                  %v498 = vld [vmem:[%s444 + $0xd0] sm:$0xf]
                  %499 = vst [vmem:[%s445 + $0x68] sm:$0xf] %v498
                  %v500 = vld [vmem:[%s444 + $0xd8] sm:$0xf]
                  %501 = vst [vmem:[%s445 + $0x6c] sm:$0xf] %v500
                  %v502 = vld [vmem:[%s444 + $0xe0] sm:$0xf]
                  %503 = vst [vmem:[%s445 + $0x70] sm:$0xf] %v502
                  %v504 = vld [vmem:[%s444 + $0xe8] sm:$0xf]
                  %505 = vst [vmem:[%s445 + $0x74] sm:$0xf] %v504
                  %v506 = vld [vmem:[%s444 + $0xf0] sm:$0xf]
                  %507 = vst [vmem:[%s445 + $0x78] sm:$0xf] %v506
                  %v508 = vld [vmem:[%s444 + $0xf8] sm:$0xf]
                  %509 = vst [vmem:[%s445 + $0x7c] sm:$0xf] %v508
                $region96: #{_lambda_.6} parent=83 // loop_footer
                  %s443 = sadd.s32 1, %s439
                $region97: #{_lambda_.6} parent=83 // loop_footer_branch
                  %438 = sbr.rel target = $region93
                $region98: #{_lambda_.6} parent=83 // loop_exit
                  _
              $region84: #{_lambda_.6} parent=68 // pred_fallthru
                _
            $region69: #{_lambda_.6} parent=64 // pred_fallthru
              _
            // Predicated region
            $region70: #{_lambda_.6} parent=64 // pred_check
              _
            $region71: #{_lambda_.6} parent=64 // pred_check_branch
              %353 = sbr.rel (0) target = $region73
            $region72: #{_lambda_.6} parent=64 // pred_region
              loop: start=0, step=1, limit=1
              $region74: #{_lambda_.6} parent=72 // loop_pre_header
                _
              $region75: #{_lambda_.6} parent=72 // loop_header
                %s356 = sphi 0, %s360
                %p357 = scmp.ge.s32.totalorder %s356, 1
                %s361 = sphi %s347, %s347
                %s362 = sphi %s341, %s341
              $region76: #{_lambda_.6} parent=72 // loop_header_branch
                %359 = sbr.rel (%p357) target = $region80
              $region77: #{_lambda_.6} parent=72 // loop_body
                %v363 = vld [vmem:[%s361] sm:$0xf]
                %364 = vst [vmem:[%s362] sm:$0xf] %v363
                %v365 = vld [vmem:[%s361 + $0x8] sm:$0xf]
                %366 = vst [vmem:[%s362 + $0x4] sm:$0xf] %v365
                %v367 = vld [vmem:[%s361 + $0x10] sm:$0xf]
                %368 = vst [vmem:[%s362 + $0x8] sm:$0xf] %v367
                %v369 = vld [vmem:[%s361 + $0x18] sm:$0xf]
                %370 = vst [vmem:[%s362 + $0xc] sm:$0xf] %v369
                %v371 = vld [vmem:[%s361 + $0x20] sm:$0xf]
                %372 = vst [vmem:[%s362 + $0x10] sm:$0xf] %v371
                %v373 = vld [vmem:[%s361 + $0x28] sm:$0xf]
                %374 = vst [vmem:[%s362 + $0x14] sm:$0xf] %v373
                %v375 = vld [vmem:[%s361 + $0x30] sm:$0xf]
                %376 = vst [vmem:[%s362 + $0x18] sm:$0xf] %v375
                %v377 = vld [vmem:[%s361 + $0x38] sm:$0xf]
                %378 = vst [vmem:[%s362 + $0x1c] sm:$0xf] %v377
                %v379 = vld [vmem:[%s361 + $0x40] sm:$0xf]
                %380 = vst [vmem:[%s362 + $0x20] sm:$0xf] %v379
                %v381 = vld [vmem:[%s361 + $0x48] sm:$0xf]
                %382 = vst [vmem:[%s362 + $0x24] sm:$0xf] %v381
                %v383 = vld [vmem:[%s361 + $0x50] sm:$0xf]
                %384 = vst [vmem:[%s362 + $0x28] sm:$0xf] %v383
                %v385 = vld [vmem:[%s361 + $0x58] sm:$0xf]
                %386 = vst [vmem:[%s362 + $0x2c] sm:$0xf] %v385
                %v387 = vld [vmem:[%s361 + $0x60] sm:$0xf]
                %388 = vst [vmem:[%s362 + $0x30] sm:$0xf] %v387
                %v389 = vld [vmem:[%s361 + $0x68] sm:$0xf]
                %390 = vst [vmem:[%s362 + $0x34] sm:$0xf] %v389
                %v391 = vld [vmem:[%s361 + $0x70] sm:$0xf]
                %392 = vst [vmem:[%s362 + $0x38] sm:$0xf] %v391
                %v393 = vld [vmem:[%s361 + $0x78] sm:$0xf]
                %394 = vst [vmem:[%s362 + $0x3c] sm:$0xf] %v393
                %v395 = vld [vmem:[%s361 + $0x80] sm:$0xf]
                %396 = vst [vmem:[%s362 + $0x40] sm:$0xf] %v395
                %v397 = vld [vmem:[%s361 + $0x88] sm:$0xf]
                %398 = vst [vmem:[%s362 + $0x44] sm:$0xf] %v397
                %v399 = vld [vmem:[%s361 + $0x90] sm:$0xf]
                %400 = vst [vmem:[%s362 + $0x48] sm:$0xf] %v399
                %v401 = vld [vmem:[%s361 + $0x98] sm:$0xf]
                %402 = vst [vmem:[%s362 + $0x4c] sm:$0xf] %v401
                %v403 = vld [vmem:[%s361 + $0xa0] sm:$0xf]
                %404 = vst [vmem:[%s362 + $0x50] sm:$0xf] %v403
                %v405 = vld [vmem:[%s361 + $0xa8] sm:$0xf]
                %406 = vst [vmem:[%s362 + $0x54] sm:$0xf] %v405
                %v407 = vld [vmem:[%s361 + $0xb0] sm:$0xf]
                %408 = vst [vmem:[%s362 + $0x58] sm:$0xf] %v407
                %v409 = vld [vmem:[%s361 + $0xb8] sm:$0xf]
                %410 = vst [vmem:[%s362 + $0x5c] sm:$0xf] %v409
                %v411 = vld [vmem:[%s361 + $0xc0] sm:$0xf]
                %412 = vst [vmem:[%s362 + $0x60] sm:$0xf] %v411
                %v413 = vld [vmem:[%s361 + $0xc8] sm:$0xf]
                %414 = vst [vmem:[%s362 + $0x64] sm:$0xf] %v413
                %v415 = vld [vmem:[%s361 + $0xd0] sm:$0xf]
                %416 = vst [vmem:[%s362 + $0x68] sm:$0xf] %v415
                %v417 = vld [vmem:[%s361 + $0xd8] sm:$0xf]
                %418 = vst [vmem:[%s362 + $0x6c] sm:$0xf] %v417
                %v419 = vld [vmem:[%s361 + $0xe0] sm:$0xf]
                %420 = vst [vmem:[%s362 + $0x70] sm:$0xf] %v419
                %v421 = vld [vmem:[%s361 + $0xe8] sm:$0xf]
                %422 = vst [vmem:[%s362 + $0x74] sm:$0xf] %v421
                %v423 = vld [vmem:[%s361 + $0xf0] sm:$0xf]
                %424 = vst [vmem:[%s362 + $0x78] sm:$0xf] %v423
                %v425 = vld [vmem:[%s361 + $0xf8] sm:$0xf]
                %426 = vst [vmem:[%s362 + $0x7c] sm:$0xf] %v425
              $region78: #{_lambda_.6} parent=72 // loop_footer
                %s360 = sadd.s32 1, %s356
              $region79: #{_lambda_.6} parent=72 // loop_footer_branch
                %355 = sbr.rel target = $region75
              $region80: #{_lambda_.6} parent=72 // loop_exit
                _
            $region73: #{_lambda_.6} parent=64 // pred_fallthru
              _
          $region65: #{_lambda_.6} parent=60 // pred_fallthru
            _
          %510 = vnop
        $region61: #{_lambda_.6} parent=15 // pred_fallthru
          _
        // Predicated region
        $region99: #{_lambda_.6} parent=15 // pred_check
          %p511 = pneg %p106
        $region100: #{_lambda_.6} parent=15 // pred_check_branch
          %513 = sbr.rel (%p511) target = $region102
        $region101: #{_lambda_.6} parent=15 // pred_region
          %s514 = sand.u32 %s96, 1
          %s515 = sand.u32 %s96, 1
          %s516 = smul.addr %s515, 128
          %s517 = scalar_lea.vmem [#allocation7], %s516
          %s518 = smul.u32 32, %s18
          %s519 = smul.addr %s518, 2
          %s520 = sadd.s32 1, %s519
          %s521 = smul.addr %s16, 64
          %s522 = sadd.s32 %s520, %s521
          %s523 = smul.addr %s522, 4
          %s524 = scalar_lea.vmem %s2, %s523
          // Predicated region
          $region103: #{_lambda_.6} parent=101 // pred_check
            _
          $region104: #{_lambda_.6} parent=101 // pred_check_branch
            %526 = sbr.rel (0) target = $region106
          $region105: #{_lambda_.6} parent=101 // pred_region
            // Predicated region
            $region107: #{_lambda_.6} parent=105 // pred_check
              _
            $region108: #{_lambda_.6} parent=105 // pred_check_branch
              %528 = sbr.rel target = $region110
            $region109: #{_lambda_.6} parent=105 // pred_region
              // Predicated region
              $region122: #{_lambda_.6} parent=109 // pred_check
                _
              $region123: #{_lambda_.6} parent=109 // pred_check_branch
                %605 = sbr.rel (0) target = $region125
              $region124: #{_lambda_.6} parent=109 // pred_region
                loop: start=0, step=1, limit=1
                $region126: #{_lambda_.6} parent=124 // loop_pre_header
                  _
                $region127: #{_lambda_.6} parent=124 // loop_header
                  %s607 = sphi 0, %s611
                  %p608 = scmp.ge.s32.totalorder %s607, 1
                  %s612 = sphi %s524, %s524
                  %s613 = sphi %s517, %s517
                $region128: #{_lambda_.6} parent=124 // loop_header_branch
                  %610 = sbr.rel (%p608) target = $region132
                $region129: #{_lambda_.6} parent=124 // loop_body
                  _
                $region130: #{_lambda_.6} parent=124 // loop_footer
                  %s611 = sadd.s32 1, %s607
                $region131: #{_lambda_.6} parent=124 // loop_footer_branch
                  %606 = sbr.rel target = $region127
                $region132: #{_lambda_.6} parent=124 // loop_exit
                  _
                loop: start=0, step=1, limit=1
                $region133: #{_lambda_.6} parent=124 // loop_pre_header
                  _
                $region134: #{_lambda_.6} parent=124 // loop_header
                  %s616 = sphi 0, %s620
                  %p617 = scmp.ge.s32.totalorder %s616, 1
                  %s621 = sphi %s524, %s524
                  %s622 = sphi %s517, %s517
                $region135: #{_lambda_.6} parent=124 // loop_header_branch
                  %619 = sbr.rel (%p617) target = $region139
                $region136: #{_lambda_.6} parent=124 // loop_body
                  %v623 = vld [vmem:[%s621] sm:$0xf]
                  %624 = vst [vmem:[%s622] sm:$0xf] %v623
                  %v625 = vld [vmem:[%s621 + $0x8] sm:$0xf]
                  %626 = vst [vmem:[%s622 + $0x4] sm:$0xf] %v625
                  %v627 = vld [vmem:[%s621 + $0x10] sm:$0xf]
                  %628 = vst [vmem:[%s622 + $0x8] sm:$0xf] %v627
                  %v629 = vld [vmem:[%s621 + $0x18] sm:$0xf]
                  %630 = vst [vmem:[%s622 + $0xc] sm:$0xf] %v629
                  %v631 = vld [vmem:[%s621 + $0x20] sm:$0xf]
                  %632 = vst [vmem:[%s622 + $0x10] sm:$0xf] %v631
                  %v633 = vld [vmem:[%s621 + $0x28] sm:$0xf]
                  %634 = vst [vmem:[%s622 + $0x14] sm:$0xf] %v633
                  %v635 = vld [vmem:[%s621 + $0x30] sm:$0xf]
                  %636 = vst [vmem:[%s622 + $0x18] sm:$0xf] %v635
                  %v637 = vld [vmem:[%s621 + $0x38] sm:$0xf]
                  %638 = vst [vmem:[%s622 + $0x1c] sm:$0xf] %v637
                  %v639 = vld [vmem:[%s621 + $0x40] sm:$0xf]
                  %640 = vst [vmem:[%s622 + $0x20] sm:$0xf] %v639
                  %v641 = vld [vmem:[%s621 + $0x48] sm:$0xf]
                  %642 = vst [vmem:[%s622 + $0x24] sm:$0xf] %v641
                  %v643 = vld [vmem:[%s621 + $0x50] sm:$0xf]
                  %644 = vst [vmem:[%s622 + $0x28] sm:$0xf] %v643
                  %v645 = vld [vmem:[%s621 + $0x58] sm:$0xf]
                  %646 = vst [vmem:[%s622 + $0x2c] sm:$0xf] %v645
                  %v647 = vld [vmem:[%s621 + $0x60] sm:$0xf]
                  %648 = vst [vmem:[%s622 + $0x30] sm:$0xf] %v647
                  %v649 = vld [vmem:[%s621 + $0x68] sm:$0xf]
                  %650 = vst [vmem:[%s622 + $0x34] sm:$0xf] %v649
                  %v651 = vld [vmem:[%s621 + $0x70] sm:$0xf]
                  %652 = vst [vmem:[%s622 + $0x38] sm:$0xf] %v651
                  %v653 = vld [vmem:[%s621 + $0x78] sm:$0xf]
                  %654 = vst [vmem:[%s622 + $0x3c] sm:$0xf] %v653
                  %v655 = vld [vmem:[%s621 + $0x80] sm:$0xf]
                  %656 = vst [vmem:[%s622 + $0x40] sm:$0xf] %v655
                  %v657 = vld [vmem:[%s621 + $0x88] sm:$0xf]
                  %658 = vst [vmem:[%s622 + $0x44] sm:$0xf] %v657
                  %v659 = vld [vmem:[%s621 + $0x90] sm:$0xf]
                  %660 = vst [vmem:[%s622 + $0x48] sm:$0xf] %v659
                  %v661 = vld [vmem:[%s621 + $0x98] sm:$0xf]
                  %662 = vst [vmem:[%s622 + $0x4c] sm:$0xf] %v661
                  %v663 = vld [vmem:[%s621 + $0xa0] sm:$0xf]
                  %664 = vst [vmem:[%s622 + $0x50] sm:$0xf] %v663
                  %v665 = vld [vmem:[%s621 + $0xa8] sm:$0xf]
                  %666 = vst [vmem:[%s622 + $0x54] sm:$0xf] %v665
                  %v667 = vld [vmem:[%s621 + $0xb0] sm:$0xf]
                  %668 = vst [vmem:[%s622 + $0x58] sm:$0xf] %v667
                  %v669 = vld [vmem:[%s621 + $0xb8] sm:$0xf]
                  %670 = vst [vmem:[%s622 + $0x5c] sm:$0xf] %v669
                  %v671 = vld [vmem:[%s621 + $0xc0] sm:$0xf]
                  %672 = vst [vmem:[%s622 + $0x60] sm:$0xf] %v671
                  %v673 = vld [vmem:[%s621 + $0xc8] sm:$0xf]
                  %674 = vst [vmem:[%s622 + $0x64] sm:$0xf] %v673
                  %v675 = vld [vmem:[%s621 + $0xd0] sm:$0xf]
                  %676 = vst [vmem:[%s622 + $0x68] sm:$0xf] %v675
                  %v677 = vld [vmem:[%s621 + $0xd8] sm:$0xf]
                  %678 = vst [vmem:[%s622 + $0x6c] sm:$0xf] %v677
                  %v679 = vld [vmem:[%s621 + $0xe0] sm:$0xf]
                  %680 = vst [vmem:[%s622 + $0x70] sm:$0xf] %v679
                  %v681 = vld [vmem:[%s621 + $0xe8] sm:$0xf]
                  %682 = vst [vmem:[%s622 + $0x74] sm:$0xf] %v681
                  %v683 = vld [vmem:[%s621 + $0xf0] sm:$0xf]
                  %684 = vst [vmem:[%s622 + $0x78] sm:$0xf] %v683
                  %v685 = vld [vmem:[%s621 + $0xf8] sm:$0xf]
                  %686 = vst [vmem:[%s622 + $0x7c] sm:$0xf] %v685
                $region137: #{_lambda_.6} parent=124 // loop_footer
                  %s620 = sadd.s32 1, %s616
                $region138: #{_lambda_.6} parent=124 // loop_footer_branch
                  %615 = sbr.rel target = $region134
                $region139: #{_lambda_.6} parent=124 // loop_exit
                  _
              $region125: #{_lambda_.6} parent=109 // pred_fallthru
                _
            $region110: #{_lambda_.6} parent=105 // pred_fallthru
              _
            // Predicated region
            $region111: #{_lambda_.6} parent=105 // pred_check
              _
            $region112: #{_lambda_.6} parent=105 // pred_check_branch
              %530 = sbr.rel (0) target = $region114
            $region113: #{_lambda_.6} parent=105 // pred_region
              loop: start=0, step=1, limit=1
              $region115: #{_lambda_.6} parent=113 // loop_pre_header
                _
              $region116: #{_lambda_.6} parent=113 // loop_header
                %s533 = sphi 0, %s537
                %p534 = scmp.ge.s32.totalorder %s533, 1
                %s538 = sphi %s524, %s524
                %s539 = sphi %s517, %s517
              $region117: #{_lambda_.6} parent=113 // loop_header_branch
                %536 = sbr.rel (%p534) target = $region121
              $region118: #{_lambda_.6} parent=113 // loop_body
                %v540 = vld [vmem:[%s538] sm:$0xf]
                %541 = vst [vmem:[%s539] sm:$0xf] %v540
                %v542 = vld [vmem:[%s538 + $0x8] sm:$0xf]
                %543 = vst [vmem:[%s539 + $0x4] sm:$0xf] %v542
                %v544 = vld [vmem:[%s538 + $0x10] sm:$0xf]
                %545 = vst [vmem:[%s539 + $0x8] sm:$0xf] %v544
                %v546 = vld [vmem:[%s538 + $0x18] sm:$0xf]
                %547 = vst [vmem:[%s539 + $0xc] sm:$0xf] %v546
                %v548 = vld [vmem:[%s538 + $0x20] sm:$0xf]
                %549 = vst [vmem:[%s539 + $0x10] sm:$0xf] %v548
                %v550 = vld [vmem:[%s538 + $0x28] sm:$0xf]
                %551 = vst [vmem:[%s539 + $0x14] sm:$0xf] %v550
                %v552 = vld [vmem:[%s538 + $0x30] sm:$0xf]
                %553 = vst [vmem:[%s539 + $0x18] sm:$0xf] %v552
                %v554 = vld [vmem:[%s538 + $0x38] sm:$0xf]
                %555 = vst [vmem:[%s539 + $0x1c] sm:$0xf] %v554
                %v556 = vld [vmem:[%s538 + $0x40] sm:$0xf]
                %557 = vst [vmem:[%s539 + $0x20] sm:$0xf] %v556
                %v558 = vld [vmem:[%s538 + $0x48] sm:$0xf]
                %559 = vst [vmem:[%s539 + $0x24] sm:$0xf] %v558
                %v560 = vld [vmem:[%s538 + $0x50] sm:$0xf]
                %561 = vst [vmem:[%s539 + $0x28] sm:$0xf] %v560
                %v562 = vld [vmem:[%s538 + $0x58] sm:$0xf]
                %563 = vst [vmem:[%s539 + $0x2c] sm:$0xf] %v562
                %v564 = vld [vmem:[%s538 + $0x60] sm:$0xf]
                %565 = vst [vmem:[%s539 + $0x30] sm:$0xf] %v564
                %v566 = vld [vmem:[%s538 + $0x68] sm:$0xf]
                %567 = vst [vmem:[%s539 + $0x34] sm:$0xf] %v566
                %v568 = vld [vmem:[%s538 + $0x70] sm:$0xf]
                %569 = vst [vmem:[%s539 + $0x38] sm:$0xf] %v568
                %v570 = vld [vmem:[%s538 + $0x78] sm:$0xf]
                %571 = vst [vmem:[%s539 + $0x3c] sm:$0xf] %v570
                %v572 = vld [vmem:[%s538 + $0x80] sm:$0xf]
                %573 = vst [vmem:[%s539 + $0x40] sm:$0xf] %v572
                %v574 = vld [vmem:[%s538 + $0x88] sm:$0xf]
                %575 = vst [vmem:[%s539 + $0x44] sm:$0xf] %v574
                %v576 = vld [vmem:[%s538 + $0x90] sm:$0xf]
                %577 = vst [vmem:[%s539 + $0x48] sm:$0xf] %v576
                %v578 = vld [vmem:[%s538 + $0x98] sm:$0xf]
                %579 = vst [vmem:[%s539 + $0x4c] sm:$0xf] %v578
                %v580 = vld [vmem:[%s538 + $0xa0] sm:$0xf]
                %581 = vst [vmem:[%s539 + $0x50] sm:$0xf] %v580
                %v582 = vld [vmem:[%s538 + $0xa8] sm:$0xf]
                %583 = vst [vmem:[%s539 + $0x54] sm:$0xf] %v582
                %v584 = vld [vmem:[%s538 + $0xb0] sm:$0xf]
                %585 = vst [vmem:[%s539 + $0x58] sm:$0xf] %v584
                %v586 = vld [vmem:[%s538 + $0xb8] sm:$0xf]
                %587 = vst [vmem:[%s539 + $0x5c] sm:$0xf] %v586
                %v588 = vld [vmem:[%s538 + $0xc0] sm:$0xf]
                %589 = vst [vmem:[%s539 + $0x60] sm:$0xf] %v588
                %v590 = vld [vmem:[%s538 + $0xc8] sm:$0xf]
                %591 = vst [vmem:[%s539 + $0x64] sm:$0xf] %v590
                %v592 = vld [vmem:[%s538 + $0xd0] sm:$0xf]
                %593 = vst [vmem:[%s539 + $0x68] sm:$0xf] %v592
                %v594 = vld [vmem:[%s538 + $0xd8] sm:$0xf]
                %595 = vst [vmem:[%s539 + $0x6c] sm:$0xf] %v594
                %v596 = vld [vmem:[%s538 + $0xe0] sm:$0xf]
                %597 = vst [vmem:[%s539 + $0x70] sm:$0xf] %v596
                %v598 = vld [vmem:[%s538 + $0xe8] sm:$0xf]
                %599 = vst [vmem:[%s539 + $0x74] sm:$0xf] %v598
                %v600 = vld [vmem:[%s538 + $0xf0] sm:$0xf]
                %601 = vst [vmem:[%s539 + $0x78] sm:$0xf] %v600
                %v602 = vld [vmem:[%s538 + $0xf8] sm:$0xf]
                %603 = vst [vmem:[%s539 + $0x7c] sm:$0xf] %v602
              $region119: #{_lambda_.6} parent=113 // loop_footer
                %s537 = sadd.s32 1, %s533
              $region120: #{_lambda_.6} parent=113 // loop_footer_branch
                %532 = sbr.rel target = $region116
              $region121: #{_lambda_.6} parent=113 // loop_exit
                _
            $region114: #{_lambda_.6} parent=105 // pred_fallthru
              _
          $region106: #{_lambda_.6} parent=101 // pred_fallthru
            _
          %687 = vnop
        $region102: #{_lambda_.6} parent=15 // pred_fallthru
          _
      $region16: #{_lambda_.6} parent=5 // pred_fallthru
        _
      %p688 = scmp.le.s32.totalorder 1, %s9
      %p689 = scmp.lt.s32.totalorder %s9, 3
      %p690 = pnand %p688, %p689
      %p691 = pneg %p690
      // Predicated region
      $region140: #{_lambda_.6} parent=5 // pred_check
        _
      $region141: #{_lambda_.6} parent=5 // pred_check_branch
        %693 = sbr.rel (%p690) target = $region143
      $region142: #{_lambda_.6} parent=5 // pred_region
        %s694 = ssub.s32 %s9, 1
        %s695 = sand.u32 %s43, 1
        %s696 = sand.u32 %s43, 1
        %s697 = smul.addr %s696, 128
        %s698 = scalar_lea.vmem [#allocation5], %s697
        // Predicated region
        $region144: #{_lambda_.6} parent=142 // pred_check
          %p699 = pneg %p56
        $region145: #{_lambda_.6} parent=142 // pred_check_branch
          %701 = sbr.rel (%p699) target = $region147
        $region146: #{_lambda_.6} parent=142 // pred_region
          _
        $region147: #{_lambda_.6} parent=142 // pred_fallthru
          _
        %s702 = sand.u32 %s71, 1
        %s703 = sand.u32 %s71, 1
        %s704 = smul.addr %s703, 128
        %s705 = scalar_lea.vmem [#allocation6], %s704
        // Predicated region
        $region148: #{_lambda_.6} parent=142 // pred_check
          %p706 = pneg %p84
        $region149: #{_lambda_.6} parent=142 // pred_check_branch
          %708 = sbr.rel (%p706) target = $region151
        $region150: #{_lambda_.6} parent=142 // pred_region
          _
        $region151: #{_lambda_.6} parent=142 // pred_fallthru
          _
        %s709 = sand.u32 %s99, 1
        %s710 = sand.u32 %s99, 1
        %s711 = smul.addr %s710, 128
        %s712 = scalar_lea.vmem [#allocation7], %s711
        // Predicated region
        $region152: #{_lambda_.6} parent=142 // pred_check
          %p713 = pneg %p112
        $region153: #{_lambda_.6} parent=142 // pred_check_branch
          %715 = sbr.rel (%p713) target = $region155
        $region154: #{_lambda_.6} parent=142 // pred_region
          _
        $region155: #{_lambda_.6} parent=142 // pred_fallthru
          _
        %s716 = sand.u32 %s43, 1
        %s717 = sand.u32 %s43, 1
        %s718 = smul.addr %s717, 128
        %s719 = scalar_lea.vmem [#allocation5], %s718
        %p720 = pneg %p56
        %p721 = pneg %p53
        %s722 = sand.u32 %s71, 1
        %s723 = sand.u32 %s71, 1
        %s724 = smul.addr %s723, 128
        %s725 = scalar_lea.vmem [#allocation6], %s724
        %p726 = pneg %p84
        %p727 = pneg %p81
        %s728 = sand.u32 %s99, 1
        %s729 = sand.u32 %s99, 1
        %s730 = smul.addr %s729, 128
        %s731 = scalar_lea.vmem [#allocation7], %s730
        %p732 = pneg %p112
        %p733 = pneg %p109
        %p734 = pneg %p140
        %p735 = pneg %p137
        %s736 = smul.u32 32, %s20
        %p737 = scmp.lt.s32.totalorder %s19, 1
        %s738 = scalar_select %p737, %s19, 1
        %p739 = scmp.lt.s32.totalorder %s736, 31
        %s740 = scalar_select %p739, %s736, 31
        %s741 = smul.addr %s738, 32
        %s742 = sadd.s32 %s740, %s741
        %s743 = smul.addr %s742, 4
        %s744 = scalar_lea.vmem %s3, %s743
        %s745 = smul.u32 32, %s20
        %s746 = smul.u32 32, %s21
        %s747 = smul.u32 32, %s21
        %s748 = smul.u32 32, %s20
        %p749 = scmp.lt.s32.totalorder %s19, 1
        %s750 = scalar_select %p749, %s19, 1
        %p751 = scmp.lt.s32.totalorder %s748, 31
        %s752 = scalar_select %p751, %s748, 31
        %s753 = smul.addr %s750, 32
        %s754 = sadd.s32 %s752, %s753
        %s755 = smul.addr %s754, 4
        %s756 = scalar_lea.vmem %s3, %s755
        %s757 = smul.u32 32, %s20
        %p759 = scmp.eq.s32.totalorder %s21, 0
        // Predicated region
        $region156: #{_lambda_.6} parent=142 // pred_check
          %p760 = pneg %p759
        $region157: #{_lambda_.6} parent=142 // pred_check_branch
          %762 = sbr.rel (%p760) target = $region159
        $region158: #{_lambda_.6} parent=142 // pred_region
          %vm763 = vcmask 7168
          %764 = vst.msk [vmem:[#allocation2] sm:$0xff] %vm763, -inf
          %765 = vst.msk [vmem:[#allocation2 + $0x8] sm:$0xff] %vm763, -inf
          %766 = vst.msk [vmem:[#allocation2 + $0x10] sm:$0xff] %vm763, -inf
          %767 = vst.msk [vmem:[#allocation2 + $0x18] sm:$0xff] %vm763, -inf
          %768 = vst.msk [vmem:[#allocation2 + $0x20] sm:$0xff] %vm763, -inf
          %769 = vst.msk [vmem:[#allocation2 + $0x28] sm:$0xff] %vm763, -inf
          %770 = vst.msk [vmem:[#allocation2 + $0x30] sm:$0xff] %vm763, -inf
          %771 = vst.msk [vmem:[#allocation2 + $0x38] sm:$0xff] %vm763, -inf
          %772 = vst.msk [vmem:[#allocation2 + $0x40] sm:$0xff] %vm763, -inf
          %773 = vst.msk [vmem:[#allocation2 + $0x48] sm:$0xff] %vm763, -inf
          %774 = vst.msk [vmem:[#allocation2 + $0x50] sm:$0xff] %vm763, -inf
          %775 = vst.msk [vmem:[#allocation2 + $0x58] sm:$0xff] %vm763, -inf
          %776 = vst.msk [vmem:[#allocation2 + $0x60] sm:$0xff] %vm763, -inf
          %777 = vst.msk [vmem:[#allocation2 + $0x68] sm:$0xff] %vm763, -inf
          %778 = vst.msk [vmem:[#allocation2 + $0x70] sm:$0xff] %vm763, -inf
          %779 = vst.msk [vmem:[#allocation2 + $0x78] sm:$0xff] %vm763, -inf
          %780 = vst.msk [vmem:[#allocation2 + $0x80] sm:$0xff] %vm763, -inf
          %781 = vst.msk [vmem:[#allocation2 + $0x88] sm:$0xff] %vm763, -inf
          %782 = vst.msk [vmem:[#allocation2 + $0x90] sm:$0xff] %vm763, -inf
          %783 = vst.msk [vmem:[#allocation2 + $0x98] sm:$0xff] %vm763, -inf
          %784 = vst.msk [vmem:[#allocation2 + $0xa0] sm:$0xff] %vm763, -inf
          %785 = vst.msk [vmem:[#allocation2 + $0xa8] sm:$0xff] %vm763, -inf
          %786 = vst.msk [vmem:[#allocation2 + $0xb0] sm:$0xff] %vm763, -inf
          %787 = vst.msk [vmem:[#allocation2 + $0xb8] sm:$0xff] %vm763, -inf
          %788 = vst.msk [vmem:[#allocation2 + $0xc0] sm:$0xff] %vm763, -inf
          %789 = vst.msk [vmem:[#allocation2 + $0xc8] sm:$0xff] %vm763, -inf
          %790 = vst.msk [vmem:[#allocation2 + $0xd0] sm:$0xff] %vm763, -inf
          %791 = vst.msk [vmem:[#allocation2 + $0xd8] sm:$0xff] %vm763, -inf
          %792 = vst.msk [vmem:[#allocation2 + $0xe0] sm:$0xff] %vm763, -inf
          %793 = vst.msk [vmem:[#allocation2 + $0xe8] sm:$0xff] %vm763, -inf
          %794 = vst.msk [vmem:[#allocation2 + $0xf0] sm:$0xff] %vm763, -inf
          %795 = vst.msk [vmem:[#allocation2 + $0xf8] sm:$0xff] %vm763, -inf
          %796 = vst.msk [vmem:[#allocation3] sm:$0xff] %vm763, 0.0
          %797 = vst.msk [vmem:[#allocation3 + $0x8] sm:$0xff] %vm763, 0.0
          %798 = vst.msk [vmem:[#allocation3 + $0x10] sm:$0xff] %vm763, 0.0
          %799 = vst.msk [vmem:[#allocation3 + $0x18] sm:$0xff] %vm763, 0.0
          %800 = vst.msk [vmem:[#allocation3 + $0x20] sm:$0xff] %vm763, 0.0
          %801 = vst.msk [vmem:[#allocation3 + $0x28] sm:$0xff] %vm763, 0.0
          %802 = vst.msk [vmem:[#allocation3 + $0x30] sm:$0xff] %vm763, 0.0
          %803 = vst.msk [vmem:[#allocation3 + $0x38] sm:$0xff] %vm763, 0.0
          %804 = vst.msk [vmem:[#allocation3 + $0x40] sm:$0xff] %vm763, 0.0
          %805 = vst.msk [vmem:[#allocation3 + $0x48] sm:$0xff] %vm763, 0.0
          %806 = vst.msk [vmem:[#allocation3 + $0x50] sm:$0xff] %vm763, 0.0
          %807 = vst.msk [vmem:[#allocation3 + $0x58] sm:$0xff] %vm763, 0.0
          %808 = vst.msk [vmem:[#allocation3 + $0x60] sm:$0xff] %vm763, 0.0
          %809 = vst.msk [vmem:[#allocation3 + $0x68] sm:$0xff] %vm763, 0.0
          %810 = vst.msk [vmem:[#allocation3 + $0x70] sm:$0xff] %vm763, 0.0
          %811 = vst.msk [vmem:[#allocation3 + $0x78] sm:$0xff] %vm763, 0.0
          %812 = vst.msk [vmem:[#allocation3 + $0x80] sm:$0xff] %vm763, 0.0
          %813 = vst.msk [vmem:[#allocation3 + $0x88] sm:$0xff] %vm763, 0.0
          %814 = vst.msk [vmem:[#allocation3 + $0x90] sm:$0xff] %vm763, 0.0
          %815 = vst.msk [vmem:[#allocation3 + $0x98] sm:$0xff] %vm763, 0.0
          %816 = vst.msk [vmem:[#allocation3 + $0xa0] sm:$0xff] %vm763, 0.0
          %817 = vst.msk [vmem:[#allocation3 + $0xa8] sm:$0xff] %vm763, 0.0
          %818 = vst.msk [vmem:[#allocation3 + $0xb0] sm:$0xff] %vm763, 0.0
          %819 = vst.msk [vmem:[#allocation3 + $0xb8] sm:$0xff] %vm763, 0.0
          %820 = vst.msk [vmem:[#allocation3 + $0xc0] sm:$0xff] %vm763, 0.0
          %821 = vst.msk [vmem:[#allocation3 + $0xc8] sm:$0xff] %vm763, 0.0
          %822 = vst.msk [vmem:[#allocation3 + $0xd0] sm:$0xff] %vm763, 0.0
          %823 = vst.msk [vmem:[#allocation3 + $0xd8] sm:$0xff] %vm763, 0.0
          %824 = vst.msk [vmem:[#allocation3 + $0xe0] sm:$0xff] %vm763, 0.0
          %825 = vst.msk [vmem:[#allocation3 + $0xe8] sm:$0xff] %vm763, 0.0
          %826 = vst.msk [vmem:[#allocation3 + $0xf0] sm:$0xff] %vm763, 0.0
          %827 = vst.msk [vmem:[#allocation3 + $0xf8] sm:$0xff] %vm763, 0.0
          %828 = vst [vmem:[#allocation4] sm:$0xff] 0.0
          %829 = vst [vmem:[#allocation4 + $0x8] sm:$0xff] 0.0
          %830 = vst [vmem:[#allocation4 + $0x10] sm:$0xff] 0.0
          %831 = vst [vmem:[#allocation4 + $0x18] sm:$0xff] 0.0
          %832 = vst [vmem:[#allocation4 + $0x20] sm:$0xff] 0.0
          %833 = vst [vmem:[#allocation4 + $0x28] sm:$0xff] 0.0
          %834 = vst [vmem:[#allocation4 + $0x30] sm:$0xff] 0.0
          %835 = vst [vmem:[#allocation4 + $0x38] sm:$0xff] 0.0
          %836 = vst [vmem:[#allocation4 + $0x40] sm:$0xff] 0.0
          %837 = vst [vmem:[#allocation4 + $0x48] sm:$0xff] 0.0
          %838 = vst [vmem:[#allocation4 + $0x50] sm:$0xff] 0.0
          %839 = vst [vmem:[#allocation4 + $0x58] sm:$0xff] 0.0
          %840 = vst [vmem:[#allocation4 + $0x60] sm:$0xff] 0.0
          %841 = vst [vmem:[#allocation4 + $0x68] sm:$0xff] 0.0
          %842 = vst [vmem:[#allocation4 + $0x70] sm:$0xff] 0.0
          %843 = vst [vmem:[#allocation4 + $0x78] sm:$0xff] 0.0
          %844 = vst [vmem:[#allocation4 + $0x80] sm:$0xff] 0.0
          %845 = vst [vmem:[#allocation4 + $0x88] sm:$0xff] 0.0
          %846 = vst [vmem:[#allocation4 + $0x90] sm:$0xff] 0.0
          %847 = vst [vmem:[#allocation4 + $0x98] sm:$0xff] 0.0
          %848 = vst [vmem:[#allocation4 + $0xa0] sm:$0xff] 0.0
          %849 = vst [vmem:[#allocation4 + $0xa8] sm:$0xff] 0.0
          %850 = vst [vmem:[#allocation4 + $0xb0] sm:$0xff] 0.0
          %851 = vst [vmem:[#allocation4 + $0xb8] sm:$0xff] 0.0
          %852 = vst [vmem:[#allocation4 + $0xc0] sm:$0xff] 0.0
          %853 = vst [vmem:[#allocation4 + $0xc8] sm:$0xff] 0.0
          %854 = vst [vmem:[#allocation4 + $0xd0] sm:$0xff] 0.0
          %855 = vst [vmem:[#allocation4 + $0xd8] sm:$0xff] 0.0
          %856 = vst [vmem:[#allocation4 + $0xe0] sm:$0xff] 0.0
          %857 = vst [vmem:[#allocation4 + $0xe8] sm:$0xff] 0.0
          %858 = vst [vmem:[#allocation4 + $0xf0] sm:$0xff] 0.0
          %859 = vst [vmem:[#allocation4 + $0xf8] sm:$0xff] 0.0
        $region159: #{_lambda_.6} parent=142 // pred_fallthru
          _
        %v860 = vld [vmem:[%s698] sm:$0xf]
        %v861 = vld [vmem:[%s698 + $0x4] sm:$0xf]
        %v862 = vld [vmem:[%s698 + $0x8] sm:$0xf]
        %v863 = vld [vmem:[%s698 + $0xc] sm:$0xf]
        %v864 = vld [vmem:[%s698 + $0x10] sm:$0xf]
        %v865 = vld [vmem:[%s698 + $0x14] sm:$0xf]
        %v866 = vld [vmem:[%s698 + $0x18] sm:$0xf]
        %v867 = vld [vmem:[%s698 + $0x1c] sm:$0xf]
        %v868 = vld [vmem:[%s698 + $0x20] sm:$0xf]
        %v869 = vld [vmem:[%s698 + $0x24] sm:$0xf]
        %v870 = vld [vmem:[%s698 + $0x28] sm:$0xf]
        %v871 = vld [vmem:[%s698 + $0x2c] sm:$0xf]
        %v872 = vld [vmem:[%s698 + $0x30] sm:$0xf]
        %v873 = vld [vmem:[%s698 + $0x34] sm:$0xf]
        %v874 = vld [vmem:[%s698 + $0x38] sm:$0xf]
        %v875 = vld [vmem:[%s698 + $0x3c] sm:$0xf]
        %v876 = vld [vmem:[%s698 + $0x40] sm:$0xf]
        %v877 = vld [vmem:[%s698 + $0x44] sm:$0xf]
        %v878 = vld [vmem:[%s698 + $0x48] sm:$0xf]
        %v879 = vld [vmem:[%s698 + $0x4c] sm:$0xf]
        %v880 = vld [vmem:[%s698 + $0x50] sm:$0xf]
        %v881 = vld [vmem:[%s698 + $0x54] sm:$0xf]
        %v882 = vld [vmem:[%s698 + $0x58] sm:$0xf]
        %v883 = vld [vmem:[%s698 + $0x5c] sm:$0xf]
        %v884 = vld [vmem:[%s698 + $0x60] sm:$0xf]
        %v885 = vld [vmem:[%s698 + $0x64] sm:$0xf]
        %v886 = vld [vmem:[%s698 + $0x68] sm:$0xf]
        %v887 = vld [vmem:[%s698 + $0x6c] sm:$0xf]
        %v888 = vld [vmem:[%s698 + $0x70] sm:$0xf]
        %v889 = vld [vmem:[%s698 + $0x74] sm:$0xf]
        %v890 = vld [vmem:[%s698 + $0x78] sm:$0xf]
        %v891 = vld [vmem:[%s698 + $0x7c] sm:$0xf]
        %v892 = vld [vmem:[%s705] sm:$0xf]
        %v893 = vld [vmem:[%s705 + $0x4] sm:$0xf]
        %v894 = vld [vmem:[%s705 + $0x8] sm:$0xf]
        %v895 = vld [vmem:[%s705 + $0xc] sm:$0xf]
        %v896 = vld [vmem:[%s705 + $0x10] sm:$0xf]
        %v897 = vld [vmem:[%s705 + $0x14] sm:$0xf]
        %v898 = vld [vmem:[%s705 + $0x18] sm:$0xf]
        %v899 = vld [vmem:[%s705 + $0x1c] sm:$0xf]
        %v900 = vld [vmem:[%s705 + $0x20] sm:$0xf]
        %v901 = vld [vmem:[%s705 + $0x24] sm:$0xf]
        %v902 = vld [vmem:[%s705 + $0x28] sm:$0xf]
        %v903 = vld [vmem:[%s705 + $0x2c] sm:$0xf]
        %v904 = vld [vmem:[%s705 + $0x30] sm:$0xf]
        %v905 = vld [vmem:[%s705 + $0x34] sm:$0xf]
        %v906 = vld [vmem:[%s705 + $0x38] sm:$0xf]
        %v907 = vld [vmem:[%s705 + $0x3c] sm:$0xf]
        %v908 = vld [vmem:[%s705 + $0x40] sm:$0xf]
        %v909 = vld [vmem:[%s705 + $0x44] sm:$0xf]
        %v910 = vld [vmem:[%s705 + $0x48] sm:$0xf]
        %v911 = vld [vmem:[%s705 + $0x4c] sm:$0xf]
        %v912 = vld [vmem:[%s705 + $0x50] sm:$0xf]
        %v913 = vld [vmem:[%s705 + $0x54] sm:$0xf]
        %v914 = vld [vmem:[%s705 + $0x58] sm:$0xf]
        %v915 = vld [vmem:[%s705 + $0x5c] sm:$0xf]
        %v916 = vld [vmem:[%s705 + $0x60] sm:$0xf]
        %v917 = vld [vmem:[%s705 + $0x64] sm:$0xf]
        %v918 = vld [vmem:[%s705 + $0x68] sm:$0xf]
        %v919 = vld [vmem:[%s705 + $0x6c] sm:$0xf]
        %v920 = vld [vmem:[%s705 + $0x70] sm:$0xf]
        %v921 = vld [vmem:[%s705 + $0x74] sm:$0xf]
        %v922 = vld [vmem:[%s705 + $0x78] sm:$0xf]
        %v923 = vld [vmem:[%s705 + $0x7c] sm:$0xf]
        %v956 = vunpack.c.l.b16 %v860
        %v957 = vunpack.c.l.b16 %v861
        %v958 = vunpack.c.l.b16 %v862
        %v959 = vunpack.c.l.b16 %v863
        %v960 = vunpack.c.l.b16 %v864
        %v961 = vunpack.c.l.b16 %v865
        %v962 = vunpack.c.l.b16 %v866
        %v963 = vunpack.c.l.b16 %v867
        %v964 = vunpack.c.l.b16 %v868
        %v965 = vunpack.c.l.b16 %v869
        %v966 = vunpack.c.l.b16 %v870
        %v967 = vunpack.c.l.b16 %v871
        %v968 = vunpack.c.l.b16 %v872
        %v969 = vunpack.c.l.b16 %v873
        %v970 = vunpack.c.l.b16 %v874
        %v971 = vunpack.c.l.b16 %v875
        %v972 = vunpack.c.l.b16 %v876
        %v973 = vunpack.c.l.b16 %v877
        %v974 = vunpack.c.l.b16 %v878
        %v975 = vunpack.c.l.b16 %v879
        %v976 = vunpack.c.l.b16 %v880
        %v977 = vunpack.c.l.b16 %v881
        %v978 = vunpack.c.l.b16 %v882
        %v979 = vunpack.c.l.b16 %v883
        %v980 = vunpack.c.l.b16 %v884
        %v981 = vunpack.c.l.b16 %v885
        %v982 = vunpack.c.l.b16 %v886
        %v983 = vunpack.c.l.b16 %v887
        %v984 = vunpack.c.l.b16 %v888
        %v985 = vunpack.c.l.b16 %v889
        %v986 = vunpack.c.l.b16 %v890
        %v987 = vunpack.c.l.b16 %v891
        %v988 = vpack.c.b16 %v957, %v956
        %v989 = vpack.c.b16 %v959, %v958
        %v990 = vpack.c.b16 %v961, %v960
        %v991 = vpack.c.b16 %v963, %v962
        %v992 = vpack.c.b16 %v965, %v964
        %v993 = vpack.c.b16 %v967, %v966
        %v994 = vpack.c.b16 %v969, %v968
        %v995 = vpack.c.b16 %v971, %v970
        %v996 = vpack.c.b16 %v973, %v972
        %v997 = vpack.c.b16 %v975, %v974
        %v998 = vpack.c.b16 %v977, %v976
        %v999 = vpack.c.b16 %v979, %v978
        %v1000 = vpack.c.b16 %v981, %v980
        %v1001 = vpack.c.b16 %v983, %v982
        %v1002 = vpack.c.b16 %v985, %v984
        %v1003 = vpack.c.b16 %v987, %v986
        %v1052 = vunpack.c.l.b16 %v892
        %v1053 = vunpack.c.l.b16 %v893
        %v1054 = vunpack.c.l.b16 %v894
        %v1055 = vunpack.c.l.b16 %v895
        %v1056 = vunpack.c.l.b16 %v896
        %v1057 = vunpack.c.l.b16 %v897
        %v1058 = vunpack.c.l.b16 %v898
        %v1059 = vunpack.c.l.b16 %v899
        %v1060 = vunpack.c.l.b16 %v900
        %v1061 = vunpack.c.l.b16 %v901
        %v1062 = vunpack.c.l.b16 %v902
        %v1063 = vunpack.c.l.b16 %v903
        %v1064 = vunpack.c.l.b16 %v904
        %v1065 = vunpack.c.l.b16 %v905
        %v1066 = vunpack.c.l.b16 %v906
        %v1067 = vunpack.c.l.b16 %v907
        %v1068 = vunpack.c.l.b16 %v908
        %v1069 = vunpack.c.l.b16 %v909
        %v1070 = vunpack.c.l.b16 %v910
        %v1071 = vunpack.c.l.b16 %v911
        %v1072 = vunpack.c.l.b16 %v912
        %v1073 = vunpack.c.l.b16 %v913
        %v1074 = vunpack.c.l.b16 %v914
        %v1075 = vunpack.c.l.b16 %v915
        %v1076 = vunpack.c.l.b16 %v916
        %v1077 = vunpack.c.l.b16 %v917
        %v1078 = vunpack.c.l.b16 %v918
        %v1079 = vunpack.c.l.b16 %v919
        %v1080 = vunpack.c.l.b16 %v920
        %v1081 = vunpack.c.l.b16 %v921
        %v1082 = vunpack.c.l.b16 %v922
        %v1083 = vunpack.c.l.b16 %v923
        %v1084 = vpack.c.b16 %v1053, %v1052
        %v1085 = vpack.c.b16 %v1055, %v1054
        %v1086 = vpack.c.b16 %v1057, %v1056
        %v1087 = vpack.c.b16 %v1059, %v1058
        %v1088 = vpack.c.b16 %v1061, %v1060
        %v1089 = vpack.c.b16 %v1063, %v1062
        %v1090 = vpack.c.b16 %v1065, %v1064
        %v1091 = vpack.c.b16 %v1067, %v1066
        %v1092 = vpack.c.b16 %v1069, %v1068
        %v1093 = vpack.c.b16 %v1071, %v1070
        %v1094 = vpack.c.b16 %v1073, %v1072
        %v1095 = vpack.c.b16 %v1075, %v1074
        %v1096 = vpack.c.b16 %v1077, %v1076
        %v1097 = vpack.c.b16 %v1079, %v1078
        %v1098 = vpack.c.b16 %v1081, %v1080
        %v1099 = vpack.c.b16 %v1083, %v1082
        %1116 = vmatprep.subr.bf16.mxu0 0
        %1117 = vmatpush1.bf16.xpose.msra.mxu0 %v1084
        %1118 = vmatprep.subr.bf16.mxu0 0
        %1119 = vmatpush1.bf16.xpose.msra.mxu0 %v1085
        %1120 = vmatprep.subr.bf16.mxu0 0
        %1121 = vmatpush1.bf16.xpose.msra.mxu0 %v1086
        %1122 = vmatprep.subr.bf16.mxu0 0
        %1123 = vmatpush1.bf16.xpose.msra.mxu0 %v1087
        %1124 = vmatprep.subr.bf16.mxu0 0
        %1125 = vmatpush1.bf16.xpose.msra.mxu0 %v1088
        %1126 = vmatprep.subr.bf16.mxu0 0
        %1127 = vmatpush1.bf16.xpose.msra.mxu0 %v1089
        %1128 = vmatprep.subr.bf16.mxu0 0
        %1129 = vmatpush1.bf16.xpose.msra.mxu0 %v1090
        %1130 = vmatprep.subr.bf16.mxu0 0
        %1131 = vmatpush1.bf16.xpose.msra.mxu0 %v1091
        %1132 = vmatprep.subr.bf16.mxu0 0
        %1133 = vmatpush1.bf16.xpose.msra.mxu0 %v1092
        %1134 = vmatprep.subr.bf16.mxu0 0
        %1135 = vmatpush1.bf16.xpose.msra.mxu0 %v1093
        %1136 = vmatprep.subr.bf16.mxu0 0
        %1137 = vmatpush1.bf16.xpose.msra.mxu0 %v1094
        %1138 = vmatprep.subr.bf16.mxu0 0
        %1139 = vmatpush1.bf16.xpose.msra.mxu0 %v1095
        %1140 = vmatprep.subr.bf16.mxu0 0
        %1141 = vmatpush1.bf16.xpose.msra.mxu0 %v1096
        %1142 = vmatprep.subr.bf16.mxu0 0
        %1143 = vmatpush1.bf16.xpose.msra.mxu0 %v1097
        %1144 = vmatprep.subr.bf16.mxu0 0
        %1145 = vmatpush1.bf16.xpose.msra.mxu0 %v1098
        %1146 = vmatprep.subr.bf16.mxu0 0
        %1147 = vmatpush1.bf16.xpose.msra.mxu0 %v1099
        %1148 = vmatprep.mubr.bf16.mxu0 0
        %1149 = vmatmul.mubr.bf16.gmra.mrb[0].mxu0 %v988
        %v1150 = vpop.f32.mrb[0].mxu0
        %v1151 = vadd.f32 0.0, %v1150
        %v1152 = vpop.f32.mrb[0].mxu0
        %v1153 = vadd.f32 0.0, %v1152
        %v1154 = vpop.f32.mrb[0].mxu0
        %v1155 = vadd.f32 0.0, %v1154
        %v1156 = vpop.f32.mrb[0].mxu0
        %v1157 = vadd.f32 0.0, %v1156
        %1158 = vmatprep.mubr.bf16.mxu0 0
        %1159 = vmatmul.mubr.bf16.gmra.mrb[0].mxu0 %v989
        %v1160 = vpop.f32.mrb[0].mxu0
        %v1161 = vadd.f32 0.0, %v1160
        %v1162 = vpop.f32.mrb[0].mxu0
        %v1163 = vadd.f32 0.0, %v1162
        %v1164 = vpop.f32.mrb[0].mxu0
        %v1165 = vadd.f32 0.0, %v1164
        %v1166 = vpop.f32.mrb[0].mxu0
        %v1167 = vadd.f32 0.0, %v1166
        %1168 = vmatprep.mubr.bf16.mxu0 0
        %1169 = vmatmul.mubr.bf16.gmra.mrb[0].mxu0 %v990
        %v1170 = vpop.f32.mrb[0].mxu0
        %v1171 = vadd.f32 0.0, %v1170
        %v1172 = vpop.f32.mrb[0].mxu0
        %v1173 = vadd.f32 0.0, %v1172
        %v1174 = vpop.f32.mrb[0].mxu0
        %v1175 = vadd.f32 0.0, %v1174
        %v1176 = vpop.f32.mrb[0].mxu0
        %v1177 = vadd.f32 0.0, %v1176
        %1178 = vmatprep.mubr.bf16.mxu0 0
        %1179 = vmatmul.mubr.bf16.gmra.mrb[0].mxu0 %v991
        %v1180 = vpop.f32.mrb[0].mxu0
        %v1181 = vadd.f32 0.0, %v1180
        %v1182 = vpop.f32.mrb[0].mxu0
        %v1183 = vadd.f32 0.0, %v1182
        %v1184 = vpop.f32.mrb[0].mxu0
        %v1185 = vadd.f32 0.0, %v1184
        %v1186 = vpop.f32.mrb[0].mxu0
        %v1187 = vadd.f32 0.0, %v1186
        %1188 = vmatprep.mubr.bf16.mxu0 0
        %1189 = vmatmul.mubr.bf16.gmra.mrb[0].mxu0 %v992
        %v1190 = vpop.f32.mrb[0].mxu0
        %v1191 = vadd.f32 0.0, %v1190
        %v1192 = vpop.f32.mrb[0].mxu0
        %v1193 = vadd.f32 0.0, %v1192
        %v1194 = vpop.f32.mrb[0].mxu0
        %v1195 = vadd.f32 0.0, %v1194
        %v1196 = vpop.f32.mrb[0].mxu0
        %v1197 = vadd.f32 0.0, %v1196
        %1198 = vmatprep.mubr.bf16.mxu0 0
        %1199 = vmatmul.mubr.bf16.gmra.mrb[0].mxu0 %v993
        %v1200 = vpop.f32.mrb[0].mxu0
        %v1201 = vadd.f32 0.0, %v1200
        %v1202 = vpop.f32.mrb[0].mxu0
        %v1203 = vadd.f32 0.0, %v1202
        %v1204 = vpop.f32.mrb[0].mxu0
        %v1205 = vadd.f32 0.0, %v1204
        %v1206 = vpop.f32.mrb[0].mxu0
        %v1207 = vadd.f32 0.0, %v1206
        %1208 = vmatprep.mubr.bf16.mxu0 0
        %1209 = vmatmul.mubr.bf16.gmra.mrb[0].mxu0 %v994
        %v1210 = vpop.f32.mrb[0].mxu0
        %v1211 = vadd.f32 0.0, %v1210
        %v1212 = vpop.f32.mrb[0].mxu0
        %v1213 = vadd.f32 0.0, %v1212
        %v1214 = vpop.f32.mrb[0].mxu0
        %v1215 = vadd.f32 0.0, %v1214
        %v1216 = vpop.f32.mrb[0].mxu0
        %v1217 = vadd.f32 0.0, %v1216
        %1218 = vmatprep.mubr.bf16.mxu0 0
        %1219 = vmatmul.mubr.bf16.gmra.mrb[0].mxu0 %v995
        %v1220 = vpop.f32.mrb[0].mxu0
        %v1221 = vadd.f32 0.0, %v1220
        %v1222 = vpop.f32.mrb[0].mxu0
        %v1223 = vadd.f32 0.0, %v1222
        %v1224 = vpop.f32.mrb[0].mxu0
        %v1225 = vadd.f32 0.0, %v1224
        %v1226 = vpop.f32.mrb[0].mxu0
        %v1227 = vadd.f32 0.0, %v1226
        %1228 = vmatprep.mubr.bf16.mxu0 0
        %1229 = vmatmul.mubr.bf16.gmra.mrb[0].mxu0 %v996
        %v1230 = vpop.f32.mrb[0].mxu0
        %v1231 = vadd.f32 0.0, %v1230
        %v1232 = vpop.f32.mrb[0].mxu0
        %v1233 = vadd.f32 0.0, %v1232
        %v1234 = vpop.f32.mrb[0].mxu0
        %v1235 = vadd.f32 0.0, %v1234
        %v1236 = vpop.f32.mrb[0].mxu0
        %v1237 = vadd.f32 0.0, %v1236
        %1238 = vmatprep.mubr.bf16.mxu0 0
        %1239 = vmatmul.mubr.bf16.gmra.mrb[0].mxu0 %v997
        %v1240 = vpop.f32.mrb[0].mxu0
        %v1241 = vadd.f32 0.0, %v1240
        %v1242 = vpop.f32.mrb[0].mxu0
        %v1243 = vadd.f32 0.0, %v1242
        %v1244 = vpop.f32.mrb[0].mxu0
        %v1245 = vadd.f32 0.0, %v1244
        %v1246 = vpop.f32.mrb[0].mxu0
        %v1247 = vadd.f32 0.0, %v1246
        %1248 = vmatprep.mubr.bf16.mxu0 0
        %1249 = vmatmul.mubr.bf16.gmra.mrb[0].mxu0 %v998
        %v1250 = vpop.f32.mrb[0].mxu0
        %v1251 = vadd.f32 0.0, %v1250
        %v1252 = vpop.f32.mrb[0].mxu0
        %v1253 = vadd.f32 0.0, %v1252
        %v1254 = vpop.f32.mrb[0].mxu0
        %v1255 = vadd.f32 0.0, %v1254
        %v1256 = vpop.f32.mrb[0].mxu0
        %v1257 = vadd.f32 0.0, %v1256
        %1258 = vmatprep.mubr.bf16.mxu0 0
        %1259 = vmatmul.mubr.bf16.gmra.mrb[0].mxu0 %v999
        %v1260 = vpop.f32.mrb[0].mxu0
        %v1261 = vadd.f32 0.0, %v1260
        %v1262 = vpop.f32.mrb[0].mxu0
        %v1263 = vadd.f32 0.0, %v1262
        %v1264 = vpop.f32.mrb[0].mxu0
        %v1265 = vadd.f32 0.0, %v1264
        %v1266 = vpop.f32.mrb[0].mxu0
        %v1267 = vadd.f32 0.0, %v1266
        %1268 = vmatprep.mubr.bf16.mxu0 0
        %1269 = vmatmul.mubr.bf16.gmra.mrb[0].mxu0 %v1000
        %v1270 = vpop.f32.mrb[0].mxu0
        %v1271 = vadd.f32 0.0, %v1270
        %v1272 = vpop.f32.mrb[0].mxu0
        %v1273 = vadd.f32 0.0, %v1272
        %v1274 = vpop.f32.mrb[0].mxu0
        %v1275 = vadd.f32 0.0, %v1274
        %v1276 = vpop.f32.mrb[0].mxu0
        %v1277 = vadd.f32 0.0, %v1276
        %1278 = vmatprep.mubr.bf16.mxu0 0
        %1279 = vmatmul.mubr.bf16.gmra.mrb[0].mxu0 %v1001
        %v1280 = vpop.f32.mrb[0].mxu0
        %v1281 = vadd.f32 0.0, %v1280
        %v1282 = vpop.f32.mrb[0].mxu0
        %v1283 = vadd.f32 0.0, %v1282
        %v1284 = vpop.f32.mrb[0].mxu0
        %v1285 = vadd.f32 0.0, %v1284
        %v1286 = vpop.f32.mrb[0].mxu0
        %v1287 = vadd.f32 0.0, %v1286
        %1288 = vmatprep.mubr.bf16.mxu0 0
        %1289 = vmatmul.mubr.bf16.gmra.mrb[0].mxu0 %v1002
        %v1290 = vpop.f32.mrb[0].mxu0
        %v1291 = vadd.f32 0.0, %v1290
        %v1292 = vpop.f32.mrb[0].mxu0
        %v1293 = vadd.f32 0.0, %v1292
        %v1294 = vpop.f32.mrb[0].mxu0
        %v1295 = vadd.f32 0.0, %v1294
        %v1296 = vpop.f32.mrb[0].mxu0
        %v1297 = vadd.f32 0.0, %v1296
        %1298 = vmatprep.mubr.bf16.mxu0 0
        %1299 = vmatmul.mubr.bf16.gmra.mrb[0].mxu0 %v1003
        %v1300 = vpop.f32.mrb[0].mxu0
        %v1301 = vadd.f32 0.0, %v1300
        %v1302 = vpop.f32.mrb[0].mxu0
        %v1303 = vadd.f32 0.0, %v1302
        %v1304 = vpop.f32.mrb[0].mxu0
        %v1305 = vadd.f32 0.0, %v1304
        %v1306 = vpop.f32.mrb[0].mxu0
        %v1307 = vadd.f32 0.0, %v1306
        %1308 = vdwg.mxu0
        %v1309 = vld [vmem:[#allocation2] sm:$0xff]
        %v1310 = vld [vmem:[#allocation2 + $0x8] sm:$0xff]
        %v1311 = vld [vmem:[#allocation2 + $0x10] sm:$0xff]
        %v1312 = vld [vmem:[#allocation2 + $0x18] sm:$0xff]
        %v1313 = vld [vmem:[#allocation2 + $0x20] sm:$0xff]
        %v1314 = vld [vmem:[#allocation2 + $0x28] sm:$0xff]
        %v1315 = vld [vmem:[#allocation2 + $0x30] sm:$0xff]
        %v1316 = vld [vmem:[#allocation2 + $0x38] sm:$0xff]
        %v1317 = vld [vmem:[#allocation2 + $0x40] sm:$0xff]
        %v1318 = vld [vmem:[#allocation2 + $0x48] sm:$0xff]
        %v1319 = vld [vmem:[#allocation2 + $0x50] sm:$0xff]
        %v1320 = vld [vmem:[#allocation2 + $0x58] sm:$0xff]
        %v1321 = vld [vmem:[#allocation2 + $0x60] sm:$0xff]
        %v1322 = vld [vmem:[#allocation2 + $0x68] sm:$0xff]
        %v1323 = vld [vmem:[#allocation2 + $0x70] sm:$0xff]
        %v1324 = vld [vmem:[#allocation2 + $0x78] sm:$0xff]
        %v1325 = vld [vmem:[#allocation2 + $0x80] sm:$0xff]
        %v1326 = vld [vmem:[#allocation2 + $0x88] sm:$0xff]
        %v1327 = vld [vmem:[#allocation2 + $0x90] sm:$0xff]
        %v1328 = vld [vmem:[#allocation2 + $0x98] sm:$0xff]
        %v1329 = vld [vmem:[#allocation2 + $0xa0] sm:$0xff]
        %v1330 = vld [vmem:[#allocation2 + $0xa8] sm:$0xff]
        %v1331 = vld [vmem:[#allocation2 + $0xb0] sm:$0xff]
        %v1332 = vld [vmem:[#allocation2 + $0xb8] sm:$0xff]
        %v1333 = vld [vmem:[#allocation2 + $0xc0] sm:$0xff]
        %v1334 = vld [vmem:[#allocation2 + $0xc8] sm:$0xff]
        %v1335 = vld [vmem:[#allocation2 + $0xd0] sm:$0xff]
        %v1336 = vld [vmem:[#allocation2 + $0xd8] sm:$0xff]
        %v1337 = vld [vmem:[#allocation2 + $0xe0] sm:$0xff]
        %v1338 = vld [vmem:[#allocation2 + $0xe8] sm:$0xff]
        %v1339 = vld [vmem:[#allocation2 + $0xf0] sm:$0xff]
        %v1340 = vld [vmem:[#allocation2 + $0xf8] sm:$0xff]
        %v1341 = vmax.f32 %v1151, %v1153
        %1342 = vmax.xlane.f32.xlu0 %v1341
        %v1343 = vpop.xlane.xlu0 %1342
        %v1344 = vmax.f32 %v1155, %v1157
        %1345 = vmax.xlane.f32.xlu0 %v1344
        %v1346 = vpop.xlane.xlu0 %1345
        %v1347 = vmax.f32 %v1161, %v1163
        %1348 = vmax.xlane.f32.xlu0 %v1347
        %v1349 = vpop.xlane.xlu0 %1348
        %v1350 = vmax.f32 %v1165, %v1167
        %1351 = vmax.xlane.f32.xlu0 %v1350
        %v1352 = vpop.xlane.xlu0 %1351
        %v1353 = vmax.f32 %v1171, %v1173
        %1354 = vmax.xlane.f32.xlu0 %v1353
        %v1355 = vpop.xlane.xlu0 %1354
        %v1356 = vmax.f32 %v1175, %v1177
        %1357 = vmax.xlane.f32.xlu0 %v1356
        %v1358 = vpop.xlane.xlu0 %1357
        %v1359 = vmax.f32 %v1181, %v1183
        %1360 = vmax.xlane.f32.xlu0 %v1359
        %v1361 = vpop.xlane.xlu0 %1360
        %v1362 = vmax.f32 %v1185, %v1187
        %1363 = vmax.xlane.f32.xlu0 %v1362
        %v1364 = vpop.xlane.xlu0 %1363
        %v1365 = vmax.f32 %v1191, %v1193
        %1366 = vmax.xlane.f32.xlu0 %v1365
        %v1367 = vpop.xlane.xlu0 %1366
        %v1368 = vmax.f32 %v1195, %v1197
        %1369 = vmax.xlane.f32.xlu0 %v1368
        %v1370 = vpop.xlane.xlu0 %1369
        %v1371 = vmax.f32 %v1201, %v1203
        %1372 = vmax.xlane.f32.xlu0 %v1371
        %v1373 = vpop.xlane.xlu0 %1372
        %v1374 = vmax.f32 %v1205, %v1207
        %1375 = vmax.xlane.f32.xlu0 %v1374
        %v1376 = vpop.xlane.xlu0 %1375
        %v1377 = vmax.f32 %v1211, %v1213
        %1378 = vmax.xlane.f32.xlu0 %v1377
        %v1379 = vpop.xlane.xlu0 %1378
        %v1380 = vmax.f32 %v1215, %v1217
        %1381 = vmax.xlane.f32.xlu0 %v1380
        %v1382 = vpop.xlane.xlu0 %1381
        %v1383 = vmax.f32 %v1221, %v1223
        %1384 = vmax.xlane.f32.xlu0 %v1383
        %v1385 = vpop.xlane.xlu0 %1384
        %v1386 = vmax.f32 %v1225, %v1227
        %1387 = vmax.xlane.f32.xlu0 %v1386
        %v1388 = vpop.xlane.xlu0 %1387
        %v1389 = vmax.f32 %v1231, %v1233
        %1390 = vmax.xlane.f32.xlu0 %v1389
        %v1391 = vpop.xlane.xlu0 %1390
        %v1392 = vmax.f32 %v1235, %v1237
        %1393 = vmax.xlane.f32.xlu0 %v1392
        %v1394 = vpop.xlane.xlu0 %1393
        %v1395 = vmax.f32 %v1241, %v1243
        %1396 = vmax.xlane.f32.xlu0 %v1395
        %v1397 = vpop.xlane.xlu0 %1396
        %v1398 = vmax.f32 %v1245, %v1247
        %1399 = vmax.xlane.f32.xlu0 %v1398
        %v1400 = vpop.xlane.xlu0 %1399
        %v1401 = vmax.f32 %v1251, %v1253
        %1402 = vmax.xlane.f32.xlu0 %v1401
        %v1403 = vpop.xlane.xlu0 %1402
        %v1404 = vmax.f32 %v1255, %v1257
        %1405 = vmax.xlane.f32.xlu0 %v1404
        %v1406 = vpop.xlane.xlu0 %1405
        %v1407 = vmax.f32 %v1261, %v1263
        %1408 = vmax.xlane.f32.xlu0 %v1407
        %v1409 = vpop.xlane.xlu0 %1408
        %v1410 = vmax.f32 %v1265, %v1267
        %1411 = vmax.xlane.f32.xlu0 %v1410
        %v1412 = vpop.xlane.xlu0 %1411
        %v1413 = vmax.f32 %v1271, %v1273
        %1414 = vmax.xlane.f32.xlu0 %v1413
        %v1415 = vpop.xlane.xlu0 %1414
        %v1416 = vmax.f32 %v1275, %v1277
        %1417 = vmax.xlane.f32.xlu0 %v1416
        %v1418 = vpop.xlane.xlu0 %1417
        %v1419 = vmax.f32 %v1281, %v1283
        %1420 = vmax.xlane.f32.xlu0 %v1419
        %v1421 = vpop.xlane.xlu0 %1420
        %v1422 = vmax.f32 %v1285, %v1287
        %1423 = vmax.xlane.f32.xlu0 %v1422
        %v1424 = vpop.xlane.xlu0 %1423
        %v1425 = vmax.f32 %v1291, %v1293
        %1426 = vmax.xlane.f32.xlu0 %v1425
        %v1427 = vpop.xlane.xlu0 %1426
        %v1428 = vmax.f32 %v1295, %v1297
        %1429 = vmax.xlane.f32.xlu0 %v1428
        %v1430 = vpop.xlane.xlu0 %1429
        %v1431 = vmax.f32 %v1301, %v1303
        %1432 = vmax.xlane.f32.xlu0 %v1431
        %v1433 = vpop.xlane.xlu0 %1432
        %v1434 = vmax.f32 %v1305, %v1307
        %1435 = vmax.xlane.f32.xlu0 %v1434
        %v1436 = vpop.xlane.xlu0 %1435
        %v1437 = vmax.f32 %v1309, %v1343
        %v1438 = vmax.f32 %v1310, %v1346
        %v1439 = vmax.f32 %v1311, %v1349
        %v1440 = vmax.f32 %v1312, %v1352
        %v1441 = vmax.f32 %v1313, %v1355
        %v1442 = vmax.f32 %v1314, %v1358
        %v1443 = vmax.f32 %v1315, %v1361
        %v1444 = vmax.f32 %v1316, %v1364
        %v1445 = vmax.f32 %v1317, %v1367
        %v1446 = vmax.f32 %v1318, %v1370
        %v1447 = vmax.f32 %v1319, %v1373
        %v1448 = vmax.f32 %v1320, %v1376
        %v1449 = vmax.f32 %v1321, %v1379
        %v1450 = vmax.f32 %v1322, %v1382
        %v1451 = vmax.f32 %v1323, %v1385
        %v1452 = vmax.f32 %v1324, %v1388
        %v1453 = vmax.f32 %v1325, %v1391
        %v1454 = vmax.f32 %v1326, %v1394
        %v1455 = vmax.f32 %v1327, %v1397
        %v1456 = vmax.f32 %v1328, %v1400
        %v1457 = vmax.f32 %v1329, %v1403
        %v1458 = vmax.f32 %v1330, %v1406
        %v1459 = vmax.f32 %v1331, %v1409
        %v1460 = vmax.f32 %v1332, %v1412
        %v1461 = vmax.f32 %v1333, %v1415
        %v1462 = vmax.f32 %v1334, %v1418
        %v1463 = vmax.f32 %v1335, %v1421
        %v1464 = vmax.f32 %v1336, %v1424
        %v1465 = vmax.f32 %v1337, %v1427
        %v1466 = vmax.f32 %v1338, %v1430
        %v1467 = vmax.f32 %v1339, %v1433
        %v1468 = vmax.f32 %v1340, %v1436
        %v1469 = vsub.f32 %v1309, %v1437
        %v1470 = vsub.f32 %v1310, %v1438
        %v1471 = vsub.f32 %v1311, %v1439
        %v1472 = vsub.f32 %v1312, %v1440
        %v1473 = vsub.f32 %v1313, %v1441
        %v1474 = vsub.f32 %v1314, %v1442
        %v1475 = vsub.f32 %v1315, %v1443
        %v1476 = vsub.f32 %v1316, %v1444
        %v1477 = vsub.f32 %v1317, %v1445
        %v1478 = vsub.f32 %v1318, %v1446
        %v1479 = vsub.f32 %v1319, %v1447
        %v1480 = vsub.f32 %v1320, %v1448
        %v1481 = vsub.f32 %v1321, %v1449
        %v1482 = vsub.f32 %v1322, %v1450
        %v1483 = vsub.f32 %v1323, %v1451
        %v1484 = vsub.f32 %v1324, %v1452
        %v1485 = vsub.f32 %v1325, %v1453
        %v1486 = vsub.f32 %v1326, %v1454
        %v1487 = vsub.f32 %v1327, %v1455
        %v1488 = vsub.f32 %v1328, %v1456
        %v1489 = vsub.f32 %v1329, %v1457
        %v1490 = vsub.f32 %v1330, %v1458
        %v1491 = vsub.f32 %v1331, %v1459
        %v1492 = vsub.f32 %v1332, %v1460
        %v1493 = vsub.f32 %v1333, %v1461
        %v1494 = vsub.f32 %v1334, %v1462
        %v1495 = vsub.f32 %v1335, %v1463
        %v1496 = vsub.f32 %v1336, %v1464
        %v1497 = vsub.f32 %v1337, %v1465
        %v1498 = vsub.f32 %v1338, %v1466
        %v1499 = vsub.f32 %v1339, %v1467
        %v1500 = vsub.f32 %v1340, %v1468
        %v1501 = vmul.f32 %v1469, 1.442695
        %v1502 = vpow.pop %v1501
        %v1503 = vmul.f32 %v1470, 1.442695
        %v1504 = vpow.pop %v1503
        %v1505 = vmul.f32 %v1471, 1.442695
        %v1506 = vpow.pop %v1505
        %v1507 = vmul.f32 %v1472, 1.442695
        %v1508 = vpow.pop %v1507
        %v1509 = vmul.f32 %v1473, 1.442695
        %v1510 = vpow.pop %v1509
        %v1511 = vmul.f32 %v1474, 1.442695
        %v1512 = vpow.pop %v1511
        %v1513 = vmul.f32 %v1475, 1.442695
        %v1514 = vpow.pop %v1513
        %v1515 = vmul.f32 %v1476, 1.442695
        %v1516 = vpow.pop %v1515
        %v1517 = vmul.f32 %v1477, 1.442695
        %v1518 = vpow.pop %v1517
        %v1519 = vmul.f32 %v1478, 1.442695
        %v1520 = vpow.pop %v1519
        %v1521 = vmul.f32 %v1479, 1.442695
        %v1522 = vpow.pop %v1521
        %v1523 = vmul.f32 %v1480, 1.442695
        %v1524 = vpow.pop %v1523
        %v1525 = vmul.f32 %v1481, 1.442695
        %v1526 = vpow.pop %v1525
        %v1527 = vmul.f32 %v1482, 1.442695
        %v1528 = vpow.pop %v1527
        %v1529 = vmul.f32 %v1483, 1.442695
        %v1530 = vpow.pop %v1529
        %v1531 = vmul.f32 %v1484, 1.442695
        %v1532 = vpow.pop %v1531
        %v1533 = vmul.f32 %v1485, 1.442695
        %v1534 = vpow.pop %v1533
        %v1535 = vmul.f32 %v1486, 1.442695
        %v1536 = vpow.pop %v1535
        %v1537 = vmul.f32 %v1487, 1.442695
        %v1538 = vpow.pop %v1537
        %v1539 = vmul.f32 %v1488, 1.442695
        %v1540 = vpow.pop %v1539
        %v1541 = vmul.f32 %v1489, 1.442695
        %v1542 = vpow.pop %v1541
        %v1543 = vmul.f32 %v1490, 1.442695
        %v1544 = vpow.pop %v1543
        %v1545 = vmul.f32 %v1491, 1.442695
        %v1546 = vpow.pop %v1545
        %v1547 = vmul.f32 %v1492, 1.442695
        %v1548 = vpow.pop %v1547
        %v1549 = vmul.f32 %v1493, 1.442695
        %v1550 = vpow.pop %v1549
        %v1551 = vmul.f32 %v1494, 1.442695
        %v1552 = vpow.pop %v1551
        %v1553 = vmul.f32 %v1495, 1.442695
        %v1554 = vpow.pop %v1553
        %v1555 = vmul.f32 %v1496, 1.442695
        %v1556 = vpow.pop %v1555
        %v1557 = vmul.f32 %v1497, 1.442695
        %v1558 = vpow.pop %v1557
        %v1559 = vmul.f32 %v1498, 1.442695
        %v1560 = vpow.pop %v1559
        %v1561 = vmul.f32 %v1499, 1.442695
        %v1562 = vpow.pop %v1561
        %v1563 = vmul.f32 %v1500, 1.442695
        %v1564 = vpow.pop %v1563
        %1566 = vset.pattern.permute.xlu0 0
        %1567 = vperm.xlu0 %1566, %v1437
        %v1568 = vpop.permute.xlu0 %1567
        %1571 = vset.pattern.permute.xlu0 0
        %1572 = vperm.xlu0 %1571, %v1438
        %v1573 = vpop.permute.xlu0 %1572
        %1576 = vset.pattern.permute.xlu0 0
        %1577 = vperm.xlu0 %1576, %v1439
        %v1578 = vpop.permute.xlu0 %1577
        %1581 = vset.pattern.permute.xlu0 0
        %1582 = vperm.xlu0 %1581, %v1440
        %v1583 = vpop.permute.xlu0 %1582
        %1586 = vset.pattern.permute.xlu0 0
        %1587 = vperm.xlu0 %1586, %v1441
        %v1588 = vpop.permute.xlu0 %1587
        %1591 = vset.pattern.permute.xlu0 0
        %1592 = vperm.xlu0 %1591, %v1442
        %v1593 = vpop.permute.xlu0 %1592
        %1596 = vset.pattern.permute.xlu0 0
        %1597 = vperm.xlu0 %1596, %v1443
        %v1598 = vpop.permute.xlu0 %1597
        %1601 = vset.pattern.permute.xlu0 0
        %1602 = vperm.xlu0 %1601, %v1444
        %v1603 = vpop.permute.xlu0 %1602
        %1606 = vset.pattern.permute.xlu0 0
        %1607 = vperm.xlu0 %1606, %v1445
        %v1608 = vpop.permute.xlu0 %1607
        %1611 = vset.pattern.permute.xlu0 0
        %1612 = vperm.xlu0 %1611, %v1446
        %v1613 = vpop.permute.xlu0 %1612
        %1616 = vset.pattern.permute.xlu0 0
        %1617 = vperm.xlu0 %1616, %v1447
        %v1618 = vpop.permute.xlu0 %1617
        %1621 = vset.pattern.permute.xlu0 0
        %1622 = vperm.xlu0 %1621, %v1448
        %v1623 = vpop.permute.xlu0 %1622
        %1626 = vset.pattern.permute.xlu0 0
        %1627 = vperm.xlu0 %1626, %v1449
        %v1628 = vpop.permute.xlu0 %1627
        %1631 = vset.pattern.permute.xlu0 0
        %1632 = vperm.xlu0 %1631, %v1450
        %v1633 = vpop.permute.xlu0 %1632
        %1636 = vset.pattern.permute.xlu0 0
        %1637 = vperm.xlu0 %1636, %v1451
        %v1638 = vpop.permute.xlu0 %1637
        %1641 = vset.pattern.permute.xlu0 0
        %1642 = vperm.xlu0 %1641, %v1452
        %v1643 = vpop.permute.xlu0 %1642
        %1646 = vset.pattern.permute.xlu0 0
        %1647 = vperm.xlu0 %1646, %v1453
        %v1648 = vpop.permute.xlu0 %1647
        %1651 = vset.pattern.permute.xlu0 0
        %1652 = vperm.xlu0 %1651, %v1454
        %v1653 = vpop.permute.xlu0 %1652
        %1656 = vset.pattern.permute.xlu0 0
        %1657 = vperm.xlu0 %1656, %v1455
        %v1658 = vpop.permute.xlu0 %1657
        %1661 = vset.pattern.permute.xlu0 0
        %1662 = vperm.xlu0 %1661, %v1456
        %v1663 = vpop.permute.xlu0 %1662
        %1666 = vset.pattern.permute.xlu0 0
        %1667 = vperm.xlu0 %1666, %v1457
        %v1668 = vpop.permute.xlu0 %1667
        %1671 = vset.pattern.permute.xlu0 0
        %1672 = vperm.xlu0 %1671, %v1458
        %v1673 = vpop.permute.xlu0 %1672
        %1676 = vset.pattern.permute.xlu0 0
        %1677 = vperm.xlu0 %1676, %v1459
        %v1678 = vpop.permute.xlu0 %1677
        %1681 = vset.pattern.permute.xlu0 0
        %1682 = vperm.xlu0 %1681, %v1460
        %v1683 = vpop.permute.xlu0 %1682
        %1686 = vset.pattern.permute.xlu0 0
        %1687 = vperm.xlu0 %1686, %v1461
        %v1688 = vpop.permute.xlu0 %1687
        %1691 = vset.pattern.permute.xlu0 0
        %1692 = vperm.xlu0 %1691, %v1462
        %v1693 = vpop.permute.xlu0 %1692
        %1696 = vset.pattern.permute.xlu0 0
        %1697 = vperm.xlu0 %1696, %v1463
        %v1698 = vpop.permute.xlu0 %1697
        %1701 = vset.pattern.permute.xlu0 0
        %1702 = vperm.xlu0 %1701, %v1464
        %v1703 = vpop.permute.xlu0 %1702
        %1706 = vset.pattern.permute.xlu0 0
        %1707 = vperm.xlu0 %1706, %v1465
        %v1708 = vpop.permute.xlu0 %1707
        %1711 = vset.pattern.permute.xlu0 0
        %1712 = vperm.xlu0 %1711, %v1466
        %v1713 = vpop.permute.xlu0 %1712
        %1716 = vset.pattern.permute.xlu0 0
        %1717 = vperm.xlu0 %1716, %v1467
        %v1718 = vpop.permute.xlu0 %1717
        %1721 = vset.pattern.permute.xlu0 0
        %1722 = vperm.xlu0 %1721, %v1468
        %v1723 = vpop.permute.xlu0 %1722
        %v1725 = vsub.f32 %v1151, %v1568
        %v1726 = vsub.f32 %v1153, %v1568
        %v1727 = vsub.f32 %v1155, %v1573
        %v1728 = vsub.f32 %v1157, %v1573
        %v1729 = vsub.f32 %v1161, %v1578
        %v1730 = vsub.f32 %v1163, %v1578
        %v1731 = vsub.f32 %v1165, %v1583
        %v1732 = vsub.f32 %v1167, %v1583
        %v1733 = vsub.f32 %v1171, %v1588
        %v1734 = vsub.f32 %v1173, %v1588
        %v1735 = vsub.f32 %v1175, %v1593
        %v1736 = vsub.f32 %v1177, %v1593
        %v1737 = vsub.f32 %v1181, %v1598
        %v1738 = vsub.f32 %v1183, %v1598
        %v1739 = vsub.f32 %v1185, %v1603
        %v1740 = vsub.f32 %v1187, %v1603
        %v1741 = vsub.f32 %v1191, %v1608
        %v1742 = vsub.f32 %v1193, %v1608
        %v1743 = vsub.f32 %v1195, %v1613
        %v1744 = vsub.f32 %v1197, %v1613
        %v1745 = vsub.f32 %v1201, %v1618
        %v1746 = vsub.f32 %v1203, %v1618
        %v1747 = vsub.f32 %v1205, %v1623
        %v1748 = vsub.f32 %v1207, %v1623
        %v1749 = vsub.f32 %v1211, %v1628
        %v1750 = vsub.f32 %v1213, %v1628
        %v1751 = vsub.f32 %v1215, %v1633
        %v1752 = vsub.f32 %v1217, %v1633
        %v1753 = vsub.f32 %v1221, %v1638
        %v1754 = vsub.f32 %v1223, %v1638
        %v1755 = vsub.f32 %v1225, %v1643
        %v1756 = vsub.f32 %v1227, %v1643
        %v1757 = vsub.f32 %v1231, %v1648
        %v1758 = vsub.f32 %v1233, %v1648
        %v1759 = vsub.f32 %v1235, %v1653
        %v1760 = vsub.f32 %v1237, %v1653
        %v1761 = vsub.f32 %v1241, %v1658
        %v1762 = vsub.f32 %v1243, %v1658
        %v1763 = vsub.f32 %v1245, %v1663
        %v1764 = vsub.f32 %v1247, %v1663
        %v1765 = vsub.f32 %v1251, %v1668
        %v1766 = vsub.f32 %v1253, %v1668
        %v1767 = vsub.f32 %v1255, %v1673
        %v1768 = vsub.f32 %v1257, %v1673
        %v1769 = vsub.f32 %v1261, %v1678
        %v1770 = vsub.f32 %v1263, %v1678
        %v1771 = vsub.f32 %v1265, %v1683
        %v1772 = vsub.f32 %v1267, %v1683
        %v1773 = vsub.f32 %v1271, %v1688
        %v1774 = vsub.f32 %v1273, %v1688
        %v1775 = vsub.f32 %v1275, %v1693
        %v1776 = vsub.f32 %v1277, %v1693
        %v1777 = vsub.f32 %v1281, %v1698
        %v1778 = vsub.f32 %v1283, %v1698
        %v1779 = vsub.f32 %v1285, %v1703
        %v1780 = vsub.f32 %v1287, %v1703
        %v1781 = vsub.f32 %v1291, %v1708
        %v1782 = vsub.f32 %v1293, %v1708
        %v1783 = vsub.f32 %v1295, %v1713
        %v1784 = vsub.f32 %v1297, %v1713
        %v1785 = vsub.f32 %v1301, %v1718
        %v1786 = vsub.f32 %v1303, %v1718
        %v1787 = vsub.f32 %v1305, %v1723
        %v1788 = vsub.f32 %v1307, %v1723
        %v1789 = vmul.f32 %v1725, 1.442695
        %v1790 = vpow.pop %v1789
        %v1791 = vmul.f32 %v1726, 1.442695
        %v1792 = vpow.pop %v1791
        %v1793 = vmul.f32 %v1727, 1.442695
        %v1794 = vpow.pop %v1793
        %v1795 = vmul.f32 %v1728, 1.442695
        %v1796 = vpow.pop %v1795
        %v1797 = vmul.f32 %v1729, 1.442695
        %v1798 = vpow.pop %v1797
        %v1799 = vmul.f32 %v1730, 1.442695
        %v1800 = vpow.pop %v1799
        %v1801 = vmul.f32 %v1731, 1.442695
        %v1802 = vpow.pop %v1801
        %v1803 = vmul.f32 %v1732, 1.442695
        %v1804 = vpow.pop %v1803
        %v1805 = vmul.f32 %v1733, 1.442695
        %v1806 = vpow.pop %v1805
        %v1807 = vmul.f32 %v1734, 1.442695
        %v1808 = vpow.pop %v1807
        %v1809 = vmul.f32 %v1735, 1.442695
        %v1810 = vpow.pop %v1809
        %v1811 = vmul.f32 %v1736, 1.442695
        %v1812 = vpow.pop %v1811
        %v1813 = vmul.f32 %v1737, 1.442695
        %v1814 = vpow.pop %v1813
        %v1815 = vmul.f32 %v1738, 1.442695
        %v1816 = vpow.pop %v1815
        %v1817 = vmul.f32 %v1739, 1.442695
        %v1818 = vpow.pop %v1817
        %v1819 = vmul.f32 %v1740, 1.442695
        %v1820 = vpow.pop %v1819
        %v1821 = vmul.f32 %v1741, 1.442695
        %v1822 = vpow.pop %v1821
        %v1823 = vmul.f32 %v1742, 1.442695
        %v1824 = vpow.pop %v1823
        %v1825 = vmul.f32 %v1743, 1.442695
        %v1826 = vpow.pop %v1825
        %v1827 = vmul.f32 %v1744, 1.442695
        %v1828 = vpow.pop %v1827
        %v1829 = vmul.f32 %v1745, 1.442695
        %v1830 = vpow.pop %v1829
        %v1831 = vmul.f32 %v1746, 1.442695
        %v1832 = vpow.pop %v1831
        %v1833 = vmul.f32 %v1747, 1.442695
        %v1834 = vpow.pop %v1833
        %v1835 = vmul.f32 %v1748, 1.442695
        %v1836 = vpow.pop %v1835
        %v1837 = vmul.f32 %v1749, 1.442695
        %v1838 = vpow.pop %v1837
        %v1839 = vmul.f32 %v1750, 1.442695
        %v1840 = vpow.pop %v1839
        %v1841 = vmul.f32 %v1751, 1.442695
        %v1842 = vpow.pop %v1841
        %v1843 = vmul.f32 %v1752, 1.442695
        %v1844 = vpow.pop %v1843
        %v1845 = vmul.f32 %v1753, 1.442695
        %v1846 = vpow.pop %v1845
        %v1847 = vmul.f32 %v1754, 1.442695
        %v1848 = vpow.pop %v1847
        %v1849 = vmul.f32 %v1755, 1.442695
        %v1850 = vpow.pop %v1849
        %v1851 = vmul.f32 %v1756, 1.442695
        %v1852 = vpow.pop %v1851
        %v1853 = vmul.f32 %v1757, 1.442695
        %v1854 = vpow.pop %v1853
        %v1855 = vmul.f32 %v1758, 1.442695
        %v1856 = vpow.pop %v1855
        %v1857 = vmul.f32 %v1759, 1.442695
        %v1858 = vpow.pop %v1857
        %v1859 = vmul.f32 %v1760, 1.442695
        %v1860 = vpow.pop %v1859
        %v1861 = vmul.f32 %v1761, 1.442695
        %v1862 = vpow.pop %v1861
        %v1863 = vmul.f32 %v1762, 1.442695
        %v1864 = vpow.pop %v1863
        %v1865 = vmul.f32 %v1763, 1.442695
        %v1866 = vpow.pop %v1865
        %v1867 = vmul.f32 %v1764, 1.442695
        %v1868 = vpow.pop %v1867
        %v1869 = vmul.f32 %v1765, 1.442695
        %v1870 = vpow.pop %v1869
        %v1871 = vmul.f32 %v1766, 1.442695
        %v1872 = vpow.pop %v1871
        %v1873 = vmul.f32 %v1767, 1.442695
        %v1874 = vpow.pop %v1873
        %v1875 = vmul.f32 %v1768, 1.442695
        %v1876 = vpow.pop %v1875
        %v1877 = vmul.f32 %v1769, 1.442695
        %v1878 = vpow.pop %v1877
        %v1879 = vmul.f32 %v1770, 1.442695
        %v1880 = vpow.pop %v1879
        %v1881 = vmul.f32 %v1771, 1.442695
        %v1882 = vpow.pop %v1881
        %v1883 = vmul.f32 %v1772, 1.442695
        %v1884 = vpow.pop %v1883
        %v1885 = vmul.f32 %v1773, 1.442695
        %v1886 = vpow.pop %v1885
        %v1887 = vmul.f32 %v1774, 1.442695
        %v1888 = vpow.pop %v1887
        %v1889 = vmul.f32 %v1775, 1.442695
        %v1890 = vpow.pop %v1889
        %v1891 = vmul.f32 %v1776, 1.442695
        %v1892 = vpow.pop %v1891
        %v1893 = vmul.f32 %v1777, 1.442695
        %v1894 = vpow.pop %v1893
        %v1895 = vmul.f32 %v1778, 1.442695
        %v1896 = vpow.pop %v1895
        %v1897 = vmul.f32 %v1779, 1.442695
        %v1898 = vpow.pop %v1897
        %v1899 = vmul.f32 %v1780, 1.442695
        %v1900 = vpow.pop %v1899
        %v1901 = vmul.f32 %v1781, 1.442695
        %v1902 = vpow.pop %v1901
        %v1903 = vmul.f32 %v1782, 1.442695
        %v1904 = vpow.pop %v1903
        %v1905 = vmul.f32 %v1783, 1.442695
        %v1906 = vpow.pop %v1905
        %v1907 = vmul.f32 %v1784, 1.442695
        %v1908 = vpow.pop %v1907
        %v1909 = vmul.f32 %v1785, 1.442695
        %v1910 = vpow.pop %v1909
        %v1911 = vmul.f32 %v1786, 1.442695
        %v1912 = vpow.pop %v1911
        %v1913 = vmul.f32 %v1787, 1.442695
        %v1914 = vpow.pop %v1913
        %v1915 = vmul.f32 %v1788, 1.442695
        %v1916 = vpow.pop %v1915
        %v1917 = vld [vmem:[#allocation3] sm:$0xff]
        %v1918 = vld [vmem:[#allocation3 + $0x8] sm:$0xff]
        %v1919 = vld [vmem:[#allocation3 + $0x10] sm:$0xff]
        %v1920 = vld [vmem:[#allocation3 + $0x18] sm:$0xff]
        %v1921 = vld [vmem:[#allocation3 + $0x20] sm:$0xff]
        %v1922 = vld [vmem:[#allocation3 + $0x28] sm:$0xff]
        %v1923 = vld [vmem:[#allocation3 + $0x30] sm:$0xff]
        %v1924 = vld [vmem:[#allocation3 + $0x38] sm:$0xff]
        %v1925 = vld [vmem:[#allocation3 + $0x40] sm:$0xff]
        %v1926 = vld [vmem:[#allocation3 + $0x48] sm:$0xff]
        %v1927 = vld [vmem:[#allocation3 + $0x50] sm:$0xff]
        %v1928 = vld [vmem:[#allocation3 + $0x58] sm:$0xff]
        %v1929 = vld [vmem:[#allocation3 + $0x60] sm:$0xff]
        %v1930 = vld [vmem:[#allocation3 + $0x68] sm:$0xff]
        %v1931 = vld [vmem:[#allocation3 + $0x70] sm:$0xff]
        %v1932 = vld [vmem:[#allocation3 + $0x78] sm:$0xff]
        %v1933 = vld [vmem:[#allocation3 + $0x80] sm:$0xff]
        %v1934 = vld [vmem:[#allocation3 + $0x88] sm:$0xff]
        %v1935 = vld [vmem:[#allocation3 + $0x90] sm:$0xff]
        %v1936 = vld [vmem:[#allocation3 + $0x98] sm:$0xff]
        %v1937 = vld [vmem:[#allocation3 + $0xa0] sm:$0xff]
        %v1938 = vld [vmem:[#allocation3 + $0xa8] sm:$0xff]
        %v1939 = vld [vmem:[#allocation3 + $0xb0] sm:$0xff]
        %v1940 = vld [vmem:[#allocation3 + $0xb8] sm:$0xff]
        %v1941 = vld [vmem:[#allocation3 + $0xc0] sm:$0xff]
        %v1942 = vld [vmem:[#allocation3 + $0xc8] sm:$0xff]
        %v1943 = vld [vmem:[#allocation3 + $0xd0] sm:$0xff]
        %v1944 = vld [vmem:[#allocation3 + $0xd8] sm:$0xff]
        %v1945 = vld [vmem:[#allocation3 + $0xe0] sm:$0xff]
        %v1946 = vld [vmem:[#allocation3 + $0xe8] sm:$0xff]
        %v1947 = vld [vmem:[#allocation3 + $0xf0] sm:$0xff]
        %v1948 = vld [vmem:[#allocation3 + $0xf8] sm:$0xff]
        %v1949 = vmul.f32 %v1502, %v1917
        %v1950 = vmul.f32 %v1504, %v1918
        %v1951 = vmul.f32 %v1506, %v1919
        %v1952 = vmul.f32 %v1508, %v1920
        %v1953 = vmul.f32 %v1510, %v1921
        %v1954 = vmul.f32 %v1512, %v1922
        %v1955 = vmul.f32 %v1514, %v1923
        %v1956 = vmul.f32 %v1516, %v1924
        %v1957 = vmul.f32 %v1518, %v1925
        %v1958 = vmul.f32 %v1520, %v1926
        %v1959 = vmul.f32 %v1522, %v1927
        %v1960 = vmul.f32 %v1524, %v1928
        %v1961 = vmul.f32 %v1526, %v1929
        %v1962 = vmul.f32 %v1528, %v1930
        %v1963 = vmul.f32 %v1530, %v1931
        %v1964 = vmul.f32 %v1532, %v1932
        %v1965 = vmul.f32 %v1534, %v1933
        %v1966 = vmul.f32 %v1536, %v1934
        %v1967 = vmul.f32 %v1538, %v1935
        %v1968 = vmul.f32 %v1540, %v1936
        %v1969 = vmul.f32 %v1542, %v1937
        %v1970 = vmul.f32 %v1544, %v1938
        %v1971 = vmul.f32 %v1546, %v1939
        %v1972 = vmul.f32 %v1548, %v1940
        %v1973 = vmul.f32 %v1550, %v1941
        %v1974 = vmul.f32 %v1552, %v1942
        %v1975 = vmul.f32 %v1554, %v1943
        %v1976 = vmul.f32 %v1556, %v1944
        %v1977 = vmul.f32 %v1558, %v1945
        %v1978 = vmul.f32 %v1560, %v1946
        %v1979 = vmul.f32 %v1562, %v1947
        %v1980 = vmul.f32 %v1564, %v1948
        %v1981 = vadd.f32 %v1790, %v1792
        %1982 = vadd.xlane.f32.xlu0 %v1981
        %v1983 = vpop.xlane.xlu0 %1982
        %v1984 = vadd.f32 %v1794, %v1796
        %1985 = vadd.xlane.f32.xlu0 %v1984
        %v1986 = vpop.xlane.xlu0 %1985
        %v1987 = vadd.f32 %v1798, %v1800
        %1988 = vadd.xlane.f32.xlu0 %v1987
        %v1989 = vpop.xlane.xlu0 %1988
        %v1990 = vadd.f32 %v1802, %v1804
        %1991 = vadd.xlane.f32.xlu0 %v1990
        %v1992 = vpop.xlane.xlu0 %1991
        %v1993 = vadd.f32 %v1806, %v1808
        %1994 = vadd.xlane.f32.xlu0 %v1993
        %v1995 = vpop.xlane.xlu0 %1994
        %v1996 = vadd.f32 %v1810, %v1812
        %1997 = vadd.xlane.f32.xlu0 %v1996
        %v1998 = vpop.xlane.xlu0 %1997
        %v1999 = vadd.f32 %v1814, %v1816
        %2000 = vadd.xlane.f32.xlu0 %v1999
        %v2001 = vpop.xlane.xlu0 %2000
        %v2002 = vadd.f32 %v1818, %v1820
        %2003 = vadd.xlane.f32.xlu0 %v2002
        %v2004 = vpop.xlane.xlu0 %2003
        %v2005 = vadd.f32 %v1822, %v1824
        %2006 = vadd.xlane.f32.xlu0 %v2005
        %v2007 = vpop.xlane.xlu0 %2006
        %v2008 = vadd.f32 %v1826, %v1828
        %2009 = vadd.xlane.f32.xlu0 %v2008
        %v2010 = vpop.xlane.xlu0 %2009
        %v2011 = vadd.f32 %v1830, %v1832
        %2012 = vadd.xlane.f32.xlu0 %v2011
        %v2013 = vpop.xlane.xlu0 %2012
        %v2014 = vadd.f32 %v1834, %v1836
        %2015 = vadd.xlane.f32.xlu0 %v2014
        %v2016 = vpop.xlane.xlu0 %2015
        %v2017 = vadd.f32 %v1838, %v1840
        %2018 = vadd.xlane.f32.xlu0 %v2017
        %v2019 = vpop.xlane.xlu0 %2018
        %v2020 = vadd.f32 %v1842, %v1844
        %2021 = vadd.xlane.f32.xlu0 %v2020
        %v2022 = vpop.xlane.xlu0 %2021
        %v2023 = vadd.f32 %v1846, %v1848
        %2024 = vadd.xlane.f32.xlu0 %v2023
        %v2025 = vpop.xlane.xlu0 %2024
        %v2026 = vadd.f32 %v1850, %v1852
        %2027 = vadd.xlane.f32.xlu0 %v2026
        %v2028 = vpop.xlane.xlu0 %2027
        %v2029 = vadd.f32 %v1854, %v1856
        %2030 = vadd.xlane.f32.xlu0 %v2029
        %v2031 = vpop.xlane.xlu0 %2030
        %v2032 = vadd.f32 %v1858, %v1860
        %2033 = vadd.xlane.f32.xlu0 %v2032
        %v2034 = vpop.xlane.xlu0 %2033
        %v2035 = vadd.f32 %v1862, %v1864
        %2036 = vadd.xlane.f32.xlu0 %v2035
        %v2037 = vpop.xlane.xlu0 %2036
        %v2038 = vadd.f32 %v1866, %v1868
        %2039 = vadd.xlane.f32.xlu0 %v2038
        %v2040 = vpop.xlane.xlu0 %2039
        %v2041 = vadd.f32 %v1870, %v1872
        %2042 = vadd.xlane.f32.xlu0 %v2041
        %v2043 = vpop.xlane.xlu0 %2042
        %v2044 = vadd.f32 %v1874, %v1876
        %2045 = vadd.xlane.f32.xlu0 %v2044
        %v2046 = vpop.xlane.xlu0 %2045
        %v2047 = vadd.f32 %v1878, %v1880
        %2048 = vadd.xlane.f32.xlu0 %v2047
        %v2049 = vpop.xlane.xlu0 %2048
        %v2050 = vadd.f32 %v1882, %v1884
        %2051 = vadd.xlane.f32.xlu0 %v2050
        %v2052 = vpop.xlane.xlu0 %2051
        %v2053 = vadd.f32 %v1886, %v1888
        %2054 = vadd.xlane.f32.xlu0 %v2053
        %v2055 = vpop.xlane.xlu0 %2054
        %v2056 = vadd.f32 %v1890, %v1892
        %2057 = vadd.xlane.f32.xlu0 %v2056
        %v2058 = vpop.xlane.xlu0 %2057
        %v2059 = vadd.f32 %v1894, %v1896
        %2060 = vadd.xlane.f32.xlu0 %v2059
        %v2061 = vpop.xlane.xlu0 %2060
        %v2062 = vadd.f32 %v1898, %v1900
        %2063 = vadd.xlane.f32.xlu0 %v2062
        %v2064 = vpop.xlane.xlu0 %2063
        %v2065 = vadd.f32 %v1902, %v1904
        %2066 = vadd.xlane.f32.xlu0 %v2065
        %v2067 = vpop.xlane.xlu0 %2066
        %v2068 = vadd.f32 %v1906, %v1908
        %2069 = vadd.xlane.f32.xlu0 %v2068
        %v2070 = vpop.xlane.xlu0 %2069
        %v2071 = vadd.f32 %v1910, %v1912
        %2072 = vadd.xlane.f32.xlu0 %v2071
        %v2073 = vpop.xlane.xlu0 %2072
        %v2074 = vadd.f32 %v1914, %v1916
        %2075 = vadd.xlane.f32.xlu0 %v2074
        %v2076 = vpop.xlane.xlu0 %2075
        %v2077 = vadd.f32 %v1949, %v1983
        %v2078 = vadd.f32 %v1950, %v1986
        %v2079 = vadd.f32 %v1951, %v1989
        %v2080 = vadd.f32 %v1952, %v1992
        %v2081 = vadd.f32 %v1953, %v1995
        %v2082 = vadd.f32 %v1954, %v1998
        %v2083 = vadd.f32 %v1955, %v2001
        %v2084 = vadd.f32 %v1956, %v2004
        %v2085 = vadd.f32 %v1957, %v2007
        %v2086 = vadd.f32 %v1958, %v2010
        %v2087 = vadd.f32 %v1959, %v2013
        %v2088 = vadd.f32 %v1960, %v2016
        %v2089 = vadd.f32 %v1961, %v2019
        %v2090 = vadd.f32 %v1962, %v2022
        %v2091 = vadd.f32 %v1963, %v2025
        %v2092 = vadd.f32 %v1964, %v2028
        %v2093 = vadd.f32 %v1965, %v2031
        %v2094 = vadd.f32 %v1966, %v2034
        %v2095 = vadd.f32 %v1967, %v2037
        %v2096 = vadd.f32 %v1968, %v2040
        %v2097 = vadd.f32 %v1969, %v2043
        %v2098 = vadd.f32 %v1970, %v2046
        %v2099 = vadd.f32 %v1971, %v2049
        %v2100 = vadd.f32 %v1972, %v2052
        %v2101 = vadd.f32 %v1973, %v2055
        %v2102 = vadd.f32 %v1974, %v2058
        %v2103 = vadd.f32 %v1975, %v2061
        %v2104 = vadd.f32 %v1976, %v2064
        %v2105 = vadd.f32 %v1977, %v2067
        %v2106 = vadd.f32 %v1978, %v2070
        %v2107 = vadd.f32 %v1979, %v2073
        %v2108 = vadd.f32 %v1980, %v2076
        %vm2109 = vcmask 7168
        %2110 = vst.msk [vmem:[#allocation3] sm:$0xff] %vm2109, %v2077
        %2111 = vst.msk [vmem:[#allocation3 + $0x8] sm:$0xff] %vm2109, %v2078
        %2112 = vst.msk [vmem:[#allocation3 + $0x10] sm:$0xff] %vm2109, %v2079
        %2113 = vst.msk [vmem:[#allocation3 + $0x18] sm:$0xff] %vm2109, %v2080
        %2114 = vst.msk [vmem:[#allocation3 + $0x20] sm:$0xff] %vm2109, %v2081
        %2115 = vst.msk [vmem:[#allocation3 + $0x28] sm:$0xff] %vm2109, %v2082
        %2116 = vst.msk [vmem:[#allocation3 + $0x30] sm:$0xff] %vm2109, %v2083
        %2117 = vst.msk [vmem:[#allocation3 + $0x38] sm:$0xff] %vm2109, %v2084
        %2118 = vst.msk [vmem:[#allocation3 + $0x40] sm:$0xff] %vm2109, %v2085
        %2119 = vst.msk [vmem:[#allocation3 + $0x48] sm:$0xff] %vm2109, %v2086
        %2120 = vst.msk [vmem:[#allocation3 + $0x50] sm:$0xff] %vm2109, %v2087
        %2121 = vst.msk [vmem:[#allocation3 + $0x58] sm:$0xff] %vm2109, %v2088
        %2122 = vst.msk [vmem:[#allocation3 + $0x60] sm:$0xff] %vm2109, %v2089
        %2123 = vst.msk [vmem:[#allocation3 + $0x68] sm:$0xff] %vm2109, %v2090
        %2124 = vst.msk [vmem:[#allocation3 + $0x70] sm:$0xff] %vm2109, %v2091
        %2125 = vst.msk [vmem:[#allocation3 + $0x78] sm:$0xff] %vm2109, %v2092
        %2126 = vst.msk [vmem:[#allocation3 + $0x80] sm:$0xff] %vm2109, %v2093
        %2127 = vst.msk [vmem:[#allocation3 + $0x88] sm:$0xff] %vm2109, %v2094
        %2128 = vst.msk [vmem:[#allocation3 + $0x90] sm:$0xff] %vm2109, %v2095
        %2129 = vst.msk [vmem:[#allocation3 + $0x98] sm:$0xff] %vm2109, %v2096
        %2130 = vst.msk [vmem:[#allocation3 + $0xa0] sm:$0xff] %vm2109, %v2097
        %2131 = vst.msk [vmem:[#allocation3 + $0xa8] sm:$0xff] %vm2109, %v2098
        %2132 = vst.msk [vmem:[#allocation3 + $0xb0] sm:$0xff] %vm2109, %v2099
        %2133 = vst.msk [vmem:[#allocation3 + $0xb8] sm:$0xff] %vm2109, %v2100
        %2134 = vst.msk [vmem:[#allocation3 + $0xc0] sm:$0xff] %vm2109, %v2101
        %2135 = vst.msk [vmem:[#allocation3 + $0xc8] sm:$0xff] %vm2109, %v2102
        %2136 = vst.msk [vmem:[#allocation3 + $0xd0] sm:$0xff] %vm2109, %v2103
        %2137 = vst.msk [vmem:[#allocation3 + $0xd8] sm:$0xff] %vm2109, %v2104
        %2138 = vst.msk [vmem:[#allocation3 + $0xe0] sm:$0xff] %vm2109, %v2105
        %2139 = vst.msk [vmem:[#allocation3 + $0xe8] sm:$0xff] %vm2109, %v2106
        %2140 = vst.msk [vmem:[#allocation3 + $0xf0] sm:$0xff] %vm2109, %v2107
        %2141 = vst.msk [vmem:[#allocation3 + $0xf8] sm:$0xff] %vm2109, %v2108
        %v2142 = vld [vmem:[#allocation4] sm:$0xff]
        %v2143 = vld [vmem:[#allocation4 + $0x8] sm:$0xff]
        %v2144 = vld [vmem:[#allocation4 + $0x10] sm:$0xff]
        %v2145 = vld [vmem:[#allocation4 + $0x18] sm:$0xff]
        %v2146 = vld [vmem:[#allocation4 + $0x20] sm:$0xff]
        %v2147 = vld [vmem:[#allocation4 + $0x28] sm:$0xff]
        %v2148 = vld [vmem:[#allocation4 + $0x30] sm:$0xff]
        %v2149 = vld [vmem:[#allocation4 + $0x38] sm:$0xff]
        %v2150 = vld [vmem:[#allocation4 + $0x40] sm:$0xff]
        %v2151 = vld [vmem:[#allocation4 + $0x48] sm:$0xff]
        %v2152 = vld [vmem:[#allocation4 + $0x50] sm:$0xff]
        %v2153 = vld [vmem:[#allocation4 + $0x58] sm:$0xff]
        %v2154 = vld [vmem:[#allocation4 + $0x60] sm:$0xff]
        %v2155 = vld [vmem:[#allocation4 + $0x68] sm:$0xff]
        %v2156 = vld [vmem:[#allocation4 + $0x70] sm:$0xff]
        %v2157 = vld [vmem:[#allocation4 + $0x78] sm:$0xff]
        %v2158 = vld [vmem:[#allocation4 + $0x80] sm:$0xff]
        %v2159 = vld [vmem:[#allocation4 + $0x88] sm:$0xff]
        %v2160 = vld [vmem:[#allocation4 + $0x90] sm:$0xff]
        %v2161 = vld [vmem:[#allocation4 + $0x98] sm:$0xff]
        %v2162 = vld [vmem:[#allocation4 + $0xa0] sm:$0xff]
        %v2163 = vld [vmem:[#allocation4 + $0xa8] sm:$0xff]
        %v2164 = vld [vmem:[#allocation4 + $0xb0] sm:$0xff]
        %v2165 = vld [vmem:[#allocation4 + $0xb8] sm:$0xff]
        %v2166 = vld [vmem:[#allocation4 + $0xc0] sm:$0xff]
        %v2167 = vld [vmem:[#allocation4 + $0xc8] sm:$0xff]
        %v2168 = vld [vmem:[#allocation4 + $0xd0] sm:$0xff]
        %v2169 = vld [vmem:[#allocation4 + $0xd8] sm:$0xff]
        %v2170 = vld [vmem:[#allocation4 + $0xe0] sm:$0xff]
        %v2171 = vld [vmem:[#allocation4 + $0xe8] sm:$0xff]
        %v2172 = vld [vmem:[#allocation4 + $0xf0] sm:$0xff]
        %v2173 = vld [vmem:[#allocation4 + $0xf8] sm:$0xff]
        %2175 = vset.pattern.permute.xlu0 0
        %2176 = vperm.xlu0 %2175, %v1502
        %v2177 = vpop.permute.xlu0 %2176
        %2180 = vset.pattern.permute.xlu0 0
        %2181 = vperm.xlu0 %2180, %v1504
        %v2182 = vpop.permute.xlu0 %2181
        %2185 = vset.pattern.permute.xlu0 0
        %2186 = vperm.xlu0 %2185, %v1506
        %v2187 = vpop.permute.xlu0 %2186
        %2190 = vset.pattern.permute.xlu0 0
        %2191 = vperm.xlu0 %2190, %v1508
        %v2192 = vpop.permute.xlu0 %2191
        %2195 = vset.pattern.permute.xlu0 0
        %2196 = vperm.xlu0 %2195, %v1510
        %v2197 = vpop.permute.xlu0 %2196
        %2200 = vset.pattern.permute.xlu0 0
        %2201 = vperm.xlu0 %2200, %v1512
        %v2202 = vpop.permute.xlu0 %2201
        %2205 = vset.pattern.permute.xlu0 0
        %2206 = vperm.xlu0 %2205, %v1514
        %v2207 = vpop.permute.xlu0 %2206
        %2210 = vset.pattern.permute.xlu0 0
        %2211 = vperm.xlu0 %2210, %v1516
        %v2212 = vpop.permute.xlu0 %2211
        %2215 = vset.pattern.permute.xlu0 0
        %2216 = vperm.xlu0 %2215, %v1518
        %v2217 = vpop.permute.xlu0 %2216
        %2220 = vset.pattern.permute.xlu0 0
        %2221 = vperm.xlu0 %2220, %v1520
        %v2222 = vpop.permute.xlu0 %2221
        %2225 = vset.pattern.permute.xlu0 0
        %2226 = vperm.xlu0 %2225, %v1522
        %v2227 = vpop.permute.xlu0 %2226
        %2230 = vset.pattern.permute.xlu0 0
        %2231 = vperm.xlu0 %2230, %v1524
        %v2232 = vpop.permute.xlu0 %2231
        %2235 = vset.pattern.permute.xlu0 0
        %2236 = vperm.xlu0 %2235, %v1526
        %v2237 = vpop.permute.xlu0 %2236
        %2240 = vset.pattern.permute.xlu0 0
        %2241 = vperm.xlu0 %2240, %v1528
        %v2242 = vpop.permute.xlu0 %2241
        %2245 = vset.pattern.permute.xlu0 0
        %2246 = vperm.xlu0 %2245, %v1530
        %v2247 = vpop.permute.xlu0 %2246
        %2250 = vset.pattern.permute.xlu0 0
        %2251 = vperm.xlu0 %2250, %v1532
        %v2252 = vpop.permute.xlu0 %2251
        %2255 = vset.pattern.permute.xlu0 0
        %2256 = vperm.xlu0 %2255, %v1534
        %v2257 = vpop.permute.xlu0 %2256
        %2260 = vset.pattern.permute.xlu0 0
        %2261 = vperm.xlu0 %2260, %v1536
        %v2262 = vpop.permute.xlu0 %2261
        %2265 = vset.pattern.permute.xlu0 0
        %2266 = vperm.xlu0 %2265, %v1538
        %v2267 = vpop.permute.xlu0 %2266
        %2270 = vset.pattern.permute.xlu0 0
        %2271 = vperm.xlu0 %2270, %v1540
        %v2272 = vpop.permute.xlu0 %2271
        %2275 = vset.pattern.permute.xlu0 0
        %2276 = vperm.xlu0 %2275, %v1542
        %v2277 = vpop.permute.xlu0 %2276
        %2280 = vset.pattern.permute.xlu0 0
        %2281 = vperm.xlu0 %2280, %v1544
        %v2282 = vpop.permute.xlu0 %2281
        %2285 = vset.pattern.permute.xlu0 0
        %2286 = vperm.xlu0 %2285, %v1546
        %v2287 = vpop.permute.xlu0 %2286
        %2290 = vset.pattern.permute.xlu0 0
        %2291 = vperm.xlu0 %2290, %v1548
        %v2292 = vpop.permute.xlu0 %2291
        %2295 = vset.pattern.permute.xlu0 0
        %2296 = vperm.xlu0 %2295, %v1550
        %v2297 = vpop.permute.xlu0 %2296
        %2300 = vset.pattern.permute.xlu0 0
        %2301 = vperm.xlu0 %2300, %v1552
        %v2302 = vpop.permute.xlu0 %2301
        %2305 = vset.pattern.permute.xlu0 0
        %2306 = vperm.xlu0 %2305, %v1554
        %v2307 = vpop.permute.xlu0 %2306
        %2310 = vset.pattern.permute.xlu0 0
        %2311 = vperm.xlu0 %2310, %v1556
        %v2312 = vpop.permute.xlu0 %2311
        %2315 = vset.pattern.permute.xlu0 0
        %2316 = vperm.xlu0 %2315, %v1558
        %v2317 = vpop.permute.xlu0 %2316
        %2320 = vset.pattern.permute.xlu0 0
        %2321 = vperm.xlu0 %2320, %v1560
        %v2322 = vpop.permute.xlu0 %2321
        %2325 = vset.pattern.permute.xlu0 0
        %2326 = vperm.xlu0 %2325, %v1562
        %v2327 = vpop.permute.xlu0 %2326
        %2330 = vset.pattern.permute.xlu0 0
        %2331 = vperm.xlu0 %2330, %v1564
        %v2332 = vpop.permute.xlu0 %2331
        %v2334 = vmul.f32 %v2177, %v2142
        %v2335 = vmul.f32 %v2182, %v2143
        %v2336 = vmul.f32 %v2187, %v2144
        %v2337 = vmul.f32 %v2192, %v2145
        %v2338 = vmul.f32 %v2197, %v2146
        %v2339 = vmul.f32 %v2202, %v2147
        %v2340 = vmul.f32 %v2207, %v2148
        %v2341 = vmul.f32 %v2212, %v2149
        %v2342 = vmul.f32 %v2217, %v2150
        %v2343 = vmul.f32 %v2222, %v2151
        %v2344 = vmul.f32 %v2227, %v2152
        %v2345 = vmul.f32 %v2232, %v2153
        %v2346 = vmul.f32 %v2237, %v2154
        %v2347 = vmul.f32 %v2242, %v2155
        %v2348 = vmul.f32 %v2247, %v2156
        %v2349 = vmul.f32 %v2252, %v2157
        %v2350 = vmul.f32 %v2257, %v2158
        %v2351 = vmul.f32 %v2262, %v2159
        %v2352 = vmul.f32 %v2267, %v2160
        %v2353 = vmul.f32 %v2272, %v2161
        %v2354 = vmul.f32 %v2277, %v2162
        %v2355 = vmul.f32 %v2282, %v2163
        %v2356 = vmul.f32 %v2287, %v2164
        %v2357 = vmul.f32 %v2292, %v2165
        %v2358 = vmul.f32 %v2297, %v2166
        %v2359 = vmul.f32 %v2302, %v2167
        %v2360 = vmul.f32 %v2307, %v2168
        %v2361 = vmul.f32 %v2312, %v2169
        %v2362 = vmul.f32 %v2317, %v2170
        %v2363 = vmul.f32 %v2322, %v2171
        %v2364 = vmul.f32 %v2327, %v2172
        %v2365 = vmul.f32 %v2332, %v2173
        %v2366 = vpack.c.bf16 %v1794, %v1790
        %v2367 = vpack.c.bf16 %v1796, %v1792
        %v2368 = vpack.c.bf16 %v1802, %v1798
        %v2369 = vpack.c.bf16 %v1804, %v1800
        %v2370 = vpack.c.bf16 %v1810, %v1806
        %v2371 = vpack.c.bf16 %v1812, %v1808
        %v2372 = vpack.c.bf16 %v1818, %v1814
        %v2373 = vpack.c.bf16 %v1820, %v1816
        %v2374 = vpack.c.bf16 %v1826, %v1822
        %v2375 = vpack.c.bf16 %v1828, %v1824
        %v2376 = vpack.c.bf16 %v1834, %v1830
        %v2377 = vpack.c.bf16 %v1836, %v1832
        %v2378 = vpack.c.bf16 %v1842, %v1838
        %v2379 = vpack.c.bf16 %v1844, %v1840
        %v2380 = vpack.c.bf16 %v1850, %v1846
        %v2381 = vpack.c.bf16 %v1852, %v1848
        %v2382 = vpack.c.bf16 %v1858, %v1854
        %v2383 = vpack.c.bf16 %v1860, %v1856
        %v2384 = vpack.c.bf16 %v1866, %v1862
        %v2385 = vpack.c.bf16 %v1868, %v1864
        %v2386 = vpack.c.bf16 %v1874, %v1870
        %v2387 = vpack.c.bf16 %v1876, %v1872
        %v2388 = vpack.c.bf16 %v1882, %v1878
        %v2389 = vpack.c.bf16 %v1884, %v1880
        %v2390 = vpack.c.bf16 %v1890, %v1886
        %v2391 = vpack.c.bf16 %v1892, %v1888
        %v2392 = vpack.c.bf16 %v1898, %v1894
        %v2393 = vpack.c.bf16 %v1900, %v1896
        %v2394 = vpack.c.bf16 %v1906, %v1902
        %v2395 = vpack.c.bf16 %v1908, %v1904
        %v2396 = vpack.c.bf16 %v1914, %v1910
        %v2397 = vpack.c.bf16 %v1916, %v1912
        %v2398 = vld [vmem:[%s712] sm:$0xf]
        %v2399 = vld [vmem:[%s712 + $0x4] sm:$0xf]
        %v2400 = vld [vmem:[%s712 + $0x8] sm:$0xf]
        %v2401 = vld [vmem:[%s712 + $0xc] sm:$0xf]
        %v2402 = vld [vmem:[%s712 + $0x10] sm:$0xf]
        %v2403 = vld [vmem:[%s712 + $0x14] sm:$0xf]
        %v2404 = vld [vmem:[%s712 + $0x18] sm:$0xf]
        %v2405 = vld [vmem:[%s712 + $0x1c] sm:$0xf]
        %v2406 = vld [vmem:[%s712 + $0x20] sm:$0xf]
        %v2407 = vld [vmem:[%s712 + $0x24] sm:$0xf]
        %v2408 = vld [vmem:[%s712 + $0x28] sm:$0xf]
        %v2409 = vld [vmem:[%s712 + $0x2c] sm:$0xf]
        %v2410 = vld [vmem:[%s712 + $0x30] sm:$0xf]
        %v2411 = vld [vmem:[%s712 + $0x34] sm:$0xf]
        %v2412 = vld [vmem:[%s712 + $0x38] sm:$0xf]
        %v2413 = vld [vmem:[%s712 + $0x3c] sm:$0xf]
        %v2414 = vld [vmem:[%s712 + $0x40] sm:$0xf]
        %v2415 = vld [vmem:[%s712 + $0x44] sm:$0xf]
        %v2416 = vld [vmem:[%s712 + $0x48] sm:$0xf]
        %v2417 = vld [vmem:[%s712 + $0x4c] sm:$0xf]
        %v2418 = vld [vmem:[%s712 + $0x50] sm:$0xf]
        %v2419 = vld [vmem:[%s712 + $0x54] sm:$0xf]
        %v2420 = vld [vmem:[%s712 + $0x58] sm:$0xf]
        %v2421 = vld [vmem:[%s712 + $0x5c] sm:$0xf]
        %v2422 = vld [vmem:[%s712 + $0x60] sm:$0xf]
        %v2423 = vld [vmem:[%s712 + $0x64] sm:$0xf]
        %v2424 = vld [vmem:[%s712 + $0x68] sm:$0xf]
        %v2425 = vld [vmem:[%s712 + $0x6c] sm:$0xf]
        %v2426 = vld [vmem:[%s712 + $0x70] sm:$0xf]
        %v2427 = vld [vmem:[%s712 + $0x74] sm:$0xf]
        %v2428 = vld [vmem:[%s712 + $0x78] sm:$0xf]
        %v2429 = vld [vmem:[%s712 + $0x7c] sm:$0xf]
        %v2462 = vunpack.c.l.b16 %v2398
        %v2463 = vunpack.c.l.b16 %v2399
        %v2464 = vunpack.c.l.b16 %v2400
        %v2465 = vunpack.c.l.b16 %v2401
        %v2466 = vunpack.c.l.b16 %v2402
        %v2467 = vunpack.c.l.b16 %v2403
        %v2468 = vunpack.c.l.b16 %v2404
        %v2469 = vunpack.c.l.b16 %v2405
        %v2470 = vunpack.c.l.b16 %v2406
        %v2471 = vunpack.c.l.b16 %v2407
        %v2472 = vunpack.c.l.b16 %v2408
        %v2473 = vunpack.c.l.b16 %v2409
        %v2474 = vunpack.c.l.b16 %v2410
        %v2475 = vunpack.c.l.b16 %v2411
        %v2476 = vunpack.c.l.b16 %v2412
        %v2477 = vunpack.c.l.b16 %v2413
        %v2478 = vunpack.c.l.b16 %v2414
        %v2479 = vunpack.c.l.b16 %v2415
        %v2480 = vunpack.c.l.b16 %v2416
        %v2481 = vunpack.c.l.b16 %v2417
        %v2482 = vunpack.c.l.b16 %v2418
        %v2483 = vunpack.c.l.b16 %v2419
        %v2484 = vunpack.c.l.b16 %v2420
        %v2485 = vunpack.c.l.b16 %v2421
        %v2486 = vunpack.c.l.b16 %v2422
        %v2487 = vunpack.c.l.b16 %v2423
        %v2488 = vunpack.c.l.b16 %v2424
        %v2489 = vunpack.c.l.b16 %v2425
        %v2490 = vunpack.c.l.b16 %v2426
        %v2491 = vunpack.c.l.b16 %v2427
        %v2492 = vunpack.c.l.b16 %v2428
        %v2493 = vunpack.c.l.b16 %v2429
        %v2494 = vpack.c.b16 %v2463, %v2462
        %v2495 = vpack.c.b16 %v2465, %v2464
        %v2496 = vpack.c.b16 %v2467, %v2466
        %v2497 = vpack.c.b16 %v2469, %v2468
        %v2498 = vpack.c.b16 %v2471, %v2470
        %v2499 = vpack.c.b16 %v2473, %v2472
        %v2500 = vpack.c.b16 %v2475, %v2474
        %v2501 = vpack.c.b16 %v2477, %v2476
        %v2502 = vpack.c.b16 %v2479, %v2478
        %v2503 = vpack.c.b16 %v2481, %v2480
        %v2504 = vpack.c.b16 %v2483, %v2482
        %v2505 = vpack.c.b16 %v2485, %v2484
        %v2506 = vpack.c.b16 %v2487, %v2486
        %v2507 = vpack.c.b16 %v2489, %v2488
        %v2508 = vpack.c.b16 %v2491, %v2490
        %v2509 = vpack.c.b16 %v2493, %v2492
        %2526 = vmatprep.subr.bf16.mxu0 0
        %2527 = vmatpush1.bf16.msra.mxu0 %v2494
        %2528 = vmatprep.subr.bf16.mxu0 0
        %2529 = vmatpush1.bf16.msra.mxu0 %v2495
        %2530 = vmatprep.subr.bf16.mxu0 0
        %2531 = vmatpush1.bf16.msra.mxu0 %v2496
        %2532 = vmatprep.subr.bf16.mxu0 0
        %2533 = vmatpush1.bf16.msra.mxu0 %v2497
        %2534 = vmatprep.subr.bf16.mxu0 0
        %2535 = vmatpush1.bf16.msra.mxu0 %v2498
        %2536 = vmatprep.subr.bf16.mxu0 0
        %2537 = vmatpush1.bf16.msra.mxu0 %v2499
        %2538 = vmatprep.subr.bf16.mxu0 0
        %2539 = vmatpush1.bf16.msra.mxu0 %v2500
        %2540 = vmatprep.subr.bf16.mxu0 0
        %2541 = vmatpush1.bf16.msra.mxu0 %v2501
        %2542 = vmatprep.subr.bf16.mxu0 0
        %2543 = vmatpush1.bf16.msra.mxu0 %v2502
        %2544 = vmatprep.subr.bf16.mxu0 0
        %2545 = vmatpush1.bf16.msra.mxu0 %v2503
        %2546 = vmatprep.subr.bf16.mxu0 0
        %2547 = vmatpush1.bf16.msra.mxu0 %v2504
        %2548 = vmatprep.subr.bf16.mxu0 0
        %2549 = vmatpush1.bf16.msra.mxu0 %v2505
        %2550 = vmatprep.subr.bf16.mxu0 0
        %2551 = vmatpush1.bf16.msra.mxu0 %v2506
        %2552 = vmatprep.subr.bf16.mxu0 0
        %2553 = vmatpush1.bf16.msra.mxu0 %v2507
        %2554 = vmatprep.subr.bf16.mxu0 0
        %2555 = vmatpush1.bf16.msra.mxu0 %v2508
        %2556 = vmatprep.subr.bf16.mxu0 0
        %2557 = vmatpush1.bf16.msra.mxu0 %v2509
        %2558 = vmatprep.mubr.bf16.mxu0 %v2367
        %2559 = vmatmul.mubr.bf16.gmra.mrb[0].mxu0 %v2366
        %v2560 = vpop.f32.mrb[0].mxu0
        %v2561 = vadd.f32 0.0, %v2560
        %v2562 = vpop.f32.mrb[0].mxu0
        %v2563 = vpop.f32.mrb[0].mxu0
        %v2564 = vadd.f32 0.0, %v2563
        %v2565 = vpop.f32.mrb[0].mxu0
        %2566 = vmatprep.mubr.bf16.mxu0 %v2369
        %2567 = vmatmul.mubr.bf16.gmra.mrb[0].mxu0 %v2368
        %v2568 = vpop.f32.mrb[0].mxu0
        %v2569 = vadd.f32 0.0, %v2568
        %v2570 = vpop.f32.mrb[0].mxu0
        %v2571 = vpop.f32.mrb[0].mxu0
        %v2572 = vadd.f32 0.0, %v2571
        %v2573 = vpop.f32.mrb[0].mxu0
        %2574 = vmatprep.mubr.bf16.mxu0 %v2371
        %2575 = vmatmul.mubr.bf16.gmra.mrb[0].mxu0 %v2370
        %v2576 = vpop.f32.mrb[0].mxu0
        %v2577 = vadd.f32 0.0, %v2576
        %v2578 = vpop.f32.mrb[0].mxu0
        %v2579 = vpop.f32.mrb[0].mxu0
        %v2580 = vadd.f32 0.0, %v2579
        %v2581 = vpop.f32.mrb[0].mxu0
        %2582 = vmatprep.mubr.bf16.mxu0 %v2373
        %2583 = vmatmul.mubr.bf16.gmra.mrb[0].mxu0 %v2372
        %v2584 = vpop.f32.mrb[0].mxu0
        %v2585 = vadd.f32 0.0, %v2584
        %v2586 = vpop.f32.mrb[0].mxu0
        %v2587 = vpop.f32.mrb[0].mxu0
        %v2588 = vadd.f32 0.0, %v2587
        %v2589 = vpop.f32.mrb[0].mxu0
        %2590 = vmatprep.mubr.bf16.mxu0 %v2375
        %2591 = vmatmul.mubr.bf16.gmra.mrb[0].mxu0 %v2374
        %v2592 = vpop.f32.mrb[0].mxu0
        %v2593 = vadd.f32 0.0, %v2592
        %v2594 = vpop.f32.mrb[0].mxu0
        %v2595 = vpop.f32.mrb[0].mxu0
        %v2596 = vadd.f32 0.0, %v2595
        %v2597 = vpop.f32.mrb[0].mxu0
        %2598 = vmatprep.mubr.bf16.mxu0 %v2377
        %2599 = vmatmul.mubr.bf16.gmra.mrb[0].mxu0 %v2376
        %v2600 = vpop.f32.mrb[0].mxu0
        %v2601 = vadd.f32 0.0, %v2600
        %v2602 = vpop.f32.mrb[0].mxu0
        %v2603 = vpop.f32.mrb[0].mxu0
        %v2604 = vadd.f32 0.0, %v2603
        %v2605 = vpop.f32.mrb[0].mxu0
        %2606 = vmatprep.mubr.bf16.mxu0 %v2379
        %2607 = vmatmul.mubr.bf16.gmra.mrb[0].mxu0 %v2378
        %v2608 = vpop.f32.mrb[0].mxu0
        %v2609 = vadd.f32 0.0, %v2608
        %v2610 = vpop.f32.mrb[0].mxu0
        %v2611 = vpop.f32.mrb[0].mxu0
        %v2612 = vadd.f32 0.0, %v2611
        %v2613 = vpop.f32.mrb[0].mxu0
        %2614 = vmatprep.mubr.bf16.mxu0 %v2381
        %2615 = vmatmul.mubr.bf16.gmra.mrb[0].mxu0 %v2380
        %v2616 = vpop.f32.mrb[0].mxu0
        %v2617 = vadd.f32 0.0, %v2616
        %v2618 = vpop.f32.mrb[0].mxu0
        %v2619 = vpop.f32.mrb[0].mxu0
        %v2620 = vadd.f32 0.0, %v2619
        %v2621 = vpop.f32.mrb[0].mxu0
        %2622 = vmatprep.mubr.bf16.mxu0 %v2383
        %2623 = vmatmul.mubr.bf16.gmra.mrb[0].mxu0 %v2382
        %v2624 = vpop.f32.mrb[0].mxu0
        %v2625 = vadd.f32 0.0, %v2624
        %v2626 = vpop.f32.mrb[0].mxu0
        %v2627 = vpop.f32.mrb[0].mxu0
        %v2628 = vadd.f32 0.0, %v2627
        %v2629 = vpop.f32.mrb[0].mxu0
        %2630 = vmatprep.mubr.bf16.mxu0 %v2385
        %2631 = vmatmul.mubr.bf16.gmra.mrb[0].mxu0 %v2384
        %v2632 = vpop.f32.mrb[0].mxu0
        %v2633 = vadd.f32 0.0, %v2632
        %v2634 = vpop.f32.mrb[0].mxu0
        %v2635 = vpop.f32.mrb[0].mxu0
        %v2636 = vadd.f32 0.0, %v2635
        %v2637 = vpop.f32.mrb[0].mxu0
        %2638 = vmatprep.mubr.bf16.mxu0 %v2387
        %2639 = vmatmul.mubr.bf16.gmra.mrb[0].mxu0 %v2386
        %v2640 = vpop.f32.mrb[0].mxu0
        %v2641 = vadd.f32 0.0, %v2640
        %v2642 = vpop.f32.mrb[0].mxu0
        %v2643 = vpop.f32.mrb[0].mxu0
        %v2644 = vadd.f32 0.0, %v2643
        %v2645 = vpop.f32.mrb[0].mxu0
        %2646 = vmatprep.mubr.bf16.mxu0 %v2389
        %2647 = vmatmul.mubr.bf16.gmra.mrb[0].mxu0 %v2388
        %v2648 = vpop.f32.mrb[0].mxu0
        %v2649 = vadd.f32 0.0, %v2648
        %v2650 = vpop.f32.mrb[0].mxu0
        %v2651 = vpop.f32.mrb[0].mxu0
        %v2652 = vadd.f32 0.0, %v2651
        %v2653 = vpop.f32.mrb[0].mxu0
        %2654 = vmatprep.mubr.bf16.mxu0 %v2391
        %2655 = vmatmul.mubr.bf16.gmra.mrb[0].mxu0 %v2390
        %v2656 = vpop.f32.mrb[0].mxu0
        %v2657 = vadd.f32 0.0, %v2656
        %v2658 = vpop.f32.mrb[0].mxu0
        %v2659 = vpop.f32.mrb[0].mxu0
        %v2660 = vadd.f32 0.0, %v2659
        %v2661 = vpop.f32.mrb[0].mxu0
        %2662 = vmatprep.mubr.bf16.mxu0 %v2393
        %2663 = vmatmul.mubr.bf16.gmra.mrb[0].mxu0 %v2392
        %v2664 = vpop.f32.mrb[0].mxu0
        %v2665 = vadd.f32 0.0, %v2664
        %v2666 = vpop.f32.mrb[0].mxu0
        %v2667 = vpop.f32.mrb[0].mxu0
        %v2668 = vadd.f32 0.0, %v2667
        %v2669 = vpop.f32.mrb[0].mxu0
        %2670 = vmatprep.mubr.bf16.mxu0 %v2395
        %2671 = vmatmul.mubr.bf16.gmra.mrb[0].mxu0 %v2394
        %v2672 = vpop.f32.mrb[0].mxu0
        %v2673 = vadd.f32 0.0, %v2672
        %v2674 = vpop.f32.mrb[0].mxu0
        %v2675 = vpop.f32.mrb[0].mxu0
        %v2676 = vadd.f32 0.0, %v2675
        %v2677 = vpop.f32.mrb[0].mxu0
        %2678 = vmatprep.mubr.bf16.mxu0 %v2397
        %2679 = vmatmul.mubr.bf16.gmra.mrb[0].mxu0 %v2396
        %v2680 = vpop.f32.mrb[0].mxu0
        %v2681 = vadd.f32 0.0, %v2680
        %v2682 = vpop.f32.mrb[0].mxu0
        %v2683 = vpop.f32.mrb[0].mxu0
        %v2684 = vadd.f32 0.0, %v2683
        %v2685 = vpop.f32.mrb[0].mxu0
        %2686 = vdwg.mxu0
        %v2687 = vadd.f32 %v2334, %v2561
        %v2688 = vadd.f32 %v2335, %v2564
        %v2689 = vadd.f32 %v2336, %v2569
        %v2690 = vadd.f32 %v2337, %v2572
        %v2691 = vadd.f32 %v2338, %v2577
        %v2692 = vadd.f32 %v2339, %v2580
        %v2693 = vadd.f32 %v2340, %v2585
        %v2694 = vadd.f32 %v2341, %v2588
        %v2695 = vadd.f32 %v2342, %v2593
        %v2696 = vadd.f32 %v2343, %v2596
        %v2697 = vadd.f32 %v2344, %v2601
        %v2698 = vadd.f32 %v2345, %v2604
        %v2699 = vadd.f32 %v2346, %v2609
        %v2700 = vadd.f32 %v2347, %v2612
        %v2701 = vadd.f32 %v2348, %v2617
        %v2702 = vadd.f32 %v2349, %v2620
        %v2703 = vadd.f32 %v2350, %v2625
        %v2704 = vadd.f32 %v2351, %v2628
        %v2705 = vadd.f32 %v2352, %v2633
        %v2706 = vadd.f32 %v2353, %v2636
        %v2707 = vadd.f32 %v2354, %v2641
        %v2708 = vadd.f32 %v2355, %v2644
        %v2709 = vadd.f32 %v2356, %v2649
        %v2710 = vadd.f32 %v2357, %v2652
        %v2711 = vadd.f32 %v2358, %v2657
        %v2712 = vadd.f32 %v2359, %v2660
        %v2713 = vadd.f32 %v2360, %v2665
        %v2714 = vadd.f32 %v2361, %v2668
        %v2715 = vadd.f32 %v2362, %v2673
        %v2716 = vadd.f32 %v2363, %v2676
        %v2717 = vadd.f32 %v2364, %v2681
        %v2718 = vadd.f32 %v2365, %v2684
        %2719 = vst [vmem:[#allocation4] sm:$0xff] %v2687
        %2720 = vst [vmem:[#allocation4 + $0x8] sm:$0xff] %v2688
        %2721 = vst [vmem:[#allocation4 + $0x10] sm:$0xff] %v2689
        %2722 = vst [vmem:[#allocation4 + $0x18] sm:$0xff] %v2690
        %2723 = vst [vmem:[#allocation4 + $0x20] sm:$0xff] %v2691
        %2724 = vst [vmem:[#allocation4 + $0x28] sm:$0xff] %v2692
        %2725 = vst [vmem:[#allocation4 + $0x30] sm:$0xff] %v2693
        %2726 = vst [vmem:[#allocation4 + $0x38] sm:$0xff] %v2694
        %2727 = vst [vmem:[#allocation4 + $0x40] sm:$0xff] %v2695
        %2728 = vst [vmem:[#allocation4 + $0x48] sm:$0xff] %v2696
        %2729 = vst [vmem:[#allocation4 + $0x50] sm:$0xff] %v2697
        %2730 = vst [vmem:[#allocation4 + $0x58] sm:$0xff] %v2698
        %2731 = vst [vmem:[#allocation4 + $0x60] sm:$0xff] %v2699
        %2732 = vst [vmem:[#allocation4 + $0x68] sm:$0xff] %v2700
        %2733 = vst [vmem:[#allocation4 + $0x70] sm:$0xff] %v2701
        %2734 = vst [vmem:[#allocation4 + $0x78] sm:$0xff] %v2702
        %2735 = vst [vmem:[#allocation4 + $0x80] sm:$0xff] %v2703
        %2736 = vst [vmem:[#allocation4 + $0x88] sm:$0xff] %v2704
        %2737 = vst [vmem:[#allocation4 + $0x90] sm:$0xff] %v2705
        %2738 = vst [vmem:[#allocation4 + $0x98] sm:$0xff] %v2706
        %2739 = vst [vmem:[#allocation4 + $0xa0] sm:$0xff] %v2707
        %2740 = vst [vmem:[#allocation4 + $0xa8] sm:$0xff] %v2708
        %2741 = vst [vmem:[#allocation4 + $0xb0] sm:$0xff] %v2709
        %2742 = vst [vmem:[#allocation4 + $0xb8] sm:$0xff] %v2710
        %2743 = vst [vmem:[#allocation4 + $0xc0] sm:$0xff] %v2711
        %2744 = vst [vmem:[#allocation4 + $0xc8] sm:$0xff] %v2712
        %2745 = vst [vmem:[#allocation4 + $0xd0] sm:$0xff] %v2713
        %2746 = vst [vmem:[#allocation4 + $0xd8] sm:$0xff] %v2714
        %2747 = vst [vmem:[#allocation4 + $0xe0] sm:$0xff] %v2715
        %2748 = vst [vmem:[#allocation4 + $0xe8] sm:$0xff] %v2716
        %2749 = vst [vmem:[#allocation4 + $0xf0] sm:$0xff] %v2717
        %2750 = vst [vmem:[#allocation4 + $0xf8] sm:$0xff] %v2718
        %2751 = vst.msk [vmem:[#allocation2] sm:$0xff] %vm2109, %v1437
        %2752 = vst.msk [vmem:[#allocation2 + $0x8] sm:$0xff] %vm2109, %v1438
        %2753 = vst.msk [vmem:[#allocation2 + $0x10] sm:$0xff] %vm2109, %v1439
        %2754 = vst.msk [vmem:[#allocation2 + $0x18] sm:$0xff] %vm2109, %v1440
        %2755 = vst.msk [vmem:[#allocation2 + $0x20] sm:$0xff] %vm2109, %v1441
        %2756 = vst.msk [vmem:[#allocation2 + $0x28] sm:$0xff] %vm2109, %v1442
        %2757 = vst.msk [vmem:[#allocation2 + $0x30] sm:$0xff] %vm2109, %v1443
        %2758 = vst.msk [vmem:[#allocation2 + $0x38] sm:$0xff] %vm2109, %v1444
        %2759 = vst.msk [vmem:[#allocation2 + $0x40] sm:$0xff] %vm2109, %v1445
        %2760 = vst.msk [vmem:[#allocation2 + $0x48] sm:$0xff] %vm2109, %v1446
        %2761 = vst.msk [vmem:[#allocation2 + $0x50] sm:$0xff] %vm2109, %v1447
        %2762 = vst.msk [vmem:[#allocation2 + $0x58] sm:$0xff] %vm2109, %v1448
        %2763 = vst.msk [vmem:[#allocation2 + $0x60] sm:$0xff] %vm2109, %v1449
        %2764 = vst.msk [vmem:[#allocation2 + $0x68] sm:$0xff] %vm2109, %v1450
        %2765 = vst.msk [vmem:[#allocation2 + $0x70] sm:$0xff] %vm2109, %v1451
        %2766 = vst.msk [vmem:[#allocation2 + $0x78] sm:$0xff] %vm2109, %v1452
        %2767 = vst.msk [vmem:[#allocation2 + $0x80] sm:$0xff] %vm2109, %v1453
        %2768 = vst.msk [vmem:[#allocation2 + $0x88] sm:$0xff] %vm2109, %v1454
        %2769 = vst.msk [vmem:[#allocation2 + $0x90] sm:$0xff] %vm2109, %v1455
        %2770 = vst.msk [vmem:[#allocation2 + $0x98] sm:$0xff] %vm2109, %v1456
        %2771 = vst.msk [vmem:[#allocation2 + $0xa0] sm:$0xff] %vm2109, %v1457
        %2772 = vst.msk [vmem:[#allocation2 + $0xa8] sm:$0xff] %vm2109, %v1458
        %2773 = vst.msk [vmem:[#allocation2 + $0xb0] sm:$0xff] %vm2109, %v1459
        %2774 = vst.msk [vmem:[#allocation2 + $0xb8] sm:$0xff] %vm2109, %v1460
        %2775 = vst.msk [vmem:[#allocation2 + $0xc0] sm:$0xff] %vm2109, %v1461
        %2776 = vst.msk [vmem:[#allocation2 + $0xc8] sm:$0xff] %vm2109, %v1462
        %2777 = vst.msk [vmem:[#allocation2 + $0xd0] sm:$0xff] %vm2109, %v1463
        %2778 = vst.msk [vmem:[#allocation2 + $0xd8] sm:$0xff] %vm2109, %v1464
        %2779 = vst.msk [vmem:[#allocation2 + $0xe0] sm:$0xff] %vm2109, %v1465
        %2780 = vst.msk [vmem:[#allocation2 + $0xe8] sm:$0xff] %vm2109, %v1466
        %2781 = vst.msk [vmem:[#allocation2 + $0xf0] sm:$0xff] %vm2109, %v1467
        %2782 = vst.msk [vmem:[#allocation2 + $0xf8] sm:$0xff] %vm2109, %v1468
        // Predicated region
        $region160: #{_lambda_.6} parent=142 // pred_check
          %p2783 = pneg %p759
        $region161: #{_lambda_.6} parent=142 // pred_check_branch
          %2785 = sbr.rel (%p2783) target = $region163
        $region162: #{_lambda_.6} parent=142 // pred_region
          %v2786 = vld [vmem:[#allocation3] sm:$0xff]
          %v2787 = vld [vmem:[#allocation3 + $0x8] sm:$0xff]
          %v2788 = vld [vmem:[#allocation3 + $0x10] sm:$0xff]
          %v2789 = vld [vmem:[#allocation3 + $0x18] sm:$0xff]
          %v2790 = vld [vmem:[#allocation3 + $0x20] sm:$0xff]
          %v2791 = vld [vmem:[#allocation3 + $0x28] sm:$0xff]
          %v2792 = vld [vmem:[#allocation3 + $0x30] sm:$0xff]
          %v2793 = vld [vmem:[#allocation3 + $0x38] sm:$0xff]
          %v2794 = vld [vmem:[#allocation3 + $0x40] sm:$0xff]
          %v2795 = vld [vmem:[#allocation3 + $0x48] sm:$0xff]
          %v2796 = vld [vmem:[#allocation3 + $0x50] sm:$0xff]
          %v2797 = vld [vmem:[#allocation3 + $0x58] sm:$0xff]
          %v2798 = vld [vmem:[#allocation3 + $0x60] sm:$0xff]
          %v2799 = vld [vmem:[#allocation3 + $0x68] sm:$0xff]
          %v2800 = vld [vmem:[#allocation3 + $0x70] sm:$0xff]
          %v2801 = vld [vmem:[#allocation3 + $0x78] sm:$0xff]
          %v2802 = vld [vmem:[#allocation3 + $0x80] sm:$0xff]
          %v2803 = vld [vmem:[#allocation3 + $0x88] sm:$0xff]
          %v2804 = vld [vmem:[#allocation3 + $0x90] sm:$0xff]
          %v2805 = vld [vmem:[#allocation3 + $0x98] sm:$0xff]
          %v2806 = vld [vmem:[#allocation3 + $0xa0] sm:$0xff]
          %v2807 = vld [vmem:[#allocation3 + $0xa8] sm:$0xff]
          %v2808 = vld [vmem:[#allocation3 + $0xb0] sm:$0xff]
          %v2809 = vld [vmem:[#allocation3 + $0xb8] sm:$0xff]
          %v2810 = vld [vmem:[#allocation3 + $0xc0] sm:$0xff]
          %v2811 = vld [vmem:[#allocation3 + $0xc8] sm:$0xff]
          %v2812 = vld [vmem:[#allocation3 + $0xd0] sm:$0xff]
          %v2813 = vld [vmem:[#allocation3 + $0xd8] sm:$0xff]
          %v2814 = vld [vmem:[#allocation3 + $0xe0] sm:$0xff]
          %v2815 = vld [vmem:[#allocation3 + $0xe8] sm:$0xff]
          %v2816 = vld [vmem:[#allocation3 + $0xf0] sm:$0xff]
          %v2817 = vld [vmem:[#allocation3 + $0xf8] sm:$0xff]
          %v2818 = vrcp.pop %v2786
          %v2819 = vrcp.pop %v2787
          %v2820 = vrcp.pop %v2788
          %v2821 = vrcp.pop %v2789
          %v2822 = vrcp.pop %v2790
          %v2823 = vrcp.pop %v2791
          %v2824 = vrcp.pop %v2792
          %v2825 = vrcp.pop %v2793
          %v2826 = vrcp.pop %v2794
          %v2827 = vrcp.pop %v2795
          %v2828 = vrcp.pop %v2796
          %v2829 = vrcp.pop %v2797
          %v2830 = vrcp.pop %v2798
          %v2831 = vrcp.pop %v2799
          %v2832 = vrcp.pop %v2800
          %v2833 = vrcp.pop %v2801
          %v2834 = vrcp.pop %v2802
          %v2835 = vrcp.pop %v2803
          %v2836 = vrcp.pop %v2804
          %v2837 = vrcp.pop %v2805
          %v2838 = vrcp.pop %v2806
          %v2839 = vrcp.pop %v2807
          %v2840 = vrcp.pop %v2808
          %v2841 = vrcp.pop %v2809
          %v2842 = vrcp.pop %v2810
          %v2843 = vrcp.pop %v2811
          %v2844 = vrcp.pop %v2812
          %v2845 = vrcp.pop %v2813
          %v2846 = vrcp.pop %v2814
          %v2847 = vrcp.pop %v2815
          %v2848 = vrcp.pop %v2816
          %v2849 = vrcp.pop %v2817
          %v2850 = vld [vmem:[#allocation4] sm:$0xff]
          %v2851 = vld [vmem:[#allocation4 + $0x8] sm:$0xff]
          %v2852 = vld [vmem:[#allocation4 + $0x10] sm:$0xff]
          %v2853 = vld [vmem:[#allocation4 + $0x18] sm:$0xff]
          %v2854 = vld [vmem:[#allocation4 + $0x20] sm:$0xff]
          %v2855 = vld [vmem:[#allocation4 + $0x28] sm:$0xff]
          %v2856 = vld [vmem:[#allocation4 + $0x30] sm:$0xff]
          %v2857 = vld [vmem:[#allocation4 + $0x38] sm:$0xff]
          %v2858 = vld [vmem:[#allocation4 + $0x40] sm:$0xff]
          %v2859 = vld [vmem:[#allocation4 + $0x48] sm:$0xff]
          %v2860 = vld [vmem:[#allocation4 + $0x50] sm:$0xff]
          %v2861 = vld [vmem:[#allocation4 + $0x58] sm:$0xff]
          %v2862 = vld [vmem:[#allocation4 + $0x60] sm:$0xff]
          %v2863 = vld [vmem:[#allocation4 + $0x68] sm:$0xff]
          %v2864 = vld [vmem:[#allocation4 + $0x70] sm:$0xff]
          %v2865 = vld [vmem:[#allocation4 + $0x78] sm:$0xff]
          %v2866 = vld [vmem:[#allocation4 + $0x80] sm:$0xff]
          %v2867 = vld [vmem:[#allocation4 + $0x88] sm:$0xff]
          %v2868 = vld [vmem:[#allocation4 + $0x90] sm:$0xff]
          %v2869 = vld [vmem:[#allocation4 + $0x98] sm:$0xff]
          %v2870 = vld [vmem:[#allocation4 + $0xa0] sm:$0xff]
          %v2871 = vld [vmem:[#allocation4 + $0xa8] sm:$0xff]
          %v2872 = vld [vmem:[#allocation4 + $0xb0] sm:$0xff]
          %v2873 = vld [vmem:[#allocation4 + $0xb8] sm:$0xff]
          %v2874 = vld [vmem:[#allocation4 + $0xc0] sm:$0xff]
          %v2875 = vld [vmem:[#allocation4 + $0xc8] sm:$0xff]
          %v2876 = vld [vmem:[#allocation4 + $0xd0] sm:$0xff]
          %v2877 = vld [vmem:[#allocation4 + $0xd8] sm:$0xff]
          %v2878 = vld [vmem:[#allocation4 + $0xe0] sm:$0xff]
          %v2879 = vld [vmem:[#allocation4 + $0xe8] sm:$0xff]
          %v2880 = vld [vmem:[#allocation4 + $0xf0] sm:$0xff]
          %v2881 = vld [vmem:[#allocation4 + $0xf8] sm:$0xff]
          %2883 = vset.pattern.permute.xlu0 0
          %2884 = vperm.xlu0 %2883, %v2818
          %v2885 = vpop.permute.xlu0 %2884
          %2888 = vset.pattern.permute.xlu0 0
          %2889 = vperm.xlu0 %2888, %v2819
          %v2890 = vpop.permute.xlu0 %2889
          %2893 = vset.pattern.permute.xlu0 0
          %2894 = vperm.xlu0 %2893, %v2820
          %v2895 = vpop.permute.xlu0 %2894
          %2898 = vset.pattern.permute.xlu0 0
          %2899 = vperm.xlu0 %2898, %v2821
          %v2900 = vpop.permute.xlu0 %2899
          %2903 = vset.pattern.permute.xlu0 0
          %2904 = vperm.xlu0 %2903, %v2822
          %v2905 = vpop.permute.xlu0 %2904
          %2908 = vset.pattern.permute.xlu0 0
          %2909 = vperm.xlu0 %2908, %v2823
          %v2910 = vpop.permute.xlu0 %2909
          %2913 = vset.pattern.permute.xlu0 0
          %2914 = vperm.xlu0 %2913, %v2824
          %v2915 = vpop.permute.xlu0 %2914
          %2918 = vset.pattern.permute.xlu0 0
          %2919 = vperm.xlu0 %2918, %v2825
          %v2920 = vpop.permute.xlu0 %2919
          %2923 = vset.pattern.permute.xlu0 0
          %2924 = vperm.xlu0 %2923, %v2826
          %v2925 = vpop.permute.xlu0 %2924
          %2928 = vset.pattern.permute.xlu0 0
          %2929 = vperm.xlu0 %2928, %v2827
          %v2930 = vpop.permute.xlu0 %2929
          %2933 = vset.pattern.permute.xlu0 0
          %2934 = vperm.xlu0 %2933, %v2828
          %v2935 = vpop.permute.xlu0 %2934
          %2938 = vset.pattern.permute.xlu0 0
          %2939 = vperm.xlu0 %2938, %v2829
          %v2940 = vpop.permute.xlu0 %2939
          %2943 = vset.pattern.permute.xlu0 0
          %2944 = vperm.xlu0 %2943, %v2830
          %v2945 = vpop.permute.xlu0 %2944
          %2948 = vset.pattern.permute.xlu0 0
          %2949 = vperm.xlu0 %2948, %v2831
          %v2950 = vpop.permute.xlu0 %2949
          %2953 = vset.pattern.permute.xlu0 0
          %2954 = vperm.xlu0 %2953, %v2832
          %v2955 = vpop.permute.xlu0 %2954
          %2958 = vset.pattern.permute.xlu0 0
          %2959 = vperm.xlu0 %2958, %v2833
          %v2960 = vpop.permute.xlu0 %2959
          %2963 = vset.pattern.permute.xlu0 0
          %2964 = vperm.xlu0 %2963, %v2834
          %v2965 = vpop.permute.xlu0 %2964
          %2968 = vset.pattern.permute.xlu0 0
          %2969 = vperm.xlu0 %2968, %v2835
          %v2970 = vpop.permute.xlu0 %2969
          %2973 = vset.pattern.permute.xlu0 0
          %2974 = vperm.xlu0 %2973, %v2836
          %v2975 = vpop.permute.xlu0 %2974
          %2978 = vset.pattern.permute.xlu0 0
          %2979 = vperm.xlu0 %2978, %v2837
          %v2980 = vpop.permute.xlu0 %2979
          %2983 = vset.pattern.permute.xlu0 0
          %2984 = vperm.xlu0 %2983, %v2838
          %v2985 = vpop.permute.xlu0 %2984
          %2988 = vset.pattern.permute.xlu0 0
          %2989 = vperm.xlu0 %2988, %v2839
          %v2990 = vpop.permute.xlu0 %2989
          %2993 = vset.pattern.permute.xlu0 0
          %2994 = vperm.xlu0 %2993, %v2840
          %v2995 = vpop.permute.xlu0 %2994
          %2998 = vset.pattern.permute.xlu0 0
          %2999 = vperm.xlu0 %2998, %v2841
          %v3000 = vpop.permute.xlu0 %2999
          %3003 = vset.pattern.permute.xlu0 0
          %3004 = vperm.xlu0 %3003, %v2842
          %v3005 = vpop.permute.xlu0 %3004
          %3008 = vset.pattern.permute.xlu0 0
          %3009 = vperm.xlu0 %3008, %v2843
          %v3010 = vpop.permute.xlu0 %3009
          %3013 = vset.pattern.permute.xlu0 0
          %3014 = vperm.xlu0 %3013, %v2844
          %v3015 = vpop.permute.xlu0 %3014
          %3018 = vset.pattern.permute.xlu0 0
          %3019 = vperm.xlu0 %3018, %v2845
          %v3020 = vpop.permute.xlu0 %3019
          %3023 = vset.pattern.permute.xlu0 0
          %3024 = vperm.xlu0 %3023, %v2846
          %v3025 = vpop.permute.xlu0 %3024
          %3028 = vset.pattern.permute.xlu0 0
          %3029 = vperm.xlu0 %3028, %v2847
          %v3030 = vpop.permute.xlu0 %3029
          %3033 = vset.pattern.permute.xlu0 0
          %3034 = vperm.xlu0 %3033, %v2848
          %v3035 = vpop.permute.xlu0 %3034
          %3038 = vset.pattern.permute.xlu0 0
          %3039 = vperm.xlu0 %3038, %v2849
          %v3040 = vpop.permute.xlu0 %3039
          %v3042 = vmul.f32 %v2850, %v2885
          %v3043 = vmul.f32 %v2851, %v2890
          %v3044 = vmul.f32 %v2852, %v2895
          %v3045 = vmul.f32 %v2853, %v2900
          %v3046 = vmul.f32 %v2854, %v2905
          %v3047 = vmul.f32 %v2855, %v2910
          %v3048 = vmul.f32 %v2856, %v2915
          %v3049 = vmul.f32 %v2857, %v2920
          %v3050 = vmul.f32 %v2858, %v2925
          %v3051 = vmul.f32 %v2859, %v2930
          %v3052 = vmul.f32 %v2860, %v2935
          %v3053 = vmul.f32 %v2861, %v2940
          %v3054 = vmul.f32 %v2862, %v2945
          %v3055 = vmul.f32 %v2863, %v2950
          %v3056 = vmul.f32 %v2864, %v2955
          %v3057 = vmul.f32 %v2865, %v2960
          %v3058 = vmul.f32 %v2866, %v2965
          %v3059 = vmul.f32 %v2867, %v2970
          %v3060 = vmul.f32 %v2868, %v2975
          %v3061 = vmul.f32 %v2869, %v2980
          %v3062 = vmul.f32 %v2870, %v2985
          %v3063 = vmul.f32 %v2871, %v2990
          %v3064 = vmul.f32 %v2872, %v2995
          %v3065 = vmul.f32 %v2873, %v3000
          %v3066 = vmul.f32 %v2874, %v3005
          %v3067 = vmul.f32 %v2875, %v3010
          %v3068 = vmul.f32 %v2876, %v3015
          %v3069 = vmul.f32 %v2877, %v3020
          %v3070 = vmul.f32 %v2878, %v3025
          %v3071 = vmul.f32 %v2879, %v3030
          %v3072 = vmul.f32 %v2880, %v3035
          %v3073 = vmul.f32 %v2881, %v3040
          %v3074 = vpack.c.bf16 %v3043, %v3042
          %v3075 = vpack.c.bf16 %v3045, %v3044
          %v3076 = vpack.c.bf16 %v3047, %v3046
          %v3077 = vpack.c.bf16 %v3049, %v3048
          %v3078 = vpack.c.bf16 %v3051, %v3050
          %v3079 = vpack.c.bf16 %v3053, %v3052
          %v3080 = vpack.c.bf16 %v3055, %v3054
          %v3081 = vpack.c.bf16 %v3057, %v3056
          %v3082 = vpack.c.bf16 %v3059, %v3058
          %v3083 = vpack.c.bf16 %v3061, %v3060
          %v3084 = vpack.c.bf16 %v3063, %v3062
          %v3085 = vpack.c.bf16 %v3065, %v3064
          %v3086 = vpack.c.bf16 %v3067, %v3066
          %v3087 = vpack.c.bf16 %v3069, %v3068
          %v3088 = vpack.c.bf16 %v3071, %v3070
          %v3089 = vpack.c.bf16 %v3073, %v3072
          %v3106 = vunpack.c.l.b16 %v3074
          %v3107 = vunpack.c.h.b16 %v3074
          %v3108 = vunpack.c.l.b16 %v3075
          %v3109 = vunpack.c.h.b16 %v3075
          %v3110 = vunpack.c.l.b16 %v3076
          %v3111 = vunpack.c.h.b16 %v3076
          %v3112 = vunpack.c.l.b16 %v3077
          %v3113 = vunpack.c.h.b16 %v3077
          %v3114 = vunpack.c.l.b16 %v3078
          %v3115 = vunpack.c.h.b16 %v3078
          %v3116 = vunpack.c.l.b16 %v3079
          %v3117 = vunpack.c.h.b16 %v3079
          %v3118 = vunpack.c.l.b16 %v3080
          %v3119 = vunpack.c.h.b16 %v3080
          %v3120 = vunpack.c.l.b16 %v3081
          %v3121 = vunpack.c.h.b16 %v3081
          %v3122 = vunpack.c.l.b16 %v3082
          %v3123 = vunpack.c.h.b16 %v3082
          %v3124 = vunpack.c.l.b16 %v3083
          %v3125 = vunpack.c.h.b16 %v3083
          %v3126 = vunpack.c.l.b16 %v3084
          %v3127 = vunpack.c.h.b16 %v3084
          %v3128 = vunpack.c.l.b16 %v3085
          %v3129 = vunpack.c.h.b16 %v3085
          %v3130 = vunpack.c.l.b16 %v3086
          %v3131 = vunpack.c.h.b16 %v3086
          %v3132 = vunpack.c.l.b16 %v3087
          %v3133 = vunpack.c.h.b16 %v3087
          %v3134 = vunpack.c.l.b16 %v3088
          %v3135 = vunpack.c.h.b16 %v3088
          %v3136 = vunpack.c.l.b16 %v3089
          %v3137 = vunpack.c.h.b16 %v3089
          %v3138 = vpack.c.b16 %v3106, %v3106
          %v3139 = vpack.c.b16 %v3107, %v3107
          %v3140 = vpack.c.b16 %v3108, %v3108
          %v3141 = vpack.c.b16 %v3109, %v3109
          %v3142 = vpack.c.b16 %v3110, %v3110
          %v3143 = vpack.c.b16 %v3111, %v3111
          %v3144 = vpack.c.b16 %v3112, %v3112
          %v3145 = vpack.c.b16 %v3113, %v3113
          %v3146 = vpack.c.b16 %v3114, %v3114
          %v3147 = vpack.c.b16 %v3115, %v3115
          %v3148 = vpack.c.b16 %v3116, %v3116
          %v3149 = vpack.c.b16 %v3117, %v3117
          %v3150 = vpack.c.b16 %v3118, %v3118
          %v3151 = vpack.c.b16 %v3119, %v3119
          %v3152 = vpack.c.b16 %v3120, %v3120
          %v3153 = vpack.c.b16 %v3121, %v3121
          %v3154 = vpack.c.b16 %v3122, %v3122
          %v3155 = vpack.c.b16 %v3123, %v3123
          %v3156 = vpack.c.b16 %v3124, %v3124
          %v3157 = vpack.c.b16 %v3125, %v3125
          %v3158 = vpack.c.b16 %v3126, %v3126
          %v3159 = vpack.c.b16 %v3127, %v3127
          %v3160 = vpack.c.b16 %v3128, %v3128
          %v3161 = vpack.c.b16 %v3129, %v3129
          %v3162 = vpack.c.b16 %v3130, %v3130
          %v3163 = vpack.c.b16 %v3131, %v3131
          %v3164 = vpack.c.b16 %v3132, %v3132
          %v3165 = vpack.c.b16 %v3133, %v3133
          %v3166 = vpack.c.b16 %v3134, %v3134
          %v3167 = vpack.c.b16 %v3135, %v3135
          %v3168 = vpack.c.b16 %v3136, %v3136
          %v3169 = vpack.c.b16 %v3137, %v3137
          %3202 = vst [vmem:[%s756] sm:$0xf] %v3138
          %3203 = vst [vmem:[%s756 + $0x4] sm:$0xf] %v3139
          %3204 = vst [vmem:[%s756 + $0x8] sm:$0xf] %v3140
          %3205 = vst [vmem:[%s756 + $0xc] sm:$0xf] %v3141
          %3206 = vst [vmem:[%s756 + $0x10] sm:$0xf] %v3142
          %3207 = vst [vmem:[%s756 + $0x14] sm:$0xf] %v3143
          %3208 = vst [vmem:[%s756 + $0x18] sm:$0xf] %v3144
          %3209 = vst [vmem:[%s756 + $0x1c] sm:$0xf] %v3145
          %3210 = vst [vmem:[%s756 + $0x20] sm:$0xf] %v3146
          %3211 = vst [vmem:[%s756 + $0x24] sm:$0xf] %v3147
          %3212 = vst [vmem:[%s756 + $0x28] sm:$0xf] %v3148
          %3213 = vst [vmem:[%s756 + $0x2c] sm:$0xf] %v3149
          %3214 = vst [vmem:[%s756 + $0x30] sm:$0xf] %v3150
          %3215 = vst [vmem:[%s756 + $0x34] sm:$0xf] %v3151
          %3216 = vst [vmem:[%s756 + $0x38] sm:$0xf] %v3152
          %3217 = vst [vmem:[%s756 + $0x3c] sm:$0xf] %v3153
          %3218 = vst [vmem:[%s756 + $0x40] sm:$0xf] %v3154
          %3219 = vst [vmem:[%s756 + $0x44] sm:$0xf] %v3155
          %3220 = vst [vmem:[%s756 + $0x48] sm:$0xf] %v3156
          %3221 = vst [vmem:[%s756 + $0x4c] sm:$0xf] %v3157
          %3222 = vst [vmem:[%s756 + $0x50] sm:$0xf] %v3158
          %3223 = vst [vmem:[%s756 + $0x54] sm:$0xf] %v3159
          %3224 = vst [vmem:[%s756 + $0x58] sm:$0xf] %v3160
          %3225 = vst [vmem:[%s756 + $0x5c] sm:$0xf] %v3161
          %3226 = vst [vmem:[%s756 + $0x60] sm:$0xf] %v3162
          %3227 = vst [vmem:[%s756 + $0x64] sm:$0xf] %v3163
          %3228 = vst [vmem:[%s756 + $0x68] sm:$0xf] %v3164
          %3229 = vst [vmem:[%s756 + $0x6c] sm:$0xf] %v3165
          %3230 = vst [vmem:[%s756 + $0x70] sm:$0xf] %v3166
          %3231 = vst [vmem:[%s756 + $0x74] sm:$0xf] %v3167
          %3232 = vst [vmem:[%s756 + $0x78] sm:$0xf] %v3168
          %3233 = vst [vmem:[%s756 + $0x7c] sm:$0xf] %v3169
        $region163: #{_lambda_.6} parent=142 // pred_fallthru
          _
        %s3234 = smul.u32 32, %s20
        %p3235 = scmp.lt.s32.totalorder %s19, 1
        %s3236 = scalar_select %p3235, %s19, 1
        %p3237 = scmp.lt.s32.totalorder %s3234, 31
        %s3238 = scalar_select %p3237, %s3234, 31
        %s3239 = smul.addr %s3236, 32
        %s3240 = sadd.s32 %s3238, %s3239
        %s3241 = smul.addr %s3240, 4
        %s3242 = scalar_lea.vmem %s3, %s3241
        // Predicated region
        $region164: #{_lambda_.6} parent=142 // pred_check
          %p3243 = pneg %p137
        $region165: #{_lambda_.6} parent=142 // pred_check_branch
          %3245 = sbr.rel (%p3243) target = $region167
        $region166: #{_lambda_.6} parent=142 // pred_region
          %s3246 = smul.u32 32, %s20
        $region167: #{_lambda_.6} parent=142 // pred_fallthru
          _
      $region143: #{_lambda_.6} parent=5 // pred_fallthru
        _
      %p3247 = scmp.le.s32.totalorder 2, %s9
      // Predicated region
      $region168: #{_lambda_.6} parent=5 // pred_check
        %p3248 = pneg %p3247
      $region169: #{_lambda_.6} parent=5 // pred_check_branch
        %3250 = sbr.rel (%p3248) target = $region171
      $region170: #{_lambda_.6} parent=5 // pred_region
        %s3251 = ssub.s32 %s9, 2
        // Predicated region
        $region172: #{_lambda_.6} parent=170 // pred_check
          %p3252 = pneg %p143
        $region173: #{_lambda_.6} parent=170 // pred_check_branch
          %3254 = sbr.rel (%p3252) target = $region175
        $region174: #{_lambda_.6} parent=170 // pred_region
          %s3255 = smul.u32 32, %s23
          %p3256 = scmp.lt.s32.totalorder %s22, 1
          %s3257 = scalar_select %p3256, %s22, 1
          %p3258 = scmp.lt.s32.totalorder %s3255, 31
          %s3259 = scalar_select %p3258, %s3255, 31
          %s3260 = smul.addr %s3257, 32
          %s3261 = sadd.s32 %s3259, %s3260
          %s3262 = smul.addr %s3261, 4
          %s3263 = scalar_lea.vmem %s3, %s3262
        $region175: #{_lambda_.6} parent=170 // pred_fallthru
          _
      $region171: #{_lambda_.6} parent=5 // pred_fallthru
        _
    $region6: #{_lambda_.6} parent=1 // loop_footer
      %s13 = sadd.s32 1, %s9
    $region7: #{_lambda_.6} parent=1 // loop_footer_branch
      %8 = sbr.rel target = $region3
    $region8: #{_lambda_.6} parent=1 // loop_exit
      _

// kernel: _lambda_.4
$region0: #{_lambda_.4}
  #allocation0 [shape = 'u32[]', space=smem, size = 0x4, offset = 0x4, fixed_abs, tag = 'smem constant byte address 0x4 - core index']
  #allocation1 [shape = 'u32[144,128]{1,0:T(1,128)}', space=vmem, size = 0x12000, scoped, tag = 'internal scratch']
  %s0 = inlined_call_operand.vmem [shape: bf16[2,290,128], index: 0, kind: input, shape index: {}]
  %s1 = inlined_call_operand.vmem [shape: bf16[1,3,384,256], index: 1, kind: input, shape index: {}]
  %s2 = inlined_call_operand.vmem [shape: f32[1,256], index: 2, kind: input, shape index: {}]
  %s3 = inlined_call_operand.vmem [shape: bf16[2,256,256], index: 3, kind: output, shape index: {}]
  %s4 = sld [smem:[#allocation0]]
  $region45: #{_lambda_.4} parent=0
    _
  %s6 = ssub.s32 1, %s4
  %s7 = scalar_select 0, %s6, %s4
  loop: start=0, step=1, limit=4
  $region2: #{_lambda_.4} parent=0 // loop_pre_header
    _
  $region3: #{_lambda_.4} parent=0 // loop_header
    %s9 = sphi 0, %s13
    %p10 = scmp.ge.s32.totalorder %s9, 4
    %s16 = sphi 0, %s35
    %s17 = sphi 0, %s31
    %s18 = sphi 0, %s27
    %s19 = sphi 0, %s16
    %s20 = sphi 0, %s17
    %s21 = sphi 0, %s18
    %s22 = sphi 0, %s19
    %s23 = sphi 0, %s20
    %s24 = sphi 0, %s21
    %s40 = sphi 0, %s42
    %s43 = sphi 0, %s40
    %s44 = sphi 0, %s43
    %s60 = sphi 0, %s44
    %s68 = sphi 0, %s70
    %s71 = sphi 0, %s68
    %s72 = sphi 0, %s71
    %s88 = sphi 0, %s72
    %s94 = sphi 0, %s96
    %s97 = sphi 0, %s94
    %s98 = sphi 0, %s97
    %s114 = sphi 0, %s98
    %s122 = sphi 0, %s124
    %s125 = sphi 0, %s122
    %s126 = sphi 0, %s125
    %s142 = sphi 0, %s126
  $region4: #{_lambda_.4} parent=0 // loop_header_branch
    %12 = sbr.rel (%p10) target = $region8
  $region5: #{_lambda_.4} parent=0 // loop_body
    %s14 = ssub.s32 %s9, 1
    %s15 = ssub.s32 %s9, 2
    %s25 = sadd.s32 1, %s18
    %p26 = scmp.ge.s32.totalorder %s25, 1
    %s27 = scalar_select %p26, 0, %s25
    %s28 = sadd.s32 1, %s17
    %s29 = scalar_select %p26, %s28, %s17
    %p30 = scmp.ge.s32.totalorder %s29, 1
    %s31 = scalar_select %p30, 0, %s29
    %s32 = sadd.s32 1, %s16
    %s33 = scalar_select %p30, %s32, %s16
    %p34 = scmp.ge.s32.totalorder %s33, 2
    %s35 = scalar_select %p34, 0, %s33
    %s36 = ssub.s32 %s16, %s35
    %s37 = ssub.s32 %s18, %s27
    %s38 = sor.u32 %s36, %s37
    %p39 = scmp.eq.s32.totalorder %s38, 0
    %s41 = sadd.s32 %s40, 1
    %s42 = scalar_select %p39, %s40, %s41
    %p45 = pneg %p39
    %p46 = scmp.eq.s32.totalorder %s9, 1
    %p47 = por %p45, %p46
    %p48 = scmp.ne.s32.totalorder %s40, %s43
    %p49 = scmp.eq.s32.totalorder %s9, 0
    %p50 = por %p48, %p49
    %p51 = scmp.ne.s32.totalorder %s40, %s43
    %p52 = scmp.eq.s32.totalorder %s14, 1
    %p53 = por %p51, %p52
    %p54 = scmp.ne.s32.totalorder %s43, %s44
    %p55 = scmp.eq.s32.totalorder %s14, 0
    %p56 = por %p54, %p55
    %p57 = scmp.ne.s32.totalorder %s43, %s44
    %p58 = scmp.eq.s32.totalorder %s15, 1
    %p59 = por %p57, %p58
    %p61 = scmp.ne.s32.totalorder %s44, %s60
    %p62 = scmp.eq.s32.totalorder %s15, 0
    %p63 = por %p61, %p62
    %s64 = ssub.s32 %s18, %s27
    %s65 = ssub.s32 %s17, %s31
    %s66 = sor.u32 %s64, %s65
    %p67 = scmp.eq.s32.totalorder %s66, 0
    %s69 = sadd.s32 %s68, 1
    %s70 = scalar_select %p67, %s68, %s69
    %p73 = pneg %p67
    %p74 = scmp.eq.s32.totalorder %s9, 1
    %p75 = por %p73, %p74
    %p76 = scmp.ne.s32.totalorder %s68, %s71
    %p77 = scmp.eq.s32.totalorder %s9, 0
    %p78 = por %p76, %p77
    %p79 = scmp.ne.s32.totalorder %s68, %s71
    %p80 = scmp.eq.s32.totalorder %s14, 1
    %p81 = por %p79, %p80
    %p82 = scmp.ne.s32.totalorder %s71, %s72
    %p83 = scmp.eq.s32.totalorder %s14, 0
    %p84 = por %p82, %p83
    %p85 = scmp.ne.s32.totalorder %s71, %s72
    %p86 = scmp.eq.s32.totalorder %s15, 1
    %p87 = por %p85, %p86
    %p89 = scmp.ne.s32.totalorder %s72, %s88
    %p90 = scmp.eq.s32.totalorder %s15, 0
    %p91 = por %p89, %p90
    %s92 = ssub.s32 %s17, %s31
    %p93 = scmp.eq.s32.totalorder %s92, 0
    %s95 = sadd.s32 %s94, 1
    %s96 = scalar_select %p93, %s94, %s95
    %p99 = pneg %p93
    %p100 = scmp.eq.s32.totalorder %s9, 1
    %p101 = por %p99, %p100
    %p102 = scmp.ne.s32.totalorder %s94, %s97
    %p103 = scmp.eq.s32.totalorder %s9, 0
    %p104 = por %p102, %p103
    %p105 = scmp.ne.s32.totalorder %s94, %s97
    %p106 = scmp.eq.s32.totalorder %s14, 1
    %p107 = por %p105, %p106
    %p108 = scmp.ne.s32.totalorder %s97, %s98
    %p109 = scmp.eq.s32.totalorder %s14, 0
    %p110 = por %p108, %p109
    %p111 = scmp.ne.s32.totalorder %s97, %s98
    %p112 = scmp.eq.s32.totalorder %s15, 1
    %p113 = por %p111, %p112
    %p115 = scmp.ne.s32.totalorder %s98, %s114
    %p116 = scmp.eq.s32.totalorder %s15, 0
    %p117 = por %p115, %p116
    %s118 = ssub.s32 %s16, %s35
    %s119 = ssub.s32 %s17, %s31
    %s120 = sor.u32 %s118, %s119
    %p121 = scmp.eq.s32.totalorder %s120, 0
    %s123 = sadd.s32 %s122, 1
    %s124 = scalar_select %p121, %s122, %s123
    %p127 = pneg %p121
    %p128 = scmp.eq.s32.totalorder %s9, 1
    %p129 = por %p127, %p128
    %p130 = scmp.ne.s32.totalorder %s122, %s125
    %p131 = scmp.eq.s32.totalorder %s9, 0
    %p132 = por %p130, %p131
    %p133 = scmp.ne.s32.totalorder %s122, %s125
    %p134 = scmp.eq.s32.totalorder %s14, 1
    %p135 = por %p133, %p134
    %p136 = scmp.ne.s32.totalorder %s125, %s126
    %p137 = scmp.eq.s32.totalorder %s14, 0
    %p138 = por %p136, %p137
    %p139 = scmp.ne.s32.totalorder %s125, %s126
    %p140 = scmp.eq.s32.totalorder %s15, 1
    %p141 = por %p139, %p140
    %p143 = scmp.ne.s32.totalorder %s126, %s142
    %p144 = scmp.eq.s32.totalorder %s15, 0
    %p145 = por %p143, %p144
    %p146 = scmp.le.s32.totalorder 1, %s9
    %p147 = scmp.lt.s32.totalorder %s9, 3
    %p148 = pnand %p146, %p147
    %p149 = pneg %p148
    // Predicated region
    $region9: #{_lambda_.4} parent=5 // pred_check
      _
    $region10: #{_lambda_.4} parent=5 // pred_check_branch
      %151 = sbr.rel (%p148) target = $region12
    $region11: #{_lambda_.4} parent=5 // pred_region
      %s152 = ssub.s32 %s9, 1
      // Predicated region
      $region13: #{_lambda_.4} parent=11 // pred_check
        %p153 = pneg %p84
      $region14: #{_lambda_.4} parent=11 // pred_check_branch
        %155 = sbr.rel (%p153) target = $region16
      $region15: #{_lambda_.4} parent=11 // pred_region
        %s156 = smul.u32 2, %s20
        %p157 = scmp.lt.s32.totalorder %s21, 0
        %s158 = scalar_select %p157, %s21, 0
        %p159 = scmp.lt.s32.totalorder %s156, 1
        %s160 = scalar_select %p159, %s156, 1
        %s161 = smul.addr %s158, 288
        %s162 = sadd.s32 %s160, %s161
        %s163 = smul.addr %s162, 4
        %s164 = scalar_lea.vmem %s1, %s163
        %s165 = smul.u32 2, %s20
      $region16: #{_lambda_.4} parent=11 // pred_fallthru
        _
      // Predicated region
      $region17: #{_lambda_.4} parent=11 // pred_check
        %p166 = pneg %p110
      $region18: #{_lambda_.4} parent=11 // pred_check_branch
        %168 = sbr.rel (%p166) target = $region20
      $region19: #{_lambda_.4} parent=11 // pred_region
        %s169 = smul.u32 2, %s20
        %p170 = scmp.lt.s32.totalorder %s169, 1
        %s171 = scalar_select %p170, %s169, 1
        %s172 = scalar_lea.vmem %s2, %s171
        %s173 = smul.u32 2, %s20
      $region20: #{_lambda_.4} parent=11 // pred_fallthru
        _
    $region12: #{_lambda_.4} parent=5 // pred_fallthru
      _
    %p174 = scmp.lt.s32.totalorder %s9, 2
    // Predicated region
    $region21: #{_lambda_.4} parent=5 // pred_check
      %p175 = pneg %p174
    $region22: #{_lambda_.4} parent=5 // pred_check_branch
      %177 = sbr.rel (%p175) target = $region24
    $region23: #{_lambda_.4} parent=5 // pred_region
      // Predicated region
      $region25: #{_lambda_.4} parent=23 // pred_check
        %p178 = pneg %p50
      $region26: #{_lambda_.4} parent=23 // pred_check_branch
        %180 = sbr.rel (%p178) target = $region28
      $region27: #{_lambda_.4} parent=23 // pred_region
        %p181 = scmp.lt.s32.totalorder %s16, 1
        %s182 = scalar_select %p181, %s16, 1
        %p183 = scmp.lt.s32.totalorder %s18, 0
        %s184 = scalar_select %p183, %s18, 0
        %s185 = smul.addr %s182, 37
        %s186 = sadd.s32 %s184, %s185
        %s187 = smul.addr %s186, 4
        %s188 = scalar_lea.vmem %s0, %s187
      $region28: #{_lambda_.4} parent=23 // pred_fallthru
        _
    $region24: #{_lambda_.4} parent=5 // pred_fallthru
      _
    %p189 = scmp.le.s32.totalorder 1, %s9
    %p190 = scmp.lt.s32.totalorder %s9, 3
    %p191 = pnand %p189, %p190
    %p192 = pneg %p191
    // Predicated region
    $region29: #{_lambda_.4} parent=5 // pred_check
      _
    $region30: #{_lambda_.4} parent=5 // pred_check_branch
      %194 = sbr.rel (%p191) target = $region32
    $region31: #{_lambda_.4} parent=5 // pred_region
      %s195 = ssub.s32 %s9, 1
      %p196 = scmp.lt.s32.totalorder %s19, 1
      %s197 = scalar_select %p196, %s19, 1
      %p198 = scmp.lt.s32.totalorder %s21, 0
      %s199 = scalar_select %p198, %s21, 0
      %s200 = smul.addr %s197, 37
      %s201 = sadd.s32 %s199, %s200
      %s202 = smul.addr %s201, 4
      %s203 = scalar_lea.vmem %s0, %s202
      %p204 = pneg %p56
      %p205 = pneg %p53
      %s206 = smul.u32 2, %s20
      %p207 = scmp.lt.s32.totalorder %s21, 0
      %s208 = scalar_select %p207, %s21, 0
      %p209 = scmp.lt.s32.totalorder %s206, 1
      %s210 = scalar_select %p209, %s206, 1
      %s211 = smul.addr %s208, 288
      %s212 = sadd.s32 %s210, %s211
      %s213 = smul.addr %s212, 4
      %s214 = scalar_lea.vmem %s1, %s213
      %p215 = pneg %p84
      %p216 = pneg %p81
      %s217 = smul.u32 2, %s20
      %p218 = scmp.lt.s32.totalorder %s217, 1
      %s219 = scalar_select %p218, %s217, 1
      %s220 = scalar_lea.vmem %s2, %s219
      %p221 = pneg %p110
      %p222 = pneg %p107
      %p223 = pneg %p138
      %p224 = pneg %p135
      %s225 = smul.u32 2, %s20
      %p226 = scmp.lt.s32.totalorder %s19, 1
      %s227 = scalar_select %p226, %s19, 1
      %p228 = scmp.lt.s32.totalorder %s225, 1
      %s229 = scalar_select %p228, %s225, 1
      %s230 = smul.addr %s227, 64
      %s231 = sadd.s32 %s229, %s230
      %s232 = smul.addr %s231, 4
      %s233 = scalar_lea.vmem %s3, %s232
      %p234 = scmp.lt.s32.totalorder %s19, 1
      %s235 = scalar_select %p234, %s19, 1
      %p236 = scmp.lt.s32.totalorder %s21, 0
      %s237 = scalar_select %p236, %s21, 0
      %s238 = smul.addr %s235, 37
      %s239 = sadd.s32 %s237, %s238
      %s240 = smul.addr %s239, 4
      %s241 = scalar_lea.vmem %s0, %s240
      %s242 = smul.u32 2, %s20
      %p243 = scmp.lt.s32.totalorder %s21, 0
      %s244 = scalar_select %p243, %s21, 0
      %p245 = scmp.lt.s32.totalorder %s242, 1
      %s246 = scalar_select %p245, %s242, 1
      %s247 = smul.addr %s244, 288
      %s248 = sadd.s32 %s246, %s247
      %s249 = smul.addr %s248, 4
      %s250 = scalar_lea.vmem %s1, %s249
      %s251 = smul.u32 2, %s20
      %s252 = smul.u32 2, %s20
      %p253 = scmp.lt.s32.totalorder %s252, 1
      %s254 = scalar_select %p253, %s252, 1
      %s255 = scalar_lea.vmem %s2, %s254
      %s256 = smul.u32 2, %s20
      %s257 = smul.u32 2, %s20
      %p258 = scmp.lt.s32.totalorder %s19, 1
      %s259 = scalar_select %p258, %s19, 1
      %p260 = scmp.lt.s32.totalorder %s257, 1
      %s261 = scalar_select %p260, %s257, 1
      %s262 = smul.addr %s259, 64
      %s263 = sadd.s32 %s261, %s262
      %s264 = smul.addr %s263, 4
      %s265 = scalar_lea.vmem %s3, %s264
      %s266 = smul.u32 2, %s20
      %v268 = vlaneseq
      %v269 = vshrl.u32 %v268, 7
      %v270 = vadd.s32 %v269, 8
      %v271 = vadd.s32 %v269, 16
      %v272 = vadd.s32 %v269, 24
      %v273 = vadd.s32 %v269, 32
      %v274 = vadd.s32 %v269, 40
      %v275 = vadd.s32 %v269, 48
      %v276 = vadd.s32 %v269, 56
      %v277 = vadd.s32 %v269, 64
      %v278 = vadd.s32 %v269, 72
      %v279 = vadd.s32 %v269, 80
      %v280 = vadd.s32 %v269, 88
      %v281 = vadd.s32 %v269, 96
      %v282 = vadd.s32 %v269, 104
      %v283 = vadd.s32 %v269, 112
      %v284 = vadd.s32 %v269, 120
      %v285 = vadd.s32 %v269, 128
      %v286 = vadd.s32 %v269, 136
      %v287 = vadd.s32 %v269, 144
      %v288 = vadd.s32 %v269, 152
      %v289 = vadd.s32 %v269, 160
      %v290 = vadd.s32 %v269, 168
      %v291 = vadd.s32 %v269, 176
      %v292 = vadd.s32 %v269, 184
      %v293 = vadd.s32 %v269, 192
      %v294 = vadd.s32 %v269, 200
      %v295 = vadd.s32 %v269, 208
      %v296 = vadd.s32 %v269, 216
      %v297 = vadd.s32 %v269, 224
      %v298 = vadd.s32 %v269, 232
      %v299 = vadd.s32 %v269, 240
      %v300 = vadd.s32 %v269, 248
      %vm301 = vcmp.lt.s32.totalorder %v269, 0
      %v302 = vsub.s32 0, %v269
      %v303 = vsel %vm301, %v302, %v269
      %v304 = vshrl.u32 %v303, 4
      %v305 = vand.u32 %v303, 15
      %v306 = vsub.s32 0, %v305
      %v307 = vsel %vm301, %v306, %v305
      %vm308 = vcmp.lt.s32.totalorder %v270, 0
      %v309 = vsub.s32 0, %v270
      %v310 = vsel %vm308, %v309, %v270
      %v311 = vshrl.u32 %v310, 4
      %v312 = vand.u32 %v310, 15
      %v313 = vsub.s32 0, %v312
      %v314 = vsel %vm308, %v313, %v312
      %vm315 = vcmp.lt.s32.totalorder %v271, 0
      %v316 = vsub.s32 0, %v271
      %v317 = vsel %vm315, %v316, %v271
      %v318 = vshrl.u32 %v317, 4
      %v319 = vand.u32 %v317, 15
      %v320 = vsub.s32 0, %v319
      %v321 = vsel %vm315, %v320, %v319
      %vm322 = vcmp.lt.s32.totalorder %v272, 0
      %v323 = vsub.s32 0, %v272
      %v324 = vsel %vm322, %v323, %v272
      %v325 = vshrl.u32 %v324, 4
      %v326 = vand.u32 %v324, 15
      %v327 = vsub.s32 0, %v326
      %v328 = vsel %vm322, %v327, %v326
      %vm329 = vcmp.lt.s32.totalorder %v273, 0
      %v330 = vsub.s32 0, %v273
      %v331 = vsel %vm329, %v330, %v273
      %v332 = vshrl.u32 %v331, 4
      %v333 = vand.u32 %v331, 15
      %v334 = vsub.s32 0, %v333
      %v335 = vsel %vm329, %v334, %v333
      %vm336 = vcmp.lt.s32.totalorder %v274, 0
      %v337 = vsub.s32 0, %v274
      %v338 = vsel %vm336, %v337, %v274
      %v339 = vshrl.u32 %v338, 4
      %v340 = vand.u32 %v338, 15
      %v341 = vsub.s32 0, %v340
      %v342 = vsel %vm336, %v341, %v340
      %vm343 = vcmp.lt.s32.totalorder %v275, 0
      %v344 = vsub.s32 0, %v275
      %v345 = vsel %vm343, %v344, %v275
      %v346 = vshrl.u32 %v345, 4
      %v347 = vand.u32 %v345, 15
      %v348 = vsub.s32 0, %v347
      %v349 = vsel %vm343, %v348, %v347
      %vm350 = vcmp.lt.s32.totalorder %v276, 0
      %v351 = vsub.s32 0, %v276
      %v352 = vsel %vm350, %v351, %v276
      %v353 = vshrl.u32 %v352, 4
      %v354 = vand.u32 %v352, 15
      %v355 = vsub.s32 0, %v354
      %v356 = vsel %vm350, %v355, %v354
      %vm357 = vcmp.lt.s32.totalorder %v277, 0
      %v358 = vsub.s32 0, %v277
      %v359 = vsel %vm357, %v358, %v277
      %v360 = vshrl.u32 %v359, 4
      %v361 = vand.u32 %v359, 15
      %v362 = vsub.s32 0, %v361
      %v363 = vsel %vm357, %v362, %v361
      %vm364 = vcmp.lt.s32.totalorder %v278, 0
      %v365 = vsub.s32 0, %v278
      %v366 = vsel %vm364, %v365, %v278
      %v367 = vshrl.u32 %v366, 4
      %v368 = vand.u32 %v366, 15
      %v369 = vsub.s32 0, %v368
      %v370 = vsel %vm364, %v369, %v368
      %vm371 = vcmp.lt.s32.totalorder %v279, 0
      %v372 = vsub.s32 0, %v279
      %v373 = vsel %vm371, %v372, %v279
      %v374 = vshrl.u32 %v373, 4
      %v375 = vand.u32 %v373, 15
      %v376 = vsub.s32 0, %v375
      %v377 = vsel %vm371, %v376, %v375
      %vm378 = vcmp.lt.s32.totalorder %v280, 0
      %v379 = vsub.s32 0, %v280
      %v380 = vsel %vm378, %v379, %v280
      %v381 = vshrl.u32 %v380, 4
      %v382 = vand.u32 %v380, 15
      %v383 = vsub.s32 0, %v382
      %v384 = vsel %vm378, %v383, %v382
      %vm385 = vcmp.lt.s32.totalorder %v281, 0
      %v386 = vsub.s32 0, %v281
      %v387 = vsel %vm385, %v386, %v281
      %v388 = vshrl.u32 %v387, 4
      %v389 = vand.u32 %v387, 15
      %v390 = vsub.s32 0, %v389
      %v391 = vsel %vm385, %v390, %v389
      %vm392 = vcmp.lt.s32.totalorder %v282, 0
      %v393 = vsub.s32 0, %v282
      %v394 = vsel %vm392, %v393, %v282
      %v395 = vshrl.u32 %v394, 4
      %v396 = vand.u32 %v394, 15
      %v397 = vsub.s32 0, %v396
      %v398 = vsel %vm392, %v397, %v396
      %vm399 = vcmp.lt.s32.totalorder %v283, 0
      %v400 = vsub.s32 0, %v283
      %v401 = vsel %vm399, %v400, %v283
      %v402 = vshrl.u32 %v401, 4
      %v403 = vand.u32 %v401, 15
      %v404 = vsub.s32 0, %v403
      %v405 = vsel %vm399, %v404, %v403
      %vm406 = vcmp.lt.s32.totalorder %v284, 0
      %v407 = vsub.s32 0, %v284
      %v408 = vsel %vm406, %v407, %v284
      %v409 = vshrl.u32 %v408, 4
      %v410 = vand.u32 %v408, 15
      %v411 = vsub.s32 0, %v410
      %v412 = vsel %vm406, %v411, %v410
      %vm413 = vcmp.lt.s32.totalorder %v285, 0
      %v414 = vsub.s32 0, %v285
      %v415 = vsel %vm413, %v414, %v285
      %v416 = vshrl.u32 %v415, 4
      %v417 = vand.u32 %v415, 15
      %v418 = vsub.s32 0, %v417
      %v419 = vsel %vm413, %v418, %v417
      %vm420 = vcmp.lt.s32.totalorder %v286, 0
      %v421 = vsub.s32 0, %v286
      %v422 = vsel %vm420, %v421, %v286
      %v423 = vshrl.u32 %v422, 4
      %v424 = vand.u32 %v422, 15
      %v425 = vsub.s32 0, %v424
      %v426 = vsel %vm420, %v425, %v424
      %vm427 = vcmp.lt.s32.totalorder %v287, 0
      %v428 = vsub.s32 0, %v287
      %v429 = vsel %vm427, %v428, %v287
      %v430 = vshrl.u32 %v429, 4
      %v431 = vand.u32 %v429, 15
      %v432 = vsub.s32 0, %v431
      %v433 = vsel %vm427, %v432, %v431
      %vm434 = vcmp.lt.s32.totalorder %v288, 0
      %v435 = vsub.s32 0, %v288
      %v436 = vsel %vm434, %v435, %v288
      %v437 = vshrl.u32 %v436, 4
      %v438 = vand.u32 %v436, 15
      %v439 = vsub.s32 0, %v438
      %v440 = vsel %vm434, %v439, %v438
      %vm441 = vcmp.lt.s32.totalorder %v289, 0
      %v442 = vsub.s32 0, %v289
      %v443 = vsel %vm441, %v442, %v289
      %v444 = vshrl.u32 %v443, 4
      %v445 = vand.u32 %v443, 15
      %v446 = vsub.s32 0, %v445
      %v447 = vsel %vm441, %v446, %v445
      %vm448 = vcmp.lt.s32.totalorder %v290, 0
      %v449 = vsub.s32 0, %v290
      %v450 = vsel %vm448, %v449, %v290
      %v451 = vshrl.u32 %v450, 4
      %v452 = vand.u32 %v450, 15
      %v453 = vsub.s32 0, %v452
      %v454 = vsel %vm448, %v453, %v452
      %vm455 = vcmp.lt.s32.totalorder %v291, 0
      %v456 = vsub.s32 0, %v291
      %v457 = vsel %vm455, %v456, %v291
      %v458 = vshrl.u32 %v457, 4
      %v459 = vand.u32 %v457, 15
      %v460 = vsub.s32 0, %v459
      %v461 = vsel %vm455, %v460, %v459
      %vm462 = vcmp.lt.s32.totalorder %v292, 0
      %v463 = vsub.s32 0, %v292
      %v464 = vsel %vm462, %v463, %v292
      %v465 = vshrl.u32 %v464, 4
      %v466 = vand.u32 %v464, 15
      %v467 = vsub.s32 0, %v466
      %v468 = vsel %vm462, %v467, %v466
      %vm469 = vcmp.lt.s32.totalorder %v293, 0
      %v470 = vsub.s32 0, %v293
      %v471 = vsel %vm469, %v470, %v293
      %v472 = vshrl.u32 %v471, 4
      %v473 = vand.u32 %v471, 15
      %v474 = vsub.s32 0, %v473
      %v475 = vsel %vm469, %v474, %v473
      %vm476 = vcmp.lt.s32.totalorder %v294, 0
      %v477 = vsub.s32 0, %v294
      %v478 = vsel %vm476, %v477, %v294
      %v479 = vshrl.u32 %v478, 4
      %v480 = vand.u32 %v478, 15
      %v481 = vsub.s32 0, %v480
      %v482 = vsel %vm476, %v481, %v480
      %vm483 = vcmp.lt.s32.totalorder %v295, 0
      %v484 = vsub.s32 0, %v295
      %v485 = vsel %vm483, %v484, %v295
      %v486 = vshrl.u32 %v485, 4
      %v487 = vand.u32 %v485, 15
      %v488 = vsub.s32 0, %v487
      %v489 = vsel %vm483, %v488, %v487
      %vm490 = vcmp.lt.s32.totalorder %v296, 0
      %v491 = vsub.s32 0, %v296
      %v492 = vsel %vm490, %v491, %v296
      %v493 = vshrl.u32 %v492, 4
      %v494 = vand.u32 %v492, 15
      %v495 = vsub.s32 0, %v494
      %v496 = vsel %vm490, %v495, %v494
      %vm497 = vcmp.lt.s32.totalorder %v297, 0
      %v498 = vsub.s32 0, %v297
      %v499 = vsel %vm497, %v498, %v297
      %v500 = vshrl.u32 %v499, 4
      %v501 = vand.u32 %v499, 15
      %v502 = vsub.s32 0, %v501
      %v503 = vsel %vm497, %v502, %v501
      %vm504 = vcmp.lt.s32.totalorder %v298, 0
      %v505 = vsub.s32 0, %v298
      %v506 = vsel %vm504, %v505, %v298
      %v507 = vshrl.u32 %v506, 4
      %v508 = vand.u32 %v506, 15
      %v509 = vsub.s32 0, %v508
      %v510 = vsel %vm504, %v509, %v508
      %vm511 = vcmp.lt.s32.totalorder %v299, 0
      %v512 = vsub.s32 0, %v299
      %v513 = vsel %vm511, %v512, %v299
      %v514 = vshrl.u32 %v513, 4
      %v515 = vand.u32 %v513, 15
      %v516 = vsub.s32 0, %v515
      %v517 = vsel %vm511, %v516, %v515
      %vm518 = vcmp.lt.s32.totalorder %v300, 0
      %v519 = vsub.s32 0, %v300
      %v520 = vsel %vm518, %v519, %v300
      %v521 = vshrl.u32 %v520, 4
      %v522 = vand.u32 %v520, 15
      %v523 = vsub.s32 0, %v522
      %v524 = vsel %vm518, %v523, %v522
      %vm525 = vcmp.ne.s32.totalorder %v307, 0
      %vm526 = vcmp.ne.s32.totalorder %v314, 0
      %vm527 = vcmp.ne.s32.totalorder %v321, 0
      %vm528 = vcmp.ne.s32.totalorder %v328, 0
      %vm529 = vcmp.ne.s32.totalorder %v335, 0
      %vm530 = vcmp.ne.s32.totalorder %v342, 0
      %vm531 = vcmp.ne.s32.totalorder %v349, 0
      %vm532 = vcmp.ne.s32.totalorder %v356, 0
      %vm533 = vcmp.ne.s32.totalorder %v363, 0
      %vm534 = vcmp.ne.s32.totalorder %v370, 0
      %vm535 = vcmp.ne.s32.totalorder %v377, 0
      %vm536 = vcmp.ne.s32.totalorder %v384, 0
      %vm537 = vcmp.ne.s32.totalorder %v391, 0
      %vm538 = vcmp.ne.s32.totalorder %v398, 0
      %vm539 = vcmp.ne.s32.totalorder %v405, 0
      %vm540 = vcmp.ne.s32.totalorder %v412, 0
      %vm541 = vcmp.ne.s32.totalorder %v419, 0
      %vm542 = vcmp.ne.s32.totalorder %v426, 0
      %vm543 = vcmp.ne.s32.totalorder %v433, 0
      %vm544 = vcmp.ne.s32.totalorder %v440, 0
      %vm545 = vcmp.ne.s32.totalorder %v447, 0
      %vm546 = vcmp.ne.s32.totalorder %v454, 0
      %vm547 = vcmp.ne.s32.totalorder %v461, 0
      %vm548 = vcmp.ne.s32.totalorder %v468, 0
      %vm549 = vcmp.ne.s32.totalorder %v475, 0
      %vm550 = vcmp.ne.s32.totalorder %v482, 0
      %vm551 = vcmp.ne.s32.totalorder %v489, 0
      %vm552 = vcmp.ne.s32.totalorder %v496, 0
      %vm553 = vcmp.ne.s32.totalorder %v503, 0
      %vm554 = vcmp.ne.s32.totalorder %v510, 0
      %vm555 = vcmp.ne.s32.totalorder %v517, 0
      %vm556 = vcmp.ne.s32.totalorder %v524, 0
      %vm557 = vcmp.lt.s32.totalorder %v307, 0
      %vm558 = vcmp.lt.s32.totalorder %v314, 0
      %vm559 = vcmp.lt.s32.totalorder %v321, 0
      %vm560 = vcmp.lt.s32.totalorder %v328, 0
      %vm561 = vcmp.lt.s32.totalorder %v335, 0
      %vm562 = vcmp.lt.s32.totalorder %v342, 0
      %vm563 = vcmp.lt.s32.totalorder %v349, 0
      %vm564 = vcmp.lt.s32.totalorder %v356, 0
      %vm565 = vcmp.lt.s32.totalorder %v363, 0
      %vm566 = vcmp.lt.s32.totalorder %v370, 0
      %vm567 = vcmp.lt.s32.totalorder %v377, 0
      %vm568 = vcmp.lt.s32.totalorder %v384, 0
      %vm569 = vcmp.lt.s32.totalorder %v391, 0
      %vm570 = vcmp.lt.s32.totalorder %v398, 0
      %vm571 = vcmp.lt.s32.totalorder %v405, 0
      %vm572 = vcmp.lt.s32.totalorder %v412, 0
      %vm573 = vcmp.lt.s32.totalorder %v419, 0
      %vm574 = vcmp.lt.s32.totalorder %v426, 0
      %vm575 = vcmp.lt.s32.totalorder %v433, 0
      %vm576 = vcmp.lt.s32.totalorder %v440, 0
      %vm577 = vcmp.lt.s32.totalorder %v447, 0
      %vm578 = vcmp.lt.s32.totalorder %v454, 0
      %vm579 = vcmp.lt.s32.totalorder %v461, 0
      %vm580 = vcmp.lt.s32.totalorder %v468, 0
      %vm581 = vcmp.lt.s32.totalorder %v475, 0
      %vm582 = vcmp.lt.s32.totalorder %v482, 0
      %vm583 = vcmp.lt.s32.totalorder %v489, 0
      %vm584 = vcmp.lt.s32.totalorder %v496, 0
      %vm585 = vcmp.lt.s32.totalorder %v503, 0
      %vm586 = vcmp.lt.s32.totalorder %v510, 0
      %vm587 = vcmp.lt.s32.totalorder %v517, 0
      %vm588 = vcmp.lt.s32.totalorder %v524, 0
      %vm589 = vmand %vm557, %vm525
      %vm590 = vmand %vm558, %vm526
      %vm591 = vmand %vm559, %vm527
      %vm592 = vmand %vm560, %vm528
      %vm593 = vmand %vm561, %vm529
      %vm594 = vmand %vm562, %vm530
      %vm595 = vmand %vm563, %vm531
      %vm596 = vmand %vm564, %vm532
      %vm597 = vmand %vm565, %vm533
      %vm598 = vmand %vm566, %vm534
      %vm599 = vmand %vm567, %vm535
      %vm600 = vmand %vm568, %vm536
      %vm601 = vmand %vm569, %vm537
      %vm602 = vmand %vm570, %vm538
      %vm603 = vmand %vm571, %vm539
      %vm604 = vmand %vm572, %vm540
      %vm605 = vmand %vm573, %vm541
      %vm606 = vmand %vm574, %vm542
      %vm607 = vmand %vm575, %vm543
      %vm608 = vmand %vm576, %vm544
      %vm609 = vmand %vm577, %vm545
      %vm610 = vmand %vm578, %vm546
      %vm611 = vmand %vm579, %vm547
      %vm612 = vmand %vm580, %vm548
      %vm613 = vmand %vm581, %vm549
      %vm614 = vmand %vm582, %vm550
      %vm615 = vmand %vm583, %vm551
      %vm616 = vmand %vm584, %vm552
      %vm617 = vmand %vm585, %vm553
      %vm618 = vmand %vm586, %vm554
      %vm619 = vmand %vm587, %vm555
      %vm620 = vmand %vm588, %vm556
      %v621 = vadd.s32 %v307, 16
      %v622 = vadd.s32 %v314, 16
      %v623 = vadd.s32 %v321, 16
      %v624 = vadd.s32 %v328, 16
      %v625 = vadd.s32 %v335, 16
      %v626 = vadd.s32 %v342, 16
      %v627 = vadd.s32 %v349, 16
      %v628 = vadd.s32 %v356, 16
      %v629 = vadd.s32 %v363, 16
      %v630 = vadd.s32 %v370, 16
      %v631 = vadd.s32 %v377, 16
      %v632 = vadd.s32 %v384, 16
      %v633 = vadd.s32 %v391, 16
      %v634 = vadd.s32 %v398, 16
      %v635 = vadd.s32 %v405, 16
      %v636 = vadd.s32 %v412, 16
      %v637 = vadd.s32 %v419, 16
      %v638 = vadd.s32 %v426, 16
      %v639 = vadd.s32 %v433, 16
      %v640 = vadd.s32 %v440, 16
      %v641 = vadd.s32 %v447, 16
      %v642 = vadd.s32 %v454, 16
      %v643 = vadd.s32 %v461, 16
      %v644 = vadd.s32 %v468, 16
      %v645 = vadd.s32 %v475, 16
      %v646 = vadd.s32 %v482, 16
      %v647 = vadd.s32 %v489, 16
      %v648 = vadd.s32 %v496, 16
      %v649 = vadd.s32 %v503, 16
      %v650 = vadd.s32 %v510, 16
      %v651 = vadd.s32 %v517, 16
      %v652 = vadd.s32 %v524, 16
      %v653 = vsel %vm589, %v621, %v307
      %v654 = vsel %vm590, %v622, %v314
      %v655 = vsel %vm591, %v623, %v321
      %v656 = vsel %vm592, %v624, %v328
      %v657 = vsel %vm593, %v625, %v335
      %v658 = vsel %vm594, %v626, %v342
      %v659 = vsel %vm595, %v627, %v349
      %v660 = vsel %vm596, %v628, %v356
      %v661 = vsel %vm597, %v629, %v363
      %v662 = vsel %vm598, %v630, %v370
      %v663 = vsel %vm599, %v631, %v377
      %v664 = vsel %vm600, %v632, %v384
      %v665 = vsel %vm601, %v633, %v391
      %v666 = vsel %vm602, %v634, %v398
      %v667 = vsel %vm603, %v635, %v405
      %v668 = vsel %vm604, %v636, %v412
      %v669 = vsel %vm605, %v637, %v419
      %v670 = vsel %vm606, %v638, %v426
      %v671 = vsel %vm607, %v639, %v433
      %v672 = vsel %vm608, %v640, %v440
      %v673 = vsel %vm609, %v641, %v447
      %v674 = vsel %vm610, %v642, %v454
      %v675 = vsel %vm611, %v643, %v461
      %v676 = vsel %vm612, %v644, %v468
      %v677 = vsel %vm613, %v645, %v475
      %v678 = vsel %vm614, %v646, %v482
      %v679 = vsel %vm615, %v647, %v489
      %v680 = vsel %vm616, %v648, %v496
      %v681 = vsel %vm617, %v649, %v503
      %v682 = vsel %vm618, %v650, %v510
      %v683 = vsel %vm619, %v651, %v517
      %v684 = vsel %vm620, %v652, %v524
      %vm685 = vcmp.ge.s32.totalorder %v653, 1
      %vm686 = vcmp.ge.s32.totalorder %v654, 1
      %vm687 = vcmp.ge.s32.totalorder %v655, 1
      %vm688 = vcmp.ge.s32.totalorder %v656, 1
      %vm689 = vcmp.ge.s32.totalorder %v657, 1
      %vm690 = vcmp.ge.s32.totalorder %v658, 1
      %vm691 = vcmp.ge.s32.totalorder %v659, 1
      %vm692 = vcmp.ge.s32.totalorder %v660, 1
      %vm693 = vcmp.ge.s32.totalorder %v661, 1
      %vm694 = vcmp.ge.s32.totalorder %v662, 1
      %vm695 = vcmp.ge.s32.totalorder %v663, 1
      %vm696 = vcmp.ge.s32.totalorder %v664, 1
      %vm697 = vcmp.ge.s32.totalorder %v665, 1
      %vm698 = vcmp.ge.s32.totalorder %v666, 1
      %vm699 = vcmp.ge.s32.totalorder %v667, 1
      %vm700 = vcmp.ge.s32.totalorder %v668, 1
      %vm701 = vcmp.ge.s32.totalorder %v669, 1
      %vm702 = vcmp.ge.s32.totalorder %v670, 1
      %vm703 = vcmp.ge.s32.totalorder %v671, 1
      %vm704 = vcmp.ge.s32.totalorder %v672, 1
      %vm705 = vcmp.ge.s32.totalorder %v673, 1
      %vm706 = vcmp.ge.s32.totalorder %v674, 1
      %vm707 = vcmp.ge.s32.totalorder %v675, 1
      %vm708 = vcmp.ge.s32.totalorder %v676, 1
      %vm709 = vcmp.ge.s32.totalorder %v677, 1
      %vm710 = vcmp.ge.s32.totalorder %v678, 1
      %vm711 = vcmp.ge.s32.totalorder %v679, 1
      %vm712 = vcmp.ge.s32.totalorder %v680, 1
      %vm713 = vcmp.ge.s32.totalorder %v681, 1
      %vm714 = vcmp.ge.s32.totalorder %v682, 1
      %vm715 = vcmp.ge.s32.totalorder %v683, 1
      %vm716 = vcmp.ge.s32.totalorder %v684, 1
      %v717 = vsel %vm685, 1, 0
      %v718 = vsel %vm686, 1, 0
      %v719 = vsel %vm687, 1, 0
      %v720 = vsel %vm688, 1, 0
      %v721 = vsel %vm689, 1, 0
      %v722 = vsel %vm690, 1, 0
      %v723 = vsel %vm691, 1, 0
      %v724 = vsel %vm692, 1, 0
      %v725 = vsel %vm693, 1, 0
      %v726 = vsel %vm694, 1, 0
      %v727 = vsel %vm695, 1, 0
      %v728 = vsel %vm696, 1, 0
      %v729 = vsel %vm697, 1, 0
      %v730 = vsel %vm698, 1, 0
      %v731 = vsel %vm699, 1, 0
      %v732 = vsel %vm700, 1, 0
      %v733 = vsel %vm701, 1, 0
      %v734 = vsel %vm702, 1, 0
      %v735 = vsel %vm703, 1, 0
      %v736 = vsel %vm704, 1, 0
      %v737 = vsel %vm705, 1, 0
      %v738 = vsel %vm706, 1, 0
      %v739 = vsel %vm707, 1, 0
      %v740 = vsel %vm708, 1, 0
      %v741 = vsel %vm709, 1, 0
      %v742 = vsel %vm710, 1, 0
      %v743 = vsel %vm711, 1, 0
      %v744 = vsel %vm712, 1, 0
      %v745 = vsel %vm713, 1, 0
      %v746 = vsel %vm714, 1, 0
      %v747 = vsel %vm715, 1, 0
      %v748 = vsel %vm716, 1, 0
      %v749 = vcvt.s32.f32 %v717
      %v750 = vcvt.s32.f32 %v718
      %v751 = vcvt.s32.f32 %v719
      %v752 = vcvt.s32.f32 %v720
      %v753 = vcvt.s32.f32 %v721
      %v754 = vcvt.s32.f32 %v722
      %v755 = vcvt.s32.f32 %v723
      %v756 = vcvt.s32.f32 %v724
      %v757 = vcvt.s32.f32 %v725
      %v758 = vcvt.s32.f32 %v726
      %v759 = vcvt.s32.f32 %v727
      %v760 = vcvt.s32.f32 %v728
      %v761 = vcvt.s32.f32 %v729
      %v762 = vcvt.s32.f32 %v730
      %v763 = vcvt.s32.f32 %v731
      %v764 = vcvt.s32.f32 %v732
      %v765 = vcvt.s32.f32 %v733
      %v766 = vcvt.s32.f32 %v734
      %v767 = vcvt.s32.f32 %v735
      %v768 = vcvt.s32.f32 %v736
      %v769 = vcvt.s32.f32 %v737
      %v770 = vcvt.s32.f32 %v738
      %v771 = vcvt.s32.f32 %v739
      %v772 = vcvt.s32.f32 %v740
      %v773 = vcvt.s32.f32 %v741
      %v774 = vcvt.s32.f32 %v742
      %v775 = vcvt.s32.f32 %v743
      %v776 = vcvt.s32.f32 %v744
      %v777 = vcvt.s32.f32 %v745
      %v778 = vcvt.s32.f32 %v746
      %v779 = vcvt.s32.f32 %v747
      %v780 = vcvt.s32.f32 %v748
      %vm781 = vcmp.le.s32.totalorder %v653, 14
      %vm782 = vcmp.le.s32.totalorder %v654, 14
      %vm783 = vcmp.le.s32.totalorder %v655, 14
      %vm784 = vcmp.le.s32.totalorder %v656, 14
      %vm785 = vcmp.le.s32.totalorder %v657, 14
      %vm786 = vcmp.le.s32.totalorder %v658, 14
      %vm787 = vcmp.le.s32.totalorder %v659, 14
      %vm788 = vcmp.le.s32.totalorder %v660, 14
      %vm789 = vcmp.le.s32.totalorder %v661, 14
      %vm790 = vcmp.le.s32.totalorder %v662, 14
      %vm791 = vcmp.le.s32.totalorder %v663, 14
      %vm792 = vcmp.le.s32.totalorder %v664, 14
      %vm793 = vcmp.le.s32.totalorder %v665, 14
      %vm794 = vcmp.le.s32.totalorder %v666, 14
      %vm795 = vcmp.le.s32.totalorder %v667, 14
      %vm796 = vcmp.le.s32.totalorder %v668, 14
      %vm797 = vcmp.le.s32.totalorder %v669, 14
      %vm798 = vcmp.le.s32.totalorder %v670, 14
      %vm799 = vcmp.le.s32.totalorder %v671, 14
      %vm800 = vcmp.le.s32.totalorder %v672, 14
      %vm801 = vcmp.le.s32.totalorder %v673, 14
      %vm802 = vcmp.le.s32.totalorder %v674, 14
      %vm803 = vcmp.le.s32.totalorder %v675, 14
      %vm804 = vcmp.le.s32.totalorder %v676, 14
      %vm805 = vcmp.le.s32.totalorder %v677, 14
      %vm806 = vcmp.le.s32.totalorder %v678, 14
      %vm807 = vcmp.le.s32.totalorder %v679, 14
      %vm808 = vcmp.le.s32.totalorder %v680, 14
      %vm809 = vcmp.le.s32.totalorder %v681, 14
      %vm810 = vcmp.le.s32.totalorder %v682, 14
      %vm811 = vcmp.le.s32.totalorder %v683, 14
      %vm812 = vcmp.le.s32.totalorder %v684, 14
      %v813 = vsel %vm781, 1, 0
      %v814 = vsel %vm782, 1, 0
      %v815 = vsel %vm783, 1, 0
      %v816 = vsel %vm784, 1, 0
      %v817 = vsel %vm785, 1, 0
      %v818 = vsel %vm786, 1, 0
      %v819 = vsel %vm787, 1, 0
      %v820 = vsel %vm788, 1, 0
      %v821 = vsel %vm789, 1, 0
      %v822 = vsel %vm790, 1, 0
      %v823 = vsel %vm791, 1, 0
      %v824 = vsel %vm792, 1, 0
      %v825 = vsel %vm793, 1, 0
      %v826 = vsel %vm794, 1, 0
      %v827 = vsel %vm795, 1, 0
      %v828 = vsel %vm796, 1, 0
      %v829 = vsel %vm797, 1, 0
      %v830 = vsel %vm798, 1, 0
      %v831 = vsel %vm799, 1, 0
      %v832 = vsel %vm800, 1, 0
      %v833 = vsel %vm801, 1, 0
      %v834 = vsel %vm802, 1, 0
      %v835 = vsel %vm803, 1, 0
      %v836 = vsel %vm804, 1, 0
      %v837 = vsel %vm805, 1, 0
      %v838 = vsel %vm806, 1, 0
      %v839 = vsel %vm807, 1, 0
      %v840 = vsel %vm808, 1, 0
      %v841 = vsel %vm809, 1, 0
      %v842 = vsel %vm810, 1, 0
      %v843 = vsel %vm811, 1, 0
      %v844 = vsel %vm812, 1, 0
      %v845 = vcvt.s32.f32 %v813
      %v846 = vcvt.s32.f32 %v814
      %v847 = vcvt.s32.f32 %v815
      %v848 = vcvt.s32.f32 %v816
      %v849 = vcvt.s32.f32 %v817
      %v850 = vcvt.s32.f32 %v818
      %v851 = vcvt.s32.f32 %v819
      %v852 = vcvt.s32.f32 %v820
      %v853 = vcvt.s32.f32 %v821
      %v854 = vcvt.s32.f32 %v822
      %v855 = vcvt.s32.f32 %v823
      %v856 = vcvt.s32.f32 %v824
      %v857 = vcvt.s32.f32 %v825
      %v858 = vcvt.s32.f32 %v826
      %v859 = vcvt.s32.f32 %v827
      %v860 = vcvt.s32.f32 %v828
      %v861 = vcvt.s32.f32 %v829
      %v862 = vcvt.s32.f32 %v830
      %v863 = vcvt.s32.f32 %v831
      %v864 = vcvt.s32.f32 %v832
      %v865 = vcvt.s32.f32 %v833
      %v866 = vcvt.s32.f32 %v834
      %v867 = vcvt.s32.f32 %v835
      %v868 = vcvt.s32.f32 %v836
      %v869 = vcvt.s32.f32 %v837
      %v870 = vcvt.s32.f32 %v838
      %v871 = vcvt.s32.f32 %v839
      %v872 = vcvt.s32.f32 %v840
      %v873 = vcvt.s32.f32 %v841
      %v874 = vcvt.s32.f32 %v842
      %v875 = vcvt.s32.f32 %v843
      %v876 = vcvt.s32.f32 %v844
      %v877 = vld [vmem:[%s241] sm:$0xf]
      %v878 = vld [vmem:[%s241 + $0x4] sm:$0xf]
      %v879 = vld [vmem:[%s241 + $0x8] sm:$0xf]
      %v880 = vld [vmem:[%s241 + $0xc] sm:$0xf]
      %v881 = vld [vmem:[%s241 + $0x10] sm:$0xf]
      %v882 = vld [vmem:[%s241 + $0x14] sm:$0xf]
      %v883 = vld [vmem:[%s241 + $0x18] sm:$0xf]
      %v884 = vld [vmem:[%s241 + $0x1c] sm:$0xf]
      %v885 = vld [vmem:[%s241 + $0x20] sm:$0xf]
      %v886 = vld [vmem:[%s241 + $0x24] sm:$0xf]
      %v887 = vld [vmem:[%s241 + $0x28] sm:$0xf]
      %v888 = vld [vmem:[%s241 + $0x2c] sm:$0xf]
      %v889 = vld [vmem:[%s241 + $0x30] sm:$0xf]
      %v890 = vld [vmem:[%s241 + $0x34] sm:$0xf]
      %v891 = vld [vmem:[%s241 + $0x38] sm:$0xf]
      %v892 = vld [vmem:[%s241 + $0x3c] sm:$0xf]
      %v893 = vld [vmem:[%s241 + $0x40] sm:$0xf]
      %v894 = vld [vmem:[%s241 + $0x44] sm:$0xf]
      %v895 = vld [vmem:[%s241 + $0x48] sm:$0xf]
      %v896 = vld [vmem:[%s241 + $0x4c] sm:$0xf]
      %v897 = vld [vmem:[%s241 + $0x50] sm:$0xf]
      %v898 = vld [vmem:[%s241 + $0x54] sm:$0xf]
      %v899 = vld [vmem:[%s241 + $0x58] sm:$0xf]
      %v900 = vld [vmem:[%s241 + $0x5c] sm:$0xf]
      %v901 = vld [vmem:[%s241 + $0x60] sm:$0xf]
      %v902 = vld [vmem:[%s241 + $0x64] sm:$0xf]
      %v903 = vld [vmem:[%s241 + $0x68] sm:$0xf]
      %v904 = vld [vmem:[%s241 + $0x6c] sm:$0xf]
      %v905 = vld [vmem:[%s241 + $0x70] sm:$0xf]
      %v906 = vld [vmem:[%s241 + $0x74] sm:$0xf]
      %v907 = vld [vmem:[%s241 + $0x78] sm:$0xf]
      %v908 = vld [vmem:[%s241 + $0x7c] sm:$0xf]
      %v909 = vld [vmem:[%s241 + $0x80] sm:$0xf]
      %v910 = vld [vmem:[%s241 + $0x84] sm:$0xf]
      %v911 = vld [vmem:[%s241 + $0x88] sm:$0xf]
      %v912 = vld [vmem:[%s241 + $0x8c] sm:$0xf]
      %v945 = vunpack.c.l.b16 %v877
      %v946 = vunpack.c.l.b16 %v878
      %v947 = vunpack.c.l.b16 %v879
      %v948 = vunpack.c.l.b16 %v880
      %v949 = vunpack.c.l.b16 %v881
      %v950 = vunpack.c.l.b16 %v882
      %v951 = vunpack.c.l.b16 %v883
      %v952 = vunpack.c.l.b16 %v884
      %v953 = vunpack.c.l.b16 %v885
      %v954 = vunpack.c.l.b16 %v886
      %v955 = vunpack.c.l.b16 %v887
      %v956 = vunpack.c.l.b16 %v888
      %v957 = vunpack.c.l.b16 %v889
      %v958 = vunpack.c.l.b16 %v890
      %v959 = vunpack.c.l.b16 %v891
      %v960 = vunpack.c.l.b16 %v892
      %v961 = vunpack.c.l.b16 %v893
      %v962 = vunpack.c.l.b16 %v894
      %v963 = vunpack.c.l.b16 %v895
      %v964 = vunpack.c.l.b16 %v896
      %v965 = vunpack.c.l.b16 %v897
      %v966 = vunpack.c.l.b16 %v898
      %v967 = vunpack.c.l.b16 %v899
      %v968 = vunpack.c.l.b16 %v900
      %v969 = vunpack.c.l.b16 %v901
      %v970 = vunpack.c.l.b16 %v902
      %v971 = vunpack.c.l.b16 %v903
      %v972 = vunpack.c.l.b16 %v904
      %v973 = vunpack.c.l.b16 %v905
      %v974 = vunpack.c.l.b16 %v906
      %v975 = vunpack.c.l.b16 %v907
      %v976 = vunpack.c.l.b16 %v908
      %v977 = vpack.c.b16 %v946, %v945
      %v978 = vpack.c.b16 %v948, %v947
      %v979 = vpack.c.b16 %v950, %v949
      %v980 = vpack.c.b16 %v952, %v951
      %v981 = vpack.c.b16 %v954, %v953
      %v982 = vpack.c.b16 %v956, %v955
      %v983 = vpack.c.b16 %v958, %v957
      %v984 = vpack.c.b16 %v960, %v959
      %v985 = vpack.c.b16 %v962, %v961
      %v986 = vpack.c.b16 %v964, %v963
      %v987 = vpack.c.b16 %v966, %v965
      %v988 = vpack.c.b16 %v968, %v967
      %v989 = vpack.c.b16 %v970, %v969
      %v990 = vpack.c.b16 %v972, %v971
      %v991 = vpack.c.b16 %v974, %v973
      %v992 = vpack.c.b16 %v976, %v975
      %v1011 = vunpack.c.l.b16 %v909
      %v1012 = vunpack.c.l.b16 %v910
      %v1013 = vpack.c.b16 %v1012, %v1011
      %v1017 = vunpack.c.l.b16 %v911
      %v1018 = vunpack.c.l.b16 %v912
      %v1019 = vpack.c.b16 %v1018, %v1017
      %v1021 = vld [vmem:[%s250] sm:$0xff]
      %v1022 = vld [vmem:[%s250 + $0x8] sm:$0xff]
      %v1023 = vld [vmem:[%s250 + $0x10] sm:$0xff]
      %v1024 = vld [vmem:[%s250 + $0x18] sm:$0xff]
      %v1025 = vld [vmem:[%s250 + $0x20] sm:$0xff]
      %v1026 = vld [vmem:[%s250 + $0x28] sm:$0xff]
      %v1027 = vld [vmem:[%s250 + $0x30] sm:$0xff]
      %v1028 = vld [vmem:[%s250 + $0x38] sm:$0xff]
      %v1029 = vld [vmem:[%s250 + $0x40] sm:$0xff]
      %v1030 = vld [vmem:[%s250 + $0x48] sm:$0xff]
      %v1031 = vld [vmem:[%s250 + $0x50] sm:$0xff]
      %v1032 = vld [vmem:[%s250 + $0x58] sm:$0xff]
      %v1033 = vld [vmem:[%s250 + $0x60] sm:$0xff]
      %v1034 = vld [vmem:[%s250 + $0x68] sm:$0xff]
      %v1035 = vld [vmem:[%s250 + $0x70] sm:$0xff]
      %v1036 = vld [vmem:[%s250 + $0x78] sm:$0xff]
      %v1037 = vld [vmem:[%s250 + $0x80] sm:$0xff]
      %v1038 = vld [vmem:[%s250 + $0x88] sm:$0xff]
      %v1039 = vld [vmem:[%s250 + $0x90] sm:$0xff]
      %v1040 = vld [vmem:[%s250 + $0x98] sm:$0xff]
      %v1041 = vld [vmem:[%s250 + $0xa0] sm:$0xff]
      %v1042 = vld [vmem:[%s250 + $0xa8] sm:$0xff]
      %v1043 = vld [vmem:[%s250 + $0xb0] sm:$0xff]
      %v1044 = vld [vmem:[%s250 + $0xb8] sm:$0xff]
      %v1045 = vld [vmem:[%s250 + $0xc0] sm:$0xff]
      %v1046 = vld [vmem:[%s250 + $0xc8] sm:$0xff]
      %v1047 = vld [vmem:[%s250 + $0xd0] sm:$0xff]
      %v1048 = vld [vmem:[%s250 + $0xd8] sm:$0xff]
      %v1049 = vld [vmem:[%s250 + $0xe0] sm:$0xff]
      %v1050 = vld [vmem:[%s250 + $0xe8] sm:$0xff]
      %v1051 = vld [vmem:[%s250 + $0xf0] sm:$0xff]
      %v1052 = vld [vmem:[%s250 + $0xf8] sm:$0xff]
      %v1053 = vld [vmem:[%s250 + $0x100] sm:$0xff]
      %v1054 = vld [vmem:[%s250 + $0x108] sm:$0xff]
      %v1055 = vld [vmem:[%s250 + $0x110] sm:$0xff]
      %v1056 = vld [vmem:[%s250 + $0x118] sm:$0xff]
      %v1057 = vld [vmem:[%s250 + $0x120] sm:$0xff]
      %v1058 = vld [vmem:[%s250 + $0x128] sm:$0xff]
      %v1059 = vld [vmem:[%s250 + $0x130] sm:$0xff]
      %v1060 = vld [vmem:[%s250 + $0x138] sm:$0xff]
      %v1061 = vld [vmem:[%s250 + $0x140] sm:$0xff]
      %v1062 = vld [vmem:[%s250 + $0x148] sm:$0xff]
      %v1063 = vld [vmem:[%s250 + $0x150] sm:$0xff]
      %v1064 = vld [vmem:[%s250 + $0x158] sm:$0xff]
      %v1065 = vld [vmem:[%s250 + $0x160] sm:$0xff]
      %v1066 = vld [vmem:[%s250 + $0x168] sm:$0xff]
      %v1067 = vld [vmem:[%s250 + $0x170] sm:$0xff]
      %v1068 = vld [vmem:[%s250 + $0x178] sm:$0xff]
      %v1117 = vunpack.c.l.b16 %v1021
      %v1118 = vunpack.c.h.b16 %v1021
      %v1119 = vunpack.c.l.b16 %v1022
      %v1120 = vunpack.c.h.b16 %v1022
      %v1121 = vunpack.c.l.b16 %v1023
      %v1122 = vunpack.c.h.b16 %v1023
      %v1123 = vunpack.c.l.b16 %v1024
      %v1124 = vunpack.c.h.b16 %v1024
      %v1125 = vunpack.c.l.b16 %v1025
      %v1126 = vunpack.c.h.b16 %v1025
      %v1127 = vunpack.c.l.b16 %v1026
      %v1128 = vunpack.c.h.b16 %v1026
      %v1129 = vunpack.c.l.b16 %v1027
      %v1130 = vunpack.c.h.b16 %v1027
      %v1131 = vunpack.c.l.b16 %v1028
      %v1132 = vunpack.c.h.b16 %v1028
      %v1133 = vunpack.c.l.b16 %v1029
      %v1134 = vunpack.c.h.b16 %v1029
      %v1135 = vunpack.c.l.b16 %v1030
      %v1136 = vunpack.c.h.b16 %v1030
      %v1137 = vunpack.c.l.b16 %v1031
      %v1138 = vunpack.c.h.b16 %v1031
      %v1139 = vunpack.c.l.b16 %v1032
      %v1140 = vunpack.c.h.b16 %v1032
      %v1141 = vunpack.c.l.b16 %v1033
      %v1142 = vunpack.c.h.b16 %v1033
      %v1143 = vunpack.c.l.b16 %v1034
      %v1144 = vunpack.c.h.b16 %v1034
      %v1145 = vunpack.c.l.b16 %v1035
      %v1146 = vunpack.c.h.b16 %v1035
      %v1147 = vunpack.c.l.b16 %v1036
      %v1148 = vunpack.c.h.b16 %v1036
      %v1149 = vunpack.c.l.b16 %v1037
      %v1150 = vunpack.c.h.b16 %v1037
      %v1151 = vunpack.c.l.b16 %v1038
      %v1152 = vunpack.c.h.b16 %v1038
      %v1153 = vunpack.c.l.b16 %v1039
      %v1154 = vunpack.c.h.b16 %v1039
      %v1155 = vunpack.c.l.b16 %v1040
      %v1156 = vunpack.c.h.b16 %v1040
      %v1157 = vunpack.c.l.b16 %v1041
      %v1158 = vunpack.c.h.b16 %v1041
      %v1159 = vunpack.c.l.b16 %v1042
      %v1160 = vunpack.c.h.b16 %v1042
      %v1161 = vunpack.c.l.b16 %v1043
      %v1162 = vunpack.c.h.b16 %v1043
      %v1163 = vunpack.c.l.b16 %v1044
      %v1164 = vunpack.c.h.b16 %v1044
      %v1165 = vunpack.c.l.b16 %v1045
      %v1166 = vunpack.c.h.b16 %v1045
      %v1167 = vunpack.c.l.b16 %v1046
      %v1168 = vunpack.c.h.b16 %v1046
      %v1169 = vunpack.c.l.b16 %v1047
      %v1170 = vunpack.c.h.b16 %v1047
      %v1171 = vunpack.c.l.b16 %v1048
      %v1172 = vunpack.c.h.b16 %v1048
      %v1173 = vunpack.c.l.b16 %v1049
      %v1174 = vunpack.c.h.b16 %v1049
      %v1175 = vunpack.c.l.b16 %v1050
      %v1176 = vunpack.c.h.b16 %v1050
      %v1177 = vunpack.c.l.b16 %v1051
      %v1178 = vunpack.c.h.b16 %v1051
      %v1179 = vunpack.c.l.b16 %v1052
      %v1180 = vunpack.c.h.b16 %v1052
      %v1181 = vunpack.c.l.b16 %v1053
      %v1182 = vunpack.c.h.b16 %v1053
      %v1183 = vunpack.c.l.b16 %v1054
      %v1184 = vunpack.c.h.b16 %v1054
      %v1185 = vunpack.c.l.b16 %v1055
      %v1186 = vunpack.c.h.b16 %v1055
      %v1187 = vunpack.c.l.b16 %v1056
      %v1188 = vunpack.c.h.b16 %v1056
      %v1189 = vunpack.c.l.b16 %v1057
      %v1190 = vunpack.c.h.b16 %v1057
      %v1191 = vunpack.c.l.b16 %v1058
      %v1192 = vunpack.c.h.b16 %v1058
      %v1193 = vunpack.c.l.b16 %v1059
      %v1194 = vunpack.c.h.b16 %v1059
      %v1195 = vunpack.c.l.b16 %v1060
      %v1196 = vunpack.c.h.b16 %v1060
      %v1197 = vunpack.c.l.b16 %v1061
      %v1198 = vunpack.c.h.b16 %v1061
      %v1199 = vunpack.c.l.b16 %v1062
      %v1200 = vunpack.c.h.b16 %v1062
      %v1201 = vunpack.c.l.b16 %v1063
      %v1202 = vunpack.c.h.b16 %v1063
      %v1203 = vunpack.c.l.b16 %v1064
      %v1204 = vunpack.c.h.b16 %v1064
      %v1205 = vunpack.c.l.b16 %v1065
      %v1206 = vunpack.c.h.b16 %v1065
      %v1207 = vunpack.c.l.b16 %v1066
      %v1208 = vunpack.c.h.b16 %v1066
      %v1209 = vunpack.c.l.b16 %v1067
      %v1210 = vunpack.c.h.b16 %v1067
      %v1211 = vunpack.c.l.b16 %v1068
      %v1212 = vunpack.c.h.b16 %v1068
      %v1213 = vpack.c.b16 %v1119, %v1117
      %v1214 = vpack.c.b16 %v1120, %v1118
      %v1215 = vpack.c.b16 %v1123, %v1121
      %v1216 = vpack.c.b16 %v1124, %v1122
      %v1217 = vpack.c.b16 %v1127, %v1125
      %v1218 = vpack.c.b16 %v1128, %v1126
      %v1219 = vpack.c.b16 %v1131, %v1129
      %v1220 = vpack.c.b16 %v1132, %v1130
      %v1221 = vpack.c.b16 %v1135, %v1133
      %v1222 = vpack.c.b16 %v1136, %v1134
      %v1223 = vpack.c.b16 %v1139, %v1137
      %v1224 = vpack.c.b16 %v1140, %v1138
      %v1225 = vpack.c.b16 %v1143, %v1141
      %v1226 = vpack.c.b16 %v1144, %v1142
      %v1227 = vpack.c.b16 %v1147, %v1145
      %v1228 = vpack.c.b16 %v1148, %v1146
      %v1229 = vpack.c.b16 %v1151, %v1149
      %v1230 = vpack.c.b16 %v1152, %v1150
      %v1231 = vpack.c.b16 %v1155, %v1153
      %v1232 = vpack.c.b16 %v1156, %v1154
      %v1233 = vpack.c.b16 %v1159, %v1157
      %v1234 = vpack.c.b16 %v1160, %v1158
      %v1235 = vpack.c.b16 %v1163, %v1161
      %v1236 = vpack.c.b16 %v1164, %v1162
      %v1237 = vpack.c.b16 %v1167, %v1165
      %v1238 = vpack.c.b16 %v1168, %v1166
      %v1239 = vpack.c.b16 %v1171, %v1169
      %v1240 = vpack.c.b16 %v1172, %v1170
      %v1241 = vpack.c.b16 %v1175, %v1173
      %v1242 = vpack.c.b16 %v1176, %v1174
      %v1243 = vpack.c.b16 %v1179, %v1177
      %v1244 = vpack.c.b16 %v1180, %v1178
      %v1245 = vpack.c.b16 %v1183, %v1181
      %v1246 = vpack.c.b16 %v1184, %v1182
      %v1247 = vpack.c.b16 %v1187, %v1185
      %v1248 = vpack.c.b16 %v1188, %v1186
      %v1249 = vpack.c.b16 %v1191, %v1189
      %v1250 = vpack.c.b16 %v1192, %v1190
      %v1251 = vpack.c.b16 %v1195, %v1193
      %v1252 = vpack.c.b16 %v1196, %v1194
      %v1253 = vpack.c.b16 %v1199, %v1197
      %v1254 = vpack.c.b16 %v1200, %v1198
      %v1255 = vpack.c.b16 %v1203, %v1201
      %v1256 = vpack.c.b16 %v1204, %v1202
      %v1257 = vpack.c.b16 %v1207, %v1205
      %v1258 = vpack.c.b16 %v1208, %v1206
      %v1259 = vpack.c.b16 %v1211, %v1209
      %v1260 = vpack.c.b16 %v1212, %v1210
      %1309 = vmatprep.subr.bf16.mxu0 %v1214
      %1310 = vmatpush1.bf16.msra.mxu0 %v1213
      %1311 = vmatprep.subr.bf16.mxu0 %v1216
      %1312 = vmatpush1.bf16.msra.mxu0 %v1215
      %1313 = vmatprep.subr.bf16.mxu0 %v1218
      %1314 = vmatpush1.bf16.msra.mxu0 %v1217
      %1315 = vmatprep.subr.bf16.mxu0 %v1220
      %1316 = vmatpush1.bf16.msra.mxu0 %v1219
      %1317 = vmatprep.subr.bf16.mxu0 %v1222
      %1318 = vmatpush1.bf16.msra.mxu0 %v1221
      %1319 = vmatprep.subr.bf16.mxu0 %v1224
      %1320 = vmatpush1.bf16.msra.mxu0 %v1223
      %1321 = vmatprep.subr.bf16.mxu0 %v1226
      %1322 = vmatpush1.bf16.msra.mxu0 %v1225
      %1323 = vmatprep.subr.bf16.mxu0 %v1228
      %1324 = vmatpush1.bf16.msra.mxu0 %v1227
      %1325 = vmatprep.subr.bf16.mxu0 %v1230
      %1326 = vmatpush1.bf16.msra.mxu0 %v1229
      %1327 = vmatprep.subr.bf16.mxu0 %v1232
      %1328 = vmatpush1.bf16.msra.mxu0 %v1231
      %1329 = vmatprep.subr.bf16.mxu0 %v1234
      %1330 = vmatpush1.bf16.msra.mxu0 %v1233
      %1331 = vmatprep.subr.bf16.mxu0 %v1236
      %1332 = vmatpush1.bf16.msra.mxu0 %v1235
      %1333 = vmatprep.subr.bf16.mxu0 %v1238
      %1334 = vmatpush1.bf16.msra.mxu0 %v1237
      %1335 = vmatprep.subr.bf16.mxu0 %v1240
      %1336 = vmatpush1.bf16.msra.mxu0 %v1239
      %1337 = vmatprep.subr.bf16.mxu0 %v1242
      %1338 = vmatpush1.bf16.msra.mxu0 %v1241
      %1339 = vmatprep.subr.bf16.mxu0 %v1244
      %1340 = vmatpush1.bf16.msra.mxu0 %v1243
      %1341 = vmatprep.mubr.bf16.mxu0 %v978
      %1342 = vmatmul.mubr.bf16.gmra.mrb[0].mxu0 %v977
      %v1343 = vpop.f32.mrb[0].mxu0
      %v1344 = vadd.f32 0.0, %v1343
      %v1345 = vpop.f32.mrb[0].mxu0
      %v1346 = vadd.f32 0.0, %v1345
      %v1347 = vpop.f32.mrb[0].mxu0
      %v1348 = vadd.f32 0.0, %v1347
      %v1349 = vpop.f32.mrb[0].mxu0
      %v1350 = vadd.f32 0.0, %v1349
      %1351 = vmatprep.mubr.bf16.mxu0 %v979
      %1352 = vmatmul.mubr.bf16.gmra.mrb[0].mxu0 %v978
      %v1353 = vpop.f32.mrb[0].mxu0
      %v1354 = vadd.f32 0.0, %v1353
      %v1355 = vpop.f32.mrb[0].mxu0
      %v1356 = vadd.f32 0.0, %v1355
      %v1357 = vpop.f32.mrb[0].mxu0
      %v1358 = vadd.f32 0.0, %v1357
      %v1359 = vpop.f32.mrb[0].mxu0
      %v1360 = vadd.f32 0.0, %v1359
      %1361 = vmatprep.mubr.bf16.mxu0 %v980
      %1362 = vmatmul.mubr.bf16.gmra.mrb[0].mxu0 %v979
      %v1363 = vpop.f32.mrb[0].mxu0
      %v1364 = vadd.f32 0.0, %v1363
      %v1365 = vpop.f32.mrb[0].mxu0
      %v1366 = vadd.f32 0.0, %v1365
      %v1367 = vpop.f32.mrb[0].mxu0
      %v1368 = vadd.f32 0.0, %v1367
      %v1369 = vpop.f32.mrb[0].mxu0
      %v1370 = vadd.f32 0.0, %v1369
      %1371 = vmatprep.mubr.bf16.mxu0 %v981
      %1372 = vmatmul.mubr.bf16.gmra.mrb[0].mxu0 %v980
      %v1373 = vpop.f32.mrb[0].mxu0
      %v1374 = vadd.f32 0.0, %v1373
      %v1375 = vpop.f32.mrb[0].mxu0
      %v1376 = vadd.f32 0.0, %v1375
      %v1377 = vpop.f32.mrb[0].mxu0
      %v1378 = vadd.f32 0.0, %v1377
      %v1379 = vpop.f32.mrb[0].mxu0
      %v1380 = vadd.f32 0.0, %v1379
      %1381 = vmatprep.mubr.bf16.mxu0 %v982
      %1382 = vmatmul.mubr.bf16.gmra.mrb[0].mxu0 %v981
      %v1383 = vpop.f32.mrb[0].mxu0
      %v1384 = vadd.f32 0.0, %v1383
      %v1385 = vpop.f32.mrb[0].mxu0
      %v1386 = vadd.f32 0.0, %v1385
      %v1387 = vpop.f32.mrb[0].mxu0
      %v1388 = vadd.f32 0.0, %v1387
      %v1389 = vpop.f32.mrb[0].mxu0
      %v1390 = vadd.f32 0.0, %v1389
      %1391 = vmatprep.mubr.bf16.mxu0 %v983
      %1392 = vmatmul.mubr.bf16.gmra.mrb[0].mxu0 %v982
      %v1393 = vpop.f32.mrb[0].mxu0
      %v1394 = vadd.f32 0.0, %v1393
      %v1395 = vpop.f32.mrb[0].mxu0
      %v1396 = vadd.f32 0.0, %v1395
      %v1397 = vpop.f32.mrb[0].mxu0
      %v1398 = vadd.f32 0.0, %v1397
      %v1399 = vpop.f32.mrb[0].mxu0
      %v1400 = vadd.f32 0.0, %v1399
      %1401 = vmatprep.mubr.bf16.mxu0 %v984
      %1402 = vmatmul.mubr.bf16.gmra.mrb[0].mxu0 %v983
      %v1403 = vpop.f32.mrb[0].mxu0
      %v1404 = vadd.f32 0.0, %v1403
      %v1405 = vpop.f32.mrb[0].mxu0
      %v1406 = vadd.f32 0.0, %v1405
      %v1407 = vpop.f32.mrb[0].mxu0
      %v1408 = vadd.f32 0.0, %v1407
      %v1409 = vpop.f32.mrb[0].mxu0
      %v1410 = vadd.f32 0.0, %v1409
      %1411 = vmatprep.mubr.bf16.mxu0 %v985
      %1412 = vmatmul.mubr.bf16.gmra.mrb[0].mxu0 %v984
      %v1413 = vpop.f32.mrb[0].mxu0
      %v1414 = vadd.f32 0.0, %v1413
      %v1415 = vpop.f32.mrb[0].mxu0
      %v1416 = vadd.f32 0.0, %v1415
      %v1417 = vpop.f32.mrb[0].mxu0
      %v1418 = vadd.f32 0.0, %v1417
      %v1419 = vpop.f32.mrb[0].mxu0
      %v1420 = vadd.f32 0.0, %v1419
      %1421 = vmatprep.mubr.bf16.mxu0 %v986
      %1422 = vmatmul.mubr.bf16.gmra.mrb[0].mxu0 %v985
      %v1423 = vpop.f32.mrb[0].mxu0
      %v1424 = vadd.f32 0.0, %v1423
      %v1425 = vpop.f32.mrb[0].mxu0
      %v1426 = vadd.f32 0.0, %v1425
      %v1427 = vpop.f32.mrb[0].mxu0
      %v1428 = vadd.f32 0.0, %v1427
      %v1429 = vpop.f32.mrb[0].mxu0
      %v1430 = vadd.f32 0.0, %v1429
      %1431 = vmatprep.mubr.bf16.mxu0 %v987
      %1432 = vmatmul.mubr.bf16.gmra.mrb[0].mxu0 %v986
      %v1433 = vpop.f32.mrb[0].mxu0
      %v1434 = vadd.f32 0.0, %v1433
      %v1435 = vpop.f32.mrb[0].mxu0
      %v1436 = vadd.f32 0.0, %v1435
      %v1437 = vpop.f32.mrb[0].mxu0
      %v1438 = vadd.f32 0.0, %v1437
      %v1439 = vpop.f32.mrb[0].mxu0
      %v1440 = vadd.f32 0.0, %v1439
      %1441 = vmatprep.mubr.bf16.mxu0 %v988
      %1442 = vmatmul.mubr.bf16.gmra.mrb[0].mxu0 %v987
      %v1443 = vpop.f32.mrb[0].mxu0
      %v1444 = vadd.f32 0.0, %v1443
      %v1445 = vpop.f32.mrb[0].mxu0
      %v1446 = vadd.f32 0.0, %v1445
      %v1447 = vpop.f32.mrb[0].mxu0
      %v1448 = vadd.f32 0.0, %v1447
      %v1449 = vpop.f32.mrb[0].mxu0
      %v1450 = vadd.f32 0.0, %v1449
      %1451 = vmatprep.mubr.bf16.mxu0 %v989
      %1452 = vmatmul.mubr.bf16.gmra.mrb[0].mxu0 %v988
      %v1453 = vpop.f32.mrb[0].mxu0
      %v1454 = vadd.f32 0.0, %v1453
      %v1455 = vpop.f32.mrb[0].mxu0
      %v1456 = vadd.f32 0.0, %v1455
      %v1457 = vpop.f32.mrb[0].mxu0
      %v1458 = vadd.f32 0.0, %v1457
      %v1459 = vpop.f32.mrb[0].mxu0
      %v1460 = vadd.f32 0.0, %v1459
      %1461 = vmatprep.mubr.bf16.mxu0 %v990
      %1462 = vmatmul.mubr.bf16.gmra.mrb[0].mxu0 %v989
      %v1463 = vpop.f32.mrb[0].mxu0
      %v1464 = vadd.f32 0.0, %v1463
      %v1465 = vpop.f32.mrb[0].mxu0
      %v1466 = vadd.f32 0.0, %v1465
      %v1467 = vpop.f32.mrb[0].mxu0
      %v1468 = vadd.f32 0.0, %v1467
      %v1469 = vpop.f32.mrb[0].mxu0
      %v1470 = vadd.f32 0.0, %v1469
      %1471 = vmatprep.mubr.bf16.mxu0 %v991
      %1472 = vmatmul.mubr.bf16.gmra.mrb[0].mxu0 %v990
      %v1473 = vpop.f32.mrb[0].mxu0
      %v1474 = vadd.f32 0.0, %v1473
      %v1475 = vpop.f32.mrb[0].mxu0
      %v1476 = vadd.f32 0.0, %v1475
      %v1477 = vpop.f32.mrb[0].mxu0
      %v1478 = vadd.f32 0.0, %v1477
      %v1479 = vpop.f32.mrb[0].mxu0
      %v1480 = vadd.f32 0.0, %v1479
      %1481 = vmatprep.mubr.bf16.mxu0 %v992
      %1482 = vmatmul.mubr.bf16.gmra.mrb[0].mxu0 %v991
      %v1483 = vpop.f32.mrb[0].mxu0
      %v1484 = vadd.f32 0.0, %v1483
      %v1485 = vpop.f32.mrb[0].mxu0
      %v1486 = vadd.f32 0.0, %v1485
      %v1487 = vpop.f32.mrb[0].mxu0
      %v1488 = vadd.f32 0.0, %v1487
      %v1489 = vpop.f32.mrb[0].mxu0
      %v1490 = vadd.f32 0.0, %v1489
      %1491 = vmatprep.mubr.bf16.mxu0 %v1013
      %1492 = vmatmul.mubr.bf16.gmra.mrb[0].mxu0 %v992
      %v1493 = vpop.f32.mrb[0].mxu0
      %v1494 = vadd.f32 0.0, %v1493
      %v1495 = vpop.f32.mrb[0].mxu0
      %v1496 = vadd.f32 0.0, %v1495
      %v1497 = vpop.f32.mrb[0].mxu0
      %v1498 = vadd.f32 0.0, %v1497
      %v1499 = vpop.f32.mrb[0].mxu0
      %v1500 = vadd.f32 0.0, %v1499
      %1501 = vdwg.mxu0
      %1502 = vmatprep.subr.bf16.mxu0 %v1246
      %1503 = vmatpush1.bf16.msra.mxu0 %v1245
      %1504 = vmatprep.subr.bf16.mxu0 %v1248
      %1505 = vmatpush1.bf16.msra.mxu0 %v1247
      %1506 = vmatprep.subr.bf16.mxu0 %v1250
      %1507 = vmatpush1.bf16.msra.mxu0 %v1249
      %1508 = vmatprep.subr.bf16.mxu0 %v1252
      %1509 = vmatpush1.bf16.msra.mxu0 %v1251
      %1510 = vmatprep.subr.bf16.mxu0 %v1254
      %1511 = vmatpush1.bf16.msra.mxu0 %v1253
      %1512 = vmatprep.subr.bf16.mxu0 %v1256
      %1513 = vmatpush1.bf16.msra.mxu0 %v1255
      %1514 = vmatprep.subr.bf16.mxu0 %v1258
      %1515 = vmatpush1.bf16.msra.mxu0 %v1257
      %1516 = vmatprep.subr.bf16.mxu0 %v1260
      %1517 = vmatpush1.bf16.msra.mxu0 %v1259
      %1518 = vmatprep.subr.bf16.mxu0 0
      %1519 = vmatpush1.bf16.msra.mxu0 0
      %1520 = vmatprep.subr.bf16.mxu0 0
      %1521 = vmatpush1.bf16.msra.mxu0 0
      %1522 = vmatprep.subr.bf16.mxu0 0
      %1523 = vmatpush1.bf16.msra.mxu0 0
      %1524 = vmatprep.subr.bf16.mxu0 0
      %1525 = vmatpush1.bf16.msra.mxu0 0
      %1526 = vmatprep.subr.bf16.mxu0 0
      %1527 = vmatpush1.bf16.msra.mxu0 0
      %1528 = vmatprep.subr.bf16.mxu0 0
      %1529 = vmatpush1.bf16.msra.mxu0 0
      %1530 = vmatprep.subr.bf16.mxu0 0
      %1531 = vmatpush1.bf16.msra.mxu0 0
      %1532 = vmatprep.subr.bf16.mxu0 0
      %1533 = vmatpush1.bf16.msra.mxu0 0
      %1534 = vmatprep.mubr.bf16.mxu0 0
      %1535 = vmatmul.mubr.bf16.gmra.mrb[0].mxu0 %v979
      %v1536 = vpop.f32.mrb[0].mxu0
      %v1537 = vadd.f32 %v1344, %v1536
      %v1538 = vpop.f32.mrb[0].mxu0
      %v1539 = vadd.f32 %v1346, %v1538
      %v1540 = vpop.f32.mrb[0].mxu0
      %v1541 = vadd.f32 %v1348, %v1540
      %v1542 = vpop.f32.mrb[0].mxu0
      %v1543 = vadd.f32 %v1350, %v1542
      %1544 = vmatprep.mubr.bf16.mxu0 0
      %1545 = vmatmul.mubr.bf16.gmra.mrb[0].mxu0 %v980
      %v1546 = vpop.f32.mrb[0].mxu0
      %v1547 = vadd.f32 %v1354, %v1546
      %v1548 = vpop.f32.mrb[0].mxu0
      %v1549 = vadd.f32 %v1356, %v1548
      %v1550 = vpop.f32.mrb[0].mxu0
      %v1551 = vadd.f32 %v1358, %v1550
      %v1552 = vpop.f32.mrb[0].mxu0
      %v1553 = vadd.f32 %v1360, %v1552
      %1554 = vmatprep.mubr.bf16.mxu0 0
      %1555 = vmatmul.mubr.bf16.gmra.mrb[0].mxu0 %v981
      %v1556 = vpop.f32.mrb[0].mxu0
      %v1557 = vadd.f32 %v1364, %v1556
      %v1558 = vpop.f32.mrb[0].mxu0
      %v1559 = vadd.f32 %v1366, %v1558
      %v1560 = vpop.f32.mrb[0].mxu0
      %v1561 = vadd.f32 %v1368, %v1560
      %v1562 = vpop.f32.mrb[0].mxu0
      %v1563 = vadd.f32 %v1370, %v1562
      %1564 = vmatprep.mubr.bf16.mxu0 0
      %1565 = vmatmul.mubr.bf16.gmra.mrb[0].mxu0 %v982
      %v1566 = vpop.f32.mrb[0].mxu0
      %v1567 = vadd.f32 %v1374, %v1566
      %v1568 = vpop.f32.mrb[0].mxu0
      %v1569 = vadd.f32 %v1376, %v1568
      %v1570 = vpop.f32.mrb[0].mxu0
      %v1571 = vadd.f32 %v1378, %v1570
      %v1572 = vpop.f32.mrb[0].mxu0
      %v1573 = vadd.f32 %v1380, %v1572
      %1574 = vmatprep.mubr.bf16.mxu0 0
      %1575 = vmatmul.mubr.bf16.gmra.mrb[0].mxu0 %v983
      %v1576 = vpop.f32.mrb[0].mxu0
      %v1577 = vadd.f32 %v1384, %v1576
      %v1578 = vpop.f32.mrb[0].mxu0
      %v1579 = vadd.f32 %v1386, %v1578
      %v1580 = vpop.f32.mrb[0].mxu0
      %v1581 = vadd.f32 %v1388, %v1580
      %v1582 = vpop.f32.mrb[0].mxu0
      %v1583 = vadd.f32 %v1390, %v1582
      %1584 = vmatprep.mubr.bf16.mxu0 0
      %1585 = vmatmul.mubr.bf16.gmra.mrb[0].mxu0 %v984
      %v1586 = vpop.f32.mrb[0].mxu0
      %v1587 = vadd.f32 %v1394, %v1586
      %v1588 = vpop.f32.mrb[0].mxu0
      %v1589 = vadd.f32 %v1396, %v1588
      %v1590 = vpop.f32.mrb[0].mxu0
      %v1591 = vadd.f32 %v1398, %v1590
      %v1592 = vpop.f32.mrb[0].mxu0
      %v1593 = vadd.f32 %v1400, %v1592
      %1594 = vmatprep.mubr.bf16.mxu0 0
      %1595 = vmatmul.mubr.bf16.gmra.mrb[0].mxu0 %v985
      %v1596 = vpop.f32.mrb[0].mxu0
      %v1597 = vadd.f32 %v1404, %v1596
      %v1598 = vpop.f32.mrb[0].mxu0
      %v1599 = vadd.f32 %v1406, %v1598
      %v1600 = vpop.f32.mrb[0].mxu0
      %v1601 = vadd.f32 %v1408, %v1600
      %v1602 = vpop.f32.mrb[0].mxu0
      %v1603 = vadd.f32 %v1410, %v1602
      %1604 = vmatprep.mubr.bf16.mxu0 0
      %1605 = vmatmul.mubr.bf16.gmra.mrb[0].mxu0 %v986
      %v1606 = vpop.f32.mrb[0].mxu0
      %v1607 = vadd.f32 %v1414, %v1606
      %v1608 = vpop.f32.mrb[0].mxu0
      %v1609 = vadd.f32 %v1416, %v1608
      %v1610 = vpop.f32.mrb[0].mxu0
      %v1611 = vadd.f32 %v1418, %v1610
      %v1612 = vpop.f32.mrb[0].mxu0
      %v1613 = vadd.f32 %v1420, %v1612
      %1614 = vmatprep.mubr.bf16.mxu0 0
      %1615 = vmatmul.mubr.bf16.gmra.mrb[0].mxu0 %v987
      %v1616 = vpop.f32.mrb[0].mxu0
      %v1617 = vadd.f32 %v1424, %v1616
      %v1618 = vpop.f32.mrb[0].mxu0
      %v1619 = vadd.f32 %v1426, %v1618
      %v1620 = vpop.f32.mrb[0].mxu0
      %v1621 = vadd.f32 %v1428, %v1620
      %v1622 = vpop.f32.mrb[0].mxu0
      %v1623 = vadd.f32 %v1430, %v1622
      %1624 = vmatprep.mubr.bf16.mxu0 0
      %1625 = vmatmul.mubr.bf16.gmra.mrb[0].mxu0 %v988
      %v1626 = vpop.f32.mrb[0].mxu0
      %v1627 = vadd.f32 %v1434, %v1626
      %v1628 = vpop.f32.mrb[0].mxu0
      %v1629 = vadd.f32 %v1436, %v1628
      %v1630 = vpop.f32.mrb[0].mxu0
      %v1631 = vadd.f32 %v1438, %v1630
      %v1632 = vpop.f32.mrb[0].mxu0
      %v1633 = vadd.f32 %v1440, %v1632
      %1634 = vmatprep.mubr.bf16.mxu0 0
      %1635 = vmatmul.mubr.bf16.gmra.mrb[0].mxu0 %v989
      %v1636 = vpop.f32.mrb[0].mxu0
      %v1637 = vadd.f32 %v1444, %v1636
      %v1638 = vpop.f32.mrb[0].mxu0
      %v1639 = vadd.f32 %v1446, %v1638
      %v1640 = vpop.f32.mrb[0].mxu0
      %v1641 = vadd.f32 %v1448, %v1640
      %v1642 = vpop.f32.mrb[0].mxu0
      %v1643 = vadd.f32 %v1450, %v1642
      %1644 = vmatprep.mubr.bf16.mxu0 0
      %1645 = vmatmul.mubr.bf16.gmra.mrb[0].mxu0 %v990
      %v1646 = vpop.f32.mrb[0].mxu0
      %v1647 = vadd.f32 %v1454, %v1646
      %v1648 = vpop.f32.mrb[0].mxu0
      %v1649 = vadd.f32 %v1456, %v1648
      %v1650 = vpop.f32.mrb[0].mxu0
      %v1651 = vadd.f32 %v1458, %v1650
      %v1652 = vpop.f32.mrb[0].mxu0
      %v1653 = vadd.f32 %v1460, %v1652
      %1654 = vmatprep.mubr.bf16.mxu0 0
      %1655 = vmatmul.mubr.bf16.gmra.mrb[0].mxu0 %v991
      %v1656 = vpop.f32.mrb[0].mxu0
      %v1657 = vadd.f32 %v1464, %v1656
      %v1658 = vpop.f32.mrb[0].mxu0
      %v1659 = vadd.f32 %v1466, %v1658
      %v1660 = vpop.f32.mrb[0].mxu0
      %v1661 = vadd.f32 %v1468, %v1660
      %v1662 = vpop.f32.mrb[0].mxu0
      %v1663 = vadd.f32 %v1470, %v1662
      %1664 = vmatprep.mubr.bf16.mxu0 0
      %1665 = vmatmul.mubr.bf16.gmra.mrb[0].mxu0 %v992
      %v1666 = vpop.f32.mrb[0].mxu0
      %v1667 = vadd.f32 %v1474, %v1666
      %v1668 = vpop.f32.mrb[0].mxu0
      %v1669 = vadd.f32 %v1476, %v1668
      %v1670 = vpop.f32.mrb[0].mxu0
      %v1671 = vadd.f32 %v1478, %v1670
      %v1672 = vpop.f32.mrb[0].mxu0
      %v1673 = vadd.f32 %v1480, %v1672
      %1674 = vmatprep.mubr.bf16.mxu0 0
      %1675 = vmatmul.mubr.bf16.gmra.mrb[0].mxu0 %v1013
      %v1676 = vpop.f32.mrb[0].mxu0
      %v1677 = vadd.f32 %v1484, %v1676
      %v1678 = vpop.f32.mrb[0].mxu0
      %v1679 = vadd.f32 %v1486, %v1678
      %v1680 = vpop.f32.mrb[0].mxu0
      %v1681 = vadd.f32 %v1488, %v1680
      %v1682 = vpop.f32.mrb[0].mxu0
      %v1683 = vadd.f32 %v1490, %v1682
      %1684 = vmatprep.mubr.bf16.mxu0 0
      %1685 = vmatmul.mubr.bf16.gmra.mrb[0].mxu0 %v1019
      %v1686 = vpop.f32.mrb[0].mxu0
      %v1687 = vadd.f32 %v1494, %v1686
      %v1688 = vpop.f32.mrb[0].mxu0
      %v1689 = vadd.f32 %v1496, %v1688
      %v1690 = vpop.f32.mrb[0].mxu0
      %v1691 = vadd.f32 %v1498, %v1690
      %v1692 = vpop.f32.mrb[0].mxu0
      %v1693 = vadd.f32 %v1500, %v1692
      %1694 = vdwg.mxu0
      %v1695 = vmul.f32 %v749, %v1537
      %v1696 = vmul.f32 %v749, %v1539
      %v1697 = vmul.f32 %v750, %v1541
      %v1698 = vmul.f32 %v750, %v1543
      %v1699 = vmul.f32 %v751, %v1547
      %v1700 = vmul.f32 %v751, %v1549
      %v1701 = vmul.f32 %v752, %v1551
      %v1702 = vmul.f32 %v752, %v1553
      %v1703 = vmul.f32 %v753, %v1557
      %v1704 = vmul.f32 %v753, %v1559
      %v1705 = vmul.f32 %v754, %v1561
      %v1706 = vmul.f32 %v754, %v1563
      %v1707 = vmul.f32 %v755, %v1567
      %v1708 = vmul.f32 %v755, %v1569
      %v1709 = vmul.f32 %v756, %v1571
      %v1710 = vmul.f32 %v756, %v1573
      %v1711 = vmul.f32 %v757, %v1577
      %v1712 = vmul.f32 %v757, %v1579
      %v1713 = vmul.f32 %v758, %v1581
      %v1714 = vmul.f32 %v758, %v1583
      %v1715 = vmul.f32 %v759, %v1587
      %v1716 = vmul.f32 %v759, %v1589
      %v1717 = vmul.f32 %v760, %v1591
      %v1718 = vmul.f32 %v760, %v1593
      %v1719 = vmul.f32 %v761, %v1597
      %v1720 = vmul.f32 %v761, %v1599
      %v1721 = vmul.f32 %v762, %v1601
      %v1722 = vmul.f32 %v762, %v1603
      %v1723 = vmul.f32 %v763, %v1607
      %v1724 = vmul.f32 %v763, %v1609
      %v1725 = vmul.f32 %v764, %v1611
      %v1726 = vmul.f32 %v764, %v1613
      %v1727 = vmul.f32 %v765, %v1617
      %v1728 = vmul.f32 %v765, %v1619
      %v1729 = vmul.f32 %v766, %v1621
      %v1730 = vmul.f32 %v766, %v1623
      %v1731 = vmul.f32 %v767, %v1627
      %v1732 = vmul.f32 %v767, %v1629
      %v1733 = vmul.f32 %v768, %v1631
      %v1734 = vmul.f32 %v768, %v1633
      %v1735 = vmul.f32 %v769, %v1637
      %v1736 = vmul.f32 %v769, %v1639
      %v1737 = vmul.f32 %v770, %v1641
      %v1738 = vmul.f32 %v770, %v1643
      %v1739 = vmul.f32 %v771, %v1647
      %v1740 = vmul.f32 %v771, %v1649
      %v1741 = vmul.f32 %v772, %v1651
      %v1742 = vmul.f32 %v772, %v1653
      %v1743 = vmul.f32 %v773, %v1657
      %v1744 = vmul.f32 %v773, %v1659
      %v1745 = vmul.f32 %v774, %v1661
      %v1746 = vmul.f32 %v774, %v1663
      %v1747 = vmul.f32 %v775, %v1667
      %v1748 = vmul.f32 %v775, %v1669
      %v1749 = vmul.f32 %v776, %v1671
      %v1750 = vmul.f32 %v776, %v1673
      %v1751 = vmul.f32 %v777, %v1677
      %v1752 = vmul.f32 %v777, %v1679
      %v1753 = vmul.f32 %v778, %v1681
      %v1754 = vmul.f32 %v778, %v1683
      %v1755 = vmul.f32 %v779, %v1687
      %v1756 = vmul.f32 %v779, %v1689
      %v1757 = vmul.f32 %v780, %v1691
      %v1758 = vmul.f32 %v780, %v1693
      %v1759 = vld [vmem:[%s241] sm:$0xf]
      %v1760 = vld [vmem:[%s241 + $0x4] sm:$0xf]
      %v1761 = vld [vmem:[%s241 + $0x8] sm:$0xf]
      %v1762 = vld [vmem:[%s241 + $0xc] sm:$0xf]
      %v1763 = vld [vmem:[%s241 + $0x10] sm:$0xf]
      %v1764 = vld [vmem:[%s241 + $0x14] sm:$0xf]
      %v1765 = vld [vmem:[%s241 + $0x18] sm:$0xf]
      %v1766 = vld [vmem:[%s241 + $0x1c] sm:$0xf]
      %v1767 = vld [vmem:[%s241 + $0x20] sm:$0xf]
      %v1768 = vld [vmem:[%s241 + $0x24] sm:$0xf]
      %v1769 = vld [vmem:[%s241 + $0x28] sm:$0xf]
      %v1770 = vld [vmem:[%s241 + $0x2c] sm:$0xf]
      %v1771 = vld [vmem:[%s241 + $0x30] sm:$0xf]
      %v1772 = vld [vmem:[%s241 + $0x34] sm:$0xf]
      %v1773 = vld [vmem:[%s241 + $0x38] sm:$0xf]
      %v1774 = vld [vmem:[%s241 + $0x3c] sm:$0xf]
      %v1775 = vld [vmem:[%s241 + $0x40] sm:$0xf]
      %v1776 = vld [vmem:[%s241 + $0x44] sm:$0xf]
      %v1777 = vld [vmem:[%s241 + $0x48] sm:$0xf]
      %v1778 = vld [vmem:[%s241 + $0x4c] sm:$0xf]
      %v1779 = vld [vmem:[%s241 + $0x50] sm:$0xf]
      %v1780 = vld [vmem:[%s241 + $0x54] sm:$0xf]
      %v1781 = vld [vmem:[%s241 + $0x58] sm:$0xf]
      %v1782 = vld [vmem:[%s241 + $0x5c] sm:$0xf]
      %v1783 = vld [vmem:[%s241 + $0x60] sm:$0xf]
      %v1784 = vld [vmem:[%s241 + $0x64] sm:$0xf]
      %v1785 = vld [vmem:[%s241 + $0x68] sm:$0xf]
      %v1786 = vld [vmem:[%s241 + $0x6c] sm:$0xf]
      %v1787 = vld [vmem:[%s241 + $0x70] sm:$0xf]
      %v1788 = vld [vmem:[%s241 + $0x74] sm:$0xf]
      %v1789 = vld [vmem:[%s241 + $0x78] sm:$0xf]
      %v1790 = vld [vmem:[%s241 + $0x7c] sm:$0xf]
      %v1791 = vld [vmem:[%s241 + $0x80] sm:$0x1]
      %v1792 = vld [vmem:[%s241 + $0x80] sm:$0xf]
      %v1793 = vld [vmem:[%s241 + $0x84] sm:$0xf]
      %v1794 = vld [vmem:[%s241 + $0x88] sm:$0x1]
      %v1795 = vld [vmem:[%s241 + $0x88] sm:$0xf]
      %v1796 = vld [vmem:[%s241 + $0x8c] sm:$0xf]
      %v1797 = vld [vmem:[%s241 + $0x90] sm:$0x1]
      %v1831 = vunpack.c.l.b16 %v1759
      %v1832 = vunpack.c.l.b16 %v1760
      %v1833 = vunpack.c.l.b16 %v1761
      %v1834 = vunpack.c.l.b16 %v1762
      %v1835 = vunpack.c.l.b16 %v1763
      %v1836 = vunpack.c.l.b16 %v1764
      %v1837 = vunpack.c.l.b16 %v1765
      %v1838 = vunpack.c.l.b16 %v1766
      %v1839 = vunpack.c.l.b16 %v1767
      %v1840 = vunpack.c.l.b16 %v1768
      %v1841 = vunpack.c.l.b16 %v1769
      %v1842 = vunpack.c.l.b16 %v1770
      %v1843 = vunpack.c.l.b16 %v1771
      %v1844 = vunpack.c.l.b16 %v1772
      %v1845 = vunpack.c.l.b16 %v1773
      %v1846 = vunpack.c.l.b16 %v1774
      %v1847 = vunpack.c.l.b16 %v1775
      %v1848 = vunpack.c.l.b16 %v1776
      %v1849 = vunpack.c.l.b16 %v1777
      %v1850 = vunpack.c.l.b16 %v1778
      %v1851 = vunpack.c.l.b16 %v1779
      %v1852 = vunpack.c.l.b16 %v1780
      %v1853 = vunpack.c.l.b16 %v1781
      %v1854 = vunpack.c.l.b16 %v1782
      %v1855 = vunpack.c.l.b16 %v1783
      %v1856 = vunpack.c.l.b16 %v1784
      %v1857 = vunpack.c.l.b16 %v1785
      %v1858 = vunpack.c.l.b16 %v1786
      %v1859 = vunpack.c.l.b16 %v1787
      %v1860 = vunpack.c.l.b16 %v1788
      %v1861 = vunpack.c.l.b16 %v1789
      %v1862 = vunpack.c.l.b16 %v1790
      %v1863 = vunpack.c.l.b16 %v1791
      %v1864 = vpack.c.b16 %v1832, %v1831
      %v1865 = vpack.c.b16 %v1834, %v1833
      %v1866 = vpack.c.b16 %v1836, %v1835
      %v1867 = vpack.c.b16 %v1838, %v1837
      %v1868 = vpack.c.b16 %v1840, %v1839
      %v1869 = vpack.c.b16 %v1842, %v1841
      %v1870 = vpack.c.b16 %v1844, %v1843
      %v1871 = vpack.c.b16 %v1846, %v1845
      %v1872 = vpack.c.b16 %v1848, %v1847
      %v1873 = vpack.c.b16 %v1850, %v1849
      %v1874 = vpack.c.b16 %v1852, %v1851
      %v1875 = vpack.c.b16 %v1854, %v1853
      %v1876 = vpack.c.b16 %v1856, %v1855
      %v1877 = vpack.c.b16 %v1858, %v1857
      %v1878 = vpack.c.b16 %v1860, %v1859
      %v1879 = vpack.c.b16 %v1862, %v1861
      %v1880 = vpack.c.b16 %v1863, %v1863
      %v1884 = vunpack.c.l.b16 %v1792
      %v1885 = vunpack.c.l.b16 %v1793
      %v1886 = vunpack.c.l.b16 %v1794
      %v1887 = vpack.c.b16 %v1885, %v1884
      %v1888 = vpack.c.b16 %v1886, %v1886
      %v1892 = vunpack.c.l.b16 %v1795
      %v1893 = vunpack.c.l.b16 %v1796
      %v1894 = vunpack.c.l.b16 %v1797
      %v1895 = vpack.c.b16 %v1893, %v1892
      %v1896 = vpack.c.b16 %v1894, %v1894
      %s1897 = scalar_lea.vmem %s250, 384
      %v1898 = vld [vmem:[%s1897] sm:$0xff]
      %v1899 = vld [vmem:[%s1897 + $0x8] sm:$0xff]
      %v1900 = vld [vmem:[%s1897 + $0x10] sm:$0xff]
      %v1901 = vld [vmem:[%s1897 + $0x18] sm:$0xff]
      %v1902 = vld [vmem:[%s1897 + $0x20] sm:$0xff]
      %v1903 = vld [vmem:[%s1897 + $0x28] sm:$0xff]
      %v1904 = vld [vmem:[%s1897 + $0x30] sm:$0xff]
      %v1905 = vld [vmem:[%s1897 + $0x38] sm:$0xff]
      %v1906 = vld [vmem:[%s1897 + $0x40] sm:$0xff]
      %v1907 = vld [vmem:[%s1897 + $0x48] sm:$0xff]
      %v1908 = vld [vmem:[%s1897 + $0x50] sm:$0xff]
      %v1909 = vld [vmem:[%s1897 + $0x58] sm:$0xff]
      %v1910 = vld [vmem:[%s1897 + $0x60] sm:$0xff]
      %v1911 = vld [vmem:[%s1897 + $0x68] sm:$0xff]
      %v1912 = vld [vmem:[%s1897 + $0x70] sm:$0xff]
      %v1913 = vld [vmem:[%s1897 + $0x78] sm:$0xff]
      %v1914 = vld [vmem:[%s1897 + $0x80] sm:$0xff]
      %v1915 = vld [vmem:[%s1897 + $0x88] sm:$0xff]
      %v1916 = vld [vmem:[%s1897 + $0x90] sm:$0xff]
      %v1917 = vld [vmem:[%s1897 + $0x98] sm:$0xff]
      %v1918 = vld [vmem:[%s1897 + $0xa0] sm:$0xff]
      %v1919 = vld [vmem:[%s1897 + $0xa8] sm:$0xff]
      %v1920 = vld [vmem:[%s1897 + $0xb0] sm:$0xff]
      %v1921 = vld [vmem:[%s1897 + $0xb8] sm:$0xff]
      %v1922 = vld [vmem:[%s1897 + $0xc0] sm:$0xff]
      %v1923 = vld [vmem:[%s1897 + $0xc8] sm:$0xff]
      %v1924 = vld [vmem:[%s1897 + $0xd0] sm:$0xff]
      %v1925 = vld [vmem:[%s1897 + $0xd8] sm:$0xff]
      %v1926 = vld [vmem:[%s1897 + $0xe0] sm:$0xff]
      %v1927 = vld [vmem:[%s1897 + $0xe8] sm:$0xff]
      %v1928 = vld [vmem:[%s1897 + $0xf0] sm:$0xff]
      %v1929 = vld [vmem:[%s1897 + $0xf8] sm:$0xff]
      %v1930 = vld [vmem:[%s1897 + $0x100] sm:$0xff]
      %v1931 = vld [vmem:[%s1897 + $0x108] sm:$0xff]
      %v1932 = vld [vmem:[%s1897 + $0x110] sm:$0xff]
      %v1933 = vld [vmem:[%s1897 + $0x118] sm:$0xff]
      %v1934 = vld [vmem:[%s1897 + $0x120] sm:$0xff]
      %v1935 = vld [vmem:[%s1897 + $0x128] sm:$0xff]
      %v1936 = vld [vmem:[%s1897 + $0x130] sm:$0xff]
      %v1937 = vld [vmem:[%s1897 + $0x138] sm:$0xff]
      %v1938 = vld [vmem:[%s1897 + $0x140] sm:$0xff]
      %v1939 = vld [vmem:[%s1897 + $0x148] sm:$0xff]
      %v1940 = vld [vmem:[%s1897 + $0x150] sm:$0xff]
      %v1941 = vld [vmem:[%s1897 + $0x158] sm:$0xff]
      %v1942 = vld [vmem:[%s1897 + $0x160] sm:$0xff]
      %v1943 = vld [vmem:[%s1897 + $0x168] sm:$0xff]
      %v1944 = vld [vmem:[%s1897 + $0x170] sm:$0xff]
      %v1945 = vld [vmem:[%s1897 + $0x178] sm:$0xff]
      %vm1946 = vsmask.f32 7424
      %v1948 = vshrl.u32 %v1864, 16
      %v1950 = vshll.u32 %v1864, 16
      %v1952 = vrot.slane %v1950, 1
      %v1953 = vor.u32 %v1948, %v1952
      %v1955 = vshll.u32 %v1865, 16
      %v1957 = vrot.slane %v1955, 1
      %v1958 = vsel %vm1946, %v1953, %v1957
      %v1959 = vshrl.u32 %v1865, 16
      %v1961 = vor.u32 %v1959, %v1957
      %v1963 = vshll.u32 %v1866, 16
      %v1965 = vrot.slane %v1963, 1
      %v1966 = vsel %vm1946, %v1961, %v1965
      %v1967 = vshrl.u32 %v1866, 16
      %v1969 = vor.u32 %v1967, %v1965
      %v1971 = vshll.u32 %v1867, 16
      %v1973 = vrot.slane %v1971, 1
      %v1974 = vsel %vm1946, %v1969, %v1973
      %v1975 = vshrl.u32 %v1867, 16
      %v1977 = vor.u32 %v1975, %v1973
      %v1979 = vshll.u32 %v1868, 16
      %v1981 = vrot.slane %v1979, 1
      %v1982 = vsel %vm1946, %v1977, %v1981
      %v1983 = vshrl.u32 %v1868, 16
      %v1985 = vor.u32 %v1983, %v1981
      %v1987 = vshll.u32 %v1869, 16
      %v1989 = vrot.slane %v1987, 1
      %v1990 = vsel %vm1946, %v1985, %v1989
      %v1991 = vshrl.u32 %v1869, 16
      %v1993 = vor.u32 %v1991, %v1989
      %v1995 = vshll.u32 %v1870, 16
      %v1997 = vrot.slane %v1995, 1
      %v1998 = vsel %vm1946, %v1993, %v1997
      %v1999 = vshrl.u32 %v1870, 16
      %v2001 = vor.u32 %v1999, %v1997
      %v2003 = vshll.u32 %v1871, 16
      %v2005 = vrot.slane %v2003, 1
      %v2006 = vsel %vm1946, %v2001, %v2005
      %v2007 = vshrl.u32 %v1871, 16
      %v2009 = vor.u32 %v2007, %v2005
      %v2011 = vshll.u32 %v1872, 16
      %v2013 = vrot.slane %v2011, 1
      %v2014 = vsel %vm1946, %v2009, %v2013
      %v2015 = vshrl.u32 %v1872, 16
      %v2017 = vor.u32 %v2015, %v2013
      %v2019 = vshll.u32 %v1873, 16
      %v2021 = vrot.slane %v2019, 1
      %v2022 = vsel %vm1946, %v2017, %v2021
      %v2023 = vshrl.u32 %v1873, 16
      %v2025 = vor.u32 %v2023, %v2021
      %v2027 = vshll.u32 %v1874, 16
      %v2029 = vrot.slane %v2027, 1
      %v2030 = vsel %vm1946, %v2025, %v2029
      %v2031 = vshrl.u32 %v1874, 16
      %v2033 = vor.u32 %v2031, %v2029
      %v2035 = vshll.u32 %v1875, 16
      %v2037 = vrot.slane %v2035, 1
      %v2038 = vsel %vm1946, %v2033, %v2037
      %v2039 = vshrl.u32 %v1875, 16
      %v2041 = vor.u32 %v2039, %v2037
      %v2043 = vshll.u32 %v1876, 16
      %v2045 = vrot.slane %v2043, 1
      %v2046 = vsel %vm1946, %v2041, %v2045
      %v2047 = vshrl.u32 %v1876, 16
      %v2049 = vor.u32 %v2047, %v2045
      %v2051 = vshll.u32 %v1877, 16
      %v2053 = vrot.slane %v2051, 1
      %v2054 = vsel %vm1946, %v2049, %v2053
      %v2055 = vshrl.u32 %v1877, 16
      %v2057 = vor.u32 %v2055, %v2053
      %v2059 = vshll.u32 %v1878, 16
      %v2061 = vrot.slane %v2059, 1
      %v2062 = vsel %vm1946, %v2057, %v2061
      %v2063 = vshrl.u32 %v1878, 16
      %v2065 = vor.u32 %v2063, %v2061
      %v2067 = vshll.u32 %v1879, 16
      %v2069 = vrot.slane %v2067, 1
      %v2070 = vsel %vm1946, %v2065, %v2069
      %v2071 = vshrl.u32 %v1879, 16
      %v2073 = vor.u32 %v2071, %v2069
      %v2075 = vshll.u32 %v1887, 16
      %v2077 = vrot.slane %v2075, 1
      %v2078 = vsel %vm1946, %v2073, %v2077
      %v2079 = vshrl.u32 %v1887, 16
      %v2081 = vor.u32 %v2079, %v2077
      %v2083 = vshll.u32 %v1895, 16
      %v2085 = vrot.slane %v2083, 1
      %v2086 = vsel %vm1946, %v2081, %v2085
      %v2088 = vshll.u32 %v1880, 16
      %v2090 = vrot.slane %v2088, 1
      %v2091 = vsel %vm1946, %v2073, %v2090
      %v2093 = vshll.u32 %v1888, 16
      %v2095 = vrot.slane %v2093, 1
      %v2096 = vsel %vm1946, %v2081, %v2095
      %v2097 = vshrl.u32 %v1895, 16
      %v2099 = vor.u32 %v2097, %v2085
      %v2101 = vshll.u32 %v1896, 16
      %v2103 = vrot.slane %v2101, 1
      %v2104 = vsel %vm1946, %v2099, %v2103
      %v2173 = vunpack.c.l.b16 %v1898
      %v2174 = vunpack.c.h.b16 %v1898
      %v2175 = vunpack.c.l.b16 %v1899
      %v2176 = vunpack.c.h.b16 %v1899
      %v2177 = vunpack.c.l.b16 %v1900
      %v2178 = vunpack.c.h.b16 %v1900
      %v2179 = vunpack.c.l.b16 %v1901
      %v2180 = vunpack.c.h.b16 %v1901
      %v2181 = vunpack.c.l.b16 %v1902
      %v2182 = vunpack.c.h.b16 %v1902
      %v2183 = vunpack.c.l.b16 %v1903
      %v2184 = vunpack.c.h.b16 %v1903
      %v2185 = vunpack.c.l.b16 %v1904
      %v2186 = vunpack.c.h.b16 %v1904
      %v2187 = vunpack.c.l.b16 %v1905
      %v2188 = vunpack.c.h.b16 %v1905
      %v2189 = vunpack.c.l.b16 %v1906
      %v2190 = vunpack.c.h.b16 %v1906
      %v2191 = vunpack.c.l.b16 %v1907
      %v2192 = vunpack.c.h.b16 %v1907
      %v2193 = vunpack.c.l.b16 %v1908
      %v2194 = vunpack.c.h.b16 %v1908
      %v2195 = vunpack.c.l.b16 %v1909
      %v2196 = vunpack.c.h.b16 %v1909
      %v2197 = vunpack.c.l.b16 %v1910
      %v2198 = vunpack.c.h.b16 %v1910
      %v2199 = vunpack.c.l.b16 %v1911
      %v2200 = vunpack.c.h.b16 %v1911
      %v2201 = vunpack.c.l.b16 %v1912
      %v2202 = vunpack.c.h.b16 %v1912
      %v2203 = vunpack.c.l.b16 %v1913
      %v2204 = vunpack.c.h.b16 %v1913
      %v2205 = vunpack.c.l.b16 %v1914
      %v2206 = vunpack.c.h.b16 %v1914
      %v2207 = vunpack.c.l.b16 %v1915
      %v2208 = vunpack.c.h.b16 %v1915
      %v2209 = vunpack.c.l.b16 %v1916
      %v2210 = vunpack.c.h.b16 %v1916
      %v2211 = vunpack.c.l.b16 %v1917
      %v2212 = vunpack.c.h.b16 %v1917
      %v2213 = vunpack.c.l.b16 %v1918
      %v2214 = vunpack.c.h.b16 %v1918
      %v2215 = vunpack.c.l.b16 %v1919
      %v2216 = vunpack.c.h.b16 %v1919
      %v2217 = vunpack.c.l.b16 %v1920
      %v2218 = vunpack.c.h.b16 %v1920
      %v2219 = vunpack.c.l.b16 %v1921
      %v2220 = vunpack.c.h.b16 %v1921
      %v2221 = vunpack.c.l.b16 %v1922
      %v2222 = vunpack.c.h.b16 %v1922
      %v2223 = vunpack.c.l.b16 %v1923
      %v2224 = vunpack.c.h.b16 %v1923
      %v2225 = vunpack.c.l.b16 %v1924
      %v2226 = vunpack.c.h.b16 %v1924
      %v2227 = vunpack.c.l.b16 %v1925
      %v2228 = vunpack.c.h.b16 %v1925
      %v2229 = vunpack.c.l.b16 %v1926
      %v2230 = vunpack.c.h.b16 %v1926
      %v2231 = vunpack.c.l.b16 %v1927
      %v2232 = vunpack.c.h.b16 %v1927
      %v2233 = vunpack.c.l.b16 %v1928
      %v2234 = vunpack.c.h.b16 %v1928
      %v2235 = vunpack.c.l.b16 %v1929
      %v2236 = vunpack.c.h.b16 %v1929
      %v2237 = vunpack.c.l.b16 %v1930
      %v2238 = vunpack.c.h.b16 %v1930
      %v2239 = vunpack.c.l.b16 %v1931
      %v2240 = vunpack.c.h.b16 %v1931
      %v2241 = vunpack.c.l.b16 %v1932
      %v2242 = vunpack.c.h.b16 %v1932
      %v2243 = vunpack.c.l.b16 %v1933
      %v2244 = vunpack.c.h.b16 %v1933
      %v2245 = vunpack.c.l.b16 %v1934
      %v2246 = vunpack.c.h.b16 %v1934
      %v2247 = vunpack.c.l.b16 %v1935
      %v2248 = vunpack.c.h.b16 %v1935
      %v2249 = vunpack.c.l.b16 %v1936
      %v2250 = vunpack.c.h.b16 %v1936
      %v2251 = vunpack.c.l.b16 %v1937
      %v2252 = vunpack.c.h.b16 %v1937
      %v2253 = vunpack.c.l.b16 %v1938
      %v2254 = vunpack.c.h.b16 %v1938
      %v2255 = vunpack.c.l.b16 %v1939
      %v2256 = vunpack.c.h.b16 %v1939
      %v2257 = vunpack.c.l.b16 %v1940
      %v2258 = vunpack.c.h.b16 %v1940
      %v2259 = vunpack.c.l.b16 %v1941
      %v2260 = vunpack.c.h.b16 %v1941
      %v2261 = vunpack.c.l.b16 %v1942
      %v2262 = vunpack.c.h.b16 %v1942
      %v2263 = vunpack.c.l.b16 %v1943
      %v2264 = vunpack.c.h.b16 %v1943
      %v2265 = vunpack.c.l.b16 %v1944
      %v2266 = vunpack.c.h.b16 %v1944
      %v2267 = vunpack.c.l.b16 %v1945
      %v2268 = vunpack.c.h.b16 %v1945
      %v2269 = vpack.c.b16 %v2175, %v2173
      %v2270 = vpack.c.b16 %v2176, %v2174
      %v2271 = vpack.c.b16 %v2179, %v2177
      %v2272 = vpack.c.b16 %v2180, %v2178
      %v2273 = vpack.c.b16 %v2183, %v2181
      %v2274 = vpack.c.b16 %v2184, %v2182
      %v2275 = vpack.c.b16 %v2187, %v2185
      %v2276 = vpack.c.b16 %v2188, %v2186
      %v2277 = vpack.c.b16 %v2191, %v2189
      %v2278 = vpack.c.b16 %v2192, %v2190
      %v2279 = vpack.c.b16 %v2195, %v2193
      %v2280 = vpack.c.b16 %v2196, %v2194
      %v2281 = vpack.c.b16 %v2199, %v2197
      %v2282 = vpack.c.b16 %v2200, %v2198
      %v2283 = vpack.c.b16 %v2203, %v2201
      %v2284 = vpack.c.b16 %v2204, %v2202
      %v2285 = vpack.c.b16 %v2207, %v2205
      %v2286 = vpack.c.b16 %v2208, %v2206
      %v2287 = vpack.c.b16 %v2211, %v2209
      %v2288 = vpack.c.b16 %v2212, %v2210
      %v2289 = vpack.c.b16 %v2215, %v2213
      %v2290 = vpack.c.b16 %v2216, %v2214
      %v2291 = vpack.c.b16 %v2219, %v2217
      %v2292 = vpack.c.b16 %v2220, %v2218
      %v2293 = vpack.c.b16 %v2223, %v2221
      %v2294 = vpack.c.b16 %v2224, %v2222
      %v2295 = vpack.c.b16 %v2227, %v2225
      %v2296 = vpack.c.b16 %v2228, %v2226
      %v2297 = vpack.c.b16 %v2231, %v2229
      %v2298 = vpack.c.b16 %v2232, %v2230
      %v2299 = vpack.c.b16 %v2235, %v2233
      %v2300 = vpack.c.b16 %v2236, %v2234
      %v2301 = vpack.c.b16 %v2239, %v2237
      %v2302 = vpack.c.b16 %v2240, %v2238
      %v2303 = vpack.c.b16 %v2243, %v2241
      %v2304 = vpack.c.b16 %v2244, %v2242
      %v2305 = vpack.c.b16 %v2247, %v2245
      %v2306 = vpack.c.b16 %v2248, %v2246
      %v2307 = vpack.c.b16 %v2251, %v2249
      %v2308 = vpack.c.b16 %v2252, %v2250
      %v2309 = vpack.c.b16 %v2255, %v2253
      %v2310 = vpack.c.b16 %v2256, %v2254
      %v2311 = vpack.c.b16 %v2259, %v2257
      %v2312 = vpack.c.b16 %v2260, %v2258
      %v2313 = vpack.c.b16 %v2263, %v2261
      %v2314 = vpack.c.b16 %v2264, %v2262
      %v2315 = vpack.c.b16 %v2267, %v2265
      %v2316 = vpack.c.b16 %v2268, %v2266
      %2365 = vmatprep.subr.bf16.mxu0 %v2270
      %2366 = vmatpush1.bf16.msra.mxu0 %v2269
      %2367 = vmatprep.subr.bf16.mxu0 %v2272
      %2368 = vmatpush1.bf16.msra.mxu0 %v2271
      %2369 = vmatprep.subr.bf16.mxu0 %v2274
      %2370 = vmatpush1.bf16.msra.mxu0 %v2273
      %2371 = vmatprep.subr.bf16.mxu0 %v2276
      %2372 = vmatpush1.bf16.msra.mxu0 %v2275
      %2373 = vmatprep.subr.bf16.mxu0 %v2278
      %2374 = vmatpush1.bf16.msra.mxu0 %v2277
      %2375 = vmatprep.subr.bf16.mxu0 %v2280
      %2376 = vmatpush1.bf16.msra.mxu0 %v2279
      %2377 = vmatprep.subr.bf16.mxu0 %v2282
      %2378 = vmatpush1.bf16.msra.mxu0 %v2281
      %2379 = vmatprep.subr.bf16.mxu0 %v2284
      %2380 = vmatpush1.bf16.msra.mxu0 %v2283
      %2381 = vmatprep.subr.bf16.mxu0 %v2286
      %2382 = vmatpush1.bf16.msra.mxu0 %v2285
      %2383 = vmatprep.subr.bf16.mxu0 %v2288
      %2384 = vmatpush1.bf16.msra.mxu0 %v2287
      %2385 = vmatprep.subr.bf16.mxu0 %v2290
      %2386 = vmatpush1.bf16.msra.mxu0 %v2289
      %2387 = vmatprep.subr.bf16.mxu0 %v2292
      %2388 = vmatpush1.bf16.msra.mxu0 %v2291
      %2389 = vmatprep.subr.bf16.mxu0 %v2294
      %2390 = vmatpush1.bf16.msra.mxu0 %v2293
      %2391 = vmatprep.subr.bf16.mxu0 %v2296
      %2392 = vmatpush1.bf16.msra.mxu0 %v2295
      %2393 = vmatprep.subr.bf16.mxu0 %v2298
      %2394 = vmatpush1.bf16.msra.mxu0 %v2297
      %2395 = vmatprep.subr.bf16.mxu0 %v2300
      %2396 = vmatpush1.bf16.msra.mxu0 %v2299
      %2397 = vmatprep.mubr.bf16.mxu0 %v1966
      %2398 = vmatmul.mubr.bf16.gmra.mrb[0].mxu0 %v1958
      %v2399 = vpop.f32.mrb[0].mxu0
      %v2400 = vadd.f32 0.0, %v2399
      %v2401 = vpop.f32.mrb[0].mxu0
      %v2402 = vadd.f32 0.0, %v2401
      %v2403 = vpop.f32.mrb[0].mxu0
      %v2404 = vadd.f32 0.0, %v2403
      %v2405 = vpop.f32.mrb[0].mxu0
      %v2406 = vadd.f32 0.0, %v2405
      %2407 = vmatprep.mubr.bf16.mxu0 %v1974
      %2408 = vmatmul.mubr.bf16.gmra.mrb[0].mxu0 %v1966
      %v2409 = vpop.f32.mrb[0].mxu0
      %v2410 = vadd.f32 0.0, %v2409
      %v2411 = vpop.f32.mrb[0].mxu0
      %v2412 = vadd.f32 0.0, %v2411
      %v2413 = vpop.f32.mrb[0].mxu0
      %v2414 = vadd.f32 0.0, %v2413
      %v2415 = vpop.f32.mrb[0].mxu0
      %v2416 = vadd.f32 0.0, %v2415
      %2417 = vmatprep.mubr.bf16.mxu0 %v1982
      %2418 = vmatmul.mubr.bf16.gmra.mrb[0].mxu0 %v1974
      %v2419 = vpop.f32.mrb[0].mxu0
      %v2420 = vadd.f32 0.0, %v2419
      %v2421 = vpop.f32.mrb[0].mxu0
      %v2422 = vadd.f32 0.0, %v2421
      %v2423 = vpop.f32.mrb[0].mxu0
      %v2424 = vadd.f32 0.0, %v2423
      %v2425 = vpop.f32.mrb[0].mxu0
      %v2426 = vadd.f32 0.0, %v2425
      %2427 = vmatprep.mubr.bf16.mxu0 %v1990
      %2428 = vmatmul.mubr.bf16.gmra.mrb[0].mxu0 %v1982
      %v2429 = vpop.f32.mrb[0].mxu0
      %v2430 = vadd.f32 0.0, %v2429
      %v2431 = vpop.f32.mrb[0].mxu0
      %v2432 = vadd.f32 0.0, %v2431
      %v2433 = vpop.f32.mrb[0].mxu0
      %v2434 = vadd.f32 0.0, %v2433
      %v2435 = vpop.f32.mrb[0].mxu0
      %v2436 = vadd.f32 0.0, %v2435
      %2437 = vmatprep.mubr.bf16.mxu0 %v1998
      %2438 = vmatmul.mubr.bf16.gmra.mrb[0].mxu0 %v1990
      %v2439 = vpop.f32.mrb[0].mxu0
      %v2440 = vadd.f32 0.0, %v2439
      %v2441 = vpop.f32.mrb[0].mxu0
      %v2442 = vadd.f32 0.0, %v2441
      %v2443 = vpop.f32.mrb[0].mxu0
      %v2444 = vadd.f32 0.0, %v2443
      %v2445 = vpop.f32.mrb[0].mxu0
      %v2446 = vadd.f32 0.0, %v2445
      %2447 = vmatprep.mubr.bf16.mxu0 %v2006
      %2448 = vmatmul.mubr.bf16.gmra.mrb[0].mxu0 %v1998
      %v2449 = vpop.f32.mrb[0].mxu0
      %v2450 = vadd.f32 0.0, %v2449
      %v2451 = vpop.f32.mrb[0].mxu0
      %v2452 = vadd.f32 0.0, %v2451
      %v2453 = vpop.f32.mrb[0].mxu0
      %v2454 = vadd.f32 0.0, %v2453
      %v2455 = vpop.f32.mrb[0].mxu0
      %v2456 = vadd.f32 0.0, %v2455
      %2457 = vmatprep.mubr.bf16.mxu0 %v2014
      %2458 = vmatmul.mubr.bf16.gmra.mrb[0].mxu0 %v2006
      %v2459 = vpop.f32.mrb[0].mxu0
      %v2460 = vadd.f32 0.0, %v2459
      %v2461 = vpop.f32.mrb[0].mxu0
      %v2462 = vadd.f32 0.0, %v2461
      %v2463 = vpop.f32.mrb[0].mxu0
      %v2464 = vadd.f32 0.0, %v2463
      %v2465 = vpop.f32.mrb[0].mxu0
      %v2466 = vadd.f32 0.0, %v2465
      %2467 = vmatprep.mubr.bf16.mxu0 %v2022
      %2468 = vmatmul.mubr.bf16.gmra.mrb[0].mxu0 %v2014
      %v2469 = vpop.f32.mrb[0].mxu0
      %v2470 = vadd.f32 0.0, %v2469
      %v2471 = vpop.f32.mrb[0].mxu0
      %v2472 = vadd.f32 0.0, %v2471
      %v2473 = vpop.f32.mrb[0].mxu0
      %v2474 = vadd.f32 0.0, %v2473
      %v2475 = vpop.f32.mrb[0].mxu0
      %v2476 = vadd.f32 0.0, %v2475
      %2477 = vmatprep.mubr.bf16.mxu0 %v2030
      %2478 = vmatmul.mubr.bf16.gmra.mrb[0].mxu0 %v2022
      %v2479 = vpop.f32.mrb[0].mxu0
      %v2480 = vadd.f32 0.0, %v2479
      %v2481 = vpop.f32.mrb[0].mxu0
      %v2482 = vadd.f32 0.0, %v2481
      %v2483 = vpop.f32.mrb[0].mxu0
      %v2484 = vadd.f32 0.0, %v2483
      %v2485 = vpop.f32.mrb[0].mxu0
      %v2486 = vadd.f32 0.0, %v2485
      %2487 = vmatprep.mubr.bf16.mxu0 %v2038
      %2488 = vmatmul.mubr.bf16.gmra.mrb[0].mxu0 %v2030
      %v2489 = vpop.f32.mrb[0].mxu0
      %v2490 = vadd.f32 0.0, %v2489
      %v2491 = vpop.f32.mrb[0].mxu0
      %v2492 = vadd.f32 0.0, %v2491
      %v2493 = vpop.f32.mrb[0].mxu0
      %v2494 = vadd.f32 0.0, %v2493
      %v2495 = vpop.f32.mrb[0].mxu0
      %v2496 = vadd.f32 0.0, %v2495
      %2497 = vmatprep.mubr.bf16.mxu0 %v2046
      %2498 = vmatmul.mubr.bf16.gmra.mrb[0].mxu0 %v2038
      %v2499 = vpop.f32.mrb[0].mxu0
      %v2500 = vadd.f32 0.0, %v2499
      %v2501 = vpop.f32.mrb[0].mxu0
      %v2502 = vadd.f32 0.0, %v2501
      %v2503 = vpop.f32.mrb[0].mxu0
      %v2504 = vadd.f32 0.0, %v2503
      %v2505 = vpop.f32.mrb[0].mxu0
      %v2506 = vadd.f32 0.0, %v2505
      %2507 = vmatprep.mubr.bf16.mxu0 %v2054
      %2508 = vmatmul.mubr.bf16.gmra.mrb[0].mxu0 %v2046
      %v2509 = vpop.f32.mrb[0].mxu0
      %v2510 = vadd.f32 0.0, %v2509
      %v2511 = vpop.f32.mrb[0].mxu0
      %v2512 = vadd.f32 0.0, %v2511
      %v2513 = vpop.f32.mrb[0].mxu0
      %v2514 = vadd.f32 0.0, %v2513
      %v2515 = vpop.f32.mrb[0].mxu0
      %v2516 = vadd.f32 0.0, %v2515
      %2517 = vmatprep.mubr.bf16.mxu0 %v2062
      %2518 = vmatmul.mubr.bf16.gmra.mrb[0].mxu0 %v2054
      %v2519 = vpop.f32.mrb[0].mxu0
      %v2520 = vadd.f32 0.0, %v2519
      %v2521 = vpop.f32.mrb[0].mxu0
      %v2522 = vadd.f32 0.0, %v2521
      %v2523 = vpop.f32.mrb[0].mxu0
      %v2524 = vadd.f32 0.0, %v2523
      %v2525 = vpop.f32.mrb[0].mxu0
      %v2526 = vadd.f32 0.0, %v2525
      %2527 = vmatprep.mubr.bf16.mxu0 %v2070
      %2528 = vmatmul.mubr.bf16.gmra.mrb[0].mxu0 %v2062
      %v2529 = vpop.f32.mrb[0].mxu0
      %v2530 = vadd.f32 0.0, %v2529
      %v2531 = vpop.f32.mrb[0].mxu0
      %v2532 = vadd.f32 0.0, %v2531
      %v2533 = vpop.f32.mrb[0].mxu0
      %v2534 = vadd.f32 0.0, %v2533
      %v2535 = vpop.f32.mrb[0].mxu0
      %v2536 = vadd.f32 0.0, %v2535
      %2537 = vmatprep.mubr.bf16.mxu0 %v2078
      %2538 = vmatmul.mubr.bf16.gmra.mrb[0].mxu0 %v2070
      %v2539 = vpop.f32.mrb[0].mxu0
      %v2540 = vadd.f32 0.0, %v2539
      %v2541 = vpop.f32.mrb[0].mxu0
      %v2542 = vadd.f32 0.0, %v2541
      %v2543 = vpop.f32.mrb[0].mxu0
      %v2544 = vadd.f32 0.0, %v2543
      %v2545 = vpop.f32.mrb[0].mxu0
      %v2546 = vadd.f32 0.0, %v2545
      %2547 = vmatprep.mubr.bf16.mxu0 %v2096
      %2548 = vmatmul.mubr.bf16.gmra.mrb[0].mxu0 %v2091
      %v2549 = vpop.f32.mrb[0].mxu0
      %v2550 = vadd.f32 0.0, %v2549
      %v2551 = vpop.f32.mrb[0].mxu0
      %v2552 = vadd.f32 0.0, %v2551
      %v2553 = vpop.f32.mrb[0].mxu0
      %v2554 = vadd.f32 0.0, %v2553
      %v2555 = vpop.f32.mrb[0].mxu0
      %v2556 = vadd.f32 0.0, %v2555
      %2557 = vdwg.mxu0
      %2558 = vmatprep.subr.bf16.mxu0 %v2302
      %2559 = vmatpush1.bf16.msra.mxu0 %v2301
      %2560 = vmatprep.subr.bf16.mxu0 %v2304
      %2561 = vmatpush1.bf16.msra.mxu0 %v2303
      %2562 = vmatprep.subr.bf16.mxu0 %v2306
      %2563 = vmatpush1.bf16.msra.mxu0 %v2305
      %2564 = vmatprep.subr.bf16.mxu0 %v2308
      %2565 = vmatpush1.bf16.msra.mxu0 %v2307
      %2566 = vmatprep.subr.bf16.mxu0 %v2310
      %2567 = vmatpush1.bf16.msra.mxu0 %v2309
      %2568 = vmatprep.subr.bf16.mxu0 %v2312
      %2569 = vmatpush1.bf16.msra.mxu0 %v2311
      %2570 = vmatprep.subr.bf16.mxu0 %v2314
      %2571 = vmatpush1.bf16.msra.mxu0 %v2313
      %2572 = vmatprep.subr.bf16.mxu0 %v2316
      %2573 = vmatpush1.bf16.msra.mxu0 %v2315
      %2574 = vmatprep.subr.bf16.mxu0 0
      %2575 = vmatpush1.bf16.msra.mxu0 0
      %2576 = vmatprep.subr.bf16.mxu0 0
      %2577 = vmatpush1.bf16.msra.mxu0 0
      %2578 = vmatprep.subr.bf16.mxu0 0
      %2579 = vmatpush1.bf16.msra.mxu0 0
      %2580 = vmatprep.subr.bf16.mxu0 0
      %2581 = vmatpush1.bf16.msra.mxu0 0
      %2582 = vmatprep.subr.bf16.mxu0 0
      %2583 = vmatpush1.bf16.msra.mxu0 0
      %2584 = vmatprep.subr.bf16.mxu0 0
      %2585 = vmatpush1.bf16.msra.mxu0 0
      %2586 = vmatprep.subr.bf16.mxu0 0
      %2587 = vmatpush1.bf16.msra.mxu0 0
      %2588 = vmatprep.subr.bf16.mxu0 0
      %2589 = vmatpush1.bf16.msra.mxu0 0
      %2590 = vmatprep.mubr.bf16.mxu0 0
      %2591 = vmatmul.mubr.bf16.gmra.mrb[0].mxu0 %v1974
      %v2592 = vpop.f32.mrb[0].mxu0
      %v2593 = vadd.f32 %v2400, %v2592
      %v2594 = vpop.f32.mrb[0].mxu0
      %v2595 = vadd.f32 %v2402, %v2594
      %v2596 = vpop.f32.mrb[0].mxu0
      %v2597 = vadd.f32 %v2404, %v2596
      %v2598 = vpop.f32.mrb[0].mxu0
      %v2599 = vadd.f32 %v2406, %v2598
      %2600 = vmatprep.mubr.bf16.mxu0 0
      %2601 = vmatmul.mubr.bf16.gmra.mrb[0].mxu0 %v1982
      %v2602 = vpop.f32.mrb[0].mxu0
      %v2603 = vadd.f32 %v2410, %v2602
      %v2604 = vpop.f32.mrb[0].mxu0
      %v2605 = vadd.f32 %v2412, %v2604
      %v2606 = vpop.f32.mrb[0].mxu0
      %v2607 = vadd.f32 %v2414, %v2606
      %v2608 = vpop.f32.mrb[0].mxu0
      %v2609 = vadd.f32 %v2416, %v2608
      %2610 = vmatprep.mubr.bf16.mxu0 0
      %2611 = vmatmul.mubr.bf16.gmra.mrb[0].mxu0 %v1990
      %v2612 = vpop.f32.mrb[0].mxu0
      %v2613 = vadd.f32 %v2420, %v2612
      %v2614 = vpop.f32.mrb[0].mxu0
      %v2615 = vadd.f32 %v2422, %v2614
      %v2616 = vpop.f32.mrb[0].mxu0
      %v2617 = vadd.f32 %v2424, %v2616
      %v2618 = vpop.f32.mrb[0].mxu0
      %v2619 = vadd.f32 %v2426, %v2618
      %2620 = vmatprep.mubr.bf16.mxu0 0
      %2621 = vmatmul.mubr.bf16.gmra.mrb[0].mxu0 %v1998
      %v2622 = vpop.f32.mrb[0].mxu0
      %v2623 = vadd.f32 %v2430, %v2622
      %v2624 = vpop.f32.mrb[0].mxu0
      %v2625 = vadd.f32 %v2432, %v2624
      %v2626 = vpop.f32.mrb[0].mxu0
      %v2627 = vadd.f32 %v2434, %v2626
      %v2628 = vpop.f32.mrb[0].mxu0
      %v2629 = vadd.f32 %v2436, %v2628
      %2630 = vmatprep.mubr.bf16.mxu0 0
      %2631 = vmatmul.mubr.bf16.gmra.mrb[0].mxu0 %v2006
      %v2632 = vpop.f32.mrb[0].mxu0
      %v2633 = vadd.f32 %v2440, %v2632
      %v2634 = vpop.f32.mrb[0].mxu0
      %v2635 = vadd.f32 %v2442, %v2634
      %v2636 = vpop.f32.mrb[0].mxu0
      %v2637 = vadd.f32 %v2444, %v2636
      %v2638 = vpop.f32.mrb[0].mxu0
      %v2639 = vadd.f32 %v2446, %v2638
      %2640 = vmatprep.mubr.bf16.mxu0 0
      %2641 = vmatmul.mubr.bf16.gmra.mrb[0].mxu0 %v2014
      %v2642 = vpop.f32.mrb[0].mxu0
      %v2643 = vadd.f32 %v2450, %v2642
      %v2644 = vpop.f32.mrb[0].mxu0
      %v2645 = vadd.f32 %v2452, %v2644
      %v2646 = vpop.f32.mrb[0].mxu0
      %v2647 = vadd.f32 %v2454, %v2646
      %v2648 = vpop.f32.mrb[0].mxu0
      %v2649 = vadd.f32 %v2456, %v2648
      %2650 = vmatprep.mubr.bf16.mxu0 0
      %2651 = vmatmul.mubr.bf16.gmra.mrb[0].mxu0 %v2022
      %v2652 = vpop.f32.mrb[0].mxu0
      %v2653 = vadd.f32 %v2460, %v2652
      %v2654 = vpop.f32.mrb[0].mxu0
      %v2655 = vadd.f32 %v2462, %v2654
      %v2656 = vpop.f32.mrb[0].mxu0
      %v2657 = vadd.f32 %v2464, %v2656
      %v2658 = vpop.f32.mrb[0].mxu0
      %v2659 = vadd.f32 %v2466, %v2658
      %2660 = vmatprep.mubr.bf16.mxu0 0
      %2661 = vmatmul.mubr.bf16.gmra.mrb[0].mxu0 %v2030
      %v2662 = vpop.f32.mrb[0].mxu0
      %v2663 = vadd.f32 %v2470, %v2662
      %v2664 = vpop.f32.mrb[0].mxu0
      %v2665 = vadd.f32 %v2472, %v2664
      %v2666 = vpop.f32.mrb[0].mxu0
      %v2667 = vadd.f32 %v2474, %v2666
      %v2668 = vpop.f32.mrb[0].mxu0
      %v2669 = vadd.f32 %v2476, %v2668
      %2670 = vmatprep.mubr.bf16.mxu0 0
      %2671 = vmatmul.mubr.bf16.gmra.mrb[0].mxu0 %v2038
      %v2672 = vpop.f32.mrb[0].mxu0
      %v2673 = vadd.f32 %v2480, %v2672
      %v2674 = vpop.f32.mrb[0].mxu0
      %v2675 = vadd.f32 %v2482, %v2674
      %v2676 = vpop.f32.mrb[0].mxu0
      %v2677 = vadd.f32 %v2484, %v2676
      %v2678 = vpop.f32.mrb[0].mxu0
      %v2679 = vadd.f32 %v2486, %v2678
      %2680 = vmatprep.mubr.bf16.mxu0 0
      %2681 = vmatmul.mubr.bf16.gmra.mrb[0].mxu0 %v2046
      %v2682 = vpop.f32.mrb[0].mxu0
      %v2683 = vadd.f32 %v2490, %v2682
      %v2684 = vpop.f32.mrb[0].mxu0
      %v2685 = vadd.f32 %v2492, %v2684
      %v2686 = vpop.f32.mrb[0].mxu0
      %v2687 = vadd.f32 %v2494, %v2686
      %v2688 = vpop.f32.mrb[0].mxu0
      %v2689 = vadd.f32 %v2496, %v2688
      %2690 = vmatprep.mubr.bf16.mxu0 0
      %2691 = vmatmul.mubr.bf16.gmra.mrb[0].mxu0 %v2054
      %v2692 = vpop.f32.mrb[0].mxu0
      %v2693 = vadd.f32 %v2500, %v2692
      %v2694 = vpop.f32.mrb[0].mxu0
      %v2695 = vadd.f32 %v2502, %v2694
      %v2696 = vpop.f32.mrb[0].mxu0
      %v2697 = vadd.f32 %v2504, %v2696
      %v2698 = vpop.f32.mrb[0].mxu0
      %v2699 = vadd.f32 %v2506, %v2698
      %2700 = vmatprep.mubr.bf16.mxu0 0
      %2701 = vmatmul.mubr.bf16.gmra.mrb[0].mxu0 %v2062
      %v2702 = vpop.f32.mrb[0].mxu0
      %v2703 = vadd.f32 %v2510, %v2702
      %v2704 = vpop.f32.mrb[0].mxu0
      %v2705 = vadd.f32 %v2512, %v2704
      %v2706 = vpop.f32.mrb[0].mxu0
      %v2707 = vadd.f32 %v2514, %v2706
      %v2708 = vpop.f32.mrb[0].mxu0
      %v2709 = vadd.f32 %v2516, %v2708
      %2710 = vmatprep.mubr.bf16.mxu0 0
      %2711 = vmatmul.mubr.bf16.gmra.mrb[0].mxu0 %v2070
      %v2712 = vpop.f32.mrb[0].mxu0
      %v2713 = vadd.f32 %v2520, %v2712
      %v2714 = vpop.f32.mrb[0].mxu0
      %v2715 = vadd.f32 %v2522, %v2714
      %v2716 = vpop.f32.mrb[0].mxu0
      %v2717 = vadd.f32 %v2524, %v2716
      %v2718 = vpop.f32.mrb[0].mxu0
      %v2719 = vadd.f32 %v2526, %v2718
      %2720 = vmatprep.mubr.bf16.mxu0 0
      %2721 = vmatmul.mubr.bf16.gmra.mrb[0].mxu0 %v2078
      %v2722 = vpop.f32.mrb[0].mxu0
      %v2723 = vadd.f32 %v2530, %v2722
      %v2724 = vpop.f32.mrb[0].mxu0
      %v2725 = vadd.f32 %v2532, %v2724
      %v2726 = vpop.f32.mrb[0].mxu0
      %v2727 = vadd.f32 %v2534, %v2726
      %v2728 = vpop.f32.mrb[0].mxu0
      %v2729 = vadd.f32 %v2536, %v2728
      %2730 = vmatprep.mubr.bf16.mxu0 0
      %2731 = vmatmul.mubr.bf16.gmra.mrb[0].mxu0 %v2086
      %v2732 = vpop.f32.mrb[0].mxu0
      %v2733 = vadd.f32 %v2540, %v2732
      %v2734 = vpop.f32.mrb[0].mxu0
      %v2735 = vadd.f32 %v2542, %v2734
      %v2736 = vpop.f32.mrb[0].mxu0
      %v2737 = vadd.f32 %v2544, %v2736
      %v2738 = vpop.f32.mrb[0].mxu0
      %v2739 = vadd.f32 %v2546, %v2738
      %2740 = vmatprep.mubr.bf16.mxu0 0
      %2741 = vmatmul.mubr.bf16.gmra.mrb[0].mxu0 %v2104
      %v2742 = vpop.f32.mrb[0].mxu0
      %v2743 = vadd.f32 %v2550, %v2742
      %v2744 = vpop.f32.mrb[0].mxu0
      %v2745 = vadd.f32 %v2552, %v2744
      %v2746 = vpop.f32.mrb[0].mxu0
      %v2747 = vadd.f32 %v2554, %v2746
      %v2748 = vpop.f32.mrb[0].mxu0
      %v2749 = vadd.f32 %v2556, %v2748
      %2750 = vdwg.mxu0
      %v2751 = vadd.f32 %v1695, %v2593
      %v2752 = vadd.f32 %v1696, %v2595
      %v2753 = vadd.f32 %v1697, %v2597
      %v2754 = vadd.f32 %v1698, %v2599
      %v2755 = vadd.f32 %v1699, %v2603
      %v2756 = vadd.f32 %v1700, %v2605
      %v2757 = vadd.f32 %v1701, %v2607
      %v2758 = vadd.f32 %v1702, %v2609
      %v2759 = vadd.f32 %v1703, %v2613
      %v2760 = vadd.f32 %v1704, %v2615
      %v2761 = vadd.f32 %v1705, %v2617
      %v2762 = vadd.f32 %v1706, %v2619
      %v2763 = vadd.f32 %v1707, %v2623
      %v2764 = vadd.f32 %v1708, %v2625
      %v2765 = vadd.f32 %v1709, %v2627
      %v2766 = vadd.f32 %v1710, %v2629
      %v2767 = vadd.f32 %v1711, %v2633
      %v2768 = vadd.f32 %v1712, %v2635
      %v2769 = vadd.f32 %v1713, %v2637
      %v2770 = vadd.f32 %v1714, %v2639
      %v2771 = vadd.f32 %v1715, %v2643
      %v2772 = vadd.f32 %v1716, %v2645
      %v2773 = vadd.f32 %v1717, %v2647
      %v2774 = vadd.f32 %v1718, %v2649
      %v2775 = vadd.f32 %v1719, %v2653
      %v2776 = vadd.f32 %v1720, %v2655
      %v2777 = vadd.f32 %v1721, %v2657
      %v2778 = vadd.f32 %v1722, %v2659
      %v2779 = vadd.f32 %v1723, %v2663
      %v2780 = vadd.f32 %v1724, %v2665
      %v2781 = vadd.f32 %v1725, %v2667
      %v2782 = vadd.f32 %v1726, %v2669
      %v2783 = vadd.f32 %v1727, %v2673
      %v2784 = vadd.f32 %v1728, %v2675
      %v2785 = vadd.f32 %v1729, %v2677
      %v2786 = vadd.f32 %v1730, %v2679
      %v2787 = vadd.f32 %v1731, %v2683
      %v2788 = vadd.f32 %v1732, %v2685
      %v2789 = vadd.f32 %v1733, %v2687
      %v2790 = vadd.f32 %v1734, %v2689
      %v2791 = vadd.f32 %v1735, %v2693
      %v2792 = vadd.f32 %v1736, %v2695
      %v2793 = vadd.f32 %v1737, %v2697
      %v2794 = vadd.f32 %v1738, %v2699
      %v2795 = vadd.f32 %v1739, %v2703
      %v2796 = vadd.f32 %v1740, %v2705
      %v2797 = vadd.f32 %v1741, %v2707
      %v2798 = vadd.f32 %v1742, %v2709
      %v2799 = vadd.f32 %v1743, %v2713
      %v2800 = vadd.f32 %v1744, %v2715
      %v2801 = vadd.f32 %v1745, %v2717
      %v2802 = vadd.f32 %v1746, %v2719
      %v2803 = vadd.f32 %v1747, %v2723
      %v2804 = vadd.f32 %v1748, %v2725
      %v2805 = vadd.f32 %v1749, %v2727
      %v2806 = vadd.f32 %v1750, %v2729
      %v2807 = vadd.f32 %v1751, %v2733
      %v2808 = vadd.f32 %v1752, %v2735
      %v2809 = vadd.f32 %v1753, %v2737
      %v2810 = vadd.f32 %v1754, %v2739
      %v2811 = vadd.f32 %v1755, %v2743
      %v2812 = vadd.f32 %v1756, %v2745
      %v2813 = vadd.f32 %v1757, %v2747
      %v2814 = vadd.f32 %v1758, %v2749
      %v2815 = vld [vmem:[%s241] sm:$0xe]
      %v2816 = vld [vmem:[%s241 + $0x8] sm:$0xe]
      %v2817 = vld [vmem:[%s241 + $0x10] sm:$0xe]
      %v2819 = vunpack.c.l.b16 %v2815
      %v2820 = vpack.c.b16 %v1832, %v2819
      %v2822 = vunpack.c.l.b16 %v2816
      %v2823 = vpack.c.b16 %v1834, %v2822
      %v2825 = vunpack.c.l.b16 %v2817
      %v2826 = vpack.c.b16 %v1836, %v2825
      %s2827 = scalar_lea.vmem %s250, 768
      %v2828 = vld [vmem:[%s2827] sm:$0xff]
      %v2829 = vld [vmem:[%s2827 + $0x8] sm:$0xff]
      %v2830 = vld [vmem:[%s2827 + $0x10] sm:$0xff]
      %v2831 = vld [vmem:[%s2827 + $0x18] sm:$0xff]
      %v2832 = vld [vmem:[%s2827 + $0x20] sm:$0xff]
      %v2833 = vld [vmem:[%s2827 + $0x28] sm:$0xff]
      %v2834 = vld [vmem:[%s2827 + $0x30] sm:$0xff]
      %v2835 = vld [vmem:[%s2827 + $0x38] sm:$0xff]
      %v2836 = vld [vmem:[%s2827 + $0x40] sm:$0xff]
      %v2837 = vld [vmem:[%s2827 + $0x48] sm:$0xff]
      %v2838 = vld [vmem:[%s2827 + $0x50] sm:$0xff]
      %v2839 = vld [vmem:[%s2827 + $0x58] sm:$0xff]
      %v2840 = vld [vmem:[%s2827 + $0x60] sm:$0xff]
      %v2841 = vld [vmem:[%s2827 + $0x68] sm:$0xff]
      %v2842 = vld [vmem:[%s2827 + $0x70] sm:$0xff]
      %v2843 = vld [vmem:[%s2827 + $0x78] sm:$0xff]
      %v2844 = vld [vmem:[%s2827 + $0x80] sm:$0xff]
      %v2845 = vld [vmem:[%s2827 + $0x88] sm:$0xff]
      %v2846 = vld [vmem:[%s2827 + $0x90] sm:$0xff]
      %v2847 = vld [vmem:[%s2827 + $0x98] sm:$0xff]
      %v2848 = vld [vmem:[%s2827 + $0xa0] sm:$0xff]
      %v2849 = vld [vmem:[%s2827 + $0xa8] sm:$0xff]
      %v2850 = vld [vmem:[%s2827 + $0xb0] sm:$0xff]
      %v2851 = vld [vmem:[%s2827 + $0xb8] sm:$0xff]
      %v2852 = vld [vmem:[%s2827 + $0xc0] sm:$0xff]
      %v2853 = vld [vmem:[%s2827 + $0xc8] sm:$0xff]
      %v2854 = vld [vmem:[%s2827 + $0xd0] sm:$0xff]
      %v2855 = vld [vmem:[%s2827 + $0xd8] sm:$0xff]
      %v2856 = vld [vmem:[%s2827 + $0xe0] sm:$0xff]
      %v2857 = vld [vmem:[%s2827 + $0xe8] sm:$0xff]
      %v2858 = vld [vmem:[%s2827 + $0xf0] sm:$0xff]
      %v2859 = vld [vmem:[%s2827 + $0xf8] sm:$0xff]
      %v2860 = vld [vmem:[%s2827 + $0x100] sm:$0xff]
      %v2861 = vld [vmem:[%s2827 + $0x108] sm:$0xff]
      %v2862 = vld [vmem:[%s2827 + $0x110] sm:$0xff]
      %v2863 = vld [vmem:[%s2827 + $0x118] sm:$0xff]
      %v2864 = vld [vmem:[%s2827 + $0x120] sm:$0xff]
      %v2865 = vld [vmem:[%s2827 + $0x128] sm:$0xff]
      %v2866 = vld [vmem:[%s2827 + $0x130] sm:$0xff]
      %v2867 = vld [vmem:[%s2827 + $0x138] sm:$0xff]
      %v2868 = vld [vmem:[%s2827 + $0x140] sm:$0xff]
      %v2869 = vld [vmem:[%s2827 + $0x148] sm:$0xff]
      %v2870 = vld [vmem:[%s2827 + $0x150] sm:$0xff]
      %v2871 = vld [vmem:[%s2827 + $0x158] sm:$0xff]
      %v2872 = vld [vmem:[%s2827 + $0x160] sm:$0xff]
      %v2873 = vld [vmem:[%s2827 + $0x168] sm:$0xff]
      %v2874 = vld [vmem:[%s2827 + $0x170] sm:$0xff]
      %v2875 = vld [vmem:[%s2827 + $0x178] sm:$0xff]
      %vm2876 = vcmask 1046528
      %v2877 = vrot.slane %v2820, 1
      %v2878 = vrot.slane %v1865, 1
      %v2879 = vsel %vm2876, %v2877, %v2878
      %v2880 = vrot.slane %v2823, 1
      %v2881 = vrot.slane %v1866, 1
      %v2882 = vsel %vm2876, %v2880, %v2881
      %v2883 = vrot.slane %v2826, 1
      %v2884 = vrot.slane %v1867, 1
      %v2885 = vsel %vm2876, %v2883, %v2884
      %v2886 = vsel %vm2876, %v2878, %v2881
      %v2887 = vsel %vm2876, %v2881, %v2884
      %v2888 = vrot.slane %v1868, 1
      %v2889 = vsel %vm2876, %v2884, %v2888
      %v2890 = vrot.slane %v1869, 1
      %v2891 = vsel %vm2876, %v2888, %v2890
      %v2892 = vrot.slane %v1870, 1
      %v2893 = vsel %vm2876, %v2890, %v2892
      %v2894 = vrot.slane %v1871, 1
      %v2895 = vsel %vm2876, %v2892, %v2894
      %v2896 = vrot.slane %v1872, 1
      %v2897 = vsel %vm2876, %v2894, %v2896
      %v2898 = vrot.slane %v1873, 1
      %v2899 = vsel %vm2876, %v2896, %v2898
      %v2900 = vrot.slane %v1874, 1
      %v2901 = vsel %vm2876, %v2898, %v2900
      %v2902 = vrot.slane %v1875, 1
      %v2903 = vsel %vm2876, %v2900, %v2902
      %v2904 = vrot.slane %v1876, 1
      %v2905 = vsel %vm2876, %v2902, %v2904
      %v2906 = vrot.slane %v1877, 1
      %v2907 = vsel %vm2876, %v2904, %v2906
      %v2908 = vrot.slane %v1878, 1
      %v2909 = vsel %vm2876, %v2906, %v2908
      %v2910 = vrot.slane %v1879, 1
      %v2911 = vsel %vm2876, %v2908, %v2910
      %v2912 = vrot.slane %v1887, 1
      %v2913 = vsel %vm2876, %v2910, %v2912
      %v2914 = vrot.slane %v1895, 1
      %v2915 = vsel %vm2876, %v2912, %v2914
      %v2916 = vrot.slane %v1880, 1
      %v2917 = vsel %vm2876, %v2910, %v2916
      %v2918 = vrot.slane %v1888, 1
      %v2919 = vsel %vm2876, %v2912, %v2918
      %v2920 = vrot.slane %v1896, 1
      %v2921 = vsel %vm2876, %v2914, %v2920
      %v2992 = vunpack.c.l.b16 %v2828
      %v2993 = vunpack.c.h.b16 %v2828
      %v2994 = vunpack.c.l.b16 %v2829
      %v2995 = vunpack.c.h.b16 %v2829
      %v2996 = vunpack.c.l.b16 %v2830
      %v2997 = vunpack.c.h.b16 %v2830
      %v2998 = vunpack.c.l.b16 %v2831
      %v2999 = vunpack.c.h.b16 %v2831
      %v3000 = vunpack.c.l.b16 %v2832
      %v3001 = vunpack.c.h.b16 %v2832
      %v3002 = vunpack.c.l.b16 %v2833
      %v3003 = vunpack.c.h.b16 %v2833
      %v3004 = vunpack.c.l.b16 %v2834
      %v3005 = vunpack.c.h.b16 %v2834
      %v3006 = vunpack.c.l.b16 %v2835
      %v3007 = vunpack.c.h.b16 %v2835
      %v3008 = vunpack.c.l.b16 %v2836
      %v3009 = vunpack.c.h.b16 %v2836
      %v3010 = vunpack.c.l.b16 %v2837
      %v3011 = vunpack.c.h.b16 %v2837
      %v3012 = vunpack.c.l.b16 %v2838
      %v3013 = vunpack.c.h.b16 %v2838
      %v3014 = vunpack.c.l.b16 %v2839
      %v3015 = vunpack.c.h.b16 %v2839
      %v3016 = vunpack.c.l.b16 %v2840
      %v3017 = vunpack.c.h.b16 %v2840
      %v3018 = vunpack.c.l.b16 %v2841
      %v3019 = vunpack.c.h.b16 %v2841
      %v3020 = vunpack.c.l.b16 %v2842
      %v3021 = vunpack.c.h.b16 %v2842
      %v3022 = vunpack.c.l.b16 %v2843
      %v3023 = vunpack.c.h.b16 %v2843
      %v3024 = vunpack.c.l.b16 %v2844
      %v3025 = vunpack.c.h.b16 %v2844
      %v3026 = vunpack.c.l.b16 %v2845
      %v3027 = vunpack.c.h.b16 %v2845
      %v3028 = vunpack.c.l.b16 %v2846
      %v3029 = vunpack.c.h.b16 %v2846
      %v3030 = vunpack.c.l.b16 %v2847
      %v3031 = vunpack.c.h.b16 %v2847
      %v3032 = vunpack.c.l.b16 %v2848
      %v3033 = vunpack.c.h.b16 %v2848
      %v3034 = vunpack.c.l.b16 %v2849
      %v3035 = vunpack.c.h.b16 %v2849
      %v3036 = vunpack.c.l.b16 %v2850
      %v3037 = vunpack.c.h.b16 %v2850
      %v3038 = vunpack.c.l.b16 %v2851
      %v3039 = vunpack.c.h.b16 %v2851
      %v3040 = vunpack.c.l.b16 %v2852
      %v3041 = vunpack.c.h.b16 %v2852
      %v3042 = vunpack.c.l.b16 %v2853
      %v3043 = vunpack.c.h.b16 %v2853
      %v3044 = vunpack.c.l.b16 %v2854
      %v3045 = vunpack.c.h.b16 %v2854
      %v3046 = vunpack.c.l.b16 %v2855
      %v3047 = vunpack.c.h.b16 %v2855
      %v3048 = vunpack.c.l.b16 %v2856
      %v3049 = vunpack.c.h.b16 %v2856
      %v3050 = vunpack.c.l.b16 %v2857
      %v3051 = vunpack.c.h.b16 %v2857
      %v3052 = vunpack.c.l.b16 %v2858
      %v3053 = vunpack.c.h.b16 %v2858
      %v3054 = vunpack.c.l.b16 %v2859
      %v3055 = vunpack.c.h.b16 %v2859
      %v3056 = vunpack.c.l.b16 %v2860
      %v3057 = vunpack.c.h.b16 %v2860
      %v3058 = vunpack.c.l.b16 %v2861
      %v3059 = vunpack.c.h.b16 %v2861
      %v3060 = vunpack.c.l.b16 %v2862
      %v3061 = vunpack.c.h.b16 %v2862
      %v3062 = vunpack.c.l.b16 %v2863
      %v3063 = vunpack.c.h.b16 %v2863
      %v3064 = vunpack.c.l.b16 %v2864
      %v3065 = vunpack.c.h.b16 %v2864
      %v3066 = vunpack.c.l.b16 %v2865
      %v3067 = vunpack.c.h.b16 %v2865
      %v3068 = vunpack.c.l.b16 %v2866
      %v3069 = vunpack.c.h.b16 %v2866
      %v3070 = vunpack.c.l.b16 %v2867
      %v3071 = vunpack.c.h.b16 %v2867
      %v3072 = vunpack.c.l.b16 %v2868
      %v3073 = vunpack.c.h.b16 %v2868
      %v3074 = vunpack.c.l.b16 %v2869
      %v3075 = vunpack.c.h.b16 %v2869
      %v3076 = vunpack.c.l.b16 %v2870
      %v3077 = vunpack.c.h.b16 %v2870
      %v3078 = vunpack.c.l.b16 %v2871
      %v3079 = vunpack.c.h.b16 %v2871
      %v3080 = vunpack.c.l.b16 %v2872
      %v3081 = vunpack.c.h.b16 %v2872
      %v3082 = vunpack.c.l.b16 %v2873
      %v3083 = vunpack.c.h.b16 %v2873
      %v3084 = vunpack.c.l.b16 %v2874
      %v3085 = vunpack.c.h.b16 %v2874
      %v3086 = vunpack.c.l.b16 %v2875
      %v3087 = vunpack.c.h.b16 %v2875
      %v3088 = vpack.c.b16 %v2994, %v2992
      %v3089 = vpack.c.b16 %v2995, %v2993
      %v3090 = vpack.c.b16 %v2998, %v2996
      %v3091 = vpack.c.b16 %v2999, %v2997
      %v3092 = vpack.c.b16 %v3002, %v3000
      %v3093 = vpack.c.b16 %v3003, %v3001
      %v3094 = vpack.c.b16 %v3006, %v3004
      %v3095 = vpack.c.b16 %v3007, %v3005
      %v3096 = vpack.c.b16 %v3010, %v3008
      %v3097 = vpack.c.b16 %v3011, %v3009
      %v3098 = vpack.c.b16 %v3014, %v3012
      %v3099 = vpack.c.b16 %v3015, %v3013
      %v3100 = vpack.c.b16 %v3018, %v3016
      %v3101 = vpack.c.b16 %v3019, %v3017
      %v3102 = vpack.c.b16 %v3022, %v3020
      %v3103 = vpack.c.b16 %v3023, %v3021
      %v3104 = vpack.c.b16 %v3026, %v3024
      %v3105 = vpack.c.b16 %v3027, %v3025
      %v3106 = vpack.c.b16 %v3030, %v3028
      %v3107 = vpack.c.b16 %v3031, %v3029
      %v3108 = vpack.c.b16 %v3034, %v3032
      %v3109 = vpack.c.b16 %v3035, %v3033
      %v3110 = vpack.c.b16 %v3038, %v3036
      %v3111 = vpack.c.b16 %v3039, %v3037
      %v3112 = vpack.c.b16 %v3042, %v3040
      %v3113 = vpack.c.b16 %v3043, %v3041
      %v3114 = vpack.c.b16 %v3046, %v3044
      %v3115 = vpack.c.b16 %v3047, %v3045
      %v3116 = vpack.c.b16 %v3050, %v3048
      %v3117 = vpack.c.b16 %v3051, %v3049
      %v3118 = vpack.c.b16 %v3054, %v3052
      %v3119 = vpack.c.b16 %v3055, %v3053
      %v3120 = vpack.c.b16 %v3058, %v3056
      %v3121 = vpack.c.b16 %v3059, %v3057
      %v3122 = vpack.c.b16 %v3062, %v3060
      %v3123 = vpack.c.b16 %v3063, %v3061
      %v3124 = vpack.c.b16 %v3066, %v3064
      %v3125 = vpack.c.b16 %v3067, %v3065
      %v3126 = vpack.c.b16 %v3070, %v3068
      %v3127 = vpack.c.b16 %v3071, %v3069
      %v3128 = vpack.c.b16 %v3074, %v3072
      %v3129 = vpack.c.b16 %v3075, %v3073
      %v3130 = vpack.c.b16 %v3078, %v3076
      %v3131 = vpack.c.b16 %v3079, %v3077
      %v3132 = vpack.c.b16 %v3082, %v3080
      %v3133 = vpack.c.b16 %v3083, %v3081
      %v3134 = vpack.c.b16 %v3086, %v3084
      %v3135 = vpack.c.b16 %v3087, %v3085
      %3184 = vmatprep.subr.bf16.mxu0 %v3089
      %3185 = vmatpush1.bf16.msra.mxu0 %v3088
      %3186 = vmatprep.subr.bf16.mxu0 %v3091
      %3187 = vmatpush1.bf16.msra.mxu0 %v3090
      %3188 = vmatprep.subr.bf16.mxu0 %v3093
      %3189 = vmatpush1.bf16.msra.mxu0 %v3092
      %3190 = vmatprep.subr.bf16.mxu0 %v3095
      %3191 = vmatpush1.bf16.msra.mxu0 %v3094
      %3192 = vmatprep.subr.bf16.mxu0 %v3097
      %3193 = vmatpush1.bf16.msra.mxu0 %v3096
      %3194 = vmatprep.subr.bf16.mxu0 %v3099
      %3195 = vmatpush1.bf16.msra.mxu0 %v3098
      %3196 = vmatprep.subr.bf16.mxu0 %v3101
      %3197 = vmatpush1.bf16.msra.mxu0 %v3100
      %3198 = vmatprep.subr.bf16.mxu0 %v3103
      %3199 = vmatpush1.bf16.msra.mxu0 %v3102
      %3200 = vmatprep.subr.bf16.mxu0 %v3105
      %3201 = vmatpush1.bf16.msra.mxu0 %v3104
      %3202 = vmatprep.subr.bf16.mxu0 %v3107
      %3203 = vmatpush1.bf16.msra.mxu0 %v3106
      %3204 = vmatprep.subr.bf16.mxu0 %v3109
      %3205 = vmatpush1.bf16.msra.mxu0 %v3108
      %3206 = vmatprep.subr.bf16.mxu0 %v3111
      %3207 = vmatpush1.bf16.msra.mxu0 %v3110
      %3208 = vmatprep.subr.bf16.mxu0 %v3113
      %3209 = vmatpush1.bf16.msra.mxu0 %v3112
      %3210 = vmatprep.subr.bf16.mxu0 %v3115
      %3211 = vmatpush1.bf16.msra.mxu0 %v3114
      %3212 = vmatprep.subr.bf16.mxu0 %v3117
      %3213 = vmatpush1.bf16.msra.mxu0 %v3116
      %3214 = vmatprep.subr.bf16.mxu0 %v3119
      %3215 = vmatpush1.bf16.msra.mxu0 %v3118
      %3216 = vmatprep.mubr.bf16.mxu0 %v2882
      %3217 = vmatmul.mubr.bf16.gmra.mrb[0].mxu0 %v2879
      %v3218 = vpop.f32.mrb[0].mxu0
      %v3219 = vadd.f32 0.0, %v3218
      %v3220 = vpop.f32.mrb[0].mxu0
      %v3221 = vadd.f32 0.0, %v3220
      %v3222 = vpop.f32.mrb[0].mxu0
      %v3223 = vadd.f32 0.0, %v3222
      %v3224 = vpop.f32.mrb[0].mxu0
      %v3225 = vadd.f32 0.0, %v3224
      %3226 = vmatprep.mubr.bf16.mxu0 %v2887
      %3227 = vmatmul.mubr.bf16.gmra.mrb[0].mxu0 %v2886
      %v3228 = vpop.f32.mrb[0].mxu0
      %v3229 = vadd.f32 0.0, %v3228
      %v3230 = vpop.f32.mrb[0].mxu0
      %v3231 = vadd.f32 0.0, %v3230
      %v3232 = vpop.f32.mrb[0].mxu0
      %v3233 = vadd.f32 0.0, %v3232
      %v3234 = vpop.f32.mrb[0].mxu0
      %v3235 = vadd.f32 0.0, %v3234
      %3236 = vmatprep.mubr.bf16.mxu0 %v2889
      %3237 = vmatmul.mubr.bf16.gmra.mrb[0].mxu0 %v2887
      %v3238 = vpop.f32.mrb[0].mxu0
      %v3239 = vadd.f32 0.0, %v3238
      %v3240 = vpop.f32.mrb[0].mxu0
      %v3241 = vadd.f32 0.0, %v3240
      %v3242 = vpop.f32.mrb[0].mxu0
      %v3243 = vadd.f32 0.0, %v3242
      %v3244 = vpop.f32.mrb[0].mxu0
      %v3245 = vadd.f32 0.0, %v3244
      %3246 = vmatprep.mubr.bf16.mxu0 %v2891
      %3247 = vmatmul.mubr.bf16.gmra.mrb[0].mxu0 %v2889
      %v3248 = vpop.f32.mrb[0].mxu0
      %v3249 = vadd.f32 0.0, %v3248
      %v3250 = vpop.f32.mrb[0].mxu0
      %v3251 = vadd.f32 0.0, %v3250
      %v3252 = vpop.f32.mrb[0].mxu0
      %v3253 = vadd.f32 0.0, %v3252
      %v3254 = vpop.f32.mrb[0].mxu0
      %v3255 = vadd.f32 0.0, %v3254
      %3256 = vmatprep.mubr.bf16.mxu0 %v2893
      %3257 = vmatmul.mubr.bf16.gmra.mrb[0].mxu0 %v2891
      %v3258 = vpop.f32.mrb[0].mxu0
      %v3259 = vadd.f32 0.0, %v3258
      %v3260 = vpop.f32.mrb[0].mxu0
      %v3261 = vadd.f32 0.0, %v3260
      %v3262 = vpop.f32.mrb[0].mxu0
      %v3263 = vadd.f32 0.0, %v3262
      %v3264 = vpop.f32.mrb[0].mxu0
      %v3265 = vadd.f32 0.0, %v3264
      %3266 = vmatprep.mubr.bf16.mxu0 %v2895
      %3267 = vmatmul.mubr.bf16.gmra.mrb[0].mxu0 %v2893
      %v3268 = vpop.f32.mrb[0].mxu0
      %v3269 = vadd.f32 0.0, %v3268
      %v3270 = vpop.f32.mrb[0].mxu0
      %v3271 = vadd.f32 0.0, %v3270
      %v3272 = vpop.f32.mrb[0].mxu0
      %v3273 = vadd.f32 0.0, %v3272
      %v3274 = vpop.f32.mrb[0].mxu0
      %v3275 = vadd.f32 0.0, %v3274
      %3276 = vmatprep.mubr.bf16.mxu0 %v2897
      %3277 = vmatmul.mubr.bf16.gmra.mrb[0].mxu0 %v2895
      %v3278 = vpop.f32.mrb[0].mxu0
      %v3279 = vadd.f32 0.0, %v3278
      %v3280 = vpop.f32.mrb[0].mxu0
      %v3281 = vadd.f32 0.0, %v3280
      %v3282 = vpop.f32.mrb[0].mxu0
      %v3283 = vadd.f32 0.0, %v3282
      %v3284 = vpop.f32.mrb[0].mxu0
      %v3285 = vadd.f32 0.0, %v3284
      %3286 = vmatprep.mubr.bf16.mxu0 %v2899
      %3287 = vmatmul.mubr.bf16.gmra.mrb[0].mxu0 %v2897
      %v3288 = vpop.f32.mrb[0].mxu0
      %v3289 = vadd.f32 0.0, %v3288
      %v3290 = vpop.f32.mrb[0].mxu0
      %v3291 = vadd.f32 0.0, %v3290
      %v3292 = vpop.f32.mrb[0].mxu0
      %v3293 = vadd.f32 0.0, %v3292
      %v3294 = vpop.f32.mrb[0].mxu0
      %v3295 = vadd.f32 0.0, %v3294
      %3296 = vmatprep.mubr.bf16.mxu0 %v2901
      %3297 = vmatmul.mubr.bf16.gmra.mrb[0].mxu0 %v2899
      %v3298 = vpop.f32.mrb[0].mxu0
      %v3299 = vadd.f32 0.0, %v3298
      %v3300 = vpop.f32.mrb[0].mxu0
      %v3301 = vadd.f32 0.0, %v3300
      %v3302 = vpop.f32.mrb[0].mxu0
      %v3303 = vadd.f32 0.0, %v3302
      %v3304 = vpop.f32.mrb[0].mxu0
      %v3305 = vadd.f32 0.0, %v3304
      %3306 = vmatprep.mubr.bf16.mxu0 %v2903
      %3307 = vmatmul.mubr.bf16.gmra.mrb[0].mxu0 %v2901
      %v3308 = vpop.f32.mrb[0].mxu0
      %v3309 = vadd.f32 0.0, %v3308
      %v3310 = vpop.f32.mrb[0].mxu0
      %v3311 = vadd.f32 0.0, %v3310
      %v3312 = vpop.f32.mrb[0].mxu0
      %v3313 = vadd.f32 0.0, %v3312
      %v3314 = vpop.f32.mrb[0].mxu0
      %v3315 = vadd.f32 0.0, %v3314
      %3316 = vmatprep.mubr.bf16.mxu0 %v2905
      %3317 = vmatmul.mubr.bf16.gmra.mrb[0].mxu0 %v2903
      %v3318 = vpop.f32.mrb[0].mxu0
      %v3319 = vadd.f32 0.0, %v3318
      %v3320 = vpop.f32.mrb[0].mxu0
      %v3321 = vadd.f32 0.0, %v3320
      %v3322 = vpop.f32.mrb[0].mxu0
      %v3323 = vadd.f32 0.0, %v3322
      %v3324 = vpop.f32.mrb[0].mxu0
      %v3325 = vadd.f32 0.0, %v3324
      %3326 = vmatprep.mubr.bf16.mxu0 %v2907
      %3327 = vmatmul.mubr.bf16.gmra.mrb[0].mxu0 %v2905
      %v3328 = vpop.f32.mrb[0].mxu0
      %v3329 = vadd.f32 0.0, %v3328
      %v3330 = vpop.f32.mrb[0].mxu0
      %v3331 = vadd.f32 0.0, %v3330
      %v3332 = vpop.f32.mrb[0].mxu0
      %v3333 = vadd.f32 0.0, %v3332
      %v3334 = vpop.f32.mrb[0].mxu0
      %v3335 = vadd.f32 0.0, %v3334
      %3336 = vmatprep.mubr.bf16.mxu0 %v2909
      %3337 = vmatmul.mubr.bf16.gmra.mrb[0].mxu0 %v2907
      %v3338 = vpop.f32.mrb[0].mxu0
      %v3339 = vadd.f32 0.0, %v3338
      %v3340 = vpop.f32.mrb[0].mxu0
      %v3341 = vadd.f32 0.0, %v3340
      %v3342 = vpop.f32.mrb[0].mxu0
      %v3343 = vadd.f32 0.0, %v3342
      %v3344 = vpop.f32.mrb[0].mxu0
      %v3345 = vadd.f32 0.0, %v3344
      %3346 = vmatprep.mubr.bf16.mxu0 %v2911
      %3347 = vmatmul.mubr.bf16.gmra.mrb[0].mxu0 %v2909
      %v3348 = vpop.f32.mrb[0].mxu0
      %v3349 = vadd.f32 0.0, %v3348
      %v3350 = vpop.f32.mrb[0].mxu0
      %v3351 = vadd.f32 0.0, %v3350
      %v3352 = vpop.f32.mrb[0].mxu0
      %v3353 = vadd.f32 0.0, %v3352
      %v3354 = vpop.f32.mrb[0].mxu0
      %v3355 = vadd.f32 0.0, %v3354
      %3356 = vmatprep.mubr.bf16.mxu0 %v2913
      %3357 = vmatmul.mubr.bf16.gmra.mrb[0].mxu0 %v2911
      %v3358 = vpop.f32.mrb[0].mxu0
      %v3359 = vadd.f32 0.0, %v3358
      %v3360 = vpop.f32.mrb[0].mxu0
      %v3361 = vadd.f32 0.0, %v3360
      %v3362 = vpop.f32.mrb[0].mxu0
      %v3363 = vadd.f32 0.0, %v3362
      %v3364 = vpop.f32.mrb[0].mxu0
      %v3365 = vadd.f32 0.0, %v3364
      %3366 = vmatprep.mubr.bf16.mxu0 %v2919
      %3367 = vmatmul.mubr.bf16.gmra.mrb[0].mxu0 %v2917
      %v3368 = vpop.f32.mrb[0].mxu0
      %v3369 = vadd.f32 0.0, %v3368
      %v3370 = vpop.f32.mrb[0].mxu0
      %v3371 = vadd.f32 0.0, %v3370
      %v3372 = vpop.f32.mrb[0].mxu0
      %v3373 = vadd.f32 0.0, %v3372
      %v3374 = vpop.f32.mrb[0].mxu0
      %v3375 = vadd.f32 0.0, %v3374
      %3376 = vdwg.mxu0
      %3377 = vmatprep.subr.bf16.mxu0 %v3121
      %3378 = vmatpush1.bf16.msra.mxu0 %v3120
      %3379 = vmatprep.subr.bf16.mxu0 %v3123
      %3380 = vmatpush1.bf16.msra.mxu0 %v3122
      %3381 = vmatprep.subr.bf16.mxu0 %v3125
      %3382 = vmatpush1.bf16.msra.mxu0 %v3124
      %3383 = vmatprep.subr.bf16.mxu0 %v3127
      %3384 = vmatpush1.bf16.msra.mxu0 %v3126
      %3385 = vmatprep.subr.bf16.mxu0 %v3129
      %3386 = vmatpush1.bf16.msra.mxu0 %v3128
      %3387 = vmatprep.subr.bf16.mxu0 %v3131
      %3388 = vmatpush1.bf16.msra.mxu0 %v3130
      %3389 = vmatprep.subr.bf16.mxu0 %v3133
      %3390 = vmatpush1.bf16.msra.mxu0 %v3132
      %3391 = vmatprep.subr.bf16.mxu0 %v3135
      %3392 = vmatpush1.bf16.msra.mxu0 %v3134
      %3393 = vmatprep.subr.bf16.mxu0 0
      %3394 = vmatpush1.bf16.msra.mxu0 0
      %3395 = vmatprep.subr.bf16.mxu0 0
      %3396 = vmatpush1.bf16.msra.mxu0 0
      %3397 = vmatprep.subr.bf16.mxu0 0
      %3398 = vmatpush1.bf16.msra.mxu0 0
      %3399 = vmatprep.subr.bf16.mxu0 0
      %3400 = vmatpush1.bf16.msra.mxu0 0
      %3401 = vmatprep.subr.bf16.mxu0 0
      %3402 = vmatpush1.bf16.msra.mxu0 0
      %3403 = vmatprep.subr.bf16.mxu0 0
      %3404 = vmatpush1.bf16.msra.mxu0 0
      %3405 = vmatprep.subr.bf16.mxu0 0
      %3406 = vmatpush1.bf16.msra.mxu0 0
      %3407 = vmatprep.subr.bf16.mxu0 0
      %3408 = vmatpush1.bf16.msra.mxu0 0
      %3409 = vmatprep.mubr.bf16.mxu0 0
      %3410 = vmatmul.mubr.bf16.gmra.mrb[0].mxu0 %v2885
      %v3411 = vpop.f32.mrb[0].mxu0
      %v3412 = vadd.f32 %v3219, %v3411
      %v3413 = vpop.f32.mrb[0].mxu0
      %v3414 = vadd.f32 %v3221, %v3413
      %v3415 = vpop.f32.mrb[0].mxu0
      %v3416 = vadd.f32 %v3223, %v3415
      %v3417 = vpop.f32.mrb[0].mxu0
      %v3418 = vadd.f32 %v3225, %v3417
      %3419 = vmatprep.mubr.bf16.mxu0 0
      %3420 = vmatmul.mubr.bf16.gmra.mrb[0].mxu0 %v2889
      %v3421 = vpop.f32.mrb[0].mxu0
      %v3422 = vadd.f32 %v3229, %v3421
      %v3423 = vpop.f32.mrb[0].mxu0
      %v3424 = vadd.f32 %v3231, %v3423
      %v3425 = vpop.f32.mrb[0].mxu0
      %v3426 = vadd.f32 %v3233, %v3425
      %v3427 = vpop.f32.mrb[0].mxu0
      %v3428 = vadd.f32 %v3235, %v3427
      %3429 = vmatprep.mubr.bf16.mxu0 0
      %3430 = vmatmul.mubr.bf16.gmra.mrb[0].mxu0 %v2891
      %v3431 = vpop.f32.mrb[0].mxu0
      %v3432 = vadd.f32 %v3239, %v3431
      %v3433 = vpop.f32.mrb[0].mxu0
      %v3434 = vadd.f32 %v3241, %v3433
      %v3435 = vpop.f32.mrb[0].mxu0
      %v3436 = vadd.f32 %v3243, %v3435
      %v3437 = vpop.f32.mrb[0].mxu0
      %v3438 = vadd.f32 %v3245, %v3437
      %3439 = vmatprep.mubr.bf16.mxu0 0
      %3440 = vmatmul.mubr.bf16.gmra.mrb[0].mxu0 %v2893
      %v3441 = vpop.f32.mrb[0].mxu0
      %v3442 = vadd.f32 %v3249, %v3441
      %v3443 = vpop.f32.mrb[0].mxu0
      %v3444 = vadd.f32 %v3251, %v3443
      %v3445 = vpop.f32.mrb[0].mxu0
      %v3446 = vadd.f32 %v3253, %v3445
      %v3447 = vpop.f32.mrb[0].mxu0
      %v3448 = vadd.f32 %v3255, %v3447
      %3449 = vmatprep.mubr.bf16.mxu0 0
      %3450 = vmatmul.mubr.bf16.gmra.mrb[0].mxu0 %v2895
      %v3451 = vpop.f32.mrb[0].mxu0
      %v3452 = vadd.f32 %v3259, %v3451
      %v3453 = vpop.f32.mrb[0].mxu0
      %v3454 = vadd.f32 %v3261, %v3453
      %v3455 = vpop.f32.mrb[0].mxu0
      %v3456 = vadd.f32 %v3263, %v3455
      %v3457 = vpop.f32.mrb[0].mxu0
      %v3458 = vadd.f32 %v3265, %v3457
      %3459 = vmatprep.mubr.bf16.mxu0 0
      %3460 = vmatmul.mubr.bf16.gmra.mrb[0].mxu0 %v2897
      %v3461 = vpop.f32.mrb[0].mxu0
      %v3462 = vadd.f32 %v3269, %v3461
      %v3463 = vpop.f32.mrb[0].mxu0
      %v3464 = vadd.f32 %v3271, %v3463
      %v3465 = vpop.f32.mrb[0].mxu0
      %v3466 = vadd.f32 %v3273, %v3465
      %v3467 = vpop.f32.mrb[0].mxu0
      %v3468 = vadd.f32 %v3275, %v3467
      %3469 = vmatprep.mubr.bf16.mxu0 0
      %3470 = vmatmul.mubr.bf16.gmra.mrb[0].mxu0 %v2899
      %v3471 = vpop.f32.mrb[0].mxu0
      %v3472 = vadd.f32 %v3279, %v3471
      %v3473 = vpop.f32.mrb[0].mxu0
      %v3474 = vadd.f32 %v3281, %v3473
      %v3475 = vpop.f32.mrb[0].mxu0
      %v3476 = vadd.f32 %v3283, %v3475
      %v3477 = vpop.f32.mrb[0].mxu0
      %v3478 = vadd.f32 %v3285, %v3477
      %3479 = vmatprep.mubr.bf16.mxu0 0
      %3480 = vmatmul.mubr.bf16.gmra.mrb[0].mxu0 %v2901
      %v3481 = vpop.f32.mrb[0].mxu0
      %v3482 = vadd.f32 %v3289, %v3481
      %v3483 = vpop.f32.mrb[0].mxu0
      %v3484 = vadd.f32 %v3291, %v3483
      %v3485 = vpop.f32.mrb[0].mxu0
      %v3486 = vadd.f32 %v3293, %v3485
      %v3487 = vpop.f32.mrb[0].mxu0
      %v3488 = vadd.f32 %v3295, %v3487
      %3489 = vmatprep.mubr.bf16.mxu0 0
      %3490 = vmatmul.mubr.bf16.gmra.mrb[0].mxu0 %v2903
      %v3491 = vpop.f32.mrb[0].mxu0
      %v3492 = vadd.f32 %v3299, %v3491
      %v3493 = vpop.f32.mrb[0].mxu0
      %v3494 = vadd.f32 %v3301, %v3493
      %v3495 = vpop.f32.mrb[0].mxu0
      %v3496 = vadd.f32 %v3303, %v3495
      %v3497 = vpop.f32.mrb[0].mxu0
      %v3498 = vadd.f32 %v3305, %v3497
      %3499 = vmatprep.mubr.bf16.mxu0 0
      %3500 = vmatmul.mubr.bf16.gmra.mrb[0].mxu0 %v2905
      %v3501 = vpop.f32.mrb[0].mxu0
      %v3502 = vadd.f32 %v3309, %v3501
      %v3503 = vpop.f32.mrb[0].mxu0
      %v3504 = vadd.f32 %v3311, %v3503
      %v3505 = vpop.f32.mrb[0].mxu0
      %v3506 = vadd.f32 %v3313, %v3505
      %v3507 = vpop.f32.mrb[0].mxu0
      %v3508 = vadd.f32 %v3315, %v3507
      %3509 = vmatprep.mubr.bf16.mxu0 0
      %3510 = vmatmul.mubr.bf16.gmra.mrb[0].mxu0 %v2907
      %v3511 = vpop.f32.mrb[0].mxu0
      %v3512 = vadd.f32 %v3319, %v3511
      %v3513 = vpop.f32.mrb[0].mxu0
      %v3514 = vadd.f32 %v3321, %v3513
      %v3515 = vpop.f32.mrb[0].mxu0
      %v3516 = vadd.f32 %v3323, %v3515
      %v3517 = vpop.f32.mrb[0].mxu0
      %v3518 = vadd.f32 %v3325, %v3517
      %3519 = vmatprep.mubr.bf16.mxu0 0
      %3520 = vmatmul.mubr.bf16.gmra.mrb[0].mxu0 %v2909
      %v3521 = vpop.f32.mrb[0].mxu0
      %v3522 = vadd.f32 %v3329, %v3521
      %v3523 = vpop.f32.mrb[0].mxu0
      %v3524 = vadd.f32 %v3331, %v3523
      %v3525 = vpop.f32.mrb[0].mxu0
      %v3526 = vadd.f32 %v3333, %v3525
      %v3527 = vpop.f32.mrb[0].mxu0
      %v3528 = vadd.f32 %v3335, %v3527
      %3529 = vmatprep.mubr.bf16.mxu0 0
      %3530 = vmatmul.mubr.bf16.gmra.mrb[0].mxu0 %v2911
      %v3531 = vpop.f32.mrb[0].mxu0
      %v3532 = vadd.f32 %v3339, %v3531
      %v3533 = vpop.f32.mrb[0].mxu0
      %v3534 = vadd.f32 %v3341, %v3533
      %v3535 = vpop.f32.mrb[0].mxu0
      %v3536 = vadd.f32 %v3343, %v3535
      %v3537 = vpop.f32.mrb[0].mxu0
      %v3538 = vadd.f32 %v3345, %v3537
      %3539 = vmatprep.mubr.bf16.mxu0 0
      %3540 = vmatmul.mubr.bf16.gmra.mrb[0].mxu0 %v2913
      %v3541 = vpop.f32.mrb[0].mxu0
      %v3542 = vadd.f32 %v3349, %v3541
      %v3543 = vpop.f32.mrb[0].mxu0
      %v3544 = vadd.f32 %v3351, %v3543
      %v3545 = vpop.f32.mrb[0].mxu0
      %v3546 = vadd.f32 %v3353, %v3545
      %v3547 = vpop.f32.mrb[0].mxu0
      %v3548 = vadd.f32 %v3355, %v3547
      %3549 = vmatprep.mubr.bf16.mxu0 0
      %3550 = vmatmul.mubr.bf16.gmra.mrb[0].mxu0 %v2915
      %v3551 = vpop.f32.mrb[0].mxu0
      %v3552 = vadd.f32 %v3359, %v3551
      %v3553 = vpop.f32.mrb[0].mxu0
      %v3554 = vadd.f32 %v3361, %v3553
      %v3555 = vpop.f32.mrb[0].mxu0
      %v3556 = vadd.f32 %v3363, %v3555
      %v3557 = vpop.f32.mrb[0].mxu0
      %v3558 = vadd.f32 %v3365, %v3557
      %3559 = vmatprep.mubr.bf16.mxu0 0
      %3560 = vmatmul.mubr.bf16.gmra.mrb[0].mxu0 %v2921
      %v3561 = vpop.f32.mrb[0].mxu0
      %v3562 = vadd.f32 %v3369, %v3561
      %v3563 = vpop.f32.mrb[0].mxu0
      %v3564 = vadd.f32 %v3371, %v3563
      %v3565 = vpop.f32.mrb[0].mxu0
      %v3566 = vadd.f32 %v3373, %v3565
      %v3567 = vpop.f32.mrb[0].mxu0
      %v3568 = vadd.f32 %v3375, %v3567
      %3569 = vdwg.mxu0
      %v3570 = vmul.f32 %v845, %v3412
      %v3571 = vmul.f32 %v845, %v3414
      %v3572 = vmul.f32 %v846, %v3416
      %v3573 = vmul.f32 %v846, %v3418
      %v3574 = vmul.f32 %v847, %v3422
      %v3575 = vmul.f32 %v847, %v3424
      %v3576 = vmul.f32 %v848, %v3426
      %v3577 = vmul.f32 %v848, %v3428
      %v3578 = vmul.f32 %v849, %v3432
      %v3579 = vmul.f32 %v849, %v3434
      %v3580 = vmul.f32 %v850, %v3436
      %v3581 = vmul.f32 %v850, %v3438
      %v3582 = vmul.f32 %v851, %v3442
      %v3583 = vmul.f32 %v851, %v3444
      %v3584 = vmul.f32 %v852, %v3446
      %v3585 = vmul.f32 %v852, %v3448
      %v3586 = vmul.f32 %v853, %v3452
      %v3587 = vmul.f32 %v853, %v3454
      %v3588 = vmul.f32 %v854, %v3456
      %v3589 = vmul.f32 %v854, %v3458
      %v3590 = vmul.f32 %v855, %v3462
      %v3591 = vmul.f32 %v855, %v3464
      %v3592 = vmul.f32 %v856, %v3466
      %v3593 = vmul.f32 %v856, %v3468
      %v3594 = vmul.f32 %v857, %v3472
      %v3595 = vmul.f32 %v857, %v3474
      %v3596 = vmul.f32 %v858, %v3476
      %v3597 = vmul.f32 %v858, %v3478
      %v3598 = vmul.f32 %v859, %v3482
      %v3599 = vmul.f32 %v859, %v3484
      %v3600 = vmul.f32 %v860, %v3486
      %v3601 = vmul.f32 %v860, %v3488
      %v3602 = vmul.f32 %v861, %v3492
      %v3603 = vmul.f32 %v861, %v3494
      %v3604 = vmul.f32 %v862, %v3496
      %v3605 = vmul.f32 %v862, %v3498
      %v3606 = vmul.f32 %v863, %v3502
      %v3607 = vmul.f32 %v863, %v3504
      %v3608 = vmul.f32 %v864, %v3506
      %v3609 = vmul.f32 %v864, %v3508
      %v3610 = vmul.f32 %v865, %v3512
      %v3611 = vmul.f32 %v865, %v3514
      %v3612 = vmul.f32 %v866, %v3516
      %v3613 = vmul.f32 %v866, %v3518
      %v3614 = vmul.f32 %v867, %v3522
      %v3615 = vmul.f32 %v867, %v3524
      %v3616 = vmul.f32 %v868, %v3526
      %v3617 = vmul.f32 %v868, %v3528
      %v3618 = vmul.f32 %v869, %v3532
      %v3619 = vmul.f32 %v869, %v3534
      %v3620 = vmul.f32 %v870, %v3536
      %v3621 = vmul.f32 %v870, %v3538
      %v3622 = vmul.f32 %v871, %v3542
      %v3623 = vmul.f32 %v871, %v3544
      %v3624 = vmul.f32 %v872, %v3546
      %v3625 = vmul.f32 %v872, %v3548
      %v3626 = vmul.f32 %v873, %v3552
      %v3627 = vmul.f32 %v873, %v3554
      %v3628 = vmul.f32 %v874, %v3556
      %v3629 = vmul.f32 %v874, %v3558
      %v3630 = vmul.f32 %v875, %v3562
      %v3631 = vmul.f32 %v875, %v3564
      %v3632 = vmul.f32 %v876, %v3566
      %v3633 = vmul.f32 %v876, %v3568
      %v3634 = vadd.f32 %v2751, %v3570
      %v3635 = vadd.f32 %v2752, %v3571
      %v3636 = vadd.f32 %v2753, %v3572
      %v3637 = vadd.f32 %v2754, %v3573
      %v3638 = vadd.f32 %v2755, %v3574
      %v3639 = vadd.f32 %v2756, %v3575
      %v3640 = vadd.f32 %v2757, %v3576
      %v3641 = vadd.f32 %v2758, %v3577
      %v3642 = vadd.f32 %v2759, %v3578
      %v3643 = vadd.f32 %v2760, %v3579
      %v3644 = vadd.f32 %v2761, %v3580
      %v3645 = vadd.f32 %v2762, %v3581
      %v3646 = vadd.f32 %v2763, %v3582
      %v3647 = vadd.f32 %v2764, %v3583
      %v3648 = vadd.f32 %v2765, %v3584
      %v3649 = vadd.f32 %v2766, %v3585
      %v3650 = vadd.f32 %v2767, %v3586
      %v3651 = vadd.f32 %v2768, %v3587
      %v3652 = vadd.f32 %v2769, %v3588
      %v3653 = vadd.f32 %v2770, %v3589
      %v3654 = vadd.f32 %v2771, %v3590
      %v3655 = vadd.f32 %v2772, %v3591
      %v3656 = vadd.f32 %v2773, %v3592
      %v3657 = vadd.f32 %v2774, %v3593
      %v3658 = vadd.f32 %v2775, %v3594
      %v3659 = vadd.f32 %v2776, %v3595
      %v3660 = vadd.f32 %v2777, %v3596
      %v3661 = vadd.f32 %v2778, %v3597
      %v3662 = vadd.f32 %v2779, %v3598
      %v3663 = vadd.f32 %v2780, %v3599
      %v3664 = vadd.f32 %v2781, %v3600
      %v3665 = vadd.f32 %v2782, %v3601
      %v3666 = vadd.f32 %v2783, %v3602
      %v3667 = vadd.f32 %v2784, %v3603
      %v3668 = vadd.f32 %v2785, %v3604
      %v3669 = vadd.f32 %v2786, %v3605
      %v3670 = vadd.f32 %v2787, %v3606
      %v3671 = vadd.f32 %v2788, %v3607
      %v3672 = vadd.f32 %v2789, %v3608
      %v3673 = vadd.f32 %v2790, %v3609
      %v3674 = vadd.f32 %v2791, %v3610
      %v3675 = vadd.f32 %v2792, %v3611
      %v3676 = vadd.f32 %v2793, %v3612
      %v3677 = vadd.f32 %v2794, %v3613
      %v3678 = vadd.f32 %v2795, %v3614
      %v3679 = vadd.f32 %v2796, %v3615
      %v3680 = vadd.f32 %v2797, %v3616
      %v3681 = vadd.f32 %v2798, %v3617
      %v3682 = vadd.f32 %v2799, %v3618
      %v3683 = vadd.f32 %v2800, %v3619
      %v3684 = vadd.f32 %v2801, %v3620
      %v3685 = vadd.f32 %v2802, %v3621
      %v3686 = vadd.f32 %v2803, %v3622
      %v3687 = vadd.f32 %v2804, %v3623
      %v3688 = vadd.f32 %v2805, %v3624
      %v3689 = vadd.f32 %v2806, %v3625
      %v3690 = vadd.f32 %v2807, %v3626
      %v3691 = vadd.f32 %v2808, %v3627
      %v3692 = vadd.f32 %v2809, %v3628
      %v3693 = vadd.f32 %v2810, %v3629
      %v3694 = vadd.f32 %v2811, %v3630
      %v3695 = vadd.f32 %v2812, %v3631
      %v3696 = vadd.f32 %v2813, %v3632
      %v3697 = vadd.f32 %v2814, %v3633
      %v3698 = vld [vmem:[%s255] sm:$0x3]
      %v3700 = vlaneseq
      %v3701 = vshrl.u32 %v3700, 7
      %v3702 = vsub.s32 0, %v3701
      %v3703 = vrot.slane %v3698, %v3702
      %v3704 = vlaneseq
      %v3705 = vshrl.u32 %v3704, 7
      %v3706 = vsub.s32 1, %v3705
      %v3707 = vrot.slane %v3698, %v3706
      %v3710 = vadd.f32 %v3634, %v3703
      %v3711 = vadd.f32 %v3635, %v3707
      %v3712 = vadd.f32 %v3636, %v3703
      %v3713 = vadd.f32 %v3637, %v3707
      %v3714 = vadd.f32 %v3638, %v3703
      %v3715 = vadd.f32 %v3639, %v3707
      %v3716 = vadd.f32 %v3640, %v3703
      %v3717 = vadd.f32 %v3641, %v3707
      %v3718 = vadd.f32 %v3642, %v3703
      %v3719 = vadd.f32 %v3643, %v3707
      %v3720 = vadd.f32 %v3644, %v3703
      %v3721 = vadd.f32 %v3645, %v3707
      %v3722 = vadd.f32 %v3646, %v3703
      %v3723 = vadd.f32 %v3647, %v3707
      %v3724 = vadd.f32 %v3648, %v3703
      %v3725 = vadd.f32 %v3649, %v3707
      %v3726 = vadd.f32 %v3650, %v3703
      %v3727 = vadd.f32 %v3651, %v3707
      %v3728 = vadd.f32 %v3652, %v3703
      %v3729 = vadd.f32 %v3653, %v3707
      %v3730 = vadd.f32 %v3654, %v3703
      %v3731 = vadd.f32 %v3655, %v3707
      %v3732 = vadd.f32 %v3656, %v3703
      %v3733 = vadd.f32 %v3657, %v3707
      %v3734 = vadd.f32 %v3658, %v3703
      %v3735 = vadd.f32 %v3659, %v3707
      %v3736 = vadd.f32 %v3660, %v3703
      %v3737 = vadd.f32 %v3661, %v3707
      %v3738 = vadd.f32 %v3662, %v3703
      %v3739 = vadd.f32 %v3663, %v3707
      %v3740 = vadd.f32 %v3664, %v3703
      %v3741 = vadd.f32 %v3665, %v3707
      %v3742 = vadd.f32 %v3666, %v3703
      %v3743 = vadd.f32 %v3667, %v3707
      %v3744 = vadd.f32 %v3668, %v3703
      %v3745 = vadd.f32 %v3669, %v3707
      %v3746 = vadd.f32 %v3670, %v3703
      %v3747 = vadd.f32 %v3671, %v3707
      %v3748 = vadd.f32 %v3672, %v3703
      %v3749 = vadd.f32 %v3673, %v3707
      %v3750 = vadd.f32 %v3674, %v3703
      %v3751 = vadd.f32 %v3675, %v3707
      %v3752 = vadd.f32 %v3676, %v3703
      %v3753 = vadd.f32 %v3677, %v3707
      %v3754 = vadd.f32 %v3678, %v3703
      %v3755 = vadd.f32 %v3679, %v3707
      %v3756 = vadd.f32 %v3680, %v3703
      %v3757 = vadd.f32 %v3681, %v3707
      %v3758 = vadd.f32 %v3682, %v3703
      %v3759 = vadd.f32 %v3683, %v3707
      %v3760 = vadd.f32 %v3684, %v3703
      %v3761 = vadd.f32 %v3685, %v3707
      %v3762 = vadd.f32 %v3686, %v3703
      %v3763 = vadd.f32 %v3687, %v3707
      %v3764 = vadd.f32 %v3688, %v3703
      %v3765 = vadd.f32 %v3689, %v3707
      %v3766 = vadd.f32 %v3690, %v3703
      %v3767 = vadd.f32 %v3691, %v3707
      %v3768 = vadd.f32 %v3692, %v3703
      %v3769 = vadd.f32 %v3693, %v3707
      %v3770 = vadd.f32 %v3694, %v3703
      %v3771 = vadd.f32 %v3695, %v3707
      %v3772 = vadd.f32 %v3696, %v3703
      %v3773 = vadd.f32 %v3697, %v3707
      %v3774 = vmax.f32 %v3710, 0.0
      %v3775 = vmax.f32 %v3711, 0.0
      %v3776 = vmax.f32 %v3712, 0.0
      %v3777 = vmax.f32 %v3713, 0.0
      %v3778 = vmax.f32 %v3714, 0.0
      %v3779 = vmax.f32 %v3715, 0.0
      %v3780 = vmax.f32 %v3716, 0.0
      %v3781 = vmax.f32 %v3717, 0.0
      %v3782 = vmax.f32 %v3718, 0.0
      %v3783 = vmax.f32 %v3719, 0.0
      %v3784 = vmax.f32 %v3720, 0.0
      %v3785 = vmax.f32 %v3721, 0.0
      %v3786 = vmax.f32 %v3722, 0.0
      %v3787 = vmax.f32 %v3723, 0.0
      %v3788 = vmax.f32 %v3724, 0.0
      %v3789 = vmax.f32 %v3725, 0.0
      %v3790 = vmax.f32 %v3726, 0.0
      %v3791 = vmax.f32 %v3727, 0.0
      %v3792 = vmax.f32 %v3728, 0.0
      %v3793 = vmax.f32 %v3729, 0.0
      %v3794 = vmax.f32 %v3730, 0.0
      %v3795 = vmax.f32 %v3731, 0.0
      %v3796 = vmax.f32 %v3732, 0.0
      %v3797 = vmax.f32 %v3733, 0.0
      %v3798 = vmax.f32 %v3734, 0.0
      %v3799 = vmax.f32 %v3735, 0.0
      %v3800 = vmax.f32 %v3736, 0.0
      %v3801 = vmax.f32 %v3737, 0.0
      %v3802 = vmax.f32 %v3738, 0.0
      %v3803 = vmax.f32 %v3739, 0.0
      %v3804 = vmax.f32 %v3740, 0.0
      %v3805 = vmax.f32 %v3741, 0.0
      %v3806 = vmax.f32 %v3742, 0.0
      %v3807 = vmax.f32 %v3743, 0.0
      %v3808 = vmax.f32 %v3744, 0.0
      %v3809 = vmax.f32 %v3745, 0.0
      %v3810 = vmax.f32 %v3746, 0.0
      %v3811 = vmax.f32 %v3747, 0.0
      %v3812 = vmax.f32 %v3748, 0.0
      %v3813 = vmax.f32 %v3749, 0.0
      %v3814 = vmax.f32 %v3750, 0.0
      %v3815 = vmax.f32 %v3751, 0.0
      %v3816 = vmax.f32 %v3752, 0.0
      %v3817 = vmax.f32 %v3753, 0.0
      %v3818 = vmax.f32 %v3754, 0.0
      %v3819 = vmax.f32 %v3755, 0.0
      %v3820 = vmax.f32 %v3756, 0.0
      %v3821 = vmax.f32 %v3757, 0.0
      %v3822 = vmax.f32 %v3758, 0.0
      %v3823 = vmax.f32 %v3759, 0.0
      %v3824 = vmax.f32 %v3760, 0.0
      %v3825 = vmax.f32 %v3761, 0.0
      %v3826 = vmax.f32 %v3762, 0.0
      %v3827 = vmax.f32 %v3763, 0.0
      %v3828 = vmax.f32 %v3764, 0.0
      %v3829 = vmax.f32 %v3765, 0.0
      %v3830 = vmax.f32 %v3766, 0.0
      %v3831 = vmax.f32 %v3767, 0.0
      %v3832 = vmax.f32 %v3768, 0.0
      %v3833 = vmax.f32 %v3769, 0.0
      %v3834 = vmax.f32 %v3770, 0.0
      %v3835 = vmax.f32 %v3771, 0.0
      %v3836 = vmax.f32 %v3772, 0.0
      %v3837 = vmax.f32 %v3773, 0.0
      %v3838 = vpack.c.bf16 %v3776, %v3774
      %v3839 = vpack.c.bf16 %v3777, %v3775
      %v3840 = vpack.c.bf16 %v3780, %v3778
      %v3841 = vpack.c.bf16 %v3781, %v3779
      %v3842 = vpack.c.bf16 %v3784, %v3782
      %v3843 = vpack.c.bf16 %v3785, %v3783
      %v3844 = vpack.c.bf16 %v3788, %v3786
      %v3845 = vpack.c.bf16 %v3789, %v3787
      %v3846 = vpack.c.bf16 %v3792, %v3790
      %v3847 = vpack.c.bf16 %v3793, %v3791
      %v3848 = vpack.c.bf16 %v3796, %v3794
      %v3849 = vpack.c.bf16 %v3797, %v3795
      %v3850 = vpack.c.bf16 %v3800, %v3798
      %v3851 = vpack.c.bf16 %v3801, %v3799
      %v3852 = vpack.c.bf16 %v3804, %v3802
      %v3853 = vpack.c.bf16 %v3805, %v3803
      %v3854 = vpack.c.bf16 %v3808, %v3806
      %v3855 = vpack.c.bf16 %v3809, %v3807
      %v3856 = vpack.c.bf16 %v3812, %v3810
      %v3857 = vpack.c.bf16 %v3813, %v3811
      %v3858 = vpack.c.bf16 %v3816, %v3814
      %v3859 = vpack.c.bf16 %v3817, %v3815
      %v3860 = vpack.c.bf16 %v3820, %v3818
      %v3861 = vpack.c.bf16 %v3821, %v3819
      %v3862 = vpack.c.bf16 %v3824, %v3822
      %v3863 = vpack.c.bf16 %v3825, %v3823
      %v3864 = vpack.c.bf16 %v3828, %v3826
      %v3865 = vpack.c.bf16 %v3829, %v3827
      %v3866 = vpack.c.bf16 %v3832, %v3830
      %v3867 = vpack.c.bf16 %v3833, %v3831
      %v3868 = vpack.c.bf16 %v3836, %v3834
      %v3869 = vpack.c.bf16 %v3837, %v3835
      %v3902 = vunpack.c.l.b16 %v3838
      %v3903 = vunpack.c.l.b16 %v3839
      %v3904 = vunpack.c.h.b16 %v3838
      %v3905 = vunpack.c.h.b16 %v3839
      %v3906 = vunpack.c.l.b16 %v3840
      %v3907 = vunpack.c.l.b16 %v3841
      %v3908 = vunpack.c.h.b16 %v3840
      %v3909 = vunpack.c.h.b16 %v3841
      %v3910 = vunpack.c.l.b16 %v3842
      %v3911 = vunpack.c.l.b16 %v3843
      %v3912 = vunpack.c.h.b16 %v3842
      %v3913 = vunpack.c.h.b16 %v3843
      %v3914 = vunpack.c.l.b16 %v3844
      %v3915 = vunpack.c.l.b16 %v3845
      %v3916 = vunpack.c.h.b16 %v3844
      %v3917 = vunpack.c.h.b16 %v3845
      %v3918 = vunpack.c.l.b16 %v3846
      %v3919 = vunpack.c.l.b16 %v3847
      %v3920 = vunpack.c.h.b16 %v3846
      %v3921 = vunpack.c.h.b16 %v3847
      %v3922 = vunpack.c.l.b16 %v3848
      %v3923 = vunpack.c.l.b16 %v3849
      %v3924 = vunpack.c.h.b16 %v3848
      %v3925 = vunpack.c.h.b16 %v3849
      %v3926 = vunpack.c.l.b16 %v3850
      %v3927 = vunpack.c.l.b16 %v3851
      %v3928 = vunpack.c.h.b16 %v3850
      %v3929 = vunpack.c.h.b16 %v3851
      %v3930 = vunpack.c.l.b16 %v3852
      %v3931 = vunpack.c.l.b16 %v3853
      %v3932 = vunpack.c.h.b16 %v3852
      %v3933 = vunpack.c.h.b16 %v3853
      %v3934 = vunpack.c.l.b16 %v3854
      %v3935 = vunpack.c.l.b16 %v3855
      %v3936 = vunpack.c.h.b16 %v3854
      %v3937 = vunpack.c.h.b16 %v3855
      %v3938 = vunpack.c.l.b16 %v3856
      %v3939 = vunpack.c.l.b16 %v3857
      %v3940 = vunpack.c.h.b16 %v3856
      %v3941 = vunpack.c.h.b16 %v3857
      %v3942 = vunpack.c.l.b16 %v3858
      %v3943 = vunpack.c.l.b16 %v3859
      %v3944 = vunpack.c.h.b16 %v3858
      %v3945 = vunpack.c.h.b16 %v3859
      %v3946 = vunpack.c.l.b16 %v3860
      %v3947 = vunpack.c.l.b16 %v3861
      %v3948 = vunpack.c.h.b16 %v3860
      %v3949 = vunpack.c.h.b16 %v3861
      %v3950 = vunpack.c.l.b16 %v3862
      %v3951 = vunpack.c.l.b16 %v3863
      %v3952 = vunpack.c.h.b16 %v3862
      %v3953 = vunpack.c.h.b16 %v3863
      %v3954 = vunpack.c.l.b16 %v3864
      %v3955 = vunpack.c.l.b16 %v3865
      %v3956 = vunpack.c.h.b16 %v3864
      %v3957 = vunpack.c.h.b16 %v3865
      %v3958 = vunpack.c.l.b16 %v3866
      %v3959 = vunpack.c.l.b16 %v3867
      %v3960 = vunpack.c.h.b16 %v3866
      %v3961 = vunpack.c.h.b16 %v3867
      %v3962 = vunpack.c.l.b16 %v3868
      %v3963 = vunpack.c.l.b16 %v3869
      %v3964 = vunpack.c.h.b16 %v3868
      %v3965 = vunpack.c.h.b16 %v3869
      %v3966 = vpack.c.b16 %v3903, %v3902
      %v3967 = vpack.c.b16 %v3905, %v3904
      %v3968 = vpack.c.b16 %v3907, %v3906
      %v3969 = vpack.c.b16 %v3909, %v3908
      %v3970 = vpack.c.b16 %v3911, %v3910
      %v3971 = vpack.c.b16 %v3913, %v3912
      %v3972 = vpack.c.b16 %v3915, %v3914
      %v3973 = vpack.c.b16 %v3917, %v3916
      %v3974 = vpack.c.b16 %v3919, %v3918
      %v3975 = vpack.c.b16 %v3921, %v3920
      %v3976 = vpack.c.b16 %v3923, %v3922
      %v3977 = vpack.c.b16 %v3925, %v3924
      %v3978 = vpack.c.b16 %v3927, %v3926
      %v3979 = vpack.c.b16 %v3929, %v3928
      %v3980 = vpack.c.b16 %v3931, %v3930
      %v3981 = vpack.c.b16 %v3933, %v3932
      %v3982 = vpack.c.b16 %v3935, %v3934
      %v3983 = vpack.c.b16 %v3937, %v3936
      %v3984 = vpack.c.b16 %v3939, %v3938
      %v3985 = vpack.c.b16 %v3941, %v3940
      %v3986 = vpack.c.b16 %v3943, %v3942
      %v3987 = vpack.c.b16 %v3945, %v3944
      %v3988 = vpack.c.b16 %v3947, %v3946
      %v3989 = vpack.c.b16 %v3949, %v3948
      %v3990 = vpack.c.b16 %v3951, %v3950
      %v3991 = vpack.c.b16 %v3953, %v3952
      %v3992 = vpack.c.b16 %v3955, %v3954
      %v3993 = vpack.c.b16 %v3957, %v3956
      %v3994 = vpack.c.b16 %v3959, %v3958
      %v3995 = vpack.c.b16 %v3961, %v3960
      %v3996 = vpack.c.b16 %v3963, %v3962
      %v3997 = vpack.c.b16 %v3965, %v3964
      %4030 = vst [vmem:[%s265] sm:$0xff] %v3966
      %4031 = vst [vmem:[%s265 + $0x8] sm:$0xff] %v3967
      %4032 = vst [vmem:[%s265 + $0x10] sm:$0xff] %v3968
      %4033 = vst [vmem:[%s265 + $0x18] sm:$0xff] %v3969
      %4034 = vst [vmem:[%s265 + $0x20] sm:$0xff] %v3970
      %4035 = vst [vmem:[%s265 + $0x28] sm:$0xff] %v3971
      %4036 = vst [vmem:[%s265 + $0x30] sm:$0xff] %v3972
      %4037 = vst [vmem:[%s265 + $0x38] sm:$0xff] %v3973
      %4038 = vst [vmem:[%s265 + $0x40] sm:$0xff] %v3974
      %4039 = vst [vmem:[%s265 + $0x48] sm:$0xff] %v3975
      %4040 = vst [vmem:[%s265 + $0x50] sm:$0xff] %v3976
      %4041 = vst [vmem:[%s265 + $0x58] sm:$0xff] %v3977
      %4042 = vst [vmem:[%s265 + $0x60] sm:$0xff] %v3978
      %4043 = vst [vmem:[%s265 + $0x68] sm:$0xff] %v3979
      %4044 = vst [vmem:[%s265 + $0x70] sm:$0xff] %v3980
      %4045 = vst [vmem:[%s265 + $0x78] sm:$0xff] %v3981
      %4046 = vst [vmem:[%s265 + $0x80] sm:$0xff] %v3982
      %4047 = vst [vmem:[%s265 + $0x88] sm:$0xff] %v3983
      %4048 = vst [vmem:[%s265 + $0x90] sm:$0xff] %v3984
      %4049 = vst [vmem:[%s265 + $0x98] sm:$0xff] %v3985
      %4050 = vst [vmem:[%s265 + $0xa0] sm:$0xff] %v3986
      %4051 = vst [vmem:[%s265 + $0xa8] sm:$0xff] %v3987
      %4052 = vst [vmem:[%s265 + $0xb0] sm:$0xff] %v3988
      %4053 = vst [vmem:[%s265 + $0xb8] sm:$0xff] %v3989
      %4054 = vst [vmem:[%s265 + $0xc0] sm:$0xff] %v3990
      %4055 = vst [vmem:[%s265 + $0xc8] sm:$0xff] %v3991
      %4056 = vst [vmem:[%s265 + $0xd0] sm:$0xff] %v3992
      %4057 = vst [vmem:[%s265 + $0xd8] sm:$0xff] %v3993
      %4058 = vst [vmem:[%s265 + $0xe0] sm:$0xff] %v3994
      %4059 = vst [vmem:[%s265 + $0xe8] sm:$0xff] %v3995
      %4060 = vst [vmem:[%s265 + $0xf0] sm:$0xff] %v3996
      %4061 = vst [vmem:[%s265 + $0xf8] sm:$0xff] %v3997
      %s4062 = smul.u32 2, %s20
      %p4063 = scmp.lt.s32.totalorder %s19, 1
      %s4064 = scalar_select %p4063, %s19, 1
      %p4065 = scmp.lt.s32.totalorder %s4062, 1
      %s4066 = scalar_select %p4065, %s4062, 1
      %s4067 = smul.addr %s4064, 64
      %s4068 = sadd.s32 %s4066, %s4067
      %s4069 = smul.addr %s4068, 4
      %s4070 = scalar_lea.vmem %s3, %s4069
      // Predicated region
      $region33: #{_lambda_.4} parent=31 // pred_check
        %p4071 = pneg %p135
      $region34: #{_lambda_.4} parent=31 // pred_check_branch
        %4073 = sbr.rel (%p4071) target = $region36
      $region35: #{_lambda_.4} parent=31 // pred_region
        %s4074 = smul.u32 2, %s20
      $region36: #{_lambda_.4} parent=31 // pred_fallthru
        _
    $region32: #{_lambda_.4} parent=5 // pred_fallthru
      _
    %p4075 = scmp.le.s32.totalorder 2, %s9
    // Predicated region
    $region37: #{_lambda_.4} parent=5 // pred_check
      %p4076 = pneg %p4075
    $region38: #{_lambda_.4} parent=5 // pred_check_branch
      %4078 = sbr.rel (%p4076) target = $region40
    $region39: #{_lambda_.4} parent=5 // pred_region
      %s4079 = ssub.s32 %s9, 2
      // Predicated region
      $region41: #{_lambda_.4} parent=39 // pred_check
        %p4080 = pneg %p141
      $region42: #{_lambda_.4} parent=39 // pred_check_branch
        %4082 = sbr.rel (%p4080) target = $region44
      $region43: #{_lambda_.4} parent=39 // pred_region
        %s4083 = smul.u32 2, %s23
        %p4084 = scmp.lt.s32.totalorder %s22, 1
        %s4085 = scalar_select %p4084, %s22, 1
        %p4086 = scmp.lt.s32.totalorder %s4083, 1
        %s4087 = scalar_select %p4086, %s4083, 1
        %s4088 = smul.addr %s4085, 64
        %s4089 = sadd.s32 %s4087, %s4088
        %s4090 = smul.addr %s4089, 4
        %s4091 = scalar_lea.vmem %s3, %s4090
      $region44: #{_lambda_.4} parent=39 // pred_fallthru
        _
    $region40: #{_lambda_.4} parent=5 // pred_fallthru
      _
  $region6: #{_lambda_.4} parent=0 // loop_footer
    %s13 = sadd.s32 1, %s9
  $region7: #{_lambda_.4} parent=0 // loop_footer_branch
    %8 = sbr.rel target = $region3
  $region8: #{_lambda_.4} parent=0 // loop_exit
    _

</llo_original>
